<compile_context>
chip_gen: v7x
topology: tpu7x:2x2x1
jax: 0.10.0
libtpu: 0.0.40
codegen_flags: <defaults>
</compile_context>

<pallas_src>
import functools

import jax
import jax.numpy as jnp
from jax.experimental import pallas as pl
from jax.experimental.pallas import tpu as pltpu

LANE = 128      # TPU lane width (last dim)
SUBLANE = 8     # f32 sublane tile (second-to-last dim)


def _round_up(x, m):
    return (x + m - 1) // m * m


# ------------------------------ fused kernel -------------------------------

def _fused_kernel(patches_ref, conv_w_ref, conv_b_ref,
                  fcb_w_ref, fcb_b_ref,
                  fc2_w_ref, fc2_b_ref,
                  wf_ref, wp_ref, reg_b_ref,
                  mean_ref, o_ref, *, batch_pad, hw):
    """Entire H3DWEncoder forward in one VMEM-resident kernel.

    patches_ref: (batch_pad*hw, CKK_pad)  f32  im2col patches (zero padded)
    conv_w_ref:  (CKK_pad, CSTEM_pad)     f32  conv stem weight
    conv_b_ref:  (1, CSTEM_pad)           f32
    fcb_w_ref:   (CSTEM_pad, FEAT)        bf16 backbone FC weight
    fcb_b_ref:   (1, FEAT)                f32
    fc2_w_ref:   (FEAT, FEAT)             bf16 feat_encoder weight
    fc2_b_ref:   (1, FEAT)                f32
    wf_ref:      (FEAT, P_pad)            f32  regressor weight, feat rows
    wp_ref:      (P_pad, P_pad)           f32  regressor weight, pred rows
    reg_b_ref:   (1, P_pad)               f32
    mean_ref:    (batch_pad, P_pad)       f32  mean params (initial pred)
    o_ref:       (batch_pad, P_pad)       f32  refined params
    """
    inv_hw = 1.0 / float(hw)

    # --- stand-in backbone conv stem (im2col matmul) + ReLU -----------------
    y = jnp.dot(patches_ref[...], conv_w_ref[...],
                preferred_element_type=jnp.float32)
    y = jnp.maximum(y + conv_b_ref[...], 0.0)        # (batch_pad*hw, CSTEM_pad)

    # --- global average pool: f32 sum over spatial, no pool-matrix matmul ---
    cstem = y.shape[1]
    stem = jnp.sum(y.reshape(batch_pad, hw, cstem), axis=1) * inv_hw

    # --- backbone FC -> 1024-d main_feat (bf16 weights, f32 accumulation) ---
    main_feat = (jnp.dot(stem.astype(jnp.bfloat16), fcb_w_ref[...],
                         preferred_element_type=jnp.float32)
                 + fcb_b_ref[...])

    # --- feat_encoder: ReLU -> Linear(1024, 1024) -> ReLU -------------------
    h = jnp.maximum(main_feat, 0.0)
    feat = (jnp.dot(h.astype(jnp.bfloat16), fc2_w_ref[...],
                    preferred_element_type=jnp.float32)
            + fc2_b_ref[...])
    feat = jnp.maximum(feat, 0.0)

    # --- 3-step iterative regressor -----------------------------------------
    # cat([feat, pred], 1) @ Wr + br  ==  feat @ Wf + pred @ Wp + br
    # The feat term is constant across iterations, so it is hoisted.
    base = (jnp.dot(feat, wf_ref[...], preferred_element_type=jnp.float32)
            + reg_b_ref[...])
    pred = mean_ref[...]
    for _ in range(3):
        out = base + jnp.dot(pred, wp_ref[...],
                             preferred_element_type=jnp.float32)
        pred = pred + out

    o_ref[...] = pred


def h3dw_fused_call(patches, pp, *, batch_pad, hw, p_pad):
    rows, ckk_pad = patches.shape
    cstem_pad = pp['conv_w'].shape[1]
    feat_dim = pp['fc2_w'].shape[0]

    def full(shape):
        return pl.BlockSpec(shape, lambda i: (0,) * len(shape))

    kern = functools.partial(_fused_kernel, batch_pad=batch_pad, hw=hw)
    return pl.pallas_call(
        kern,
        out_shape=jax.ShapeDtypeStruct((batch_pad, p_pad), jnp.float32),
        grid=(1,),
        in_specs=[
            full((rows, ckk_pad)),         # patches
            full((ckk_pad, cstem_pad)),    # conv_w
            full((1, cstem_pad)),          # conv_b
            full((cstem_pad, feat_dim)),   # fc_back_w (bf16)
            full((1, feat_dim)),           # fc_back_b
            full((feat_dim, feat_dim)),    # fc2_w (bf16)
            full((1, feat_dim)),           # fc2_b
            full((feat_dim, p_pad)),       # reg_wf
            full((p_pad, p_pad)),          # reg_wp
            full((1, p_pad)),              # reg_b
            full((batch_pad, p_pad)),      # mean_params
        ],
        out_specs=full((batch_pad, p_pad)),
        compiler_params=pltpu.CompilerParams(
            dimension_semantics=("arbitrary",),
            vmem_limit_bytes=32 * 1024 * 1024,   # explicit budget, safe on v7x
        ),
    )(patches, pp['conv_w'], pp['conv_b'],
      pp['fc_back_w'], pp['fc_back_b'],
      pp['fc2_w'], pp['fc2_b'],
      pp['reg_wf'], pp['reg_wp'], pp['reg_b'],
      pp['mean_params'])


# ------------------------------- host glue ---------------------------------

def im2col_3x3(x_nhwc):
    """3x3, stride 1, pad 1 patches.  Returns (B*H*W, C*9)."""
    B, H, W, C = x_nhwc.shape
    xp = jnp.pad(x_nhwc, ((0, 0), (1, 1), (1, 1), (0, 0)))
    patches = jnp.stack(
        [xp[:, i:i + H, j:j + W, :] for i in range(3) for j in range(3)],
        axis=-1)                               # (B, H, W, C, 9)
    return patches.reshape(B * H * W, C * 9)


def prepare_params(p, *, batch, p_dim):
    """One-time padding / dtype prep of weights (hoisted out of the forward)."""
    ckk, cstem = p['conv_w'].shape
    feat = p['fc2_w'].shape[0]
    ckk_pad = _round_up(ckk, LANE)
    cstem_pad = _round_up(cstem, LANE)
    p_pad = _round_up(p_dim, LANE)
    batch_pad = _round_up(batch, SUBLANE)

    def pad2(a, r, c):
        return jnp.pad(a, ((0, r - a.shape[0]), (0, c - a.shape[1])))

    wf = p['reg_w'][:feat, :]      # feat rows of the regressor weight
    wp = p['reg_w'][feat:, :]      # pred rows of the regressor weight

    pp = {
        'conv_w':      pad2(p['conv_w'], ckk_pad, cstem_pad),
        'conv_b':      pad2(p['conv_b'], 1, cstem_pad),
        'fc_back_w':   pad2(p['fc_back_w'], cstem_pad, feat).astype(jnp.bfloat16),
        'fc_back_b':   p['fc_back_b'],
        'fc2_w':       p['fc2_w'].astype(jnp.bfloat16),
        'fc2_b':       p['fc2_b'],
        'reg_wf':      pad2(wf, feat, p_pad),
        'reg_wp':      pad2(wp, p_pad, p_pad),
        'reg_b':       pad2(p['reg_b'], 1, p_pad),
        'mean_params': pad2(p['mean_params'], batch_pad, p_pad),
    }
    dims = dict(batch_pad=batch_pad, p_pad=p_pad, ckk_pad=ckk_pad)
    return pp, dims


@functools.partial(jax.jit, static_argnames=('p_dim', 'batch_pad', 'p_pad',
                                             'ckk_pad'))
def h3dw_forward(x_nchw, pp, *, p_dim, batch_pad, p_pad, ckk_pad):
    """Pallas implementation of H3DWEncoder.forward."""
    B, Cin, H, W = x_nchw.shape
    hw = H * W
    x_nhwc = jnp.transpose(x_nchw, (0, 2, 3, 1))
    patches = im2col_3x3(x_nhwc)                                  # (B*hw, Cin*9)
    # lane/sublane padding done once, fused with im2col by XLA
    patches = jnp.pad(
        patches, ((0, (batch_pad - B) * hw), (0, ckk_pad - patches.shape[1])))
    pred_pad = h3dw_fused_call(patches, pp, batch_pad=batch_pad, hw=hw,
                               p_pad=p_pad)
    return pred_pad[:B, :p_dim]


def reference_forward(x_nchw, p):
    """Pure-JAX f32 reference matching PyTorch semantics (concat form)."""
    B, Cin, H, W = x_nchw.shape
    x_nhwc = jnp.transpose(x_nchw, (0, 2, 3, 1))
    patches = im2col_3x3(x_nhwc)
    y = jnp.maximum(patches @ p['conv_w'] + p['conv_b'], 0.0)
    cstem = p['conv_w'].shape[1]
    stem = y.reshape(B, H * W, cstem).mean(axis=1)
    main_feat = stem @ p['fc_back_w'] + p['fc_back_b']
    feat = jnp.maximum(
        jnp.maximum(main_feat, 0.0) @ p['fc2_w'] + p['fc2_b'], 0.0)
    pred = p['mean_params']
    for _ in range(3):
        inp = jnp.concatenate([feat, pred], axis=1)
        out = inp @ p['reg_w'] + p['reg_b']
        pred = pred + out
    return pred


# ---------------------------------- main ------------------------------------

if __name__ == "__main__":
    B, Cin, H, W = 2, 4, 16, 16      # main_input: NCHW
    CSTEM = 8                        # stand-in backbone stem channels
    FEAT = 1024                      # backbone / feat_encoder feature dim
    P = 24                           # opt.total_params_dim

    key = jax.random.PRNGKey(0)
    ks = jax.random.split(key, 10)
    x = jax.random.normal(ks[0], (B, Cin, H, W), jnp.float32)

    params = {
        'conv_w':    jax.random.normal(ks[1], (Cin * 9, CSTEM), jnp.float32) * 0.1,
        'conv_b':    jax.random.normal(ks[2], (1, CSTEM), jnp.float32) * 0.1,
        'fc_back_w': jax.random.normal(ks[3], (CSTEM, FEAT), jnp.float32) * 0.1,
        'fc_back_b': jax.random.normal(ks[4], (1, FEAT), jnp.float32) * 0.1,
        'fc2_w':     jax.random.normal(ks[5], (FEAT, FEAT), jnp.float32) * 0.05,
        'fc2_b':     jax.random.normal(ks[6], (1, FEAT), jnp.float32) * 0.05,
        'reg_w':     jax.random.normal(ks[7], (FEAT + P, P), jnp.float32) * 0.05,
        'reg_b':     jax.random.normal(ks[8], (1, P), jnp.float32) * 0.05,
        # torch.cat requires matching batch dim -> mean_params is (B, P)
        'mean_params': jax.random.normal(ks[9], (B, P), jnp.float32) * 0.1,
    }
    # The kernel stores the two large backbone weights in bf16; snap the f32
    # reference copies to the same (bf16-representable) values so kernel and
    # reference share identical weights — the only remaining difference is
    # in-kernel bf16 activation rounding at the two big matmuls.
    params['fc_back_w'] = params['fc_back_w'].astype(jnp.bfloat16).astype(jnp.float32)
    params['fc2_w'] = params['fc2_w'].astype(jnp.bfloat16).astype(jnp.float32)

    pp, dims = prepare_params(params, batch=B, p_dim=P)

    pred = h3dw_forward(x, pp, p_dim=P, batch_pad=dims['batch_pad'],
                        p_pad=dims['p_pad'], ckk_pad=dims['ckk_pad'])
    pred = jax.block_until_ready(pred)

    ref = reference_forward(x, params)
    assert pred.shape == (B, P)
    err = float(jnp.max(jnp.abs(pred - ref)))
    assert jnp.allclose(pred, ref, rtol=1e-2, atol=5e-3), f"max abs err {err}"

    print("KERNEL_OK")
</pallas_src>

<mosaic_0001>
module attributes {stable_mosaic.version = 11 : i64} {
  func.func @_fused_kernel(%arg0: i32, %arg1: memref<2048x128xf32, #tpu.memory_space<vmem>>, %arg2: memref<128x128xf32, #tpu.memory_space<vmem>>, %arg3: memref<1x128xf32, #tpu.memory_space<vmem>>, %arg4: memref<128x1024xbf16, #tpu.memory_space<vmem>>, %arg5: memref<1x1024xf32, #tpu.memory_space<vmem>>, %arg6: memref<1024x1024xbf16, #tpu.memory_space<vmem>>, %arg7: memref<1x1024xf32, #tpu.memory_space<vmem>>, %arg8: memref<1024x128xf32, #tpu.memory_space<vmem>>, %arg9: memref<128x128xf32, #tpu.memory_space<vmem>>, %arg10: memref<1x128xf32, #tpu.memory_space<vmem>>, %arg11: memref<8x128xf32, #tpu.memory_space<vmem>>, %arg12: memref<8x128xf32, #tpu.memory_space<vmem>>) attributes {dimension_semantics = [#tpu.dimension_semantics<arbitrary>], iteration_bounds = array<i64: 1>, scalar_prefetch = 0 : i64, scratch_operands = 0 : i64, tpu.core_type = #tpu.core_type<tc>, window_params = [{pipeline_mode = #tpu.pipeline_mode<synchronous>, transform_indices = @transform_0, window_bounds = array<i64: 2048, 128>}, {pipeline_mode = #tpu.pipeline_mode<synchronous>, transform_indices = @transform_1, window_bounds = array<i64: 128, 128>}, {pipeline_mode = #tpu.pipeline_mode<synchronous>, transform_indices = @transform_2, window_bounds = array<i64: 1, 128>}, {pipeline_mode = #tpu.pipeline_mode<synchronous>, transform_indices = @transform_3, window_bounds = array<i64: 128, 1024>}, {pipeline_mode = #tpu.pipeline_mode<synchronous>, transform_indices = @transform_4, window_bounds = array<i64: 1, 1024>}, {pipeline_mode = #tpu.pipeline_mode<synchronous>, transform_indices = @transform_5, window_bounds = array<i64: 1024, 1024>}, {pipeline_mode = #tpu.pipeline_mode<synchronous>, transform_indices = @transform_6, window_bounds = array<i64: 1, 1024>}, {pipeline_mode = #tpu.pipeline_mode<synchronous>, transform_indices = @transform_7, window_bounds = array<i64: 1024, 128>}, {pipeline_mode = #tpu.pipeline_mode<synchronous>, transform_indices = @transform_8, window_bounds = array<i64: 128, 128>}, {pipeline_mode = #tpu.pipeline_mode<synchronous>, transform_indices = @transform_9, window_bounds = array<i64: 1, 128>}, {pipeline_mode = #tpu.pipeline_mode<synchronous>, transform_indices = @transform_10, window_bounds = array<i64: 8, 128>}, {pipeline_mode = #tpu.pipeline_mode<synchronous>, transform_indices = @transform_11, window_bounds = array<i64: 8, 128>}]} {
    %c0 = arith.constant 0 : index
    %c0_0 = arith.constant 0 : index
    %0 = vector.load %arg1[%c0, %c0_0] : memref<2048x128xf32, #tpu.memory_space<vmem>>, vector<2048x128xf32>
    %c0_1 = arith.constant 0 : index
    %c0_2 = arith.constant 0 : index
    %1 = vector.load %arg2[%c0_1, %c0_2] : memref<128x128xf32, #tpu.memory_space<vmem>>, vector<128x128xf32>
    %cst = arith.constant dense<0.000000e+00> : vector<2048x128xf32>
    %2 = tpu.matmul %0, %1, %cst {dimension_numbers = #tpu.dot_dimension_numbers<[1], [0], [0], [1], [0, 0, 1, 1], [], []>} : vector<2048x128xf32>, vector<128x128xf32>, vector<2048x128xf32> -> vector<2048x128xf32>
    %c0_3 = arith.constant 0 : index
    %c0_4 = arith.constant 0 : index
    %3 = vector.load %arg3[%c0_3, %c0_4] : memref<1x128xf32, #tpu.memory_space<vmem>>, vector<1x128xf32>
    %4 = vector.broadcast %3 : vector<1x128xf32> to vector<2048x128xf32>
    %5 = arith.addf %2, %4 : vector<2048x128xf32>
    %cst_5 = arith.constant 0.000000e+00 : f32
    %6 = vector.broadcast %cst_5 : f32 to vector<2048x128xf32>
    %7 = arith.maximumf %5, %6 : vector<2048x128xf32>
    %8 = vector.shape_cast %7 : vector<2048x128xf32> to vector<8x256x128xf32>
    %cst_6 = arith.constant dense<0.000000e+00> : vector<8x128xf32>
    %9 = vector.multi_reduction <add>, %8, %cst_6 [1] : vector<8x256x128xf32> to vector<8x128xf32>
    %cst_7 = arith.constant 3.906250e-03 : f32
    %10 = vector.broadcast %cst_7 : f32 to vector<8x128xf32>
    %11 = arith.mulf %9, %10 : vector<8x128xf32>
    %12 = arith.truncf %11 : vector<8x128xf32> to vector<8x128xbf16>
    %c0_8 = arith.constant 0 : index
    %c0_9 = arith.constant 0 : index
    %13 = vector.load %arg4[%c0_8, %c0_9] : memref<128x1024xbf16, #tpu.memory_space<vmem>>, vector<128x1024xbf16>
    %cst_10 = arith.constant dense<0.000000e+00> : vector<8x1024xf32>
    %14 = tpu.matmul %12, %13, %cst_10 {dimension_numbers = #tpu.dot_dimension_numbers<[1], [0], [0], [1], [0, 0, 1, 1], [], []>} : vector<8x128xbf16>, vector<128x1024xbf16>, vector<8x1024xf32> -> vector<8x1024xf32>
    %c0_11 = arith.constant 0 : index
    %c0_12 = arith.constant 0 : index
    %15 = vector.load %arg5[%c0_11, %c0_12] : memref<1x1024xf32, #tpu.memory_space<vmem>>, vector<1x1024xf32>
    %16 = vector.broadcast %15 : vector<1x1024xf32> to vector<8x1024xf32>
    %17 = arith.addf %14, %16 : vector<8x1024xf32>
    %cst_13 = arith.constant 0.000000e+00 : f32
    %18 = vector.broadcast %cst_13 : f32 to vector<8x1024xf32>
    %19 = arith.maximumf %17, %18 : vector<8x1024xf32>
    %20 = arith.truncf %19 : vector<8x1024xf32> to vector<8x1024xbf16>
    %c0_14 = arith.constant 0 : index
    %c0_15 = arith.constant 0 : index
    %21 = vector.load %arg6[%c0_14, %c0_15] : memref<1024x1024xbf16, #tpu.memory_space<vmem>>, vector<1024x1024xbf16>
    %cst_16 = arith.constant dense<0.000000e+00> : vector<8x1024xf32>
    %22 = tpu.matmul %20, %21, %cst_16 {dimension_numbers = #tpu.dot_dimension_numbers<[1], [0], [0], [1], [0, 0, 1, 1], [], []>} : vector<8x1024xbf16>, vector<1024x1024xbf16>, vector<8x1024xf32> -> vector<8x1024xf32>
    %c0_17 = arith.constant 0 : index
    %c0_18 = arith.constant 0 : index
    %23 = vector.load %arg7[%c0_17, %c0_18] : memref<1x1024xf32, #tpu.memory_space<vmem>>, vector<1x1024xf32>
    %24 = vector.broadcast %23 : vector<1x1024xf32> to vector<8x1024xf32>
    %25 = arith.addf %22, %24 : vector<8x1024xf32>
    %cst_19 = arith.constant 0.000000e+00 : f32
    %26 = vector.broadcast %cst_19 : f32 to vector<8x1024xf32>
    %27 = arith.maximumf %25, %26 : vector<8x1024xf32>
    %c0_20 = arith.constant 0 : index
    %c0_21 = arith.constant 0 : index
    %28 = vector.load %arg8[%c0_20, %c0_21] : memref<1024x128xf32, #tpu.memory_space<vmem>>, vector<1024x128xf32>
    %cst_22 = arith.constant dense<0.000000e+00> : vector<8x128xf32>
    %29 = tpu.matmul %27, %28, %cst_22 {dimension_numbers = #tpu.dot_dimension_numbers<[1], [0], [0], [1], [0, 0, 1, 1], [], []>} : vector<8x1024xf32>, vector<1024x128xf32>, vector<8x128xf32> -> vector<8x128xf32>
    %c0_23 = arith.constant 0 : index
    %c0_24 = arith.constant 0 : index
    %30 = vector.load %arg10[%c0_23, %c0_24] : memref<1x128xf32, #tpu.memory_space<vmem>>, vector<1x128xf32>
    %31 = vector.broadcast %30 : vector<1x128xf32> to vector<8x128xf32>
    %32 = arith.addf %29, %31 : vector<8x128xf32>
    %c0_25 = arith.constant 0 : index
    %c0_26 = arith.constant 0 : index
    %33 = vector.load %arg11[%c0_25, %c0_26] : memref<8x128xf32, #tpu.memory_space<vmem>>, vector<8x128xf32>
    %c0_27 = arith.constant 0 : index
    %c0_28 = arith.constant 0 : index
    %34 = vector.load %arg9[%c0_27, %c0_28] : memref<128x128xf32, #tpu.memory_space<vmem>>, vector<128x128xf32>
    %cst_29 = arith.constant dense<0.000000e+00> : vector<8x128xf32>
    %35 = tpu.matmul %33, %34, %cst_29 {dimension_numbers = #tpu.dot_dimension_numbers<[1], [0], [0], [1], [0, 0, 1, 1], [], []>} : vector<8x128xf32>, vector<128x128xf32>, vector<8x128xf32> -> vector<8x128xf32>
    %36 = arith.addf %32, %35 : vector<8x128xf32>
    %37 = arith.addf %33, %36 : vector<8x128xf32>
    %c0_30 = arith.constant 0 : index
    %c0_31 = arith.constant 0 : index
    %38 = vector.load %arg9[%c0_30, %c0_31] : memref<128x128xf32, #tpu.memory_space<vmem>>, vector<128x128xf32>
    %cst_32 = arith.constant dense<0.000000e+00> : vector<8x128xf32>
    %39 = tpu.matmul %37, %38, %cst_32 {dimension_numbers = #tpu.dot_dimension_numbers<[1], [0], [0], [1], [0, 0, 1, 1], [], []>} : vector<8x128xf32>, vector<128x128xf32>, vector<8x128xf32> -> vector<8x128xf32>
    %40 = arith.addf %32, %39 : vector<8x128xf32>
    %41 = arith.addf %37, %40 : vector<8x128xf32>
    %c0_33 = arith.constant 0 : index
    %c0_34 = arith.constant 0 : index
    %42 = vector.load %arg9[%c0_33, %c0_34] : memref<128x128xf32, #tpu.memory_space<vmem>>, vector<128x128xf32>
    %cst_35 = arith.constant dense<0.000000e+00> : vector<8x128xf32>
    %43 = tpu.matmul %41, %42, %cst_35 {dimension_numbers = #tpu.dot_dimension_numbers<[1], [0], [0], [1], [0, 0, 1, 1], [], []>} : vector<8x128xf32>, vector<128x128xf32>, vector<8x128xf32> -> vector<8x128xf32>
    %44 = arith.addf %32, %43 : vector<8x128xf32>
    %45 = arith.addf %41, %44 : vector<8x128xf32>
    %c0_36 = arith.constant 0 : index
    %c0_37 = arith.constant 0 : index
    %46 = vector.load %arg12[%c0_36, %c0_37] : memref<8x128xf32, #tpu.memory_space<vmem>>, vector<8x128xf32>
    tpu.vector_store %arg12[%c0_36, %c0_37], %45 {strides = array<i32>} : memref<8x128xf32, #tpu.memory_space<vmem>>, vector<8x128xf32>,
    return
  }
  func.func @transform_0(%arg0: i32) -> (i32, i32) {
    %c0_i32 = arith.constant 0 : i32
    %c0_i32_0 = arith.constant 0 : i32
    %c0_i32_1 = arith.constant 0 : i32
    return %c0_i32, %c0_i32_0 : i32, i32
  }
  func.func @transform_1(%arg0: i32) -> (i32, i32) {
    %c0_i32 = arith.constant 0 : i32
    %c0_i32_0 = arith.constant 0 : i32
    %c0_i32_1 = arith.constant 0 : i32
    return %c0_i32, %c0_i32_0 : i32, i32
  }
  func.func @transform_2(%arg0: i32) -> (i32, i32) {
    %c0_i32 = arith.constant 0 : i32
    %c0_i32_0 = arith.constant 0 : i32
    %c0_i32_1 = arith.constant 0 : i32
    return %c0_i32, %c0_i32_0 : i32, i32
  }
  func.func @transform_3(%arg0: i32) -> (i32, i32) {
    %c0_i32 = arith.constant 0 : i32
    %c0_i32_0 = arith.constant 0 : i32
    %c0_i32_1 = arith.constant 0 : i32
    return %c0_i32, %c0_i32_0 : i32, i32
  }
  func.func @transform_4(%arg0: i32) -> (i32, i32) {
    %c0_i32 = arith.constant 0 : i32
    %c0_i32_0 = arith.constant 0 : i32
    %c0_i32_1 = arith.constant 0 : i32
    return %c0_i32, %c0_i32_0 : i32, i32
  }
  func.func @transform_5(%arg0: i32) -> (i32, i32) {
    %c0_i32 = arith.constant 0 : i32
    %c0_i32_0 = arith.constant 0 : i32
    %c0_i32_1 = arith.constant 0 : i32
    return %c0_i32, %c0_i32_0 : i32, i32
  }
  func.func @transform_6(%arg0: i32) -> (i32, i32) {
    %c0_i32 = arith.constant 0 : i32
    %c0_i32_0 = arith.constant 0 : i32
    %c0_i32_1 = arith.constant 0 : i32
    return %c0_i32, %c0_i32_0 : i32, i32
  }
  func.func @transform_7(%arg0: i32) -> (i32, i32) {
    %c0_i32 = arith.constant 0 : i32
    %c0_i32_0 = arith.constant 0 : i32
    %c0_i32_1 = arith.constant 0 : i32
    return %c0_i32, %c0_i32_0 : i32, i32
  }
  func.func @transform_8(%arg0: i32) -> (i32, i32) {
    %c0_i32 = arith.constant 0 : i32
    %c0_i32_0 = arith.constant 0 : i32
    %c0_i32_1 = arith.constant 0 : i32
    return %c0_i32, %c0_i32_0 : i32, i32
  }
  func.func @transform_9(%arg0: i32) -> (i32, i32) {
    %c0_i32 = arith.constant 0 : i32
    %c0_i32_0 = arith.constant 0 : i32
    %c0_i32_1 = arith.constant 0 : i32
    return %c0_i32, %c0_i32_0 : i32, i32
  }
  func.func @transform_10(%arg0: i32) -> (i32, i32) {
    %c0_i32 = arith.constant 0 : i32
    %c0_i32_0 = arith.constant 0 : i32
    %c0_i32_1 = arith.constant 0 : i32
    return %c0_i32, %c0_i32_0 : i32, i32
  }
  func.func @transform_11(%arg0: i32) -> (i32, i32) {
    %c0_i32 = arith.constant 0 : i32
    %c0_i32_0 = arith.constant 0 : i32
    %c0_i32_1 = arith.constant 0 : i32
    return %c0_i32, %c0_i32_0 : i32, i32
  }
}

</mosaic_0001>

<llo_original>
// kernel: h3dw_forward.1
$region0: #{h3dw_forward.1}
  #allocation0 [shape = 'u32[]', space=smem, size = 0x4, offset = 0x4, fixed_abs, tag = 'smem constant byte address 0x4 - core index']
  #allocation1 [shape = 'u32[144,128]{1,0:T(1,128)}', space=vmem, size = 0x12000, scoped, tag = 'internal scratch']
  %s0 = inlined_call_operand.vmem [shape: f32[2048,128], index: 0, kind: input, shape index: {}]
  %s1 = inlined_call_operand.vmem [shape: f32[128,128], index: 1, kind: input, shape index: {}]
  %s2 = inlined_call_operand.vmem [shape: f32[1,128], index: 2, kind: input, shape index: {}]
  %s3 = inlined_call_operand.vmem [shape: bf16[128,1024], index: 3, kind: input, shape index: {}]
  %s4 = inlined_call_operand.vmem [shape: f32[1,1024], index: 4, kind: input, shape index: {}]
  %s5 = inlined_call_operand.vmem [shape: bf16[1024,1024], index: 5, kind: input, shape index: {}]
  %s6 = inlined_call_operand.vmem [shape: f32[1,1024], index: 6, kind: input, shape index: {}]
  %s7 = inlined_call_operand.vmem [shape: f32[1024,128], index: 7, kind: input, shape index: {}]
  %s8 = inlined_call_operand.vmem [shape: f32[128,128], index: 8, kind: input, shape index: {}]
  %s9 = inlined_call_operand.vmem [shape: f32[1,128], index: 9, kind: input, shape index: {}]
  %s10 = inlined_call_operand.vmem [shape: f32[8,128], index: 10, kind: input, shape index: {}]
  %s11 = inlined_call_operand.vmem [shape: f32[8,128], index: 11, kind: output, shape index: {}]
  %s12 = sld [smem:[#allocation0]]
  $region54: #{h3dw_forward.1} parent=0
    _
  %s14 = ssub.s32 1, %s12
  %s15 = scalar_select 0, %s14, %s12
  // Predicated region
  $region2: #{h3dw_forward.1} parent=0 // pred_check
    _
  $region3: #{h3dw_forward.1} parent=0 // pred_check_branch
    %17 = sbr.rel (0) target = $region5
  $region4: #{h3dw_forward.1} parent=0 // pred_region
    _
  $region5: #{h3dw_forward.1} parent=0 // pred_fallthru
    _
  // Predicated region
  $region6: #{h3dw_forward.1} parent=0 // pred_check
    _
  $region7: #{h3dw_forward.1} parent=0 // pred_check_branch
    %19 = sbr.rel (0) target = $region9
  $region8: #{h3dw_forward.1} parent=0 // pred_region
    _
  $region9: #{h3dw_forward.1} parent=0 // pred_fallthru
    _
  // Predicated region
  $region10: #{h3dw_forward.1} parent=0 // pred_check
    _
  $region11: #{h3dw_forward.1} parent=0 // pred_check_branch
    %21 = sbr.rel (0) target = $region13
  $region12: #{h3dw_forward.1} parent=0 // pred_region
    _
  $region13: #{h3dw_forward.1} parent=0 // pred_fallthru
    _
  // Predicated region
  $region14: #{h3dw_forward.1} parent=0 // pred_check
    _
  $region15: #{h3dw_forward.1} parent=0 // pred_check_branch
    %23 = sbr.rel (0) target = $region17
  $region16: #{h3dw_forward.1} parent=0 // pred_region
    _
  $region17: #{h3dw_forward.1} parent=0 // pred_fallthru
    _
  // Predicated region
  $region18: #{h3dw_forward.1} parent=0 // pred_check
    _
  $region19: #{h3dw_forward.1} parent=0 // pred_check_branch
    %25 = sbr.rel (0) target = $region21
  $region20: #{h3dw_forward.1} parent=0 // pred_region
    _
  $region21: #{h3dw_forward.1} parent=0 // pred_fallthru
    _
  // Predicated region
  $region22: #{h3dw_forward.1} parent=0 // pred_check
    _
  $region23: #{h3dw_forward.1} parent=0 // pred_check_branch
    %27 = sbr.rel (0) target = $region25
  $region24: #{h3dw_forward.1} parent=0 // pred_region
    _
  $region25: #{h3dw_forward.1} parent=0 // pred_fallthru
    _
  // Predicated region
  $region26: #{h3dw_forward.1} parent=0 // pred_check
    _
  $region27: #{h3dw_forward.1} parent=0 // pred_check_branch
    %29 = sbr.rel (0) target = $region29
  $region28: #{h3dw_forward.1} parent=0 // pred_region
    _
  $region29: #{h3dw_forward.1} parent=0 // pred_fallthru
    _
  // Predicated region
  $region30: #{h3dw_forward.1} parent=0 // pred_check
    _
  $region31: #{h3dw_forward.1} parent=0 // pred_check_branch
    %31 = sbr.rel (0) target = $region33
  $region32: #{h3dw_forward.1} parent=0 // pred_region
    _
  $region33: #{h3dw_forward.1} parent=0 // pred_fallthru
    _
  // Predicated region
  $region34: #{h3dw_forward.1} parent=0 // pred_check
    _
  $region35: #{h3dw_forward.1} parent=0 // pred_check_branch
    %33 = sbr.rel (0) target = $region37
  $region36: #{h3dw_forward.1} parent=0 // pred_region
    _
  $region37: #{h3dw_forward.1} parent=0 // pred_fallthru
    _
  // Predicated region
  $region38: #{h3dw_forward.1} parent=0 // pred_check
    _
  $region39: #{h3dw_forward.1} parent=0 // pred_check_branch
    %35 = sbr.rel (0) target = $region41
  $region40: #{h3dw_forward.1} parent=0 // pred_region
    _
  $region41: #{h3dw_forward.1} parent=0 // pred_fallthru
    _
  // Predicated region
  $region42: #{h3dw_forward.1} parent=0 // pred_check
    _
  $region43: #{h3dw_forward.1} parent=0 // pred_check_branch
    %37 = sbr.rel (0) target = $region45
  $region44: #{h3dw_forward.1} parent=0 // pred_region
    _
  $region45: #{h3dw_forward.1} parent=0 // pred_fallthru
    _
  %v39 = vld [vmem:[%s0] sm:$0xff]
  %v40 = vld [vmem:[%s0 + $0x8] sm:$0xff]
  %v41 = vld [vmem:[%s0 + $0x10] sm:$0xff]
  %v42 = vld [vmem:[%s0 + $0x18] sm:$0xff]
  %v43 = vld [vmem:[%s0 + $0x20] sm:$0xff]
  %v44 = vld [vmem:[%s0 + $0x28] sm:$0xff]
  %v45 = vld [vmem:[%s0 + $0x30] sm:$0xff]
  %v46 = vld [vmem:[%s0 + $0x38] sm:$0xff]
  %v47 = vld [vmem:[%s0 + $0x40] sm:$0xff]
  %v48 = vld [vmem:[%s0 + $0x48] sm:$0xff]
  %v49 = vld [vmem:[%s0 + $0x50] sm:$0xff]
  %v50 = vld [vmem:[%s0 + $0x58] sm:$0xff]
  %v51 = vld [vmem:[%s0 + $0x60] sm:$0xff]
  %v52 = vld [vmem:[%s0 + $0x68] sm:$0xff]
  %v53 = vld [vmem:[%s0 + $0x70] sm:$0xff]
  %v54 = vld [vmem:[%s0 + $0x78] sm:$0xff]
  %v55 = vld [vmem:[%s0 + $0x80] sm:$0xff]
  %v56 = vld [vmem:[%s0 + $0x88] sm:$0xff]
  %v57 = vld [vmem:[%s0 + $0x90] sm:$0xff]
  %v58 = vld [vmem:[%s0 + $0x98] sm:$0xff]
  %v59 = vld [vmem:[%s0 + $0xa0] sm:$0xff]
  %v60 = vld [vmem:[%s0 + $0xa8] sm:$0xff]
  %v61 = vld [vmem:[%s0 + $0xb0] sm:$0xff]
  %v62 = vld [vmem:[%s0 + $0xb8] sm:$0xff]
  %v63 = vld [vmem:[%s0 + $0xc0] sm:$0xff]
  %v64 = vld [vmem:[%s0 + $0xc8] sm:$0xff]
  %v65 = vld [vmem:[%s0 + $0xd0] sm:$0xff]
  %v66 = vld [vmem:[%s0 + $0xd8] sm:$0xff]
  %v67 = vld [vmem:[%s0 + $0xe0] sm:$0xff]
  %v68 = vld [vmem:[%s0 + $0xe8] sm:$0xff]
  %v69 = vld [vmem:[%s0 + $0xf0] sm:$0xff]
  %v70 = vld [vmem:[%s0 + $0xf8] sm:$0xff]
  %v71 = vld [vmem:[%s0 + $0x100] sm:$0xff]
  %v72 = vld [vmem:[%s0 + $0x108] sm:$0xff]
  %v73 = vld [vmem:[%s0 + $0x110] sm:$0xff]
  %v74 = vld [vmem:[%s0 + $0x118] sm:$0xff]
  %v75 = vld [vmem:[%s0 + $0x120] sm:$0xff]
  %v76 = vld [vmem:[%s0 + $0x128] sm:$0xff]
  %v77 = vld [vmem:[%s0 + $0x130] sm:$0xff]
  %v78 = vld [vmem:[%s0 + $0x138] sm:$0xff]
  %v79 = vld [vmem:[%s0 + $0x140] sm:$0xff]
  %v80 = vld [vmem:[%s0 + $0x148] sm:$0xff]
  %v81 = vld [vmem:[%s0 + $0x150] sm:$0xff]
  %v82 = vld [vmem:[%s0 + $0x158] sm:$0xff]
  %v83 = vld [vmem:[%s0 + $0x160] sm:$0xff]
  %v84 = vld [vmem:[%s0 + $0x168] sm:$0xff]
  %v85 = vld [vmem:[%s0 + $0x170] sm:$0xff]
  %v86 = vld [vmem:[%s0 + $0x178] sm:$0xff]
  %v87 = vld [vmem:[%s0 + $0x180] sm:$0xff]
  %v88 = vld [vmem:[%s0 + $0x188] sm:$0xff]
  %v89 = vld [vmem:[%s0 + $0x190] sm:$0xff]
  %v90 = vld [vmem:[%s0 + $0x198] sm:$0xff]
  %v91 = vld [vmem:[%s0 + $0x1a0] sm:$0xff]
  %v92 = vld [vmem:[%s0 + $0x1a8] sm:$0xff]
  %v93 = vld [vmem:[%s0 + $0x1b0] sm:$0xff]
  %v94 = vld [vmem:[%s0 + $0x1b8] sm:$0xff]
  %v95 = vld [vmem:[%s0 + $0x1c0] sm:$0xff]
  %v96 = vld [vmem:[%s0 + $0x1c8] sm:$0xff]
  %v97 = vld [vmem:[%s0 + $0x1d0] sm:$0xff]
  %v98 = vld [vmem:[%s0 + $0x1d8] sm:$0xff]
  %v99 = vld [vmem:[%s0 + $0x1e0] sm:$0xff]
  %v100 = vld [vmem:[%s0 + $0x1e8] sm:$0xff]
  %v101 = vld [vmem:[%s0 + $0x1f0] sm:$0xff]
  %v102 = vld [vmem:[%s0 + $0x1f8] sm:$0xff]
  %v103 = vld [vmem:[%s0 + $0x200] sm:$0xff]
  %v104 = vld [vmem:[%s0 + $0x208] sm:$0xff]
  %v105 = vld [vmem:[%s0 + $0x210] sm:$0xff]
  %v106 = vld [vmem:[%s0 + $0x218] sm:$0xff]
  %v107 = vld [vmem:[%s0 + $0x220] sm:$0xff]
  %v108 = vld [vmem:[%s0 + $0x228] sm:$0xff]
  %v109 = vld [vmem:[%s0 + $0x230] sm:$0xff]
  %v110 = vld [vmem:[%s0 + $0x238] sm:$0xff]
  %v111 = vld [vmem:[%s0 + $0x240] sm:$0xff]
  %v112 = vld [vmem:[%s0 + $0x248] sm:$0xff]
  %v113 = vld [vmem:[%s0 + $0x250] sm:$0xff]
  %v114 = vld [vmem:[%s0 + $0x258] sm:$0xff]
  %v115 = vld [vmem:[%s0 + $0x260] sm:$0xff]
  %v116 = vld [vmem:[%s0 + $0x268] sm:$0xff]
  %v117 = vld [vmem:[%s0 + $0x270] sm:$0xff]
  %v118 = vld [vmem:[%s0 + $0x278] sm:$0xff]
  %v119 = vld [vmem:[%s0 + $0x280] sm:$0xff]
  %v120 = vld [vmem:[%s0 + $0x288] sm:$0xff]
  %v121 = vld [vmem:[%s0 + $0x290] sm:$0xff]
  %v122 = vld [vmem:[%s0 + $0x298] sm:$0xff]
  %v123 = vld [vmem:[%s0 + $0x2a0] sm:$0xff]
  %v124 = vld [vmem:[%s0 + $0x2a8] sm:$0xff]
  %v125 = vld [vmem:[%s0 + $0x2b0] sm:$0xff]
  %v126 = vld [vmem:[%s0 + $0x2b8] sm:$0xff]
  %v127 = vld [vmem:[%s0 + $0x2c0] sm:$0xff]
  %v128 = vld [vmem:[%s0 + $0x2c8] sm:$0xff]
  %v129 = vld [vmem:[%s0 + $0x2d0] sm:$0xff]
  %v130 = vld [vmem:[%s0 + $0x2d8] sm:$0xff]
  %v131 = vld [vmem:[%s0 + $0x2e0] sm:$0xff]
  %v132 = vld [vmem:[%s0 + $0x2e8] sm:$0xff]
  %v133 = vld [vmem:[%s0 + $0x2f0] sm:$0xff]
  %v134 = vld [vmem:[%s0 + $0x2f8] sm:$0xff]
  %v135 = vld [vmem:[%s0 + $0x300] sm:$0xff]
  %v136 = vld [vmem:[%s0 + $0x308] sm:$0xff]
  %v137 = vld [vmem:[%s0 + $0x310] sm:$0xff]
  %v138 = vld [vmem:[%s0 + $0x318] sm:$0xff]
  %v139 = vld [vmem:[%s0 + $0x320] sm:$0xff]
  %v140 = vld [vmem:[%s0 + $0x328] sm:$0xff]
  %v141 = vld [vmem:[%s0 + $0x330] sm:$0xff]
  %v142 = vld [vmem:[%s0 + $0x338] sm:$0xff]
  %v143 = vld [vmem:[%s0 + $0x340] sm:$0xff]
  %v144 = vld [vmem:[%s0 + $0x348] sm:$0xff]
  %v145 = vld [vmem:[%s0 + $0x350] sm:$0xff]
  %v146 = vld [vmem:[%s0 + $0x358] sm:$0xff]
  %v147 = vld [vmem:[%s0 + $0x360] sm:$0xff]
  %v148 = vld [vmem:[%s0 + $0x368] sm:$0xff]
  %v149 = vld [vmem:[%s0 + $0x370] sm:$0xff]
  %v150 = vld [vmem:[%s0 + $0x378] sm:$0xff]
  %v151 = vld [vmem:[%s0 + $0x380] sm:$0xff]
  %v152 = vld [vmem:[%s0 + $0x388] sm:$0xff]
  %v153 = vld [vmem:[%s0 + $0x390] sm:$0xff]
  %v154 = vld [vmem:[%s0 + $0x398] sm:$0xff]
  %v155 = vld [vmem:[%s0 + $0x3a0] sm:$0xff]
  %v156 = vld [vmem:[%s0 + $0x3a8] sm:$0xff]
  %v157 = vld [vmem:[%s0 + $0x3b0] sm:$0xff]
  %v158 = vld [vmem:[%s0 + $0x3b8] sm:$0xff]
  %v159 = vld [vmem:[%s0 + $0x3c0] sm:$0xff]
  %v160 = vld [vmem:[%s0 + $0x3c8] sm:$0xff]
  %v161 = vld [vmem:[%s0 + $0x3d0] sm:$0xff]
  %v162 = vld [vmem:[%s0 + $0x3d8] sm:$0xff]
  %v163 = vld [vmem:[%s0 + $0x3e0] sm:$0xff]
  %v164 = vld [vmem:[%s0 + $0x3e8] sm:$0xff]
  %v165 = vld [vmem:[%s0 + $0x3f0] sm:$0xff]
  %v166 = vld [vmem:[%s0 + $0x3f8] sm:$0xff]
  %v167 = vld [vmem:[%s0 + $0x400] sm:$0xff]
  %v168 = vld [vmem:[%s0 + $0x408] sm:$0xff]
  %v169 = vld [vmem:[%s0 + $0x410] sm:$0xff]
  %v170 = vld [vmem:[%s0 + $0x418] sm:$0xff]
  %v171 = vld [vmem:[%s0 + $0x420] sm:$0xff]
  %v172 = vld [vmem:[%s0 + $0x428] sm:$0xff]
  %v173 = vld [vmem:[%s0 + $0x430] sm:$0xff]
  %v174 = vld [vmem:[%s0 + $0x438] sm:$0xff]
  %v175 = vld [vmem:[%s0 + $0x440] sm:$0xff]
  %v176 = vld [vmem:[%s0 + $0x448] sm:$0xff]
  %v177 = vld [vmem:[%s0 + $0x450] sm:$0xff]
  %v178 = vld [vmem:[%s0 + $0x458] sm:$0xff]
  %v179 = vld [vmem:[%s0 + $0x460] sm:$0xff]
  %v180 = vld [vmem:[%s0 + $0x468] sm:$0xff]
  %v181 = vld [vmem:[%s0 + $0x470] sm:$0xff]
  %v182 = vld [vmem:[%s0 + $0x478] sm:$0xff]
  %v183 = vld [vmem:[%s0 + $0x480] sm:$0xff]
  %v184 = vld [vmem:[%s0 + $0x488] sm:$0xff]
  %v185 = vld [vmem:[%s0 + $0x490] sm:$0xff]
  %v186 = vld [vmem:[%s0 + $0x498] sm:$0xff]
  %v187 = vld [vmem:[%s0 + $0x4a0] sm:$0xff]
  %v188 = vld [vmem:[%s0 + $0x4a8] sm:$0xff]
  %v189 = vld [vmem:[%s0 + $0x4b0] sm:$0xff]
  %v190 = vld [vmem:[%s0 + $0x4b8] sm:$0xff]
  %v191 = vld [vmem:[%s0 + $0x4c0] sm:$0xff]
  %v192 = vld [vmem:[%s0 + $0x4c8] sm:$0xff]
  %v193 = vld [vmem:[%s0 + $0x4d0] sm:$0xff]
  %v194 = vld [vmem:[%s0 + $0x4d8] sm:$0xff]
  %v195 = vld [vmem:[%s0 + $0x4e0] sm:$0xff]
  %v196 = vld [vmem:[%s0 + $0x4e8] sm:$0xff]
  %v197 = vld [vmem:[%s0 + $0x4f0] sm:$0xff]
  %v198 = vld [vmem:[%s0 + $0x4f8] sm:$0xff]
  %v199 = vld [vmem:[%s0 + $0x500] sm:$0xff]
  %v200 = vld [vmem:[%s0 + $0x508] sm:$0xff]
  %v201 = vld [vmem:[%s0 + $0x510] sm:$0xff]
  %v202 = vld [vmem:[%s0 + $0x518] sm:$0xff]
  %v203 = vld [vmem:[%s0 + $0x520] sm:$0xff]
  %v204 = vld [vmem:[%s0 + $0x528] sm:$0xff]
  %v205 = vld [vmem:[%s0 + $0x530] sm:$0xff]
  %v206 = vld [vmem:[%s0 + $0x538] sm:$0xff]
  %v207 = vld [vmem:[%s0 + $0x540] sm:$0xff]
  %v208 = vld [vmem:[%s0 + $0x548] sm:$0xff]
  %v209 = vld [vmem:[%s0 + $0x550] sm:$0xff]
  %v210 = vld [vmem:[%s0 + $0x558] sm:$0xff]
  %v211 = vld [vmem:[%s0 + $0x560] sm:$0xff]
  %v212 = vld [vmem:[%s0 + $0x568] sm:$0xff]
  %v213 = vld [vmem:[%s0 + $0x570] sm:$0xff]
  %v214 = vld [vmem:[%s0 + $0x578] sm:$0xff]
  %v215 = vld [vmem:[%s0 + $0x580] sm:$0xff]
  %v216 = vld [vmem:[%s0 + $0x588] sm:$0xff]
  %v217 = vld [vmem:[%s0 + $0x590] sm:$0xff]
  %v218 = vld [vmem:[%s0 + $0x598] sm:$0xff]
  %v219 = vld [vmem:[%s0 + $0x5a0] sm:$0xff]
  %v220 = vld [vmem:[%s0 + $0x5a8] sm:$0xff]
  %v221 = vld [vmem:[%s0 + $0x5b0] sm:$0xff]
  %v222 = vld [vmem:[%s0 + $0x5b8] sm:$0xff]
  %v223 = vld [vmem:[%s0 + $0x5c0] sm:$0xff]
  %v224 = vld [vmem:[%s0 + $0x5c8] sm:$0xff]
  %v225 = vld [vmem:[%s0 + $0x5d0] sm:$0xff]
  %v226 = vld [vmem:[%s0 + $0x5d8] sm:$0xff]
  %v227 = vld [vmem:[%s0 + $0x5e0] sm:$0xff]
  %v228 = vld [vmem:[%s0 + $0x5e8] sm:$0xff]
  %v229 = vld [vmem:[%s0 + $0x5f0] sm:$0xff]
  %v230 = vld [vmem:[%s0 + $0x5f8] sm:$0xff]
  %v231 = vld [vmem:[%s0 + $0x600] sm:$0xff]
  %v232 = vld [vmem:[%s0 + $0x608] sm:$0xff]
  %v233 = vld [vmem:[%s0 + $0x610] sm:$0xff]
  %v234 = vld [vmem:[%s0 + $0x618] sm:$0xff]
  %v235 = vld [vmem:[%s0 + $0x620] sm:$0xff]
  %v236 = vld [vmem:[%s0 + $0x628] sm:$0xff]
  %v237 = vld [vmem:[%s0 + $0x630] sm:$0xff]
  %v238 = vld [vmem:[%s0 + $0x638] sm:$0xff]
  %v239 = vld [vmem:[%s0 + $0x640] sm:$0xff]
  %v240 = vld [vmem:[%s0 + $0x648] sm:$0xff]
  %v241 = vld [vmem:[%s0 + $0x650] sm:$0xff]
  %v242 = vld [vmem:[%s0 + $0x658] sm:$0xff]
  %v243 = vld [vmem:[%s0 + $0x660] sm:$0xff]
  %v244 = vld [vmem:[%s0 + $0x668] sm:$0xff]
  %v245 = vld [vmem:[%s0 + $0x670] sm:$0xff]
  %v246 = vld [vmem:[%s0 + $0x678] sm:$0xff]
  %v247 = vld [vmem:[%s0 + $0x680] sm:$0xff]
  %v248 = vld [vmem:[%s0 + $0x688] sm:$0xff]
  %v249 = vld [vmem:[%s0 + $0x690] sm:$0xff]
  %v250 = vld [vmem:[%s0 + $0x698] sm:$0xff]
  %v251 = vld [vmem:[%s0 + $0x6a0] sm:$0xff]
  %v252 = vld [vmem:[%s0 + $0x6a8] sm:$0xff]
  %v253 = vld [vmem:[%s0 + $0x6b0] sm:$0xff]
  %v254 = vld [vmem:[%s0 + $0x6b8] sm:$0xff]
  %v255 = vld [vmem:[%s0 + $0x6c0] sm:$0xff]
  %v256 = vld [vmem:[%s0 + $0x6c8] sm:$0xff]
  %v257 = vld [vmem:[%s0 + $0x6d0] sm:$0xff]
  %v258 = vld [vmem:[%s0 + $0x6d8] sm:$0xff]
  %v259 = vld [vmem:[%s0 + $0x6e0] sm:$0xff]
  %v260 = vld [vmem:[%s0 + $0x6e8] sm:$0xff]
  %v261 = vld [vmem:[%s0 + $0x6f0] sm:$0xff]
  %v262 = vld [vmem:[%s0 + $0x6f8] sm:$0xff]
  %v263 = vld [vmem:[%s0 + $0x700] sm:$0xff]
  %v264 = vld [vmem:[%s0 + $0x708] sm:$0xff]
  %v265 = vld [vmem:[%s0 + $0x710] sm:$0xff]
  %v266 = vld [vmem:[%s0 + $0x718] sm:$0xff]
  %v267 = vld [vmem:[%s0 + $0x720] sm:$0xff]
  %v268 = vld [vmem:[%s0 + $0x728] sm:$0xff]
  %v269 = vld [vmem:[%s0 + $0x730] sm:$0xff]
  %v270 = vld [vmem:[%s0 + $0x738] sm:$0xff]
  %v271 = vld [vmem:[%s0 + $0x740] sm:$0xff]
  %v272 = vld [vmem:[%s0 + $0x748] sm:$0xff]
  %v273 = vld [vmem:[%s0 + $0x750] sm:$0xff]
  %v274 = vld [vmem:[%s0 + $0x758] sm:$0xff]
  %v275 = vld [vmem:[%s0 + $0x760] sm:$0xff]
  %v276 = vld [vmem:[%s0 + $0x768] sm:$0xff]
  %v277 = vld [vmem:[%s0 + $0x770] sm:$0xff]
  %v278 = vld [vmem:[%s0 + $0x778] sm:$0xff]
  %v279 = vld [vmem:[%s0 + $0x780] sm:$0xff]
  %v280 = vld [vmem:[%s0 + $0x788] sm:$0xff]
  %v281 = vld [vmem:[%s0 + $0x790] sm:$0xff]
  %v282 = vld [vmem:[%s0 + $0x798] sm:$0xff]
  %v283 = vld [vmem:[%s0 + $0x7a0] sm:$0xff]
  %v284 = vld [vmem:[%s0 + $0x7a8] sm:$0xff]
  %v285 = vld [vmem:[%s0 + $0x7b0] sm:$0xff]
  %v286 = vld [vmem:[%s0 + $0x7b8] sm:$0xff]
  %v287 = vld [vmem:[%s0 + $0x7c0] sm:$0xff]
  %v288 = vld [vmem:[%s0 + $0x7c8] sm:$0xff]
  %v289 = vld [vmem:[%s0 + $0x7d0] sm:$0xff]
  %v290 = vld [vmem:[%s0 + $0x7d8] sm:$0xff]
  %v291 = vld [vmem:[%s0 + $0x7e0] sm:$0xff]
  %v292 = vld [vmem:[%s0 + $0x7e8] sm:$0xff]
  %v293 = vld [vmem:[%s0 + $0x7f0] sm:$0xff]
  %v294 = vld [vmem:[%s0 + $0x7f8] sm:$0xff]
  %v295 = vld [vmem:[%s1] sm:$0xff]
  %v296 = vld [vmem:[%s1 + $0x8] sm:$0xff]
  %v297 = vld [vmem:[%s1 + $0x10] sm:$0xff]
  %v298 = vld [vmem:[%s1 + $0x18] sm:$0xff]
  %v299 = vld [vmem:[%s1 + $0x20] sm:$0xff]
  %v300 = vld [vmem:[%s1 + $0x28] sm:$0xff]
  %v301 = vld [vmem:[%s1 + $0x30] sm:$0xff]
  %v302 = vld [vmem:[%s1 + $0x38] sm:$0xff]
  %v303 = vld [vmem:[%s1 + $0x40] sm:$0xff]
  %v304 = vld [vmem:[%s1 + $0x48] sm:$0xff]
  %v305 = vld [vmem:[%s1 + $0x50] sm:$0xff]
  %v306 = vld [vmem:[%s1 + $0x58] sm:$0xff]
  %v307 = vld [vmem:[%s1 + $0x60] sm:$0xff]
  %v308 = vld [vmem:[%s1 + $0x68] sm:$0xff]
  %v309 = vld [vmem:[%s1 + $0x70] sm:$0xff]
  %v310 = vld [vmem:[%s1 + $0x78] sm:$0xff]
  %v311 = vld [vmem:[%s2] sm:$0x1]
  %v313 = vlaneseq
  %v314 = vshrl.u32 %v313, 7
  %v315 = vsub.s32 0, %v314
  %v316 = vrot.slane %v311, %v315
  %318 = vmatprep.subr.mxu0 0.0
  %319 = vmatpush1.msra.mxu0 %v295
  %320 = vmatprep.subr.mxu0 0.0
  %321 = vmatpush1.msra.mxu0 %v296
  %322 = vmatprep.subr.mxu0 0.0
  %323 = vmatpush1.msra.mxu0 %v297
  %324 = vmatprep.subr.mxu0 0.0
  %325 = vmatpush1.msra.mxu0 %v298
  %326 = vmatprep.subr.mxu0 0.0
  %327 = vmatpush1.msra.mxu0 %v299
  %328 = vmatprep.subr.mxu0 0.0
  %329 = vmatpush1.msra.mxu0 %v300
  %330 = vmatprep.subr.mxu0 0.0
  %331 = vmatpush1.msra.mxu0 %v301
  %332 = vmatprep.subr.mxu0 0.0
  %333 = vmatpush1.msra.mxu0 %v302
  %334 = vmatprep.subr.mxu0 0.0
  %335 = vmatpush1.msra.mxu0 %v303
  %336 = vmatprep.subr.mxu0 0.0
  %337 = vmatpush1.msra.mxu0 %v304
  %338 = vmatprep.subr.mxu0 0.0
  %339 = vmatpush1.msra.mxu0 %v305
  %340 = vmatprep.subr.mxu0 0.0
  %341 = vmatpush1.msra.mxu0 %v306
  %342 = vmatprep.subr.mxu0 0.0
  %343 = vmatpush1.msra.mxu0 %v307
  %344 = vmatprep.subr.mxu0 0.0
  %345 = vmatpush1.msra.mxu0 %v308
  %346 = vmatprep.subr.mxu0 0.0
  %347 = vmatpush1.msra.mxu0 %v309
  %348 = vmatprep.subr.mxu0 0.0
  %349 = vmatpush1.msra.mxu0 %v310
  %350 = vmatprep.subr.mxu0 0.0
  %351 = vmatpush1.msra.mxu0 0.0
  %352 = vmatprep.subr.mxu0 0.0
  %353 = vmatpush1.msra.mxu0 0.0
  %354 = vmatprep.subr.mxu0 0.0
  %355 = vmatpush1.msra.mxu0 0.0
  %356 = vmatprep.subr.mxu0 0.0
  %357 = vmatpush1.msra.mxu0 0.0
  %358 = vmatprep.subr.mxu0 0.0
  %359 = vmatpush1.msra.mxu0 0.0
  %360 = vmatprep.subr.mxu0 0.0
  %361 = vmatpush1.msra.mxu0 0.0
  %362 = vmatprep.subr.mxu0 0.0
  %363 = vmatpush1.msra.mxu0 0.0
  %364 = vmatprep.subr.mxu0 0.0
  %365 = vmatpush1.msra.mxu0 0.0
  %366 = vmatprep.subr.mxu0 0.0
  %367 = vmatpush1.msra.mxu0 0.0
  %368 = vmatprep.subr.mxu0 0.0
  %369 = vmatpush1.msra.mxu0 0.0
  %370 = vmatprep.subr.mxu0 0.0
  %371 = vmatpush1.msra.mxu0 0.0
  %372 = vmatprep.subr.mxu0 0.0
  %373 = vmatpush1.msra.mxu0 0.0
  %374 = vmatprep.subr.mxu0 0.0
  %375 = vmatpush1.msra.mxu0 0.0
  %376 = vmatprep.subr.mxu0 0.0
  %377 = vmatpush1.msra.mxu0 0.0
  %378 = vmatprep.subr.mxu0 0.0
  %379 = vmatpush1.msra.mxu0 0.0
  %380 = vmatprep.subr.mxu0 0.0
  %381 = vmatpush1.msra.mxu0 0.0
  %382 = vmatprep.mubr.f32.mxu0 0.0
  %383 = vmatmul.mubr.f32.gmra.mrb[0].mxu0 %v39
  %v384 = vpop.f32.mrb[0].mxu0
  %v385 = vadd.f32 %v316, %v384
  %v386 = vpop.f32.mrb[0].mxu0
  %387 = vmatprep.mubr.f32.mxu0 0.0
  %388 = vmatmul.mubr.f32.gmra.mrb[0].mxu0 %v40
  %v389 = vpop.f32.mrb[0].mxu0
  %v390 = vadd.f32 %v316, %v389
  %v391 = vpop.f32.mrb[0].mxu0
  %392 = vmatprep.mubr.f32.mxu0 0.0
  %393 = vmatmul.mubr.f32.gmra.mrb[0].mxu0 %v41
  %v394 = vpop.f32.mrb[0].mxu0
  %v395 = vadd.f32 %v316, %v394
  %v396 = vpop.f32.mrb[0].mxu0
  %397 = vmatprep.mubr.f32.mxu0 0.0
  %398 = vmatmul.mubr.f32.gmra.mrb[0].mxu0 %v42
  %v399 = vpop.f32.mrb[0].mxu0
  %v400 = vadd.f32 %v316, %v399
  %v401 = vpop.f32.mrb[0].mxu0
  %402 = vmatprep.mubr.f32.mxu0 0.0
  %403 = vmatmul.mubr.f32.gmra.mrb[0].mxu0 %v43
  %v404 = vpop.f32.mrb[0].mxu0
  %v405 = vadd.f32 %v316, %v404
  %v406 = vpop.f32.mrb[0].mxu0
  %407 = vmatprep.mubr.f32.mxu0 0.0
  %408 = vmatmul.mubr.f32.gmra.mrb[0].mxu0 %v44
  %v409 = vpop.f32.mrb[0].mxu0
  %v410 = vadd.f32 %v316, %v409
  %v411 = vpop.f32.mrb[0].mxu0
  %412 = vmatprep.mubr.f32.mxu0 0.0
  %413 = vmatmul.mubr.f32.gmra.mrb[0].mxu0 %v45
  %v414 = vpop.f32.mrb[0].mxu0
  %v415 = vadd.f32 %v316, %v414
  %v416 = vpop.f32.mrb[0].mxu0
  %417 = vmatprep.mubr.f32.mxu0 0.0
  %418 = vmatmul.mubr.f32.gmra.mrb[0].mxu0 %v46
  %v419 = vpop.f32.mrb[0].mxu0
  %v420 = vadd.f32 %v316, %v419
  %v421 = vpop.f32.mrb[0].mxu0
  %422 = vmatprep.mubr.f32.mxu0 0.0
  %423 = vmatmul.mubr.f32.gmra.mrb[0].mxu0 %v47
  %v424 = vpop.f32.mrb[0].mxu0
  %v425 = vadd.f32 %v316, %v424
  %v426 = vpop.f32.mrb[0].mxu0
  %427 = vmatprep.mubr.f32.mxu0 0.0
  %428 = vmatmul.mubr.f32.gmra.mrb[0].mxu0 %v48
  %v429 = vpop.f32.mrb[0].mxu0
  %v430 = vadd.f32 %v316, %v429
  %v431 = vpop.f32.mrb[0].mxu0
  %432 = vmatprep.mubr.f32.mxu0 0.0
  %433 = vmatmul.mubr.f32.gmra.mrb[0].mxu0 %v49
  %v434 = vpop.f32.mrb[0].mxu0
  %v435 = vadd.f32 %v316, %v434
  %v436 = vpop.f32.mrb[0].mxu0
  %437 = vmatprep.mubr.f32.mxu0 0.0
  %438 = vmatmul.mubr.f32.gmra.mrb[0].mxu0 %v50
  %v439 = vpop.f32.mrb[0].mxu0
  %v440 = vadd.f32 %v316, %v439
  %v441 = vpop.f32.mrb[0].mxu0
  %442 = vmatprep.mubr.f32.mxu0 0.0
  %443 = vmatmul.mubr.f32.gmra.mrb[0].mxu0 %v51
  %v444 = vpop.f32.mrb[0].mxu0
  %v445 = vadd.f32 %v316, %v444
  %v446 = vpop.f32.mrb[0].mxu0
  %447 = vmatprep.mubr.f32.mxu0 0.0
  %448 = vmatmul.mubr.f32.gmra.mrb[0].mxu0 %v52
  %v449 = vpop.f32.mrb[0].mxu0
  %v450 = vadd.f32 %v316, %v449
  %v451 = vpop.f32.mrb[0].mxu0
  %452 = vmatprep.mubr.f32.mxu0 0.0
  %453 = vmatmul.mubr.f32.gmra.mrb[0].mxu0 %v53
  %v454 = vpop.f32.mrb[0].mxu0
  %v455 = vadd.f32 %v316, %v454
  %v456 = vpop.f32.mrb[0].mxu0
  %457 = vmatprep.mubr.f32.mxu0 0.0
  %458 = vmatmul.mubr.f32.gmra.mrb[0].mxu0 %v54
  %v459 = vpop.f32.mrb[0].mxu0
  %v460 = vadd.f32 %v316, %v459
  %v461 = vpop.f32.mrb[0].mxu0
  %462 = vmatprep.mubr.f32.mxu0 0.0
  %463 = vmatmul.mubr.f32.gmra.mrb[0].mxu0 %v55
  %v464 = vpop.f32.mrb[0].mxu0
  %v465 = vadd.f32 %v316, %v464
  %v466 = vpop.f32.mrb[0].mxu0
  %467 = vmatprep.mubr.f32.mxu0 0.0
  %468 = vmatmul.mubr.f32.gmra.mrb[0].mxu0 %v56
  %v469 = vpop.f32.mrb[0].mxu0
  %v470 = vadd.f32 %v316, %v469
  %v471 = vpop.f32.mrb[0].mxu0
  %472 = vmatprep.mubr.f32.mxu0 0.0
  %473 = vmatmul.mubr.f32.gmra.mrb[0].mxu0 %v57
  %v474 = vpop.f32.mrb[0].mxu0
  %v475 = vadd.f32 %v316, %v474
  %v476 = vpop.f32.mrb[0].mxu0
  %477 = vmatprep.mubr.f32.mxu0 0.0
  %478 = vmatmul.mubr.f32.gmra.mrb[0].mxu0 %v58
  %v479 = vpop.f32.mrb[0].mxu0
  %v480 = vadd.f32 %v316, %v479
  %v481 = vpop.f32.mrb[0].mxu0
  %482 = vmatprep.mubr.f32.mxu0 0.0
  %483 = vmatmul.mubr.f32.gmra.mrb[0].mxu0 %v59
  %v484 = vpop.f32.mrb[0].mxu0
  %v485 = vadd.f32 %v316, %v484
  %v486 = vpop.f32.mrb[0].mxu0
  %487 = vmatprep.mubr.f32.mxu0 0.0
  %488 = vmatmul.mubr.f32.gmra.mrb[0].mxu0 %v60
  %v489 = vpop.f32.mrb[0].mxu0
  %v490 = vadd.f32 %v316, %v489
  %v491 = vpop.f32.mrb[0].mxu0
  %492 = vmatprep.mubr.f32.mxu0 0.0
  %493 = vmatmul.mubr.f32.gmra.mrb[0].mxu0 %v61
  %v494 = vpop.f32.mrb[0].mxu0
  %v495 = vadd.f32 %v316, %v494
  %v496 = vpop.f32.mrb[0].mxu0
  %497 = vmatprep.mubr.f32.mxu0 0.0
  %498 = vmatmul.mubr.f32.gmra.mrb[0].mxu0 %v62
  %v499 = vpop.f32.mrb[0].mxu0
  %v500 = vadd.f32 %v316, %v499
  %v501 = vpop.f32.mrb[0].mxu0
  %502 = vmatprep.mubr.f32.mxu0 0.0
  %503 = vmatmul.mubr.f32.gmra.mrb[0].mxu0 %v63
  %v504 = vpop.f32.mrb[0].mxu0
  %v505 = vadd.f32 %v316, %v504
  %v506 = vpop.f32.mrb[0].mxu0
  %507 = vmatprep.mubr.f32.mxu0 0.0
  %508 = vmatmul.mubr.f32.gmra.mrb[0].mxu0 %v64
  %v509 = vpop.f32.mrb[0].mxu0
  %v510 = vadd.f32 %v316, %v509
  %v511 = vpop.f32.mrb[0].mxu0
  %512 = vmatprep.mubr.f32.mxu0 0.0
  %513 = vmatmul.mubr.f32.gmra.mrb[0].mxu0 %v65
  %v514 = vpop.f32.mrb[0].mxu0
  %v515 = vadd.f32 %v316, %v514
  %v516 = vpop.f32.mrb[0].mxu0
  %517 = vmatprep.mubr.f32.mxu0 0.0
  %518 = vmatmul.mubr.f32.gmra.mrb[0].mxu0 %v66
  %v519 = vpop.f32.mrb[0].mxu0
  %v520 = vadd.f32 %v316, %v519
  %v521 = vpop.f32.mrb[0].mxu0
  %522 = vmatprep.mubr.f32.mxu0 0.0
  %523 = vmatmul.mubr.f32.gmra.mrb[0].mxu0 %v67
  %v524 = vpop.f32.mrb[0].mxu0
  %v525 = vadd.f32 %v316, %v524
  %v526 = vpop.f32.mrb[0].mxu0
  %527 = vmatprep.mubr.f32.mxu0 0.0
  %528 = vmatmul.mubr.f32.gmra.mrb[0].mxu0 %v68
  %v529 = vpop.f32.mrb[0].mxu0
  %v530 = vadd.f32 %v316, %v529
  %v531 = vpop.f32.mrb[0].mxu0
  %532 = vmatprep.mubr.f32.mxu0 0.0
  %533 = vmatmul.mubr.f32.gmra.mrb[0].mxu0 %v69
  %v534 = vpop.f32.mrb[0].mxu0
  %v535 = vadd.f32 %v316, %v534
  %v536 = vpop.f32.mrb[0].mxu0
  %537 = vmatprep.mubr.f32.mxu0 0.0
  %538 = vmatmul.mubr.f32.gmra.mrb[0].mxu0 %v70
  %v539 = vpop.f32.mrb[0].mxu0
  %v540 = vadd.f32 %v316, %v539
  %v541 = vpop.f32.mrb[0].mxu0
  %542 = vmatprep.mubr.f32.mxu0 0.0
  %543 = vmatmul.mubr.f32.gmra.mrb[0].mxu0 %v71
  %v544 = vpop.f32.mrb[0].mxu0
  %v545 = vadd.f32 %v316, %v544
  %v546 = vpop.f32.mrb[0].mxu0
  %547 = vmatprep.mubr.f32.mxu0 0.0
  %548 = vmatmul.mubr.f32.gmra.mrb[0].mxu0 %v72
  %v549 = vpop.f32.mrb[0].mxu0
  %v550 = vadd.f32 %v316, %v549
  %v551 = vpop.f32.mrb[0].mxu0
  %552 = vmatprep.mubr.f32.mxu0 0.0
  %553 = vmatmul.mubr.f32.gmra.mrb[0].mxu0 %v73
  %v554 = vpop.f32.mrb[0].mxu0
  %v555 = vadd.f32 %v316, %v554
  %v556 = vpop.f32.mrb[0].mxu0
  %557 = vmatprep.mubr.f32.mxu0 0.0
  %558 = vmatmul.mubr.f32.gmra.mrb[0].mxu0 %v74
  %v559 = vpop.f32.mrb[0].mxu0
  %v560 = vadd.f32 %v316, %v559
  %v561 = vpop.f32.mrb[0].mxu0
  %562 = vmatprep.mubr.f32.mxu0 0.0
  %563 = vmatmul.mubr.f32.gmra.mrb[0].mxu0 %v75
  %v564 = vpop.f32.mrb[0].mxu0
  %v565 = vadd.f32 %v316, %v564
  %v566 = vpop.f32.mrb[0].mxu0
  %567 = vmatprep.mubr.f32.mxu0 0.0
  %568 = vmatmul.mubr.f32.gmra.mrb[0].mxu0 %v76
  %v569 = vpop.f32.mrb[0].mxu0
  %v570 = vadd.f32 %v316, %v569
  %v571 = vpop.f32.mrb[0].mxu0
  %572 = vmatprep.mubr.f32.mxu0 0.0
  %573 = vmatmul.mubr.f32.gmra.mrb[0].mxu0 %v77
  %v574 = vpop.f32.mrb[0].mxu0
  %v575 = vadd.f32 %v316, %v574
  %v576 = vpop.f32.mrb[0].mxu0
  %577 = vmatprep.mubr.f32.mxu0 0.0
  %578 = vmatmul.mubr.f32.gmra.mrb[0].mxu0 %v78
  %v579 = vpop.f32.mrb[0].mxu0
  %v580 = vadd.f32 %v316, %v579
  %v581 = vpop.f32.mrb[0].mxu0
  %582 = vmatprep.mubr.f32.mxu0 0.0
  %583 = vmatmul.mubr.f32.gmra.mrb[0].mxu0 %v79
  %v584 = vpop.f32.mrb[0].mxu0
  %v585 = vadd.f32 %v316, %v584
  %v586 = vpop.f32.mrb[0].mxu0
  %587 = vmatprep.mubr.f32.mxu0 0.0
  %588 = vmatmul.mubr.f32.gmra.mrb[0].mxu0 %v80
  %v589 = vpop.f32.mrb[0].mxu0
  %v590 = vadd.f32 %v316, %v589
  %v591 = vpop.f32.mrb[0].mxu0
  %592 = vmatprep.mubr.f32.mxu0 0.0
  %593 = vmatmul.mubr.f32.gmra.mrb[0].mxu0 %v81
  %v594 = vpop.f32.mrb[0].mxu0
  %v595 = vadd.f32 %v316, %v594
  %v596 = vpop.f32.mrb[0].mxu0
  %597 = vmatprep.mubr.f32.mxu0 0.0
  %598 = vmatmul.mubr.f32.gmra.mrb[0].mxu0 %v82
  %v599 = vpop.f32.mrb[0].mxu0
  %v600 = vadd.f32 %v316, %v599
  %v601 = vpop.f32.mrb[0].mxu0
  %602 = vmatprep.mubr.f32.mxu0 0.0
  %603 = vmatmul.mubr.f32.gmra.mrb[0].mxu0 %v83
  %v604 = vpop.f32.mrb[0].mxu0
  %v605 = vadd.f32 %v316, %v604
  %v606 = vpop.f32.mrb[0].mxu0
  %607 = vmatprep.mubr.f32.mxu0 0.0
  %608 = vmatmul.mubr.f32.gmra.mrb[0].mxu0 %v84
  %v609 = vpop.f32.mrb[0].mxu0
  %v610 = vadd.f32 %v316, %v609
  %v611 = vpop.f32.mrb[0].mxu0
  %612 = vmatprep.mubr.f32.mxu0 0.0
  %613 = vmatmul.mubr.f32.gmra.mrb[0].mxu0 %v85
  %v614 = vpop.f32.mrb[0].mxu0
  %v615 = vadd.f32 %v316, %v614
  %v616 = vpop.f32.mrb[0].mxu0
  %617 = vmatprep.mubr.f32.mxu0 0.0
  %618 = vmatmul.mubr.f32.gmra.mrb[0].mxu0 %v86
  %v619 = vpop.f32.mrb[0].mxu0
  %v620 = vadd.f32 %v316, %v619
  %v621 = vpop.f32.mrb[0].mxu0
  %622 = vmatprep.mubr.f32.mxu0 0.0
  %623 = vmatmul.mubr.f32.gmra.mrb[0].mxu0 %v87
  %v624 = vpop.f32.mrb[0].mxu0
  %v625 = vadd.f32 %v316, %v624
  %v626 = vpop.f32.mrb[0].mxu0
  %627 = vmatprep.mubr.f32.mxu0 0.0
  %628 = vmatmul.mubr.f32.gmra.mrb[0].mxu0 %v88
  %v629 = vpop.f32.mrb[0].mxu0
  %v630 = vadd.f32 %v316, %v629
  %v631 = vpop.f32.mrb[0].mxu0
  %632 = vmatprep.mubr.f32.mxu0 0.0
  %633 = vmatmul.mubr.f32.gmra.mrb[0].mxu0 %v89
  %v634 = vpop.f32.mrb[0].mxu0
  %v635 = vadd.f32 %v316, %v634
  %v636 = vpop.f32.mrb[0].mxu0
  %637 = vmatprep.mubr.f32.mxu0 0.0
  %638 = vmatmul.mubr.f32.gmra.mrb[0].mxu0 %v90
  %v639 = vpop.f32.mrb[0].mxu0
  %v640 = vadd.f32 %v316, %v639
  %v641 = vpop.f32.mrb[0].mxu0
  %642 = vmatprep.mubr.f32.mxu0 0.0
  %643 = vmatmul.mubr.f32.gmra.mrb[0].mxu0 %v91
  %v644 = vpop.f32.mrb[0].mxu0
  %v645 = vadd.f32 %v316, %v644
  %v646 = vpop.f32.mrb[0].mxu0
  %647 = vmatprep.mubr.f32.mxu0 0.0
  %648 = vmatmul.mubr.f32.gmra.mrb[0].mxu0 %v92
  %v649 = vpop.f32.mrb[0].mxu0
  %v650 = vadd.f32 %v316, %v649
  %v651 = vpop.f32.mrb[0].mxu0
  %652 = vmatprep.mubr.f32.mxu0 0.0
  %653 = vmatmul.mubr.f32.gmra.mrb[0].mxu0 %v93
  %v654 = vpop.f32.mrb[0].mxu0
  %v655 = vadd.f32 %v316, %v654
  %v656 = vpop.f32.mrb[0].mxu0
  %657 = vmatprep.mubr.f32.mxu0 0.0
  %658 = vmatmul.mubr.f32.gmra.mrb[0].mxu0 %v94
  %v659 = vpop.f32.mrb[0].mxu0
  %v660 = vadd.f32 %v316, %v659
  %v661 = vpop.f32.mrb[0].mxu0
  %662 = vmatprep.mubr.f32.mxu0 0.0
  %663 = vmatmul.mubr.f32.gmra.mrb[0].mxu0 %v95
  %v664 = vpop.f32.mrb[0].mxu0
  %v665 = vadd.f32 %v316, %v664
  %v666 = vpop.f32.mrb[0].mxu0
  %667 = vmatprep.mubr.f32.mxu0 0.0
  %668 = vmatmul.mubr.f32.gmra.mrb[0].mxu0 %v96
  %v669 = vpop.f32.mrb[0].mxu0
  %v670 = vadd.f32 %v316, %v669
  %v671 = vpop.f32.mrb[0].mxu0
  %672 = vmatprep.mubr.f32.mxu0 0.0
  %673 = vmatmul.mubr.f32.gmra.mrb[0].mxu0 %v97
  %v674 = vpop.f32.mrb[0].mxu0
  %v675 = vadd.f32 %v316, %v674
  %v676 = vpop.f32.mrb[0].mxu0
  %677 = vmatprep.mubr.f32.mxu0 0.0
  %678 = vmatmul.mubr.f32.gmra.mrb[0].mxu0 %v98
  %v679 = vpop.f32.mrb[0].mxu0
  %v680 = vadd.f32 %v316, %v679
  %v681 = vpop.f32.mrb[0].mxu0
  %682 = vmatprep.mubr.f32.mxu0 0.0
  %683 = vmatmul.mubr.f32.gmra.mrb[0].mxu0 %v99
  %v684 = vpop.f32.mrb[0].mxu0
  %v685 = vadd.f32 %v316, %v684
  %v686 = vpop.f32.mrb[0].mxu0
  %687 = vmatprep.mubr.f32.mxu0 0.0
  %688 = vmatmul.mubr.f32.gmra.mrb[0].mxu0 %v100
  %v689 = vpop.f32.mrb[0].mxu0
  %v690 = vadd.f32 %v316, %v689
  %v691 = vpop.f32.mrb[0].mxu0
  %692 = vmatprep.mubr.f32.mxu0 0.0
  %693 = vmatmul.mubr.f32.gmra.mrb[0].mxu0 %v101
  %v694 = vpop.f32.mrb[0].mxu0
  %v695 = vadd.f32 %v316, %v694
  %v696 = vpop.f32.mrb[0].mxu0
  %697 = vmatprep.mubr.f32.mxu0 0.0
  %698 = vmatmul.mubr.f32.gmra.mrb[0].mxu0 %v102
  %v699 = vpop.f32.mrb[0].mxu0
  %v700 = vadd.f32 %v316, %v699
  %v701 = vpop.f32.mrb[0].mxu0
  %702 = vmatprep.mubr.f32.mxu0 0.0
  %703 = vmatmul.mubr.f32.gmra.mrb[0].mxu0 %v103
  %v704 = vpop.f32.mrb[0].mxu0
  %v705 = vadd.f32 %v316, %v704
  %v706 = vpop.f32.mrb[0].mxu0
  %707 = vmatprep.mubr.f32.mxu0 0.0
  %708 = vmatmul.mubr.f32.gmra.mrb[0].mxu0 %v104
  %v709 = vpop.f32.mrb[0].mxu0
  %v710 = vadd.f32 %v316, %v709
  %v711 = vpop.f32.mrb[0].mxu0
  %712 = vmatprep.mubr.f32.mxu0 0.0
  %713 = vmatmul.mubr.f32.gmra.mrb[0].mxu0 %v105
  %v714 = vpop.f32.mrb[0].mxu0
  %v715 = vadd.f32 %v316, %v714
  %v716 = vpop.f32.mrb[0].mxu0
  %717 = vmatprep.mubr.f32.mxu0 0.0
  %718 = vmatmul.mubr.f32.gmra.mrb[0].mxu0 %v106
  %v719 = vpop.f32.mrb[0].mxu0
  %v720 = vadd.f32 %v316, %v719
  %v721 = vpop.f32.mrb[0].mxu0
  %722 = vmatprep.mubr.f32.mxu0 0.0
  %723 = vmatmul.mubr.f32.gmra.mrb[0].mxu0 %v107
  %v724 = vpop.f32.mrb[0].mxu0
  %v725 = vadd.f32 %v316, %v724
  %v726 = vpop.f32.mrb[0].mxu0
  %727 = vmatprep.mubr.f32.mxu0 0.0
  %728 = vmatmul.mubr.f32.gmra.mrb[0].mxu0 %v108
  %v729 = vpop.f32.mrb[0].mxu0
  %v730 = vadd.f32 %v316, %v729
  %v731 = vpop.f32.mrb[0].mxu0
  %732 = vmatprep.mubr.f32.mxu0 0.0
  %733 = vmatmul.mubr.f32.gmra.mrb[0].mxu0 %v109
  %v734 = vpop.f32.mrb[0].mxu0
  %v735 = vadd.f32 %v316, %v734
  %v736 = vpop.f32.mrb[0].mxu0
  %737 = vmatprep.mubr.f32.mxu0 0.0
  %738 = vmatmul.mubr.f32.gmra.mrb[0].mxu0 %v110
  %v739 = vpop.f32.mrb[0].mxu0
  %v740 = vadd.f32 %v316, %v739
  %v741 = vpop.f32.mrb[0].mxu0
  %742 = vmatprep.mubr.f32.mxu0 0.0
  %743 = vmatmul.mubr.f32.gmra.mrb[0].mxu0 %v111
  %v744 = vpop.f32.mrb[0].mxu0
  %v745 = vadd.f32 %v316, %v744
  %v746 = vpop.f32.mrb[0].mxu0
  %747 = vmatprep.mubr.f32.mxu0 0.0
  %748 = vmatmul.mubr.f32.gmra.mrb[0].mxu0 %v112
  %v749 = vpop.f32.mrb[0].mxu0
  %v750 = vadd.f32 %v316, %v749
  %v751 = vpop.f32.mrb[0].mxu0
  %752 = vmatprep.mubr.f32.mxu0 0.0
  %753 = vmatmul.mubr.f32.gmra.mrb[0].mxu0 %v113
  %v754 = vpop.f32.mrb[0].mxu0
  %v755 = vadd.f32 %v316, %v754
  %v756 = vpop.f32.mrb[0].mxu0
  %757 = vmatprep.mubr.f32.mxu0 0.0
  %758 = vmatmul.mubr.f32.gmra.mrb[0].mxu0 %v114
  %v759 = vpop.f32.mrb[0].mxu0
  %v760 = vadd.f32 %v316, %v759
  %v761 = vpop.f32.mrb[0].mxu0
  %762 = vmatprep.mubr.f32.mxu0 0.0
  %763 = vmatmul.mubr.f32.gmra.mrb[0].mxu0 %v115
  %v764 = vpop.f32.mrb[0].mxu0
  %v765 = vadd.f32 %v316, %v764
  %v766 = vpop.f32.mrb[0].mxu0
  %767 = vmatprep.mubr.f32.mxu0 0.0
  %768 = vmatmul.mubr.f32.gmra.mrb[0].mxu0 %v116
  %v769 = vpop.f32.mrb[0].mxu0
  %v770 = vadd.f32 %v316, %v769
  %v771 = vpop.f32.mrb[0].mxu0
  %772 = vmatprep.mubr.f32.mxu0 0.0
  %773 = vmatmul.mubr.f32.gmra.mrb[0].mxu0 %v117
  %v774 = vpop.f32.mrb[0].mxu0
  %v775 = vadd.f32 %v316, %v774
  %v776 = vpop.f32.mrb[0].mxu0
  %777 = vmatprep.mubr.f32.mxu0 0.0
  %778 = vmatmul.mubr.f32.gmra.mrb[0].mxu0 %v118
  %v779 = vpop.f32.mrb[0].mxu0
  %v780 = vadd.f32 %v316, %v779
  %v781 = vpop.f32.mrb[0].mxu0
  %782 = vmatprep.mubr.f32.mxu0 0.0
  %783 = vmatmul.mubr.f32.gmra.mrb[0].mxu0 %v119
  %v784 = vpop.f32.mrb[0].mxu0
  %v785 = vadd.f32 %v316, %v784
  %v786 = vpop.f32.mrb[0].mxu0
  %787 = vmatprep.mubr.f32.mxu0 0.0
  %788 = vmatmul.mubr.f32.gmra.mrb[0].mxu0 %v120
  %v789 = vpop.f32.mrb[0].mxu0
  %v790 = vadd.f32 %v316, %v789
  %v791 = vpop.f32.mrb[0].mxu0
  %792 = vmatprep.mubr.f32.mxu0 0.0
  %793 = vmatmul.mubr.f32.gmra.mrb[0].mxu0 %v121
  %v794 = vpop.f32.mrb[0].mxu0
  %v795 = vadd.f32 %v316, %v794
  %v796 = vpop.f32.mrb[0].mxu0
  %797 = vmatprep.mubr.f32.mxu0 0.0
  %798 = vmatmul.mubr.f32.gmra.mrb[0].mxu0 %v122
  %v799 = vpop.f32.mrb[0].mxu0
  %v800 = vadd.f32 %v316, %v799
  %v801 = vpop.f32.mrb[0].mxu0
  %802 = vmatprep.mubr.f32.mxu0 0.0
  %803 = vmatmul.mubr.f32.gmra.mrb[0].mxu0 %v123
  %v804 = vpop.f32.mrb[0].mxu0
  %v805 = vadd.f32 %v316, %v804
  %v806 = vpop.f32.mrb[0].mxu0
  %807 = vmatprep.mubr.f32.mxu0 0.0
  %808 = vmatmul.mubr.f32.gmra.mrb[0].mxu0 %v124
  %v809 = vpop.f32.mrb[0].mxu0
  %v810 = vadd.f32 %v316, %v809
  %v811 = vpop.f32.mrb[0].mxu0
  %812 = vmatprep.mubr.f32.mxu0 0.0
  %813 = vmatmul.mubr.f32.gmra.mrb[0].mxu0 %v125
  %v814 = vpop.f32.mrb[0].mxu0
  %v815 = vadd.f32 %v316, %v814
  %v816 = vpop.f32.mrb[0].mxu0
  %817 = vmatprep.mubr.f32.mxu0 0.0
  %818 = vmatmul.mubr.f32.gmra.mrb[0].mxu0 %v126
  %v819 = vpop.f32.mrb[0].mxu0
  %v820 = vadd.f32 %v316, %v819
  %v821 = vpop.f32.mrb[0].mxu0
  %822 = vmatprep.mubr.f32.mxu0 0.0
  %823 = vmatmul.mubr.f32.gmra.mrb[0].mxu0 %v127
  %v824 = vpop.f32.mrb[0].mxu0
  %v825 = vadd.f32 %v316, %v824
  %v826 = vpop.f32.mrb[0].mxu0
  %827 = vmatprep.mubr.f32.mxu0 0.0
  %828 = vmatmul.mubr.f32.gmra.mrb[0].mxu0 %v128
  %v829 = vpop.f32.mrb[0].mxu0
  %v830 = vadd.f32 %v316, %v829
  %v831 = vpop.f32.mrb[0].mxu0
  %832 = vmatprep.mubr.f32.mxu0 0.0
  %833 = vmatmul.mubr.f32.gmra.mrb[0].mxu0 %v129
  %v834 = vpop.f32.mrb[0].mxu0
  %v835 = vadd.f32 %v316, %v834
  %v836 = vpop.f32.mrb[0].mxu0
  %837 = vmatprep.mubr.f32.mxu0 0.0
  %838 = vmatmul.mubr.f32.gmra.mrb[0].mxu0 %v130
  %v839 = vpop.f32.mrb[0].mxu0
  %v840 = vadd.f32 %v316, %v839
  %v841 = vpop.f32.mrb[0].mxu0
  %842 = vmatprep.mubr.f32.mxu0 0.0
  %843 = vmatmul.mubr.f32.gmra.mrb[0].mxu0 %v131
  %v844 = vpop.f32.mrb[0].mxu0
  %v845 = vadd.f32 %v316, %v844
  %v846 = vpop.f32.mrb[0].mxu0
  %847 = vmatprep.mubr.f32.mxu0 0.0
  %848 = vmatmul.mubr.f32.gmra.mrb[0].mxu0 %v132
  %v849 = vpop.f32.mrb[0].mxu0
  %v850 = vadd.f32 %v316, %v849
  %v851 = vpop.f32.mrb[0].mxu0
  %852 = vmatprep.mubr.f32.mxu0 0.0
  %853 = vmatmul.mubr.f32.gmra.mrb[0].mxu0 %v133
  %v854 = vpop.f32.mrb[0].mxu0
  %v855 = vadd.f32 %v316, %v854
  %v856 = vpop.f32.mrb[0].mxu0
  %857 = vmatprep.mubr.f32.mxu0 0.0
  %858 = vmatmul.mubr.f32.gmra.mrb[0].mxu0 %v134
  %v859 = vpop.f32.mrb[0].mxu0
  %v860 = vadd.f32 %v316, %v859
  %v861 = vpop.f32.mrb[0].mxu0
  %862 = vmatprep.mubr.f32.mxu0 0.0
  %863 = vmatmul.mubr.f32.gmra.mrb[0].mxu0 %v135
  %v864 = vpop.f32.mrb[0].mxu0
  %v865 = vadd.f32 %v316, %v864
  %v866 = vpop.f32.mrb[0].mxu0
  %867 = vmatprep.mubr.f32.mxu0 0.0
  %868 = vmatmul.mubr.f32.gmra.mrb[0].mxu0 %v136
  %v869 = vpop.f32.mrb[0].mxu0
  %v870 = vadd.f32 %v316, %v869
  %v871 = vpop.f32.mrb[0].mxu0
  %872 = vmatprep.mubr.f32.mxu0 0.0
  %873 = vmatmul.mubr.f32.gmra.mrb[0].mxu0 %v137
  %v874 = vpop.f32.mrb[0].mxu0
  %v875 = vadd.f32 %v316, %v874
  %v876 = vpop.f32.mrb[0].mxu0
  %877 = vmatprep.mubr.f32.mxu0 0.0
  %878 = vmatmul.mubr.f32.gmra.mrb[0].mxu0 %v138
  %v879 = vpop.f32.mrb[0].mxu0
  %v880 = vadd.f32 %v316, %v879
  %v881 = vpop.f32.mrb[0].mxu0
  %882 = vmatprep.mubr.f32.mxu0 0.0
  %883 = vmatmul.mubr.f32.gmra.mrb[0].mxu0 %v139
  %v884 = vpop.f32.mrb[0].mxu0
  %v885 = vadd.f32 %v316, %v884
  %v886 = vpop.f32.mrb[0].mxu0
  %887 = vmatprep.mubr.f32.mxu0 0.0
  %888 = vmatmul.mubr.f32.gmra.mrb[0].mxu0 %v140
  %v889 = vpop.f32.mrb[0].mxu0
  %v890 = vadd.f32 %v316, %v889
  %v891 = vpop.f32.mrb[0].mxu0
  %892 = vmatprep.mubr.f32.mxu0 0.0
  %893 = vmatmul.mubr.f32.gmra.mrb[0].mxu0 %v141
  %v894 = vpop.f32.mrb[0].mxu0
  %v895 = vadd.f32 %v316, %v894
  %v896 = vpop.f32.mrb[0].mxu0
  %897 = vmatprep.mubr.f32.mxu0 0.0
  %898 = vmatmul.mubr.f32.gmra.mrb[0].mxu0 %v142
  %v899 = vpop.f32.mrb[0].mxu0
  %v900 = vadd.f32 %v316, %v899
  %v901 = vpop.f32.mrb[0].mxu0
  %902 = vmatprep.mubr.f32.mxu0 0.0
  %903 = vmatmul.mubr.f32.gmra.mrb[0].mxu0 %v143
  %v904 = vpop.f32.mrb[0].mxu0
  %v905 = vadd.f32 %v316, %v904
  %v906 = vpop.f32.mrb[0].mxu0
  %907 = vmatprep.mubr.f32.mxu0 0.0
  %908 = vmatmul.mubr.f32.gmra.mrb[0].mxu0 %v144
  %v909 = vpop.f32.mrb[0].mxu0
  %v910 = vadd.f32 %v316, %v909
  %v911 = vpop.f32.mrb[0].mxu0
  %912 = vmatprep.mubr.f32.mxu0 0.0
  %913 = vmatmul.mubr.f32.gmra.mrb[0].mxu0 %v145
  %v914 = vpop.f32.mrb[0].mxu0
  %v915 = vadd.f32 %v316, %v914
  %v916 = vpop.f32.mrb[0].mxu0
  %917 = vmatprep.mubr.f32.mxu0 0.0
  %918 = vmatmul.mubr.f32.gmra.mrb[0].mxu0 %v146
  %v919 = vpop.f32.mrb[0].mxu0
  %v920 = vadd.f32 %v316, %v919
  %v921 = vpop.f32.mrb[0].mxu0
  %922 = vmatprep.mubr.f32.mxu0 0.0
  %923 = vmatmul.mubr.f32.gmra.mrb[0].mxu0 %v147
  %v924 = vpop.f32.mrb[0].mxu0
  %v925 = vadd.f32 %v316, %v924
  %v926 = vpop.f32.mrb[0].mxu0
  %927 = vmatprep.mubr.f32.mxu0 0.0
  %928 = vmatmul.mubr.f32.gmra.mrb[0].mxu0 %v148
  %v929 = vpop.f32.mrb[0].mxu0
  %v930 = vadd.f32 %v316, %v929
  %v931 = vpop.f32.mrb[0].mxu0
  %932 = vmatprep.mubr.f32.mxu0 0.0
  %933 = vmatmul.mubr.f32.gmra.mrb[0].mxu0 %v149
  %v934 = vpop.f32.mrb[0].mxu0
  %v935 = vadd.f32 %v316, %v934
  %v936 = vpop.f32.mrb[0].mxu0
  %937 = vmatprep.mubr.f32.mxu0 0.0
  %938 = vmatmul.mubr.f32.gmra.mrb[0].mxu0 %v150
  %v939 = vpop.f32.mrb[0].mxu0
  %v940 = vadd.f32 %v316, %v939
  %v941 = vpop.f32.mrb[0].mxu0
  %942 = vmatprep.mubr.f32.mxu0 0.0
  %943 = vmatmul.mubr.f32.gmra.mrb[0].mxu0 %v151
  %v944 = vpop.f32.mrb[0].mxu0
  %v945 = vadd.f32 %v316, %v944
  %v946 = vpop.f32.mrb[0].mxu0
  %947 = vmatprep.mubr.f32.mxu0 0.0
  %948 = vmatmul.mubr.f32.gmra.mrb[0].mxu0 %v152
  %v949 = vpop.f32.mrb[0].mxu0
  %v950 = vadd.f32 %v316, %v949
  %v951 = vpop.f32.mrb[0].mxu0
  %952 = vmatprep.mubr.f32.mxu0 0.0
  %953 = vmatmul.mubr.f32.gmra.mrb[0].mxu0 %v153
  %v954 = vpop.f32.mrb[0].mxu0
  %v955 = vadd.f32 %v316, %v954
  %v956 = vpop.f32.mrb[0].mxu0
  %957 = vmatprep.mubr.f32.mxu0 0.0
  %958 = vmatmul.mubr.f32.gmra.mrb[0].mxu0 %v154
  %v959 = vpop.f32.mrb[0].mxu0
  %v960 = vadd.f32 %v316, %v959
  %v961 = vpop.f32.mrb[0].mxu0
  %962 = vmatprep.mubr.f32.mxu0 0.0
  %963 = vmatmul.mubr.f32.gmra.mrb[0].mxu0 %v155
  %v964 = vpop.f32.mrb[0].mxu0
  %v965 = vadd.f32 %v316, %v964
  %v966 = vpop.f32.mrb[0].mxu0
  %967 = vmatprep.mubr.f32.mxu0 0.0
  %968 = vmatmul.mubr.f32.gmra.mrb[0].mxu0 %v156
  %v969 = vpop.f32.mrb[0].mxu0
  %v970 = vadd.f32 %v316, %v969
  %v971 = vpop.f32.mrb[0].mxu0
  %972 = vmatprep.mubr.f32.mxu0 0.0
  %973 = vmatmul.mubr.f32.gmra.mrb[0].mxu0 %v157
  %v974 = vpop.f32.mrb[0].mxu0
  %v975 = vadd.f32 %v316, %v974
  %v976 = vpop.f32.mrb[0].mxu0
  %977 = vmatprep.mubr.f32.mxu0 0.0
  %978 = vmatmul.mubr.f32.gmra.mrb[0].mxu0 %v158
  %v979 = vpop.f32.mrb[0].mxu0
  %v980 = vadd.f32 %v316, %v979
  %v981 = vpop.f32.mrb[0].mxu0
  %982 = vmatprep.mubr.f32.mxu0 0.0
  %983 = vmatmul.mubr.f32.gmra.mrb[0].mxu0 %v159
  %v984 = vpop.f32.mrb[0].mxu0
  %v985 = vadd.f32 %v316, %v984
  %v986 = vpop.f32.mrb[0].mxu0
  %987 = vmatprep.mubr.f32.mxu0 0.0
  %988 = vmatmul.mubr.f32.gmra.mrb[0].mxu0 %v160
  %v989 = vpop.f32.mrb[0].mxu0
  %v990 = vadd.f32 %v316, %v989
  %v991 = vpop.f32.mrb[0].mxu0
  %992 = vmatprep.mubr.f32.mxu0 0.0
  %993 = vmatmul.mubr.f32.gmra.mrb[0].mxu0 %v161
  %v994 = vpop.f32.mrb[0].mxu0
  %v995 = vadd.f32 %v316, %v994
  %v996 = vpop.f32.mrb[0].mxu0
  %997 = vmatprep.mubr.f32.mxu0 0.0
  %998 = vmatmul.mubr.f32.gmra.mrb[0].mxu0 %v162
  %v999 = vpop.f32.mrb[0].mxu0
  %v1000 = vadd.f32 %v316, %v999
  %v1001 = vpop.f32.mrb[0].mxu0
  %1002 = vmatprep.mubr.f32.mxu0 0.0
  %1003 = vmatmul.mubr.f32.gmra.mrb[0].mxu0 %v163
  %v1004 = vpop.f32.mrb[0].mxu0
  %v1005 = vadd.f32 %v316, %v1004
  %v1006 = vpop.f32.mrb[0].mxu0
  %1007 = vmatprep.mubr.f32.mxu0 0.0
  %1008 = vmatmul.mubr.f32.gmra.mrb[0].mxu0 %v164
  %v1009 = vpop.f32.mrb[0].mxu0
  %v1010 = vadd.f32 %v316, %v1009
  %v1011 = vpop.f32.mrb[0].mxu0
  %1012 = vmatprep.mubr.f32.mxu0 0.0
  %1013 = vmatmul.mubr.f32.gmra.mrb[0].mxu0 %v165
  %v1014 = vpop.f32.mrb[0].mxu0
  %v1015 = vadd.f32 %v316, %v1014
  %v1016 = vpop.f32.mrb[0].mxu0
  %1017 = vmatprep.mubr.f32.mxu0 0.0
  %1018 = vmatmul.mubr.f32.gmra.mrb[0].mxu0 %v166
  %v1019 = vpop.f32.mrb[0].mxu0
  %v1020 = vadd.f32 %v316, %v1019
  %v1021 = vpop.f32.mrb[0].mxu0
  %1022 = vmatprep.mubr.f32.mxu0 0.0
  %1023 = vmatmul.mubr.f32.gmra.mrb[0].mxu0 %v167
  %v1024 = vpop.f32.mrb[0].mxu0
  %v1025 = vadd.f32 %v316, %v1024
  %v1026 = vpop.f32.mrb[0].mxu0
  %1027 = vmatprep.mubr.f32.mxu0 0.0
  %1028 = vmatmul.mubr.f32.gmra.mrb[0].mxu0 %v168
  %v1029 = vpop.f32.mrb[0].mxu0
  %v1030 = vadd.f32 %v316, %v1029
  %v1031 = vpop.f32.mrb[0].mxu0
  %1032 = vmatprep.mubr.f32.mxu0 0.0
  %1033 = vmatmul.mubr.f32.gmra.mrb[0].mxu0 %v169
  %v1034 = vpop.f32.mrb[0].mxu0
  %v1035 = vadd.f32 %v316, %v1034
  %v1036 = vpop.f32.mrb[0].mxu0
  %1037 = vmatprep.mubr.f32.mxu0 0.0
  %1038 = vmatmul.mubr.f32.gmra.mrb[0].mxu0 %v170
  %v1039 = vpop.f32.mrb[0].mxu0
  %v1040 = vadd.f32 %v316, %v1039
  %v1041 = vpop.f32.mrb[0].mxu0
  %1042 = vmatprep.mubr.f32.mxu0 0.0
  %1043 = vmatmul.mubr.f32.gmra.mrb[0].mxu0 %v171
  %v1044 = vpop.f32.mrb[0].mxu0
  %v1045 = vadd.f32 %v316, %v1044
  %v1046 = vpop.f32.mrb[0].mxu0
  %1047 = vmatprep.mubr.f32.mxu0 0.0
  %1048 = vmatmul.mubr.f32.gmra.mrb[0].mxu0 %v172
  %v1049 = vpop.f32.mrb[0].mxu0
  %v1050 = vadd.f32 %v316, %v1049
  %v1051 = vpop.f32.mrb[0].mxu0
  %1052 = vmatprep.mubr.f32.mxu0 0.0
  %1053 = vmatmul.mubr.f32.gmra.mrb[0].mxu0 %v173
  %v1054 = vpop.f32.mrb[0].mxu0
  %v1055 = vadd.f32 %v316, %v1054
  %v1056 = vpop.f32.mrb[0].mxu0
  %1057 = vmatprep.mubr.f32.mxu0 0.0
  %1058 = vmatmul.mubr.f32.gmra.mrb[0].mxu0 %v174
  %v1059 = vpop.f32.mrb[0].mxu0
  %v1060 = vadd.f32 %v316, %v1059
  %v1061 = vpop.f32.mrb[0].mxu0
  %1062 = vmatprep.mubr.f32.mxu0 0.0
  %1063 = vmatmul.mubr.f32.gmra.mrb[0].mxu0 %v175
  %v1064 = vpop.f32.mrb[0].mxu0
  %v1065 = vadd.f32 %v316, %v1064
  %v1066 = vpop.f32.mrb[0].mxu0
  %1067 = vmatprep.mubr.f32.mxu0 0.0
  %1068 = vmatmul.mubr.f32.gmra.mrb[0].mxu0 %v176
  %v1069 = vpop.f32.mrb[0].mxu0
  %v1070 = vadd.f32 %v316, %v1069
  %v1071 = vpop.f32.mrb[0].mxu0
  %1072 = vmatprep.mubr.f32.mxu0 0.0
  %1073 = vmatmul.mubr.f32.gmra.mrb[0].mxu0 %v177
  %v1074 = vpop.f32.mrb[0].mxu0
  %v1075 = vadd.f32 %v316, %v1074
  %v1076 = vpop.f32.mrb[0].mxu0
  %1077 = vmatprep.mubr.f32.mxu0 0.0
  %1078 = vmatmul.mubr.f32.gmra.mrb[0].mxu0 %v178
  %v1079 = vpop.f32.mrb[0].mxu0
  %v1080 = vadd.f32 %v316, %v1079
  %v1081 = vpop.f32.mrb[0].mxu0
  %1082 = vmatprep.mubr.f32.mxu0 0.0
  %1083 = vmatmul.mubr.f32.gmra.mrb[0].mxu0 %v179
  %v1084 = vpop.f32.mrb[0].mxu0
  %v1085 = vadd.f32 %v316, %v1084
  %v1086 = vpop.f32.mrb[0].mxu0
  %1087 = vmatprep.mubr.f32.mxu0 0.0
  %1088 = vmatmul.mubr.f32.gmra.mrb[0].mxu0 %v180
  %v1089 = vpop.f32.mrb[0].mxu0
  %v1090 = vadd.f32 %v316, %v1089
  %v1091 = vpop.f32.mrb[0].mxu0
  %1092 = vmatprep.mubr.f32.mxu0 0.0
  %1093 = vmatmul.mubr.f32.gmra.mrb[0].mxu0 %v181
  %v1094 = vpop.f32.mrb[0].mxu0
  %v1095 = vadd.f32 %v316, %v1094
  %v1096 = vpop.f32.mrb[0].mxu0
  %1097 = vmatprep.mubr.f32.mxu0 0.0
  %1098 = vmatmul.mubr.f32.gmra.mrb[0].mxu0 %v182
  %v1099 = vpop.f32.mrb[0].mxu0
  %v1100 = vadd.f32 %v316, %v1099
  %v1101 = vpop.f32.mrb[0].mxu0
  %1102 = vmatprep.mubr.f32.mxu0 0.0
  %1103 = vmatmul.mubr.f32.gmra.mrb[0].mxu0 %v183
  %v1104 = vpop.f32.mrb[0].mxu0
  %v1105 = vadd.f32 %v316, %v1104
  %v1106 = vpop.f32.mrb[0].mxu0
  %1107 = vmatprep.mubr.f32.mxu0 0.0
  %1108 = vmatmul.mubr.f32.gmra.mrb[0].mxu0 %v184
  %v1109 = vpop.f32.mrb[0].mxu0
  %v1110 = vadd.f32 %v316, %v1109
  %v1111 = vpop.f32.mrb[0].mxu0
  %1112 = vmatprep.mubr.f32.mxu0 0.0
  %1113 = vmatmul.mubr.f32.gmra.mrb[0].mxu0 %v185
  %v1114 = vpop.f32.mrb[0].mxu0
  %v1115 = vadd.f32 %v316, %v1114
  %v1116 = vpop.f32.mrb[0].mxu0
  %1117 = vmatprep.mubr.f32.mxu0 0.0
  %1118 = vmatmul.mubr.f32.gmra.mrb[0].mxu0 %v186
  %v1119 = vpop.f32.mrb[0].mxu0
  %v1120 = vadd.f32 %v316, %v1119
  %v1121 = vpop.f32.mrb[0].mxu0
  %1122 = vmatprep.mubr.f32.mxu0 0.0
  %1123 = vmatmul.mubr.f32.gmra.mrb[0].mxu0 %v187
  %v1124 = vpop.f32.mrb[0].mxu0
  %v1125 = vadd.f32 %v316, %v1124
  %v1126 = vpop.f32.mrb[0].mxu0
  %1127 = vmatprep.mubr.f32.mxu0 0.0
  %1128 = vmatmul.mubr.f32.gmra.mrb[0].mxu0 %v188
  %v1129 = vpop.f32.mrb[0].mxu0
  %v1130 = vadd.f32 %v316, %v1129
  %v1131 = vpop.f32.mrb[0].mxu0
  %1132 = vmatprep.mubr.f32.mxu0 0.0
  %1133 = vmatmul.mubr.f32.gmra.mrb[0].mxu0 %v189
  %v1134 = vpop.f32.mrb[0].mxu0
  %v1135 = vadd.f32 %v316, %v1134
  %v1136 = vpop.f32.mrb[0].mxu0
  %1137 = vmatprep.mubr.f32.mxu0 0.0
  %1138 = vmatmul.mubr.f32.gmra.mrb[0].mxu0 %v190
  %v1139 = vpop.f32.mrb[0].mxu0
  %v1140 = vadd.f32 %v316, %v1139
  %v1141 = vpop.f32.mrb[0].mxu0
  %1142 = vmatprep.mubr.f32.mxu0 0.0
  %1143 = vmatmul.mubr.f32.gmra.mrb[0].mxu0 %v191
  %v1144 = vpop.f32.mrb[0].mxu0
  %v1145 = vadd.f32 %v316, %v1144
  %v1146 = vpop.f32.mrb[0].mxu0
  %1147 = vmatprep.mubr.f32.mxu0 0.0
  %1148 = vmatmul.mubr.f32.gmra.mrb[0].mxu0 %v192
  %v1149 = vpop.f32.mrb[0].mxu0
  %v1150 = vadd.f32 %v316, %v1149
  %v1151 = vpop.f32.mrb[0].mxu0
  %1152 = vmatprep.mubr.f32.mxu0 0.0
  %1153 = vmatmul.mubr.f32.gmra.mrb[0].mxu0 %v193
  %v1154 = vpop.f32.mrb[0].mxu0
  %v1155 = vadd.f32 %v316, %v1154
  %v1156 = vpop.f32.mrb[0].mxu0
  %1157 = vmatprep.mubr.f32.mxu0 0.0
  %1158 = vmatmul.mubr.f32.gmra.mrb[0].mxu0 %v194
  %v1159 = vpop.f32.mrb[0].mxu0
  %v1160 = vadd.f32 %v316, %v1159
  %v1161 = vpop.f32.mrb[0].mxu0
  %1162 = vmatprep.mubr.f32.mxu0 0.0
  %1163 = vmatmul.mubr.f32.gmra.mrb[0].mxu0 %v195
  %v1164 = vpop.f32.mrb[0].mxu0
  %v1165 = vadd.f32 %v316, %v1164
  %v1166 = vpop.f32.mrb[0].mxu0
  %1167 = vmatprep.mubr.f32.mxu0 0.0
  %1168 = vmatmul.mubr.f32.gmra.mrb[0].mxu0 %v196
  %v1169 = vpop.f32.mrb[0].mxu0
  %v1170 = vadd.f32 %v316, %v1169
  %v1171 = vpop.f32.mrb[0].mxu0
  %1172 = vmatprep.mubr.f32.mxu0 0.0
  %1173 = vmatmul.mubr.f32.gmra.mrb[0].mxu0 %v197
  %v1174 = vpop.f32.mrb[0].mxu0
  %v1175 = vadd.f32 %v316, %v1174
  %v1176 = vpop.f32.mrb[0].mxu0
  %1177 = vmatprep.mubr.f32.mxu0 0.0
  %1178 = vmatmul.mubr.f32.gmra.mrb[0].mxu0 %v198
  %v1179 = vpop.f32.mrb[0].mxu0
  %v1180 = vadd.f32 %v316, %v1179
  %v1181 = vpop.f32.mrb[0].mxu0
  %1182 = vmatprep.mubr.f32.mxu0 0.0
  %1183 = vmatmul.mubr.f32.gmra.mrb[0].mxu0 %v199
  %v1184 = vpop.f32.mrb[0].mxu0
  %v1185 = vadd.f32 %v316, %v1184
  %v1186 = vpop.f32.mrb[0].mxu0
  %1187 = vmatprep.mubr.f32.mxu0 0.0
  %1188 = vmatmul.mubr.f32.gmra.mrb[0].mxu0 %v200
  %v1189 = vpop.f32.mrb[0].mxu0
  %v1190 = vadd.f32 %v316, %v1189
  %v1191 = vpop.f32.mrb[0].mxu0
  %1192 = vmatprep.mubr.f32.mxu0 0.0
  %1193 = vmatmul.mubr.f32.gmra.mrb[0].mxu0 %v201
  %v1194 = vpop.f32.mrb[0].mxu0
  %v1195 = vadd.f32 %v316, %v1194
  %v1196 = vpop.f32.mrb[0].mxu0
  %1197 = vmatprep.mubr.f32.mxu0 0.0
  %1198 = vmatmul.mubr.f32.gmra.mrb[0].mxu0 %v202
  %v1199 = vpop.f32.mrb[0].mxu0
  %v1200 = vadd.f32 %v316, %v1199
  %v1201 = vpop.f32.mrb[0].mxu0
  %1202 = vmatprep.mubr.f32.mxu0 0.0
  %1203 = vmatmul.mubr.f32.gmra.mrb[0].mxu0 %v203
  %v1204 = vpop.f32.mrb[0].mxu0
  %v1205 = vadd.f32 %v316, %v1204
  %v1206 = vpop.f32.mrb[0].mxu0
  %1207 = vmatprep.mubr.f32.mxu0 0.0
  %1208 = vmatmul.mubr.f32.gmra.mrb[0].mxu0 %v204
  %v1209 = vpop.f32.mrb[0].mxu0
  %v1210 = vadd.f32 %v316, %v1209
  %v1211 = vpop.f32.mrb[0].mxu0
  %1212 = vmatprep.mubr.f32.mxu0 0.0
  %1213 = vmatmul.mubr.f32.gmra.mrb[0].mxu0 %v205
  %v1214 = vpop.f32.mrb[0].mxu0
  %v1215 = vadd.f32 %v316, %v1214
  %v1216 = vpop.f32.mrb[0].mxu0
  %1217 = vmatprep.mubr.f32.mxu0 0.0
  %1218 = vmatmul.mubr.f32.gmra.mrb[0].mxu0 %v206
  %v1219 = vpop.f32.mrb[0].mxu0
  %v1220 = vadd.f32 %v316, %v1219
  %v1221 = vpop.f32.mrb[0].mxu0
  %1222 = vmatprep.mubr.f32.mxu0 0.0
  %1223 = vmatmul.mubr.f32.gmra.mrb[0].mxu0 %v207
  %v1224 = vpop.f32.mrb[0].mxu0
  %v1225 = vadd.f32 %v316, %v1224
  %v1226 = vpop.f32.mrb[0].mxu0
  %1227 = vmatprep.mubr.f32.mxu0 0.0
  %1228 = vmatmul.mubr.f32.gmra.mrb[0].mxu0 %v208
  %v1229 = vpop.f32.mrb[0].mxu0
  %v1230 = vadd.f32 %v316, %v1229
  %v1231 = vpop.f32.mrb[0].mxu0
  %1232 = vmatprep.mubr.f32.mxu0 0.0
  %1233 = vmatmul.mubr.f32.gmra.mrb[0].mxu0 %v209
  %v1234 = vpop.f32.mrb[0].mxu0
  %v1235 = vadd.f32 %v316, %v1234
  %v1236 = vpop.f32.mrb[0].mxu0
  %1237 = vmatprep.mubr.f32.mxu0 0.0
  %1238 = vmatmul.mubr.f32.gmra.mrb[0].mxu0 %v210
  %v1239 = vpop.f32.mrb[0].mxu0
  %v1240 = vadd.f32 %v316, %v1239
  %v1241 = vpop.f32.mrb[0].mxu0
  %1242 = vmatprep.mubr.f32.mxu0 0.0
  %1243 = vmatmul.mubr.f32.gmra.mrb[0].mxu0 %v211
  %v1244 = vpop.f32.mrb[0].mxu0
  %v1245 = vadd.f32 %v316, %v1244
  %v1246 = vpop.f32.mrb[0].mxu0
  %1247 = vmatprep.mubr.f32.mxu0 0.0
  %1248 = vmatmul.mubr.f32.gmra.mrb[0].mxu0 %v212
  %v1249 = vpop.f32.mrb[0].mxu0
  %v1250 = vadd.f32 %v316, %v1249
  %v1251 = vpop.f32.mrb[0].mxu0
  %1252 = vmatprep.mubr.f32.mxu0 0.0
  %1253 = vmatmul.mubr.f32.gmra.mrb[0].mxu0 %v213
  %v1254 = vpop.f32.mrb[0].mxu0
  %v1255 = vadd.f32 %v316, %v1254
  %v1256 = vpop.f32.mrb[0].mxu0
  %1257 = vmatprep.mubr.f32.mxu0 0.0
  %1258 = vmatmul.mubr.f32.gmra.mrb[0].mxu0 %v214
  %v1259 = vpop.f32.mrb[0].mxu0
  %v1260 = vadd.f32 %v316, %v1259
  %v1261 = vpop.f32.mrb[0].mxu0
  %1262 = vmatprep.mubr.f32.mxu0 0.0
  %1263 = vmatmul.mubr.f32.gmra.mrb[0].mxu0 %v215
  %v1264 = vpop.f32.mrb[0].mxu0
  %v1265 = vadd.f32 %v316, %v1264
  %v1266 = vpop.f32.mrb[0].mxu0
  %1267 = vmatprep.mubr.f32.mxu0 0.0
  %1268 = vmatmul.mubr.f32.gmra.mrb[0].mxu0 %v216
  %v1269 = vpop.f32.mrb[0].mxu0
  %v1270 = vadd.f32 %v316, %v1269
  %v1271 = vpop.f32.mrb[0].mxu0
  %1272 = vmatprep.mubr.f32.mxu0 0.0
  %1273 = vmatmul.mubr.f32.gmra.mrb[0].mxu0 %v217
  %v1274 = vpop.f32.mrb[0].mxu0
  %v1275 = vadd.f32 %v316, %v1274
  %v1276 = vpop.f32.mrb[0].mxu0
  %1277 = vmatprep.mubr.f32.mxu0 0.0
  %1278 = vmatmul.mubr.f32.gmra.mrb[0].mxu0 %v218
  %v1279 = vpop.f32.mrb[0].mxu0
  %v1280 = vadd.f32 %v316, %v1279
  %v1281 = vpop.f32.mrb[0].mxu0
  %1282 = vmatprep.mubr.f32.mxu0 0.0
  %1283 = vmatmul.mubr.f32.gmra.mrb[0].mxu0 %v219
  %v1284 = vpop.f32.mrb[0].mxu0
  %v1285 = vadd.f32 %v316, %v1284
  %v1286 = vpop.f32.mrb[0].mxu0
  %1287 = vmatprep.mubr.f32.mxu0 0.0
  %1288 = vmatmul.mubr.f32.gmra.mrb[0].mxu0 %v220
  %v1289 = vpop.f32.mrb[0].mxu0
  %v1290 = vadd.f32 %v316, %v1289
  %v1291 = vpop.f32.mrb[0].mxu0
  %1292 = vmatprep.mubr.f32.mxu0 0.0
  %1293 = vmatmul.mubr.f32.gmra.mrb[0].mxu0 %v221
  %v1294 = vpop.f32.mrb[0].mxu0
  %v1295 = vadd.f32 %v316, %v1294
  %v1296 = vpop.f32.mrb[0].mxu0
  %1297 = vmatprep.mubr.f32.mxu0 0.0
  %1298 = vmatmul.mubr.f32.gmra.mrb[0].mxu0 %v222
  %v1299 = vpop.f32.mrb[0].mxu0
  %v1300 = vadd.f32 %v316, %v1299
  %v1301 = vpop.f32.mrb[0].mxu0
  %1302 = vmatprep.mubr.f32.mxu0 0.0
  %1303 = vmatmul.mubr.f32.gmra.mrb[0].mxu0 %v223
  %v1304 = vpop.f32.mrb[0].mxu0
  %v1305 = vadd.f32 %v316, %v1304
  %v1306 = vpop.f32.mrb[0].mxu0
  %1307 = vmatprep.mubr.f32.mxu0 0.0
  %1308 = vmatmul.mubr.f32.gmra.mrb[0].mxu0 %v224
  %v1309 = vpop.f32.mrb[0].mxu0
  %v1310 = vadd.f32 %v316, %v1309
  %v1311 = vpop.f32.mrb[0].mxu0
  %1312 = vmatprep.mubr.f32.mxu0 0.0
  %1313 = vmatmul.mubr.f32.gmra.mrb[0].mxu0 %v225
  %v1314 = vpop.f32.mrb[0].mxu0
  %v1315 = vadd.f32 %v316, %v1314
  %v1316 = vpop.f32.mrb[0].mxu0
  %1317 = vmatprep.mubr.f32.mxu0 0.0
  %1318 = vmatmul.mubr.f32.gmra.mrb[0].mxu0 %v226
  %v1319 = vpop.f32.mrb[0].mxu0
  %v1320 = vadd.f32 %v316, %v1319
  %v1321 = vpop.f32.mrb[0].mxu0
  %1322 = vmatprep.mubr.f32.mxu0 0.0
  %1323 = vmatmul.mubr.f32.gmra.mrb[0].mxu0 %v227
  %v1324 = vpop.f32.mrb[0].mxu0
  %v1325 = vadd.f32 %v316, %v1324
  %v1326 = vpop.f32.mrb[0].mxu0
  %1327 = vmatprep.mubr.f32.mxu0 0.0
  %1328 = vmatmul.mubr.f32.gmra.mrb[0].mxu0 %v228
  %v1329 = vpop.f32.mrb[0].mxu0
  %v1330 = vadd.f32 %v316, %v1329
  %v1331 = vpop.f32.mrb[0].mxu0
  %1332 = vmatprep.mubr.f32.mxu0 0.0
  %1333 = vmatmul.mubr.f32.gmra.mrb[0].mxu0 %v229
  %v1334 = vpop.f32.mrb[0].mxu0
  %v1335 = vadd.f32 %v316, %v1334
  %v1336 = vpop.f32.mrb[0].mxu0
  %1337 = vmatprep.mubr.f32.mxu0 0.0
  %1338 = vmatmul.mubr.f32.gmra.mrb[0].mxu0 %v230
  %v1339 = vpop.f32.mrb[0].mxu0
  %v1340 = vadd.f32 %v316, %v1339
  %v1341 = vpop.f32.mrb[0].mxu0
  %1342 = vmatprep.mubr.f32.mxu0 0.0
  %1343 = vmatmul.mubr.f32.gmra.mrb[0].mxu0 %v231
  %v1344 = vpop.f32.mrb[0].mxu0
  %v1345 = vadd.f32 %v316, %v1344
  %v1346 = vpop.f32.mrb[0].mxu0
  %1347 = vmatprep.mubr.f32.mxu0 0.0
  %1348 = vmatmul.mubr.f32.gmra.mrb[0].mxu0 %v232
  %v1349 = vpop.f32.mrb[0].mxu0
  %v1350 = vadd.f32 %v316, %v1349
  %v1351 = vpop.f32.mrb[0].mxu0
  %1352 = vmatprep.mubr.f32.mxu0 0.0
  %1353 = vmatmul.mubr.f32.gmra.mrb[0].mxu0 %v233
  %v1354 = vpop.f32.mrb[0].mxu0
  %v1355 = vadd.f32 %v316, %v1354
  %v1356 = vpop.f32.mrb[0].mxu0
  %1357 = vmatprep.mubr.f32.mxu0 0.0
  %1358 = vmatmul.mubr.f32.gmra.mrb[0].mxu0 %v234
  %v1359 = vpop.f32.mrb[0].mxu0
  %v1360 = vadd.f32 %v316, %v1359
  %v1361 = vpop.f32.mrb[0].mxu0
  %1362 = vmatprep.mubr.f32.mxu0 0.0
  %1363 = vmatmul.mubr.f32.gmra.mrb[0].mxu0 %v235
  %v1364 = vpop.f32.mrb[0].mxu0
  %v1365 = vadd.f32 %v316, %v1364
  %v1366 = vpop.f32.mrb[0].mxu0
  %1367 = vmatprep.mubr.f32.mxu0 0.0
  %1368 = vmatmul.mubr.f32.gmra.mrb[0].mxu0 %v236
  %v1369 = vpop.f32.mrb[0].mxu0
  %v1370 = vadd.f32 %v316, %v1369
  %v1371 = vpop.f32.mrb[0].mxu0
  %1372 = vmatprep.mubr.f32.mxu0 0.0
  %1373 = vmatmul.mubr.f32.gmra.mrb[0].mxu0 %v237
  %v1374 = vpop.f32.mrb[0].mxu0
  %v1375 = vadd.f32 %v316, %v1374
  %v1376 = vpop.f32.mrb[0].mxu0
  %1377 = vmatprep.mubr.f32.mxu0 0.0
  %1378 = vmatmul.mubr.f32.gmra.mrb[0].mxu0 %v238
  %v1379 = vpop.f32.mrb[0].mxu0
  %v1380 = vadd.f32 %v316, %v1379
  %v1381 = vpop.f32.mrb[0].mxu0
  %1382 = vmatprep.mubr.f32.mxu0 0.0
  %1383 = vmatmul.mubr.f32.gmra.mrb[0].mxu0 %v239
  %v1384 = vpop.f32.mrb[0].mxu0
  %v1385 = vadd.f32 %v316, %v1384
  %v1386 = vpop.f32.mrb[0].mxu0
  %1387 = vmatprep.mubr.f32.mxu0 0.0
  %1388 = vmatmul.mubr.f32.gmra.mrb[0].mxu0 %v240
  %v1389 = vpop.f32.mrb[0].mxu0
  %v1390 = vadd.f32 %v316, %v1389
  %v1391 = vpop.f32.mrb[0].mxu0
  %1392 = vmatprep.mubr.f32.mxu0 0.0
  %1393 = vmatmul.mubr.f32.gmra.mrb[0].mxu0 %v241
  %v1394 = vpop.f32.mrb[0].mxu0
  %v1395 = vadd.f32 %v316, %v1394
  %v1396 = vpop.f32.mrb[0].mxu0
  %1397 = vmatprep.mubr.f32.mxu0 0.0
  %1398 = vmatmul.mubr.f32.gmra.mrb[0].mxu0 %v242
  %v1399 = vpop.f32.mrb[0].mxu0
  %v1400 = vadd.f32 %v316, %v1399
  %v1401 = vpop.f32.mrb[0].mxu0
  %1402 = vmatprep.mubr.f32.mxu0 0.0
  %1403 = vmatmul.mubr.f32.gmra.mrb[0].mxu0 %v243
  %v1404 = vpop.f32.mrb[0].mxu0
  %v1405 = vadd.f32 %v316, %v1404
  %v1406 = vpop.f32.mrb[0].mxu0
  %1407 = vmatprep.mubr.f32.mxu0 0.0
  %1408 = vmatmul.mubr.f32.gmra.mrb[0].mxu0 %v244
  %v1409 = vpop.f32.mrb[0].mxu0
  %v1410 = vadd.f32 %v316, %v1409
  %v1411 = vpop.f32.mrb[0].mxu0
  %1412 = vmatprep.mubr.f32.mxu0 0.0
  %1413 = vmatmul.mubr.f32.gmra.mrb[0].mxu0 %v245
  %v1414 = vpop.f32.mrb[0].mxu0
  %v1415 = vadd.f32 %v316, %v1414
  %v1416 = vpop.f32.mrb[0].mxu0
  %1417 = vmatprep.mubr.f32.mxu0 0.0
  %1418 = vmatmul.mubr.f32.gmra.mrb[0].mxu0 %v246
  %v1419 = vpop.f32.mrb[0].mxu0
  %v1420 = vadd.f32 %v316, %v1419
  %v1421 = vpop.f32.mrb[0].mxu0
  %1422 = vmatprep.mubr.f32.mxu0 0.0
  %1423 = vmatmul.mubr.f32.gmra.mrb[0].mxu0 %v247
  %v1424 = vpop.f32.mrb[0].mxu0
  %v1425 = vadd.f32 %v316, %v1424
  %v1426 = vpop.f32.mrb[0].mxu0
  %1427 = vmatprep.mubr.f32.mxu0 0.0
  %1428 = vmatmul.mubr.f32.gmra.mrb[0].mxu0 %v248
  %v1429 = vpop.f32.mrb[0].mxu0
  %v1430 = vadd.f32 %v316, %v1429
  %v1431 = vpop.f32.mrb[0].mxu0
  %1432 = vmatprep.mubr.f32.mxu0 0.0
  %1433 = vmatmul.mubr.f32.gmra.mrb[0].mxu0 %v249
  %v1434 = vpop.f32.mrb[0].mxu0
  %v1435 = vadd.f32 %v316, %v1434
  %v1436 = vpop.f32.mrb[0].mxu0
  %1437 = vmatprep.mubr.f32.mxu0 0.0
  %1438 = vmatmul.mubr.f32.gmra.mrb[0].mxu0 %v250
  %v1439 = vpop.f32.mrb[0].mxu0
  %v1440 = vadd.f32 %v316, %v1439
  %v1441 = vpop.f32.mrb[0].mxu0
  %1442 = vmatprep.mubr.f32.mxu0 0.0
  %1443 = vmatmul.mubr.f32.gmra.mrb[0].mxu0 %v251
  %v1444 = vpop.f32.mrb[0].mxu0
  %v1445 = vadd.f32 %v316, %v1444
  %v1446 = vpop.f32.mrb[0].mxu0
  %1447 = vmatprep.mubr.f32.mxu0 0.0
  %1448 = vmatmul.mubr.f32.gmra.mrb[0].mxu0 %v252
  %v1449 = vpop.f32.mrb[0].mxu0
  %v1450 = vadd.f32 %v316, %v1449
  %v1451 = vpop.f32.mrb[0].mxu0
  %1452 = vmatprep.mubr.f32.mxu0 0.0
  %1453 = vmatmul.mubr.f32.gmra.mrb[0].mxu0 %v253
  %v1454 = vpop.f32.mrb[0].mxu0
  %v1455 = vadd.f32 %v316, %v1454
  %v1456 = vpop.f32.mrb[0].mxu0
  %1457 = vmatprep.mubr.f32.mxu0 0.0
  %1458 = vmatmul.mubr.f32.gmra.mrb[0].mxu0 %v254
  %v1459 = vpop.f32.mrb[0].mxu0
  %v1460 = vadd.f32 %v316, %v1459
  %v1461 = vpop.f32.mrb[0].mxu0
  %1462 = vmatprep.mubr.f32.mxu0 0.0
  %1463 = vmatmul.mubr.f32.gmra.mrb[0].mxu0 %v255
  %v1464 = vpop.f32.mrb[0].mxu0
  %v1465 = vadd.f32 %v316, %v1464
  %v1466 = vpop.f32.mrb[0].mxu0
  %1467 = vmatprep.mubr.f32.mxu0 0.0
  %1468 = vmatmul.mubr.f32.gmra.mrb[0].mxu0 %v256
  %v1469 = vpop.f32.mrb[0].mxu0
  %v1470 = vadd.f32 %v316, %v1469
  %v1471 = vpop.f32.mrb[0].mxu0
  %1472 = vmatprep.mubr.f32.mxu0 0.0
  %1473 = vmatmul.mubr.f32.gmra.mrb[0].mxu0 %v257
  %v1474 = vpop.f32.mrb[0].mxu0
  %v1475 = vadd.f32 %v316, %v1474
  %v1476 = vpop.f32.mrb[0].mxu0
  %1477 = vmatprep.mubr.f32.mxu0 0.0
  %1478 = vmatmul.mubr.f32.gmra.mrb[0].mxu0 %v258
  %v1479 = vpop.f32.mrb[0].mxu0
  %v1480 = vadd.f32 %v316, %v1479
  %v1481 = vpop.f32.mrb[0].mxu0
  %1482 = vmatprep.mubr.f32.mxu0 0.0
  %1483 = vmatmul.mubr.f32.gmra.mrb[0].mxu0 %v259
  %v1484 = vpop.f32.mrb[0].mxu0
  %v1485 = vadd.f32 %v316, %v1484
  %v1486 = vpop.f32.mrb[0].mxu0
  %1487 = vmatprep.mubr.f32.mxu0 0.0
  %1488 = vmatmul.mubr.f32.gmra.mrb[0].mxu0 %v260
  %v1489 = vpop.f32.mrb[0].mxu0
  %v1490 = vadd.f32 %v316, %v1489
  %v1491 = vpop.f32.mrb[0].mxu0
  %1492 = vmatprep.mubr.f32.mxu0 0.0
  %1493 = vmatmul.mubr.f32.gmra.mrb[0].mxu0 %v261
  %v1494 = vpop.f32.mrb[0].mxu0
  %v1495 = vadd.f32 %v316, %v1494
  %v1496 = vpop.f32.mrb[0].mxu0
  %1497 = vmatprep.mubr.f32.mxu0 0.0
  %1498 = vmatmul.mubr.f32.gmra.mrb[0].mxu0 %v262
  %v1499 = vpop.f32.mrb[0].mxu0
  %v1500 = vadd.f32 %v316, %v1499
  %v1501 = vpop.f32.mrb[0].mxu0
  %1502 = vmatprep.mubr.f32.mxu0 0.0
  %1503 = vmatmul.mubr.f32.gmra.mrb[0].mxu0 %v263
  %v1504 = vpop.f32.mrb[0].mxu0
  %v1505 = vadd.f32 %v316, %v1504
  %v1506 = vpop.f32.mrb[0].mxu0
  %1507 = vmatprep.mubr.f32.mxu0 0.0
  %1508 = vmatmul.mubr.f32.gmra.mrb[0].mxu0 %v264
  %v1509 = vpop.f32.mrb[0].mxu0
  %v1510 = vadd.f32 %v316, %v1509
  %v1511 = vpop.f32.mrb[0].mxu0
  %1512 = vmatprep.mubr.f32.mxu0 0.0
  %1513 = vmatmul.mubr.f32.gmra.mrb[0].mxu0 %v265
  %v1514 = vpop.f32.mrb[0].mxu0
  %v1515 = vadd.f32 %v316, %v1514
  %v1516 = vpop.f32.mrb[0].mxu0
  %1517 = vmatprep.mubr.f32.mxu0 0.0
  %1518 = vmatmul.mubr.f32.gmra.mrb[0].mxu0 %v266
  %v1519 = vpop.f32.mrb[0].mxu0
  %v1520 = vadd.f32 %v316, %v1519
  %v1521 = vpop.f32.mrb[0].mxu0
  %1522 = vmatprep.mubr.f32.mxu0 0.0
  %1523 = vmatmul.mubr.f32.gmra.mrb[0].mxu0 %v267
  %v1524 = vpop.f32.mrb[0].mxu0
  %v1525 = vadd.f32 %v316, %v1524
  %v1526 = vpop.f32.mrb[0].mxu0
  %1527 = vmatprep.mubr.f32.mxu0 0.0
  %1528 = vmatmul.mubr.f32.gmra.mrb[0].mxu0 %v268
  %v1529 = vpop.f32.mrb[0].mxu0
  %v1530 = vadd.f32 %v316, %v1529
  %v1531 = vpop.f32.mrb[0].mxu0
  %1532 = vmatprep.mubr.f32.mxu0 0.0
  %1533 = vmatmul.mubr.f32.gmra.mrb[0].mxu0 %v269
  %v1534 = vpop.f32.mrb[0].mxu0
  %v1535 = vadd.f32 %v316, %v1534
  %v1536 = vpop.f32.mrb[0].mxu0
  %1537 = vmatprep.mubr.f32.mxu0 0.0
  %1538 = vmatmul.mubr.f32.gmra.mrb[0].mxu0 %v270
  %v1539 = vpop.f32.mrb[0].mxu0
  %v1540 = vadd.f32 %v316, %v1539
  %v1541 = vpop.f32.mrb[0].mxu0
  %1542 = vmatprep.mubr.f32.mxu0 0.0
  %1543 = vmatmul.mubr.f32.gmra.mrb[0].mxu0 %v271
  %v1544 = vpop.f32.mrb[0].mxu0
  %v1545 = vadd.f32 %v316, %v1544
  %v1546 = vpop.f32.mrb[0].mxu0
  %1547 = vmatprep.mubr.f32.mxu0 0.0
  %1548 = vmatmul.mubr.f32.gmra.mrb[0].mxu0 %v272
  %v1549 = vpop.f32.mrb[0].mxu0
  %v1550 = vadd.f32 %v316, %v1549
  %v1551 = vpop.f32.mrb[0].mxu0
  %1552 = vmatprep.mubr.f32.mxu0 0.0
  %1553 = vmatmul.mubr.f32.gmra.mrb[0].mxu0 %v273
  %v1554 = vpop.f32.mrb[0].mxu0
  %v1555 = vadd.f32 %v316, %v1554
  %v1556 = vpop.f32.mrb[0].mxu0
  %1557 = vmatprep.mubr.f32.mxu0 0.0
  %1558 = vmatmul.mubr.f32.gmra.mrb[0].mxu0 %v274
  %v1559 = vpop.f32.mrb[0].mxu0
  %v1560 = vadd.f32 %v316, %v1559
  %v1561 = vpop.f32.mrb[0].mxu0
  %1562 = vmatprep.mubr.f32.mxu0 0.0
  %1563 = vmatmul.mubr.f32.gmra.mrb[0].mxu0 %v275
  %v1564 = vpop.f32.mrb[0].mxu0
  %v1565 = vadd.f32 %v316, %v1564
  %v1566 = vpop.f32.mrb[0].mxu0
  %1567 = vmatprep.mubr.f32.mxu0 0.0
  %1568 = vmatmul.mubr.f32.gmra.mrb[0].mxu0 %v276
  %v1569 = vpop.f32.mrb[0].mxu0
  %v1570 = vadd.f32 %v316, %v1569
  %v1571 = vpop.f32.mrb[0].mxu0
  %1572 = vmatprep.mubr.f32.mxu0 0.0
  %1573 = vmatmul.mubr.f32.gmra.mrb[0].mxu0 %v277
  %v1574 = vpop.f32.mrb[0].mxu0
  %v1575 = vadd.f32 %v316, %v1574
  %v1576 = vpop.f32.mrb[0].mxu0
  %1577 = vmatprep.mubr.f32.mxu0 0.0
  %1578 = vmatmul.mubr.f32.gmra.mrb[0].mxu0 %v278
  %v1579 = vpop.f32.mrb[0].mxu0
  %v1580 = vadd.f32 %v316, %v1579
  %v1581 = vpop.f32.mrb[0].mxu0
  %1582 = vmatprep.mubr.f32.mxu0 0.0
  %1583 = vmatmul.mubr.f32.gmra.mrb[0].mxu0 %v279
  %v1584 = vpop.f32.mrb[0].mxu0
  %v1585 = vadd.f32 %v316, %v1584
  %v1586 = vpop.f32.mrb[0].mxu0
  %1587 = vmatprep.mubr.f32.mxu0 0.0
  %1588 = vmatmul.mubr.f32.gmra.mrb[0].mxu0 %v280
  %v1589 = vpop.f32.mrb[0].mxu0
  %v1590 = vadd.f32 %v316, %v1589
  %v1591 = vpop.f32.mrb[0].mxu0
  %1592 = vmatprep.mubr.f32.mxu0 0.0
  %1593 = vmatmul.mubr.f32.gmra.mrb[0].mxu0 %v281
  %v1594 = vpop.f32.mrb[0].mxu0
  %v1595 = vadd.f32 %v316, %v1594
  %v1596 = vpop.f32.mrb[0].mxu0
  %1597 = vmatprep.mubr.f32.mxu0 0.0
  %1598 = vmatmul.mubr.f32.gmra.mrb[0].mxu0 %v282
  %v1599 = vpop.f32.mrb[0].mxu0
  %v1600 = vadd.f32 %v316, %v1599
  %v1601 = vpop.f32.mrb[0].mxu0
  %1602 = vmatprep.mubr.f32.mxu0 0.0
  %1603 = vmatmul.mubr.f32.gmra.mrb[0].mxu0 %v283
  %v1604 = vpop.f32.mrb[0].mxu0
  %v1605 = vadd.f32 %v316, %v1604
  %v1606 = vpop.f32.mrb[0].mxu0
  %1607 = vmatprep.mubr.f32.mxu0 0.0
  %1608 = vmatmul.mubr.f32.gmra.mrb[0].mxu0 %v284
  %v1609 = vpop.f32.mrb[0].mxu0
  %v1610 = vadd.f32 %v316, %v1609
  %v1611 = vpop.f32.mrb[0].mxu0
  %1612 = vmatprep.mubr.f32.mxu0 0.0
  %1613 = vmatmul.mubr.f32.gmra.mrb[0].mxu0 %v285
  %v1614 = vpop.f32.mrb[0].mxu0
  %v1615 = vadd.f32 %v316, %v1614
  %v1616 = vpop.f32.mrb[0].mxu0
  %1617 = vmatprep.mubr.f32.mxu0 0.0
  %1618 = vmatmul.mubr.f32.gmra.mrb[0].mxu0 %v286
  %v1619 = vpop.f32.mrb[0].mxu0
  %v1620 = vadd.f32 %v316, %v1619
  %v1621 = vpop.f32.mrb[0].mxu0
  %1622 = vmatprep.mubr.f32.mxu0 0.0
  %1623 = vmatmul.mubr.f32.gmra.mrb[0].mxu0 %v287
  %v1624 = vpop.f32.mrb[0].mxu0
  %v1625 = vadd.f32 %v316, %v1624
  %v1626 = vpop.f32.mrb[0].mxu0
  %1627 = vmatprep.mubr.f32.mxu0 0.0
  %1628 = vmatmul.mubr.f32.gmra.mrb[0].mxu0 %v288
  %v1629 = vpop.f32.mrb[0].mxu0
  %v1630 = vadd.f32 %v316, %v1629
  %v1631 = vpop.f32.mrb[0].mxu0
  %1632 = vmatprep.mubr.f32.mxu0 0.0
  %1633 = vmatmul.mubr.f32.gmra.mrb[0].mxu0 %v289
  %v1634 = vpop.f32.mrb[0].mxu0
  %v1635 = vadd.f32 %v316, %v1634
  %v1636 = vpop.f32.mrb[0].mxu0
  %1637 = vmatprep.mubr.f32.mxu0 0.0
  %1638 = vmatmul.mubr.f32.gmra.mrb[0].mxu0 %v290
  %v1639 = vpop.f32.mrb[0].mxu0
  %v1640 = vadd.f32 %v316, %v1639
  %v1641 = vpop.f32.mrb[0].mxu0
  %1642 = vmatprep.mubr.f32.mxu0 0.0
  %1643 = vmatmul.mubr.f32.gmra.mrb[0].mxu0 %v291
  %v1644 = vpop.f32.mrb[0].mxu0
  %v1645 = vadd.f32 %v316, %v1644
  %v1646 = vpop.f32.mrb[0].mxu0
  %1647 = vmatprep.mubr.f32.mxu0 0.0
  %1648 = vmatmul.mubr.f32.gmra.mrb[0].mxu0 %v292
  %v1649 = vpop.f32.mrb[0].mxu0
  %v1650 = vadd.f32 %v316, %v1649
  %v1651 = vpop.f32.mrb[0].mxu0
  %1652 = vmatprep.mubr.f32.mxu0 0.0
  %1653 = vmatmul.mubr.f32.gmra.mrb[0].mxu0 %v293
  %v1654 = vpop.f32.mrb[0].mxu0
  %v1655 = vadd.f32 %v316, %v1654
  %v1656 = vpop.f32.mrb[0].mxu0
  %1657 = vmatprep.mubr.f32.mxu0 0.0
  %1658 = vmatmul.mubr.f32.gmra.mrb[0].mxu0 %v294
  %v1659 = vpop.f32.mrb[0].mxu0
  %v1660 = vadd.f32 %v316, %v1659
  %v1661 = vpop.f32.mrb[0].mxu0
  %1662 = vdwg.mxu0
  %v1663 = vmax.f32 %v385, 0.0
  %v1664 = vmax.f32 %v390, 0.0
  %v1665 = vmax.f32 %v395, 0.0
  %v1666 = vmax.f32 %v400, 0.0
  %v1667 = vmax.f32 %v405, 0.0
  %v1668 = vmax.f32 %v410, 0.0
  %v1669 = vmax.f32 %v415, 0.0
  %v1670 = vmax.f32 %v420, 0.0
  %v1671 = vmax.f32 %v425, 0.0
  %v1672 = vmax.f32 %v430, 0.0
  %v1673 = vmax.f32 %v435, 0.0
  %v1674 = vmax.f32 %v440, 0.0
  %v1675 = vmax.f32 %v445, 0.0
  %v1676 = vmax.f32 %v450, 0.0
  %v1677 = vmax.f32 %v455, 0.0
  %v1678 = vmax.f32 %v460, 0.0
  %v1679 = vmax.f32 %v465, 0.0
  %v1680 = vmax.f32 %v470, 0.0
  %v1681 = vmax.f32 %v475, 0.0
  %v1682 = vmax.f32 %v480, 0.0
  %v1683 = vmax.f32 %v485, 0.0
  %v1684 = vmax.f32 %v490, 0.0
  %v1685 = vmax.f32 %v495, 0.0
  %v1686 = vmax.f32 %v500, 0.0
  %v1687 = vmax.f32 %v505, 0.0
  %v1688 = vmax.f32 %v510, 0.0
  %v1689 = vmax.f32 %v515, 0.0
  %v1690 = vmax.f32 %v520, 0.0
  %v1691 = vmax.f32 %v525, 0.0
  %v1692 = vmax.f32 %v530, 0.0
  %v1693 = vmax.f32 %v535, 0.0
  %v1694 = vmax.f32 %v540, 0.0
  %v1695 = vmax.f32 %v545, 0.0
  %v1696 = vmax.f32 %v550, 0.0
  %v1697 = vmax.f32 %v555, 0.0
  %v1698 = vmax.f32 %v560, 0.0
  %v1699 = vmax.f32 %v565, 0.0
  %v1700 = vmax.f32 %v570, 0.0
  %v1701 = vmax.f32 %v575, 0.0
  %v1702 = vmax.f32 %v580, 0.0
  %v1703 = vmax.f32 %v585, 0.0
  %v1704 = vmax.f32 %v590, 0.0
  %v1705 = vmax.f32 %v595, 0.0
  %v1706 = vmax.f32 %v600, 0.0
  %v1707 = vmax.f32 %v605, 0.0
  %v1708 = vmax.f32 %v610, 0.0
  %v1709 = vmax.f32 %v615, 0.0
  %v1710 = vmax.f32 %v620, 0.0
  %v1711 = vmax.f32 %v625, 0.0
  %v1712 = vmax.f32 %v630, 0.0
  %v1713 = vmax.f32 %v635, 0.0
  %v1714 = vmax.f32 %v640, 0.0
  %v1715 = vmax.f32 %v645, 0.0
  %v1716 = vmax.f32 %v650, 0.0
  %v1717 = vmax.f32 %v655, 0.0
  %v1718 = vmax.f32 %v660, 0.0
  %v1719 = vmax.f32 %v665, 0.0
  %v1720 = vmax.f32 %v670, 0.0
  %v1721 = vmax.f32 %v675, 0.0
  %v1722 = vmax.f32 %v680, 0.0
  %v1723 = vmax.f32 %v685, 0.0
  %v1724 = vmax.f32 %v690, 0.0
  %v1725 = vmax.f32 %v695, 0.0
  %v1726 = vmax.f32 %v700, 0.0
  %v1727 = vmax.f32 %v705, 0.0
  %v1728 = vmax.f32 %v710, 0.0
  %v1729 = vmax.f32 %v715, 0.0
  %v1730 = vmax.f32 %v720, 0.0
  %v1731 = vmax.f32 %v725, 0.0
  %v1732 = vmax.f32 %v730, 0.0
  %v1733 = vmax.f32 %v735, 0.0
  %v1734 = vmax.f32 %v740, 0.0
  %v1735 = vmax.f32 %v745, 0.0
  %v1736 = vmax.f32 %v750, 0.0
  %v1737 = vmax.f32 %v755, 0.0
  %v1738 = vmax.f32 %v760, 0.0
  %v1739 = vmax.f32 %v765, 0.0
  %v1740 = vmax.f32 %v770, 0.0
  %v1741 = vmax.f32 %v775, 0.0
  %v1742 = vmax.f32 %v780, 0.0
  %v1743 = vmax.f32 %v785, 0.0
  %v1744 = vmax.f32 %v790, 0.0
  %v1745 = vmax.f32 %v795, 0.0
  %v1746 = vmax.f32 %v800, 0.0
  %v1747 = vmax.f32 %v805, 0.0
  %v1748 = vmax.f32 %v810, 0.0
  %v1749 = vmax.f32 %v815, 0.0
  %v1750 = vmax.f32 %v820, 0.0
  %v1751 = vmax.f32 %v825, 0.0
  %v1752 = vmax.f32 %v830, 0.0
  %v1753 = vmax.f32 %v835, 0.0
  %v1754 = vmax.f32 %v840, 0.0
  %v1755 = vmax.f32 %v845, 0.0
  %v1756 = vmax.f32 %v850, 0.0
  %v1757 = vmax.f32 %v855, 0.0
  %v1758 = vmax.f32 %v860, 0.0
  %v1759 = vmax.f32 %v865, 0.0
  %v1760 = vmax.f32 %v870, 0.0
  %v1761 = vmax.f32 %v875, 0.0
  %v1762 = vmax.f32 %v880, 0.0
  %v1763 = vmax.f32 %v885, 0.0
  %v1764 = vmax.f32 %v890, 0.0
  %v1765 = vmax.f32 %v895, 0.0
  %v1766 = vmax.f32 %v900, 0.0
  %v1767 = vmax.f32 %v905, 0.0
  %v1768 = vmax.f32 %v910, 0.0
  %v1769 = vmax.f32 %v915, 0.0
  %v1770 = vmax.f32 %v920, 0.0
  %v1771 = vmax.f32 %v925, 0.0
  %v1772 = vmax.f32 %v930, 0.0
  %v1773 = vmax.f32 %v935, 0.0
  %v1774 = vmax.f32 %v940, 0.0
  %v1775 = vmax.f32 %v945, 0.0
  %v1776 = vmax.f32 %v950, 0.0
  %v1777 = vmax.f32 %v955, 0.0
  %v1778 = vmax.f32 %v960, 0.0
  %v1779 = vmax.f32 %v965, 0.0
  %v1780 = vmax.f32 %v970, 0.0
  %v1781 = vmax.f32 %v975, 0.0
  %v1782 = vmax.f32 %v980, 0.0
  %v1783 = vmax.f32 %v985, 0.0
  %v1784 = vmax.f32 %v990, 0.0
  %v1785 = vmax.f32 %v995, 0.0
  %v1786 = vmax.f32 %v1000, 0.0
  %v1787 = vmax.f32 %v1005, 0.0
  %v1788 = vmax.f32 %v1010, 0.0
  %v1789 = vmax.f32 %v1015, 0.0
  %v1790 = vmax.f32 %v1020, 0.0
  %v1791 = vmax.f32 %v1025, 0.0
  %v1792 = vmax.f32 %v1030, 0.0
  %v1793 = vmax.f32 %v1035, 0.0
  %v1794 = vmax.f32 %v1040, 0.0
  %v1795 = vmax.f32 %v1045, 0.0
  %v1796 = vmax.f32 %v1050, 0.0
  %v1797 = vmax.f32 %v1055, 0.0
  %v1798 = vmax.f32 %v1060, 0.0
  %v1799 = vmax.f32 %v1065, 0.0
  %v1800 = vmax.f32 %v1070, 0.0
  %v1801 = vmax.f32 %v1075, 0.0
  %v1802 = vmax.f32 %v1080, 0.0
  %v1803 = vmax.f32 %v1085, 0.0
  %v1804 = vmax.f32 %v1090, 0.0
  %v1805 = vmax.f32 %v1095, 0.0
  %v1806 = vmax.f32 %v1100, 0.0
  %v1807 = vmax.f32 %v1105, 0.0
  %v1808 = vmax.f32 %v1110, 0.0
  %v1809 = vmax.f32 %v1115, 0.0
  %v1810 = vmax.f32 %v1120, 0.0
  %v1811 = vmax.f32 %v1125, 0.0
  %v1812 = vmax.f32 %v1130, 0.0
  %v1813 = vmax.f32 %v1135, 0.0
  %v1814 = vmax.f32 %v1140, 0.0
  %v1815 = vmax.f32 %v1145, 0.0
  %v1816 = vmax.f32 %v1150, 0.0
  %v1817 = vmax.f32 %v1155, 0.0
  %v1818 = vmax.f32 %v1160, 0.0
  %v1819 = vmax.f32 %v1165, 0.0
  %v1820 = vmax.f32 %v1170, 0.0
  %v1821 = vmax.f32 %v1175, 0.0
  %v1822 = vmax.f32 %v1180, 0.0
  %v1823 = vmax.f32 %v1185, 0.0
  %v1824 = vmax.f32 %v1190, 0.0
  %v1825 = vmax.f32 %v1195, 0.0
  %v1826 = vmax.f32 %v1200, 0.0
  %v1827 = vmax.f32 %v1205, 0.0
  %v1828 = vmax.f32 %v1210, 0.0
  %v1829 = vmax.f32 %v1215, 0.0
  %v1830 = vmax.f32 %v1220, 0.0
  %v1831 = vmax.f32 %v1225, 0.0
  %v1832 = vmax.f32 %v1230, 0.0
  %v1833 = vmax.f32 %v1235, 0.0
  %v1834 = vmax.f32 %v1240, 0.0
  %v1835 = vmax.f32 %v1245, 0.0
  %v1836 = vmax.f32 %v1250, 0.0
  %v1837 = vmax.f32 %v1255, 0.0
  %v1838 = vmax.f32 %v1260, 0.0
  %v1839 = vmax.f32 %v1265, 0.0
  %v1840 = vmax.f32 %v1270, 0.0
  %v1841 = vmax.f32 %v1275, 0.0
  %v1842 = vmax.f32 %v1280, 0.0
  %v1843 = vmax.f32 %v1285, 0.0
  %v1844 = vmax.f32 %v1290, 0.0
  %v1845 = vmax.f32 %v1295, 0.0
  %v1846 = vmax.f32 %v1300, 0.0
  %v1847 = vmax.f32 %v1305, 0.0
  %v1848 = vmax.f32 %v1310, 0.0
  %v1849 = vmax.f32 %v1315, 0.0
  %v1850 = vmax.f32 %v1320, 0.0
  %v1851 = vmax.f32 %v1325, 0.0
  %v1852 = vmax.f32 %v1330, 0.0
  %v1853 = vmax.f32 %v1335, 0.0
  %v1854 = vmax.f32 %v1340, 0.0
  %v1855 = vmax.f32 %v1345, 0.0
  %v1856 = vmax.f32 %v1350, 0.0
  %v1857 = vmax.f32 %v1355, 0.0
  %v1858 = vmax.f32 %v1360, 0.0
  %v1859 = vmax.f32 %v1365, 0.0
  %v1860 = vmax.f32 %v1370, 0.0
  %v1861 = vmax.f32 %v1375, 0.0
  %v1862 = vmax.f32 %v1380, 0.0
  %v1863 = vmax.f32 %v1385, 0.0
  %v1864 = vmax.f32 %v1390, 0.0
  %v1865 = vmax.f32 %v1395, 0.0
  %v1866 = vmax.f32 %v1400, 0.0
  %v1867 = vmax.f32 %v1405, 0.0
  %v1868 = vmax.f32 %v1410, 0.0
  %v1869 = vmax.f32 %v1415, 0.0
  %v1870 = vmax.f32 %v1420, 0.0
  %v1871 = vmax.f32 %v1425, 0.0
  %v1872 = vmax.f32 %v1430, 0.0
  %v1873 = vmax.f32 %v1435, 0.0
  %v1874 = vmax.f32 %v1440, 0.0
  %v1875 = vmax.f32 %v1445, 0.0
  %v1876 = vmax.f32 %v1450, 0.0
  %v1877 = vmax.f32 %v1455, 0.0
  %v1878 = vmax.f32 %v1460, 0.0
  %v1879 = vmax.f32 %v1465, 0.0
  %v1880 = vmax.f32 %v1470, 0.0
  %v1881 = vmax.f32 %v1475, 0.0
  %v1882 = vmax.f32 %v1480, 0.0
  %v1883 = vmax.f32 %v1485, 0.0
  %v1884 = vmax.f32 %v1490, 0.0
  %v1885 = vmax.f32 %v1495, 0.0
  %v1886 = vmax.f32 %v1500, 0.0
  %v1887 = vmax.f32 %v1505, 0.0
  %v1888 = vmax.f32 %v1510, 0.0
  %v1889 = vmax.f32 %v1515, 0.0
  %v1890 = vmax.f32 %v1520, 0.0
  %v1891 = vmax.f32 %v1525, 0.0
  %v1892 = vmax.f32 %v1530, 0.0
  %v1893 = vmax.f32 %v1535, 0.0
  %v1894 = vmax.f32 %v1540, 0.0
  %v1895 = vmax.f32 %v1545, 0.0
  %v1896 = vmax.f32 %v1550, 0.0
  %v1897 = vmax.f32 %v1555, 0.0
  %v1898 = vmax.f32 %v1560, 0.0
  %v1899 = vmax.f32 %v1565, 0.0
  %v1900 = vmax.f32 %v1570, 0.0
  %v1901 = vmax.f32 %v1575, 0.0
  %v1902 = vmax.f32 %v1580, 0.0
  %v1903 = vmax.f32 %v1585, 0.0
  %v1904 = vmax.f32 %v1590, 0.0
  %v1905 = vmax.f32 %v1595, 0.0
  %v1906 = vmax.f32 %v1600, 0.0
  %v1907 = vmax.f32 %v1605, 0.0
  %v1908 = vmax.f32 %v1610, 0.0
  %v1909 = vmax.f32 %v1615, 0.0
  %v1910 = vmax.f32 %v1620, 0.0
  %v1911 = vmax.f32 %v1625, 0.0
  %v1912 = vmax.f32 %v1630, 0.0
  %v1913 = vmax.f32 %v1635, 0.0
  %v1914 = vmax.f32 %v1640, 0.0
  %v1915 = vmax.f32 %v1645, 0.0
  %v1916 = vmax.f32 %v1650, 0.0
  %v1917 = vmax.f32 %v1655, 0.0
  %v1918 = vmax.f32 %v1660, 0.0
  %v1919 = vadd.f32 %v1663, %v1664
  %v1920 = vadd.f32 %v1919, %v1665
  %v1921 = vadd.f32 %v1920, %v1666
  %v1922 = vadd.f32 %v1921, %v1667
  %v1923 = vadd.f32 %v1922, %v1668
  %v1924 = vadd.f32 %v1923, %v1669
  %v1925 = vadd.f32 %v1924, %v1670
  %v1926 = vadd.f32 %v1925, %v1671
  %v1927 = vadd.f32 %v1926, %v1672
  %v1928 = vadd.f32 %v1927, %v1673
  %v1929 = vadd.f32 %v1928, %v1674
  %v1930 = vadd.f32 %v1929, %v1675
  %v1931 = vadd.f32 %v1930, %v1676
  %v1932 = vadd.f32 %v1931, %v1677
  %v1933 = vadd.f32 %v1932, %v1678
  %v1934 = vadd.f32 %v1933, %v1679
  %v1935 = vadd.f32 %v1934, %v1680
  %v1936 = vadd.f32 %v1935, %v1681
  %v1937 = vadd.f32 %v1936, %v1682
  %v1938 = vadd.f32 %v1937, %v1683
  %v1939 = vadd.f32 %v1938, %v1684
  %v1940 = vadd.f32 %v1939, %v1685
  %v1941 = vadd.f32 %v1940, %v1686
  %v1942 = vadd.f32 %v1941, %v1687
  %v1943 = vadd.f32 %v1942, %v1688
  %v1944 = vadd.f32 %v1943, %v1689
  %v1945 = vadd.f32 %v1944, %v1690
  %v1946 = vadd.f32 %v1945, %v1691
  %v1947 = vadd.f32 %v1946, %v1692
  %v1948 = vadd.f32 %v1947, %v1693
  %v1949 = vadd.f32 %v1948, %v1694
  %v1950 = vrot.slane %v1949, 4
  %v1951 = vadd.f32 %v1949, %v1950
  %v1952 = vrot.slane %v1951, 2
  %v1953 = vadd.f32 %v1951, %v1952
  %v1954 = vrot.slane %v1953, 1
  %v1955 = vadd.f32 %v1953, %v1954
  %v1956 = vadd.f32 %v1695, %v1696
  %v1957 = vadd.f32 %v1956, %v1697
  %v1958 = vadd.f32 %v1957, %v1698
  %v1959 = vadd.f32 %v1958, %v1699
  %v1960 = vadd.f32 %v1959, %v1700
  %v1961 = vadd.f32 %v1960, %v1701
  %v1962 = vadd.f32 %v1961, %v1702
  %v1963 = vadd.f32 %v1962, %v1703
  %v1964 = vadd.f32 %v1963, %v1704
  %v1965 = vadd.f32 %v1964, %v1705
  %v1966 = vadd.f32 %v1965, %v1706
  %v1967 = vadd.f32 %v1966, %v1707
  %v1968 = vadd.f32 %v1967, %v1708
  %v1969 = vadd.f32 %v1968, %v1709
  %v1970 = vadd.f32 %v1969, %v1710
  %v1971 = vadd.f32 %v1970, %v1711
  %v1972 = vadd.f32 %v1971, %v1712
  %v1973 = vadd.f32 %v1972, %v1713
  %v1974 = vadd.f32 %v1973, %v1714
  %v1975 = vadd.f32 %v1974, %v1715
  %v1976 = vadd.f32 %v1975, %v1716
  %v1977 = vadd.f32 %v1976, %v1717
  %v1978 = vadd.f32 %v1977, %v1718
  %v1979 = vadd.f32 %v1978, %v1719
  %v1980 = vadd.f32 %v1979, %v1720
  %v1981 = vadd.f32 %v1980, %v1721
  %v1982 = vadd.f32 %v1981, %v1722
  %v1983 = vadd.f32 %v1982, %v1723
  %v1984 = vadd.f32 %v1983, %v1724
  %v1985 = vadd.f32 %v1984, %v1725
  %v1986 = vadd.f32 %v1985, %v1726
  %v1987 = vrot.slane %v1986, 4
  %v1988 = vadd.f32 %v1986, %v1987
  %v1989 = vrot.slane %v1988, 2
  %v1990 = vadd.f32 %v1988, %v1989
  %v1991 = vrot.slane %v1990, 1
  %v1992 = vadd.f32 %v1990, %v1991
  %v1993 = vadd.f32 %v1727, %v1728
  %v1994 = vadd.f32 %v1993, %v1729
  %v1995 = vadd.f32 %v1994, %v1730
  %v1996 = vadd.f32 %v1995, %v1731
  %v1997 = vadd.f32 %v1996, %v1732
  %v1998 = vadd.f32 %v1997, %v1733
  %v1999 = vadd.f32 %v1998, %v1734
  %v2000 = vadd.f32 %v1999, %v1735
  %v2001 = vadd.f32 %v2000, %v1736
  %v2002 = vadd.f32 %v2001, %v1737
  %v2003 = vadd.f32 %v2002, %v1738
  %v2004 = vadd.f32 %v2003, %v1739
  %v2005 = vadd.f32 %v2004, %v1740
  %v2006 = vadd.f32 %v2005, %v1741
  %v2007 = vadd.f32 %v2006, %v1742
  %v2008 = vadd.f32 %v2007, %v1743
  %v2009 = vadd.f32 %v2008, %v1744
  %v2010 = vadd.f32 %v2009, %v1745
  %v2011 = vadd.f32 %v2010, %v1746
  %v2012 = vadd.f32 %v2011, %v1747
  %v2013 = vadd.f32 %v2012, %v1748
  %v2014 = vadd.f32 %v2013, %v1749
  %v2015 = vadd.f32 %v2014, %v1750
  %v2016 = vadd.f32 %v2015, %v1751
  %v2017 = vadd.f32 %v2016, %v1752
  %v2018 = vadd.f32 %v2017, %v1753
  %v2019 = vadd.f32 %v2018, %v1754
  %v2020 = vadd.f32 %v2019, %v1755
  %v2021 = vadd.f32 %v2020, %v1756
  %v2022 = vadd.f32 %v2021, %v1757
  %v2023 = vadd.f32 %v2022, %v1758
  %v2024 = vrot.slane %v2023, 4
  %v2025 = vadd.f32 %v2023, %v2024
  %v2026 = vrot.slane %v2025, 2
  %v2027 = vadd.f32 %v2025, %v2026
  %v2028 = vrot.slane %v2027, 1
  %v2029 = vadd.f32 %v2027, %v2028
  %v2030 = vadd.f32 %v1759, %v1760
  %v2031 = vadd.f32 %v2030, %v1761
  %v2032 = vadd.f32 %v2031, %v1762
  %v2033 = vadd.f32 %v2032, %v1763
  %v2034 = vadd.f32 %v2033, %v1764
  %v2035 = vadd.f32 %v2034, %v1765
  %v2036 = vadd.f32 %v2035, %v1766
  %v2037 = vadd.f32 %v2036, %v1767
  %v2038 = vadd.f32 %v2037, %v1768
  %v2039 = vadd.f32 %v2038, %v1769
  %v2040 = vadd.f32 %v2039, %v1770
  %v2041 = vadd.f32 %v2040, %v1771
  %v2042 = vadd.f32 %v2041, %v1772
  %v2043 = vadd.f32 %v2042, %v1773
  %v2044 = vadd.f32 %v2043, %v1774
  %v2045 = vadd.f32 %v2044, %v1775
  %v2046 = vadd.f32 %v2045, %v1776
  %v2047 = vadd.f32 %v2046, %v1777
  %v2048 = vadd.f32 %v2047, %v1778
  %v2049 = vadd.f32 %v2048, %v1779
  %v2050 = vadd.f32 %v2049, %v1780
  %v2051 = vadd.f32 %v2050, %v1781
  %v2052 = vadd.f32 %v2051, %v1782
  %v2053 = vadd.f32 %v2052, %v1783
  %v2054 = vadd.f32 %v2053, %v1784
  %v2055 = vadd.f32 %v2054, %v1785
  %v2056 = vadd.f32 %v2055, %v1786
  %v2057 = vadd.f32 %v2056, %v1787
  %v2058 = vadd.f32 %v2057, %v1788
  %v2059 = vadd.f32 %v2058, %v1789
  %v2060 = vadd.f32 %v2059, %v1790
  %v2061 = vrot.slane %v2060, 4
  %v2062 = vadd.f32 %v2060, %v2061
  %v2063 = vrot.slane %v2062, 2
  %v2064 = vadd.f32 %v2062, %v2063
  %v2065 = vrot.slane %v2064, 1
  %v2066 = vadd.f32 %v2064, %v2065
  %v2067 = vadd.f32 %v1791, %v1792
  %v2068 = vadd.f32 %v2067, %v1793
  %v2069 = vadd.f32 %v2068, %v1794
  %v2070 = vadd.f32 %v2069, %v1795
  %v2071 = vadd.f32 %v2070, %v1796
  %v2072 = vadd.f32 %v2071, %v1797
  %v2073 = vadd.f32 %v2072, %v1798
  %v2074 = vadd.f32 %v2073, %v1799
  %v2075 = vadd.f32 %v2074, %v1800
  %v2076 = vadd.f32 %v2075, %v1801
  %v2077 = vadd.f32 %v2076, %v1802
  %v2078 = vadd.f32 %v2077, %v1803
  %v2079 = vadd.f32 %v2078, %v1804
  %v2080 = vadd.f32 %v2079, %v1805
  %v2081 = vadd.f32 %v2080, %v1806
  %v2082 = vadd.f32 %v2081, %v1807
  %v2083 = vadd.f32 %v2082, %v1808
  %v2084 = vadd.f32 %v2083, %v1809
  %v2085 = vadd.f32 %v2084, %v1810
  %v2086 = vadd.f32 %v2085, %v1811
  %v2087 = vadd.f32 %v2086, %v1812
  %v2088 = vadd.f32 %v2087, %v1813
  %v2089 = vadd.f32 %v2088, %v1814
  %v2090 = vadd.f32 %v2089, %v1815
  %v2091 = vadd.f32 %v2090, %v1816
  %v2092 = vadd.f32 %v2091, %v1817
  %v2093 = vadd.f32 %v2092, %v1818
  %v2094 = vadd.f32 %v2093, %v1819
  %v2095 = vadd.f32 %v2094, %v1820
  %v2096 = vadd.f32 %v2095, %v1821
  %v2097 = vadd.f32 %v2096, %v1822
  %v2098 = vrot.slane %v2097, 4
  %v2099 = vadd.f32 %v2097, %v2098
  %v2100 = vrot.slane %v2099, 2
  %v2101 = vadd.f32 %v2099, %v2100
  %v2102 = vrot.slane %v2101, 1
  %v2103 = vadd.f32 %v2101, %v2102
  %v2104 = vadd.f32 %v1823, %v1824
  %v2105 = vadd.f32 %v2104, %v1825
  %v2106 = vadd.f32 %v2105, %v1826
  %v2107 = vadd.f32 %v2106, %v1827
  %v2108 = vadd.f32 %v2107, %v1828
  %v2109 = vadd.f32 %v2108, %v1829
  %v2110 = vadd.f32 %v2109, %v1830
  %v2111 = vadd.f32 %v2110, %v1831
  %v2112 = vadd.f32 %v2111, %v1832
  %v2113 = vadd.f32 %v2112, %v1833
  %v2114 = vadd.f32 %v2113, %v1834
  %v2115 = vadd.f32 %v2114, %v1835
  %v2116 = vadd.f32 %v2115, %v1836
  %v2117 = vadd.f32 %v2116, %v1837
  %v2118 = vadd.f32 %v2117, %v1838
  %v2119 = vadd.f32 %v2118, %v1839
  %v2120 = vadd.f32 %v2119, %v1840
  %v2121 = vadd.f32 %v2120, %v1841
  %v2122 = vadd.f32 %v2121, %v1842
  %v2123 = vadd.f32 %v2122, %v1843
  %v2124 = vadd.f32 %v2123, %v1844
  %v2125 = vadd.f32 %v2124, %v1845
  %v2126 = vadd.f32 %v2125, %v1846
  %v2127 = vadd.f32 %v2126, %v1847
  %v2128 = vadd.f32 %v2127, %v1848
  %v2129 = vadd.f32 %v2128, %v1849
  %v2130 = vadd.f32 %v2129, %v1850
  %v2131 = vadd.f32 %v2130, %v1851
  %v2132 = vadd.f32 %v2131, %v1852
  %v2133 = vadd.f32 %v2132, %v1853
  %v2134 = vadd.f32 %v2133, %v1854
  %v2135 = vrot.slane %v2134, 4
  %v2136 = vadd.f32 %v2134, %v2135
  %v2137 = vrot.slane %v2136, 2
  %v2138 = vadd.f32 %v2136, %v2137
  %v2139 = vrot.slane %v2138, 1
  %v2140 = vadd.f32 %v2138, %v2139
  %v2141 = vadd.f32 %v1855, %v1856
  %v2142 = vadd.f32 %v2141, %v1857
  %v2143 = vadd.f32 %v2142, %v1858
  %v2144 = vadd.f32 %v2143, %v1859
  %v2145 = vadd.f32 %v2144, %v1860
  %v2146 = vadd.f32 %v2145, %v1861
  %v2147 = vadd.f32 %v2146, %v1862
  %v2148 = vadd.f32 %v2147, %v1863
  %v2149 = vadd.f32 %v2148, %v1864
  %v2150 = vadd.f32 %v2149, %v1865
  %v2151 = vadd.f32 %v2150, %v1866
  %v2152 = vadd.f32 %v2151, %v1867
  %v2153 = vadd.f32 %v2152, %v1868
  %v2154 = vadd.f32 %v2153, %v1869
  %v2155 = vadd.f32 %v2154, %v1870
  %v2156 = vadd.f32 %v2155, %v1871
  %v2157 = vadd.f32 %v2156, %v1872
  %v2158 = vadd.f32 %v2157, %v1873
  %v2159 = vadd.f32 %v2158, %v1874
  %v2160 = vadd.f32 %v2159, %v1875
  %v2161 = vadd.f32 %v2160, %v1876
  %v2162 = vadd.f32 %v2161, %v1877
  %v2163 = vadd.f32 %v2162, %v1878
  %v2164 = vadd.f32 %v2163, %v1879
  %v2165 = vadd.f32 %v2164, %v1880
  %v2166 = vadd.f32 %v2165, %v1881
  %v2167 = vadd.f32 %v2166, %v1882
  %v2168 = vadd.f32 %v2167, %v1883
  %v2169 = vadd.f32 %v2168, %v1884
  %v2170 = vadd.f32 %v2169, %v1885
  %v2171 = vadd.f32 %v2170, %v1886
  %v2172 = vrot.slane %v2171, 4
  %v2173 = vadd.f32 %v2171, %v2172
  %v2174 = vrot.slane %v2173, 2
  %v2175 = vadd.f32 %v2173, %v2174
  %v2176 = vrot.slane %v2175, 1
  %v2177 = vadd.f32 %v2175, %v2176
  %v2178 = vadd.f32 %v1887, %v1888
  %v2179 = vadd.f32 %v2178, %v1889
  %v2180 = vadd.f32 %v2179, %v1890
  %v2181 = vadd.f32 %v2180, %v1891
  %v2182 = vadd.f32 %v2181, %v1892
  %v2183 = vadd.f32 %v2182, %v1893
  %v2184 = vadd.f32 %v2183, %v1894
  %v2185 = vadd.f32 %v2184, %v1895
  %v2186 = vadd.f32 %v2185, %v1896
  %v2187 = vadd.f32 %v2186, %v1897
  %v2188 = vadd.f32 %v2187, %v1898
  %v2189 = vadd.f32 %v2188, %v1899
  %v2190 = vadd.f32 %v2189, %v1900
  %v2191 = vadd.f32 %v2190, %v1901
  %v2192 = vadd.f32 %v2191, %v1902
  %v2193 = vadd.f32 %v2192, %v1903
  %v2194 = vadd.f32 %v2193, %v1904
  %v2195 = vadd.f32 %v2194, %v1905
  %v2196 = vadd.f32 %v2195, %v1906
  %v2197 = vadd.f32 %v2196, %v1907
  %v2198 = vadd.f32 %v2197, %v1908
  %v2199 = vadd.f32 %v2198, %v1909
  %v2200 = vadd.f32 %v2199, %v1910
  %v2201 = vadd.f32 %v2200, %v1911
  %v2202 = vadd.f32 %v2201, %v1912
  %v2203 = vadd.f32 %v2202, %v1913
  %v2204 = vadd.f32 %v2203, %v1914
  %v2205 = vadd.f32 %v2204, %v1915
  %v2206 = vadd.f32 %v2205, %v1916
  %v2207 = vadd.f32 %v2206, %v1917
  %v2208 = vadd.f32 %v2207, %v1918
  %v2209 = vrot.slane %v2208, 4
  %v2210 = vadd.f32 %v2208, %v2209
  %v2211 = vrot.slane %v2210, 2
  %v2212 = vadd.f32 %v2210, %v2211
  %v2213 = vrot.slane %v2212, 1
  %v2214 = vadd.f32 %v2212, %v2213
  %v2215 = vmul.f32 %v1955, 0.00390625
  %v2216 = vmul.f32 %v1992, 0.00390625
  %v2217 = vmul.f32 %v2029, 0.00390625
  %v2218 = vmul.f32 %v2066, 0.00390625
  %v2219 = vmul.f32 %v2103, 0.00390625
  %v2220 = vmul.f32 %v2140, 0.00390625
  %v2221 = vmul.f32 %v2177, 0.00390625
  %v2222 = vmul.f32 %v2214, 0.00390625
  %v2223 = vpack.c.bf16 %v2215, %v2215
  %v2224 = vpack.c.bf16 %v2216, %v2216
  %v2225 = vpack.c.bf16 %v2217, %v2217
  %v2226 = vpack.c.bf16 %v2218, %v2218
  %v2227 = vpack.c.bf16 %v2219, %v2219
  %v2228 = vpack.c.bf16 %v2220, %v2220
  %v2229 = vpack.c.bf16 %v2221, %v2221
  %v2230 = vpack.c.bf16 %v2222, %v2222
  %v2231 = vld [vmem:[%s3] sm:$0xff]
  %v2232 = vld [vmem:[%s3 + $0x8] sm:$0xff]
  %v2233 = vld [vmem:[%s3 + $0x10] sm:$0xff]
  %v2234 = vld [vmem:[%s3 + $0x18] sm:$0xff]
  %v2235 = vld [vmem:[%s3 + $0x20] sm:$0xff]
  %v2236 = vld [vmem:[%s3 + $0x28] sm:$0xff]
  %v2237 = vld [vmem:[%s3 + $0x30] sm:$0xff]
  %v2238 = vld [vmem:[%s3 + $0x38] sm:$0xff]
  %v2239 = vld [vmem:[%s3 + $0x40] sm:$0xff]
  %v2240 = vld [vmem:[%s3 + $0x48] sm:$0xff]
  %v2241 = vld [vmem:[%s3 + $0x50] sm:$0xff]
  %v2242 = vld [vmem:[%s3 + $0x58] sm:$0xff]
  %v2243 = vld [vmem:[%s3 + $0x60] sm:$0xff]
  %v2244 = vld [vmem:[%s3 + $0x68] sm:$0xff]
  %v2245 = vld [vmem:[%s3 + $0x70] sm:$0xff]
  %v2246 = vld [vmem:[%s3 + $0x78] sm:$0xff]
  %v2247 = vld [vmem:[%s3 + $0x80] sm:$0xff]
  %v2248 = vld [vmem:[%s3 + $0x88] sm:$0xff]
  %v2249 = vld [vmem:[%s3 + $0x90] sm:$0xff]
  %v2250 = vld [vmem:[%s3 + $0x98] sm:$0xff]
  %v2251 = vld [vmem:[%s3 + $0xa0] sm:$0xff]
  %v2252 = vld [vmem:[%s3 + $0xa8] sm:$0xff]
  %v2253 = vld [vmem:[%s3 + $0xb0] sm:$0xff]
  %v2254 = vld [vmem:[%s3 + $0xb8] sm:$0xff]
  %v2255 = vld [vmem:[%s3 + $0xc0] sm:$0xff]
  %v2256 = vld [vmem:[%s3 + $0xc8] sm:$0xff]
  %v2257 = vld [vmem:[%s3 + $0xd0] sm:$0xff]
  %v2258 = vld [vmem:[%s3 + $0xd8] sm:$0xff]
  %v2259 = vld [vmem:[%s3 + $0xe0] sm:$0xff]
  %v2260 = vld [vmem:[%s3 + $0xe8] sm:$0xff]
  %v2261 = vld [vmem:[%s3 + $0xf0] sm:$0xff]
  %v2262 = vld [vmem:[%s3 + $0xf8] sm:$0xff]
  %v2263 = vld [vmem:[%s3 + $0x100] sm:$0xff]
  %v2264 = vld [vmem:[%s3 + $0x108] sm:$0xff]
  %v2265 = vld [vmem:[%s3 + $0x110] sm:$0xff]
  %v2266 = vld [vmem:[%s3 + $0x118] sm:$0xff]
  %v2267 = vld [vmem:[%s3 + $0x120] sm:$0xff]
  %v2268 = vld [vmem:[%s3 + $0x128] sm:$0xff]
  %v2269 = vld [vmem:[%s3 + $0x130] sm:$0xff]
  %v2270 = vld [vmem:[%s3 + $0x138] sm:$0xff]
  %v2271 = vld [vmem:[%s3 + $0x140] sm:$0xff]
  %v2272 = vld [vmem:[%s3 + $0x148] sm:$0xff]
  %v2273 = vld [vmem:[%s3 + $0x150] sm:$0xff]
  %v2274 = vld [vmem:[%s3 + $0x158] sm:$0xff]
  %v2275 = vld [vmem:[%s3 + $0x160] sm:$0xff]
  %v2276 = vld [vmem:[%s3 + $0x168] sm:$0xff]
  %v2277 = vld [vmem:[%s3 + $0x170] sm:$0xff]
  %v2278 = vld [vmem:[%s3 + $0x178] sm:$0xff]
  %v2279 = vld [vmem:[%s3 + $0x180] sm:$0xff]
  %v2280 = vld [vmem:[%s3 + $0x188] sm:$0xff]
  %v2281 = vld [vmem:[%s3 + $0x190] sm:$0xff]
  %v2282 = vld [vmem:[%s3 + $0x198] sm:$0xff]
  %v2283 = vld [vmem:[%s3 + $0x1a0] sm:$0xff]
  %v2284 = vld [vmem:[%s3 + $0x1a8] sm:$0xff]
  %v2285 = vld [vmem:[%s3 + $0x1b0] sm:$0xff]
  %v2286 = vld [vmem:[%s3 + $0x1b8] sm:$0xff]
  %v2287 = vld [vmem:[%s3 + $0x1c0] sm:$0xff]
  %v2288 = vld [vmem:[%s3 + $0x1c8] sm:$0xff]
  %v2289 = vld [vmem:[%s3 + $0x1d0] sm:$0xff]
  %v2290 = vld [vmem:[%s3 + $0x1d8] sm:$0xff]
  %v2291 = vld [vmem:[%s3 + $0x1e0] sm:$0xff]
  %v2292 = vld [vmem:[%s3 + $0x1e8] sm:$0xff]
  %v2293 = vld [vmem:[%s3 + $0x1f0] sm:$0xff]
  %v2294 = vld [vmem:[%s3 + $0x1f8] sm:$0xff]
  %v2295 = vld [vmem:[%s4] sm:$0xff]
  %v2297 = vlaneseq
  %v2298 = vshrl.u32 %v2297, 7
  %v2299 = vsub.s32 0, %v2298
  %v2300 = vrot.slane %v2295, %v2299
  %v2301 = vlaneseq
  %v2302 = vshrl.u32 %v2301, 7
  %v2303 = vsub.s32 1, %v2302
  %v2304 = vrot.slane %v2295, %v2303
  %v2305 = vlaneseq
  %v2306 = vshrl.u32 %v2305, 7
  %v2307 = vsub.s32 2, %v2306
  %v2308 = vrot.slane %v2295, %v2307
  %v2309 = vlaneseq
  %v2310 = vshrl.u32 %v2309, 7
  %v2311 = vsub.s32 3, %v2310
  %v2312 = vrot.slane %v2295, %v2311
  %v2313 = vlaneseq
  %v2314 = vshrl.u32 %v2313, 7
  %v2315 = vsub.s32 4, %v2314
  %v2316 = vrot.slane %v2295, %v2315
  %v2317 = vlaneseq
  %v2318 = vshrl.u32 %v2317, 7
  %v2319 = vsub.s32 5, %v2318
  %v2320 = vrot.slane %v2295, %v2319
  %v2321 = vlaneseq
  %v2322 = vshrl.u32 %v2321, 7
  %v2323 = vsub.s32 6, %v2322
  %v2324 = vrot.slane %v2295, %v2323
  %v2325 = vlaneseq
  %v2326 = vshrl.u32 %v2325, 7
  %v2327 = vsub.s32 7, %v2326
  %v2328 = vrot.slane %v2295, %v2327
  %v2345 = vunpack.c.l.b16 %v2223
  %v2346 = vunpack.c.l.b16 %v2224
  %v2347 = vunpack.c.l.b16 %v2225
  %v2348 = vunpack.c.l.b16 %v2226
  %v2349 = vunpack.c.l.b16 %v2227
  %v2350 = vunpack.c.l.b16 %v2228
  %v2351 = vunpack.c.l.b16 %v2229
  %v2352 = vunpack.c.l.b16 %v2230
  %vm2353 = vcmask 1041409
  %v2354 = vsel %vm2353, %v2346, %v2345
  %vm2355 = vcmask 1042434
  %v2356 = vsel %vm2355, %v2347, %v2354
  %vm2357 = vcmask 1043459
  %v2358 = vsel %vm2357, %v2348, %v2356
  %vm2359 = vcmask 1044484
  %v2360 = vsel %vm2359, %v2349, %v2358
  %vm2361 = vcmask 1045509
  %v2362 = vsel %vm2361, %v2350, %v2360
  %vm2363 = vcmask 1046534
  %v2364 = vsel %vm2363, %v2351, %v2362
  %vm2365 = vcmask 1047559
  %v2366 = vsel %vm2365, %v2352, %v2364
  %v2367 = vpack.c.b16 %v2366, %v2366
  %v2433 = vunpack.c.l.b16 %v2231
  %v2434 = vunpack.c.h.b16 %v2231
  %v2435 = vunpack.c.l.b16 %v2232
  %v2436 = vunpack.c.h.b16 %v2232
  %v2437 = vunpack.c.l.b16 %v2233
  %v2438 = vunpack.c.h.b16 %v2233
  %v2439 = vunpack.c.l.b16 %v2234
  %v2440 = vunpack.c.h.b16 %v2234
  %v2441 = vunpack.c.l.b16 %v2235
  %v2442 = vunpack.c.h.b16 %v2235
  %v2443 = vunpack.c.l.b16 %v2236
  %v2444 = vunpack.c.h.b16 %v2236
  %v2445 = vunpack.c.l.b16 %v2237
  %v2446 = vunpack.c.h.b16 %v2237
  %v2447 = vunpack.c.l.b16 %v2238
  %v2448 = vunpack.c.h.b16 %v2238
  %v2449 = vunpack.c.l.b16 %v2239
  %v2450 = vunpack.c.h.b16 %v2239
  %v2451 = vunpack.c.l.b16 %v2240
  %v2452 = vunpack.c.h.b16 %v2240
  %v2453 = vunpack.c.l.b16 %v2241
  %v2454 = vunpack.c.h.b16 %v2241
  %v2455 = vunpack.c.l.b16 %v2242
  %v2456 = vunpack.c.h.b16 %v2242
  %v2457 = vunpack.c.l.b16 %v2243
  %v2458 = vunpack.c.h.b16 %v2243
  %v2459 = vunpack.c.l.b16 %v2244
  %v2460 = vunpack.c.h.b16 %v2244
  %v2461 = vunpack.c.l.b16 %v2245
  %v2462 = vunpack.c.h.b16 %v2245
  %v2463 = vunpack.c.l.b16 %v2246
  %v2464 = vunpack.c.h.b16 %v2246
  %v2465 = vunpack.c.l.b16 %v2247
  %v2466 = vunpack.c.h.b16 %v2247
  %v2467 = vunpack.c.l.b16 %v2248
  %v2468 = vunpack.c.h.b16 %v2248
  %v2469 = vunpack.c.l.b16 %v2249
  %v2470 = vunpack.c.h.b16 %v2249
  %v2471 = vunpack.c.l.b16 %v2250
  %v2472 = vunpack.c.h.b16 %v2250
  %v2473 = vunpack.c.l.b16 %v2251
  %v2474 = vunpack.c.h.b16 %v2251
  %v2475 = vunpack.c.l.b16 %v2252
  %v2476 = vunpack.c.h.b16 %v2252
  %v2477 = vunpack.c.l.b16 %v2253
  %v2478 = vunpack.c.h.b16 %v2253
  %v2479 = vunpack.c.l.b16 %v2254
  %v2480 = vunpack.c.h.b16 %v2254
  %v2481 = vunpack.c.l.b16 %v2255
  %v2482 = vunpack.c.h.b16 %v2255
  %v2483 = vunpack.c.l.b16 %v2256
  %v2484 = vunpack.c.h.b16 %v2256
  %v2485 = vunpack.c.l.b16 %v2257
  %v2486 = vunpack.c.h.b16 %v2257
  %v2487 = vunpack.c.l.b16 %v2258
  %v2488 = vunpack.c.h.b16 %v2258
  %v2489 = vunpack.c.l.b16 %v2259
  %v2490 = vunpack.c.h.b16 %v2259
  %v2491 = vunpack.c.l.b16 %v2260
  %v2492 = vunpack.c.h.b16 %v2260
  %v2493 = vunpack.c.l.b16 %v2261
  %v2494 = vunpack.c.h.b16 %v2261
  %v2495 = vunpack.c.l.b16 %v2262
  %v2496 = vunpack.c.h.b16 %v2262
  %v2497 = vunpack.c.l.b16 %v2263
  %v2498 = vunpack.c.h.b16 %v2263
  %v2499 = vunpack.c.l.b16 %v2264
  %v2500 = vunpack.c.h.b16 %v2264
  %v2501 = vunpack.c.l.b16 %v2265
  %v2502 = vunpack.c.h.b16 %v2265
  %v2503 = vunpack.c.l.b16 %v2266
  %v2504 = vunpack.c.h.b16 %v2266
  %v2505 = vunpack.c.l.b16 %v2267
  %v2506 = vunpack.c.h.b16 %v2267
  %v2507 = vunpack.c.l.b16 %v2268
  %v2508 = vunpack.c.h.b16 %v2268
  %v2509 = vunpack.c.l.b16 %v2269
  %v2510 = vunpack.c.h.b16 %v2269
  %v2511 = vunpack.c.l.b16 %v2270
  %v2512 = vunpack.c.h.b16 %v2270
  %v2513 = vunpack.c.l.b16 %v2271
  %v2514 = vunpack.c.h.b16 %v2271
  %v2515 = vunpack.c.l.b16 %v2272
  %v2516 = vunpack.c.h.b16 %v2272
  %v2517 = vunpack.c.l.b16 %v2273
  %v2518 = vunpack.c.h.b16 %v2273
  %v2519 = vunpack.c.l.b16 %v2274
  %v2520 = vunpack.c.h.b16 %v2274
  %v2521 = vunpack.c.l.b16 %v2275
  %v2522 = vunpack.c.h.b16 %v2275
  %v2523 = vunpack.c.l.b16 %v2276
  %v2524 = vunpack.c.h.b16 %v2276
  %v2525 = vunpack.c.l.b16 %v2277
  %v2526 = vunpack.c.h.b16 %v2277
  %v2527 = vunpack.c.l.b16 %v2278
  %v2528 = vunpack.c.h.b16 %v2278
  %v2529 = vunpack.c.l.b16 %v2279
  %v2530 = vunpack.c.h.b16 %v2279
  %v2531 = vunpack.c.l.b16 %v2280
  %v2532 = vunpack.c.h.b16 %v2280
  %v2533 = vunpack.c.l.b16 %v2281
  %v2534 = vunpack.c.h.b16 %v2281
  %v2535 = vunpack.c.l.b16 %v2282
  %v2536 = vunpack.c.h.b16 %v2282
  %v2537 = vunpack.c.l.b16 %v2283
  %v2538 = vunpack.c.h.b16 %v2283
  %v2539 = vunpack.c.l.b16 %v2284
  %v2540 = vunpack.c.h.b16 %v2284
  %v2541 = vunpack.c.l.b16 %v2285
  %v2542 = vunpack.c.h.b16 %v2285
  %v2543 = vunpack.c.l.b16 %v2286
  %v2544 = vunpack.c.h.b16 %v2286
  %v2545 = vunpack.c.l.b16 %v2287
  %v2546 = vunpack.c.h.b16 %v2287
  %v2547 = vunpack.c.l.b16 %v2288
  %v2548 = vunpack.c.h.b16 %v2288
  %v2549 = vunpack.c.l.b16 %v2289
  %v2550 = vunpack.c.h.b16 %v2289
  %v2551 = vunpack.c.l.b16 %v2290
  %v2552 = vunpack.c.h.b16 %v2290
  %v2553 = vunpack.c.l.b16 %v2291
  %v2554 = vunpack.c.h.b16 %v2291
  %v2555 = vunpack.c.l.b16 %v2292
  %v2556 = vunpack.c.h.b16 %v2292
  %v2557 = vunpack.c.l.b16 %v2293
  %v2558 = vunpack.c.h.b16 %v2293
  %v2559 = vunpack.c.l.b16 %v2294
  %v2560 = vunpack.c.h.b16 %v2294
  %v2561 = vpack.c.b16 %v2441, %v2433
  %v2562 = vpack.c.b16 %v2442, %v2434
  %v2563 = vpack.c.b16 %v2443, %v2435
  %v2564 = vpack.c.b16 %v2444, %v2436
  %v2565 = vpack.c.b16 %v2445, %v2437
  %v2566 = vpack.c.b16 %v2446, %v2438
  %v2567 = vpack.c.b16 %v2447, %v2439
  %v2568 = vpack.c.b16 %v2448, %v2440
  %v2569 = vpack.c.b16 %v2457, %v2449
  %v2570 = vpack.c.b16 %v2458, %v2450
  %v2571 = vpack.c.b16 %v2459, %v2451
  %v2572 = vpack.c.b16 %v2460, %v2452
  %v2573 = vpack.c.b16 %v2461, %v2453
  %v2574 = vpack.c.b16 %v2462, %v2454
  %v2575 = vpack.c.b16 %v2463, %v2455
  %v2576 = vpack.c.b16 %v2464, %v2456
  %v2577 = vpack.c.b16 %v2473, %v2465
  %v2578 = vpack.c.b16 %v2474, %v2466
  %v2579 = vpack.c.b16 %v2475, %v2467
  %v2580 = vpack.c.b16 %v2476, %v2468
  %v2581 = vpack.c.b16 %v2477, %v2469
  %v2582 = vpack.c.b16 %v2478, %v2470
  %v2583 = vpack.c.b16 %v2479, %v2471
  %v2584 = vpack.c.b16 %v2480, %v2472
  %v2585 = vpack.c.b16 %v2489, %v2481
  %v2586 = vpack.c.b16 %v2490, %v2482
  %v2587 = vpack.c.b16 %v2491, %v2483
  %v2588 = vpack.c.b16 %v2492, %v2484
  %v2589 = vpack.c.b16 %v2493, %v2485
  %v2590 = vpack.c.b16 %v2494, %v2486
  %v2591 = vpack.c.b16 %v2495, %v2487
  %v2592 = vpack.c.b16 %v2496, %v2488
  %v2593 = vpack.c.b16 %v2505, %v2497
  %v2594 = vpack.c.b16 %v2506, %v2498
  %v2595 = vpack.c.b16 %v2507, %v2499
  %v2596 = vpack.c.b16 %v2508, %v2500
  %v2597 = vpack.c.b16 %v2509, %v2501
  %v2598 = vpack.c.b16 %v2510, %v2502
  %v2599 = vpack.c.b16 %v2511, %v2503
  %v2600 = vpack.c.b16 %v2512, %v2504
  %v2601 = vpack.c.b16 %v2521, %v2513
  %v2602 = vpack.c.b16 %v2522, %v2514
  %v2603 = vpack.c.b16 %v2523, %v2515
  %v2604 = vpack.c.b16 %v2524, %v2516
  %v2605 = vpack.c.b16 %v2525, %v2517
  %v2606 = vpack.c.b16 %v2526, %v2518
  %v2607 = vpack.c.b16 %v2527, %v2519
  %v2608 = vpack.c.b16 %v2528, %v2520
  %v2609 = vpack.c.b16 %v2537, %v2529
  %v2610 = vpack.c.b16 %v2538, %v2530
  %v2611 = vpack.c.b16 %v2539, %v2531
  %v2612 = vpack.c.b16 %v2540, %v2532
  %v2613 = vpack.c.b16 %v2541, %v2533
  %v2614 = vpack.c.b16 %v2542, %v2534
  %v2615 = vpack.c.b16 %v2543, %v2535
  %v2616 = vpack.c.b16 %v2544, %v2536
  %v2617 = vpack.c.b16 %v2553, %v2545
  %v2618 = vpack.c.b16 %v2554, %v2546
  %v2619 = vpack.c.b16 %v2555, %v2547
  %v2620 = vpack.c.b16 %v2556, %v2548
  %v2621 = vpack.c.b16 %v2557, %v2549
  %v2622 = vpack.c.b16 %v2558, %v2550
  %v2623 = vpack.c.b16 %v2559, %v2551
  %v2624 = vpack.c.b16 %v2560, %v2552
  %2689 = vmatprep.subr.bf16.mxu0 %v2562
  %2690 = vmatpush1.bf16.msra.mxu0 %v2561
  %2691 = vmatprep.subr.bf16.mxu0 %v2570
  %2692 = vmatpush1.bf16.msra.mxu0 %v2569
  %2693 = vmatprep.subr.bf16.mxu0 %v2578
  %2694 = vmatpush1.bf16.msra.mxu0 %v2577
  %2695 = vmatprep.subr.bf16.mxu0 %v2586
  %2696 = vmatpush1.bf16.msra.mxu0 %v2585
  %2697 = vmatprep.subr.bf16.mxu0 %v2594
  %2698 = vmatpush1.bf16.msra.mxu0 %v2593
  %2699 = vmatprep.subr.bf16.mxu0 %v2602
  %2700 = vmatpush1.bf16.msra.mxu0 %v2601
  %2701 = vmatprep.subr.bf16.mxu0 %v2610
  %2702 = vmatpush1.bf16.msra.mxu0 %v2609
  %2703 = vmatprep.subr.bf16.mxu0 %v2618
  %2704 = vmatpush1.bf16.msra.mxu0 %v2617
  %2705 = vmatprep.subr.bf16.mxu0 0
  %2706 = vmatpush1.bf16.msra.mxu0 0
  %2707 = vmatprep.subr.bf16.mxu0 0
  %2708 = vmatpush1.bf16.msra.mxu0 0
  %2709 = vmatprep.subr.bf16.mxu0 0
  %2710 = vmatpush1.bf16.msra.mxu0 0
  %2711 = vmatprep.subr.bf16.mxu0 0
  %2712 = vmatpush1.bf16.msra.mxu0 0
  %2713 = vmatprep.subr.bf16.mxu0 0
  %2714 = vmatpush1.bf16.msra.mxu0 0
  %2715 = vmatprep.subr.bf16.mxu0 0
  %2716 = vmatpush1.bf16.msra.mxu0 0
  %2717 = vmatprep.subr.bf16.mxu0 0
  %2718 = vmatpush1.bf16.msra.mxu0 0
  %2719 = vmatprep.subr.bf16.mxu0 0
  %2720 = vmatpush1.bf16.msra.mxu0 0
  %2721 = vmatprep.mubr.bf16.mxu0 0
  %2722 = vmatmul.mubr.bf16.gmra.mrb[0].mxu0 %v2367
  %v2723 = vpop.f32.mrb[0].mxu0
  %v2724 = vadd.f32 %v2300, %v2723
  %v2725 = vpop.f32.mrb[0].mxu0
  %v2726 = vadd.f32 %v2304, %v2725
  %v2727 = vpop.f32.mrb[0].mxu0
  %v2728 = vpop.f32.mrb[0].mxu0
  %2729 = vdwg.mxu0
  %2730 = vmatprep.subr.bf16.mxu0 %v2564
  %2731 = vmatpush1.bf16.msra.mxu0 %v2563
  %2732 = vmatprep.subr.bf16.mxu0 %v2572
  %2733 = vmatpush1.bf16.msra.mxu0 %v2571
  %2734 = vmatprep.subr.bf16.mxu0 %v2580
  %2735 = vmatpush1.bf16.msra.mxu0 %v2579
  %2736 = vmatprep.subr.bf16.mxu0 %v2588
  %2737 = vmatpush1.bf16.msra.mxu0 %v2587
  %2738 = vmatprep.subr.bf16.mxu0 %v2596
  %2739 = vmatpush1.bf16.msra.mxu0 %v2595
  %2740 = vmatprep.subr.bf16.mxu0 %v2604
  %2741 = vmatpush1.bf16.msra.mxu0 %v2603
  %2742 = vmatprep.subr.bf16.mxu0 %v2612
  %2743 = vmatpush1.bf16.msra.mxu0 %v2611
  %2744 = vmatprep.subr.bf16.mxu0 %v2620
  %2745 = vmatpush1.bf16.msra.mxu0 %v2619
  %2746 = vmatprep.subr.bf16.mxu0 0
  %2747 = vmatpush1.bf16.msra.mxu0 0
  %2748 = vmatprep.subr.bf16.mxu0 0
  %2749 = vmatpush1.bf16.msra.mxu0 0
  %2750 = vmatprep.subr.bf16.mxu0 0
  %2751 = vmatpush1.bf16.msra.mxu0 0
  %2752 = vmatprep.subr.bf16.mxu0 0
  %2753 = vmatpush1.bf16.msra.mxu0 0
  %2754 = vmatprep.subr.bf16.mxu0 0
  %2755 = vmatpush1.bf16.msra.mxu0 0
  %2756 = vmatprep.subr.bf16.mxu0 0
  %2757 = vmatpush1.bf16.msra.mxu0 0
  %2758 = vmatprep.subr.bf16.mxu0 0
  %2759 = vmatpush1.bf16.msra.mxu0 0
  %2760 = vmatprep.subr.bf16.mxu0 0
  %2761 = vmatpush1.bf16.msra.mxu0 0
  %2762 = vmatprep.mubr.bf16.mxu0 0
  %2763 = vmatmul.mubr.bf16.gmra.mrb[0].mxu0 %v2367
  %v2764 = vpop.f32.mrb[0].mxu0
  %v2765 = vadd.f32 %v2308, %v2764
  %v2766 = vpop.f32.mrb[0].mxu0
  %v2767 = vadd.f32 %v2312, %v2766
  %v2768 = vpop.f32.mrb[0].mxu0
  %v2769 = vpop.f32.mrb[0].mxu0
  %2770 = vdwg.mxu0
  %2771 = vmatprep.subr.bf16.mxu0 %v2566
  %2772 = vmatpush1.bf16.msra.mxu0 %v2565
  %2773 = vmatprep.subr.bf16.mxu0 %v2574
  %2774 = vmatpush1.bf16.msra.mxu0 %v2573
  %2775 = vmatprep.subr.bf16.mxu0 %v2582
  %2776 = vmatpush1.bf16.msra.mxu0 %v2581
  %2777 = vmatprep.subr.bf16.mxu0 %v2590
  %2778 = vmatpush1.bf16.msra.mxu0 %v2589
  %2779 = vmatprep.subr.bf16.mxu0 %v2598
  %2780 = vmatpush1.bf16.msra.mxu0 %v2597
  %2781 = vmatprep.subr.bf16.mxu0 %v2606
  %2782 = vmatpush1.bf16.msra.mxu0 %v2605
  %2783 = vmatprep.subr.bf16.mxu0 %v2614
  %2784 = vmatpush1.bf16.msra.mxu0 %v2613
  %2785 = vmatprep.subr.bf16.mxu0 %v2622
  %2786 = vmatpush1.bf16.msra.mxu0 %v2621
  %2787 = vmatprep.subr.bf16.mxu0 0
  %2788 = vmatpush1.bf16.msra.mxu0 0
  %2789 = vmatprep.subr.bf16.mxu0 0
  %2790 = vmatpush1.bf16.msra.mxu0 0
  %2791 = vmatprep.subr.bf16.mxu0 0
  %2792 = vmatpush1.bf16.msra.mxu0 0
  %2793 = vmatprep.subr.bf16.mxu0 0
  %2794 = vmatpush1.bf16.msra.mxu0 0
  %2795 = vmatprep.subr.bf16.mxu0 0
  %2796 = vmatpush1.bf16.msra.mxu0 0
  %2797 = vmatprep.subr.bf16.mxu0 0
  %2798 = vmatpush1.bf16.msra.mxu0 0
  %2799 = vmatprep.subr.bf16.mxu0 0
  %2800 = vmatpush1.bf16.msra.mxu0 0
  %2801 = vmatprep.subr.bf16.mxu0 0
  %2802 = vmatpush1.bf16.msra.mxu0 0
  %2803 = vmatprep.mubr.bf16.mxu0 0
  %2804 = vmatmul.mubr.bf16.gmra.mrb[0].mxu0 %v2367
  %v2805 = vpop.f32.mrb[0].mxu0
  %v2806 = vadd.f32 %v2316, %v2805
  %v2807 = vpop.f32.mrb[0].mxu0
  %v2808 = vadd.f32 %v2320, %v2807
  %v2809 = vpop.f32.mrb[0].mxu0
  %v2810 = vpop.f32.mrb[0].mxu0
  %2811 = vdwg.mxu0
  %2812 = vmatprep.subr.bf16.mxu0 %v2568
  %2813 = vmatpush1.bf16.msra.mxu0 %v2567
  %2814 = vmatprep.subr.bf16.mxu0 %v2576
  %2815 = vmatpush1.bf16.msra.mxu0 %v2575
  %2816 = vmatprep.subr.bf16.mxu0 %v2584
  %2817 = vmatpush1.bf16.msra.mxu0 %v2583
  %2818 = vmatprep.subr.bf16.mxu0 %v2592
  %2819 = vmatpush1.bf16.msra.mxu0 %v2591
  %2820 = vmatprep.subr.bf16.mxu0 %v2600
  %2821 = vmatpush1.bf16.msra.mxu0 %v2599
  %2822 = vmatprep.subr.bf16.mxu0 %v2608
  %2823 = vmatpush1.bf16.msra.mxu0 %v2607
  %2824 = vmatprep.subr.bf16.mxu0 %v2616
  %2825 = vmatpush1.bf16.msra.mxu0 %v2615
  %2826 = vmatprep.subr.bf16.mxu0 %v2624
  %2827 = vmatpush1.bf16.msra.mxu0 %v2623
  %2828 = vmatprep.subr.bf16.mxu0 0
  %2829 = vmatpush1.bf16.msra.mxu0 0
  %2830 = vmatprep.subr.bf16.mxu0 0
  %2831 = vmatpush1.bf16.msra.mxu0 0
  %2832 = vmatprep.subr.bf16.mxu0 0
  %2833 = vmatpush1.bf16.msra.mxu0 0
  %2834 = vmatprep.subr.bf16.mxu0 0
  %2835 = vmatpush1.bf16.msra.mxu0 0
  %2836 = vmatprep.subr.bf16.mxu0 0
  %2837 = vmatpush1.bf16.msra.mxu0 0
  %2838 = vmatprep.subr.bf16.mxu0 0
  %2839 = vmatpush1.bf16.msra.mxu0 0
  %2840 = vmatprep.subr.bf16.mxu0 0
  %2841 = vmatpush1.bf16.msra.mxu0 0
  %2842 = vmatprep.subr.bf16.mxu0 0
  %2843 = vmatpush1.bf16.msra.mxu0 0
  %2844 = vmatprep.mubr.bf16.mxu0 0
  %2845 = vmatmul.mubr.bf16.gmra.mrb[0].mxu0 %v2367
  %v2846 = vpop.f32.mrb[0].mxu0
  %v2847 = vadd.f32 %v2324, %v2846
  %v2848 = vpop.f32.mrb[0].mxu0
  %v2849 = vadd.f32 %v2328, %v2848
  %v2850 = vpop.f32.mrb[0].mxu0
  %v2851 = vpop.f32.mrb[0].mxu0
  %2852 = vdwg.mxu0
  %v2853 = vmax.f32 %v2724, 0.0
  %v2854 = vmax.f32 %v2726, 0.0
  %v2855 = vmax.f32 %v2765, 0.0
  %v2856 = vmax.f32 %v2767, 0.0
  %v2857 = vmax.f32 %v2806, 0.0
  %v2858 = vmax.f32 %v2808, 0.0
  %v2859 = vmax.f32 %v2847, 0.0
  %v2860 = vmax.f32 %v2849, 0.0
  %v2861 = vpack.c.bf16 %v2853, %v2853
  %v2862 = vpack.c.bf16 %v2854, %v2854
  %v2863 = vpack.c.bf16 %v2855, %v2855
  %v2864 = vpack.c.bf16 %v2856, %v2856
  %v2865 = vpack.c.bf16 %v2857, %v2857
  %v2866 = vpack.c.bf16 %v2858, %v2858
  %v2867 = vpack.c.bf16 %v2859, %v2859
  %v2868 = vpack.c.bf16 %v2860, %v2860
  %v2869 = vld [vmem:[%s5] sm:$0xff]
  %v2870 = vld [vmem:[%s5 + $0x8] sm:$0xff]
  %v2871 = vld [vmem:[%s5 + $0x10] sm:$0xff]
  %v2872 = vld [vmem:[%s5 + $0x18] sm:$0xff]
  %v2873 = vld [vmem:[%s5 + $0x20] sm:$0xff]
  %v2874 = vld [vmem:[%s5 + $0x28] sm:$0xff]
  %v2875 = vld [vmem:[%s5 + $0x30] sm:$0xff]
  %v2876 = vld [vmem:[%s5 + $0x38] sm:$0xff]
  %v2877 = vld [vmem:[%s5 + $0x40] sm:$0xff]
  %v2878 = vld [vmem:[%s5 + $0x48] sm:$0xff]
  %v2879 = vld [vmem:[%s5 + $0x50] sm:$0xff]
  %v2880 = vld [vmem:[%s5 + $0x58] sm:$0xff]
  %v2881 = vld [vmem:[%s5 + $0x60] sm:$0xff]
  %v2882 = vld [vmem:[%s5 + $0x68] sm:$0xff]
  %v2883 = vld [vmem:[%s5 + $0x70] sm:$0xff]
  %v2884 = vld [vmem:[%s5 + $0x78] sm:$0xff]
  %v2885 = vld [vmem:[%s5 + $0x80] sm:$0xff]
  %v2886 = vld [vmem:[%s5 + $0x88] sm:$0xff]
  %v2887 = vld [vmem:[%s5 + $0x90] sm:$0xff]
  %v2888 = vld [vmem:[%s5 + $0x98] sm:$0xff]
  %v2889 = vld [vmem:[%s5 + $0xa0] sm:$0xff]
  %v2890 = vld [vmem:[%s5 + $0xa8] sm:$0xff]
  %v2891 = vld [vmem:[%s5 + $0xb0] sm:$0xff]
  %v2892 = vld [vmem:[%s5 + $0xb8] sm:$0xff]
  %v2893 = vld [vmem:[%s5 + $0xc0] sm:$0xff]
  %v2894 = vld [vmem:[%s5 + $0xc8] sm:$0xff]
  %v2895 = vld [vmem:[%s5 + $0xd0] sm:$0xff]
  %v2896 = vld [vmem:[%s5 + $0xd8] sm:$0xff]
  %v2897 = vld [vmem:[%s5 + $0xe0] sm:$0xff]
  %v2898 = vld [vmem:[%s5 + $0xe8] sm:$0xff]
  %v2899 = vld [vmem:[%s5 + $0xf0] sm:$0xff]
  %v2900 = vld [vmem:[%s5 + $0xf8] sm:$0xff]
  %v2901 = vld [vmem:[%s5 + $0x100] sm:$0xff]
  %v2902 = vld [vmem:[%s5 + $0x108] sm:$0xff]
  %v2903 = vld [vmem:[%s5 + $0x110] sm:$0xff]
  %v2904 = vld [vmem:[%s5 + $0x118] sm:$0xff]
  %v2905 = vld [vmem:[%s5 + $0x120] sm:$0xff]
  %v2906 = vld [vmem:[%s5 + $0x128] sm:$0xff]
  %v2907 = vld [vmem:[%s5 + $0x130] sm:$0xff]
  %v2908 = vld [vmem:[%s5 + $0x138] sm:$0xff]
  %v2909 = vld [vmem:[%s5 + $0x140] sm:$0xff]
  %v2910 = vld [vmem:[%s5 + $0x148] sm:$0xff]
  %v2911 = vld [vmem:[%s5 + $0x150] sm:$0xff]
  %v2912 = vld [vmem:[%s5 + $0x158] sm:$0xff]
  %v2913 = vld [vmem:[%s5 + $0x160] sm:$0xff]
  %v2914 = vld [vmem:[%s5 + $0x168] sm:$0xff]
  %v2915 = vld [vmem:[%s5 + $0x170] sm:$0xff]
  %v2916 = vld [vmem:[%s5 + $0x178] sm:$0xff]
  %v2917 = vld [vmem:[%s5 + $0x180] sm:$0xff]
  %v2918 = vld [vmem:[%s5 + $0x188] sm:$0xff]
  %v2919 = vld [vmem:[%s5 + $0x190] sm:$0xff]
  %v2920 = vld [vmem:[%s5 + $0x198] sm:$0xff]
  %v2921 = vld [vmem:[%s5 + $0x1a0] sm:$0xff]
  %v2922 = vld [vmem:[%s5 + $0x1a8] sm:$0xff]
  %v2923 = vld [vmem:[%s5 + $0x1b0] sm:$0xff]
  %v2924 = vld [vmem:[%s5 + $0x1b8] sm:$0xff]
  %v2925 = vld [vmem:[%s5 + $0x1c0] sm:$0xff]
  %v2926 = vld [vmem:[%s5 + $0x1c8] sm:$0xff]
  %v2927 = vld [vmem:[%s5 + $0x1d0] sm:$0xff]
  %v2928 = vld [vmem:[%s5 + $0x1d8] sm:$0xff]
  %v2929 = vld [vmem:[%s5 + $0x1e0] sm:$0xff]
  %v2930 = vld [vmem:[%s5 + $0x1e8] sm:$0xff]
  %v2931 = vld [vmem:[%s5 + $0x1f0] sm:$0xff]
  %v2932 = vld [vmem:[%s5 + $0x1f8] sm:$0xff]
  %v2933 = vld [vmem:[%s5 + $0x200] sm:$0xff]
  %v2934 = vld [vmem:[%s5 + $0x208] sm:$0xff]
  %v2935 = vld [vmem:[%s5 + $0x210] sm:$0xff]
  %v2936 = vld [vmem:[%s5 + $0x218] sm:$0xff]
  %v2937 = vld [vmem:[%s5 + $0x220] sm:$0xff]
  %v2938 = vld [vmem:[%s5 + $0x228] sm:$0xff]
  %v2939 = vld [vmem:[%s5 + $0x230] sm:$0xff]
  %v2940 = vld [vmem:[%s5 + $0x238] sm:$0xff]
  %v2941 = vld [vmem:[%s5 + $0x240] sm:$0xff]
  %v2942 = vld [vmem:[%s5 + $0x248] sm:$0xff]
  %v2943 = vld [vmem:[%s5 + $0x250] sm:$0xff]
  %v2944 = vld [vmem:[%s5 + $0x258] sm:$0xff]
  %v2945 = vld [vmem:[%s5 + $0x260] sm:$0xff]
  %v2946 = vld [vmem:[%s5 + $0x268] sm:$0xff]
  %v2947 = vld [vmem:[%s5 + $0x270] sm:$0xff]
  %v2948 = vld [vmem:[%s5 + $0x278] sm:$0xff]
  %v2949 = vld [vmem:[%s5 + $0x280] sm:$0xff]
  %v2950 = vld [vmem:[%s5 + $0x288] sm:$0xff]
  %v2951 = vld [vmem:[%s5 + $0x290] sm:$0xff]
  %v2952 = vld [vmem:[%s5 + $0x298] sm:$0xff]
  %v2953 = vld [vmem:[%s5 + $0x2a0] sm:$0xff]
  %v2954 = vld [vmem:[%s5 + $0x2a8] sm:$0xff]
  %v2955 = vld [vmem:[%s5 + $0x2b0] sm:$0xff]
  %v2956 = vld [vmem:[%s5 + $0x2b8] sm:$0xff]
  %v2957 = vld [vmem:[%s5 + $0x2c0] sm:$0xff]
  %v2958 = vld [vmem:[%s5 + $0x2c8] sm:$0xff]
  %v2959 = vld [vmem:[%s5 + $0x2d0] sm:$0xff]
  %v2960 = vld [vmem:[%s5 + $0x2d8] sm:$0xff]
  %v2961 = vld [vmem:[%s5 + $0x2e0] sm:$0xff]
  %v2962 = vld [vmem:[%s5 + $0x2e8] sm:$0xff]
  %v2963 = vld [vmem:[%s5 + $0x2f0] sm:$0xff]
  %v2964 = vld [vmem:[%s5 + $0x2f8] sm:$0xff]
  %v2965 = vld [vmem:[%s5 + $0x300] sm:$0xff]
  %v2966 = vld [vmem:[%s5 + $0x308] sm:$0xff]
  %v2967 = vld [vmem:[%s5 + $0x310] sm:$0xff]
  %v2968 = vld [vmem:[%s5 + $0x318] sm:$0xff]
  %v2969 = vld [vmem:[%s5 + $0x320] sm:$0xff]
  %v2970 = vld [vmem:[%s5 + $0x328] sm:$0xff]
  %v2971 = vld [vmem:[%s5 + $0x330] sm:$0xff]
  %v2972 = vld [vmem:[%s5 + $0x338] sm:$0xff]
  %v2973 = vld [vmem:[%s5 + $0x340] sm:$0xff]
  %v2974 = vld [vmem:[%s5 + $0x348] sm:$0xff]
  %v2975 = vld [vmem:[%s5 + $0x350] sm:$0xff]
  %v2976 = vld [vmem:[%s5 + $0x358] sm:$0xff]
  %v2977 = vld [vmem:[%s5 + $0x360] sm:$0xff]
  %v2978 = vld [vmem:[%s5 + $0x368] sm:$0xff]
  %v2979 = vld [vmem:[%s5 + $0x370] sm:$0xff]
  %v2980 = vld [vmem:[%s5 + $0x378] sm:$0xff]
  %v2981 = vld [vmem:[%s5 + $0x380] sm:$0xff]
  %v2982 = vld [vmem:[%s5 + $0x388] sm:$0xff]
  %v2983 = vld [vmem:[%s5 + $0x390] sm:$0xff]
  %v2984 = vld [vmem:[%s5 + $0x398] sm:$0xff]
  %v2985 = vld [vmem:[%s5 + $0x3a0] sm:$0xff]
  %v2986 = vld [vmem:[%s5 + $0x3a8] sm:$0xff]
  %v2987 = vld [vmem:[%s5 + $0x3b0] sm:$0xff]
  %v2988 = vld [vmem:[%s5 + $0x3b8] sm:$0xff]
  %v2989 = vld [vmem:[%s5 + $0x3c0] sm:$0xff]
  %v2990 = vld [vmem:[%s5 + $0x3c8] sm:$0xff]
  %v2991 = vld [vmem:[%s5 + $0x3d0] sm:$0xff]
  %v2992 = vld [vmem:[%s5 + $0x3d8] sm:$0xff]
  %v2993 = vld [vmem:[%s5 + $0x3e0] sm:$0xff]
  %v2994 = vld [vmem:[%s5 + $0x3e8] sm:$0xff]
  %v2995 = vld [vmem:[%s5 + $0x3f0] sm:$0xff]
  %v2996 = vld [vmem:[%s5 + $0x3f8] sm:$0xff]
  %v2997 = vld [vmem:[%s5 + $0x400] sm:$0xff]
  %v2998 = vld [vmem:[%s5 + $0x408] sm:$0xff]
  %v2999 = vld [vmem:[%s5 + $0x410] sm:$0xff]
  %v3000 = vld [vmem:[%s5 + $0x418] sm:$0xff]
  %v3001 = vld [vmem:[%s5 + $0x420] sm:$0xff]
  %v3002 = vld [vmem:[%s5 + $0x428] sm:$0xff]
  %v3003 = vld [vmem:[%s5 + $0x430] sm:$0xff]
  %v3004 = vld [vmem:[%s5 + $0x438] sm:$0xff]
  %v3005 = vld [vmem:[%s5 + $0x440] sm:$0xff]
  %v3006 = vld [vmem:[%s5 + $0x448] sm:$0xff]
  %v3007 = vld [vmem:[%s5 + $0x450] sm:$0xff]
  %v3008 = vld [vmem:[%s5 + $0x458] sm:$0xff]
  %v3009 = vld [vmem:[%s5 + $0x460] sm:$0xff]
  %v3010 = vld [vmem:[%s5 + $0x468] sm:$0xff]
  %v3011 = vld [vmem:[%s5 + $0x470] sm:$0xff]
  %v3012 = vld [vmem:[%s5 + $0x478] sm:$0xff]
  %v3013 = vld [vmem:[%s5 + $0x480] sm:$0xff]
  %v3014 = vld [vmem:[%s5 + $0x488] sm:$0xff]
  %v3015 = vld [vmem:[%s5 + $0x490] sm:$0xff]
  %v3016 = vld [vmem:[%s5 + $0x498] sm:$0xff]
  %v3017 = vld [vmem:[%s5 + $0x4a0] sm:$0xff]
  %v3018 = vld [vmem:[%s5 + $0x4a8] sm:$0xff]
  %v3019 = vld [vmem:[%s5 + $0x4b0] sm:$0xff]
  %v3020 = vld [vmem:[%s5 + $0x4b8] sm:$0xff]
  %v3021 = vld [vmem:[%s5 + $0x4c0] sm:$0xff]
  %v3022 = vld [vmem:[%s5 + $0x4c8] sm:$0xff]
  %v3023 = vld [vmem:[%s5 + $0x4d0] sm:$0xff]
  %v3024 = vld [vmem:[%s5 + $0x4d8] sm:$0xff]
  %v3025 = vld [vmem:[%s5 + $0x4e0] sm:$0xff]
  %v3026 = vld [vmem:[%s5 + $0x4e8] sm:$0xff]
  %v3027 = vld [vmem:[%s5 + $0x4f0] sm:$0xff]
  %v3028 = vld [vmem:[%s5 + $0x4f8] sm:$0xff]
  %v3029 = vld [vmem:[%s5 + $0x500] sm:$0xff]
  %v3030 = vld [vmem:[%s5 + $0x508] sm:$0xff]
  %v3031 = vld [vmem:[%s5 + $0x510] sm:$0xff]
  %v3032 = vld [vmem:[%s5 + $0x518] sm:$0xff]
  %v3033 = vld [vmem:[%s5 + $0x520] sm:$0xff]
  %v3034 = vld [vmem:[%s5 + $0x528] sm:$0xff]
  %v3035 = vld [vmem:[%s5 + $0x530] sm:$0xff]
  %v3036 = vld [vmem:[%s5 + $0x538] sm:$0xff]
  %v3037 = vld [vmem:[%s5 + $0x540] sm:$0xff]
  %v3038 = vld [vmem:[%s5 + $0x548] sm:$0xff]
  %v3039 = vld [vmem:[%s5 + $0x550] sm:$0xff]
  %v3040 = vld [vmem:[%s5 + $0x558] sm:$0xff]
  %v3041 = vld [vmem:[%s5 + $0x560] sm:$0xff]
  %v3042 = vld [vmem:[%s5 + $0x568] sm:$0xff]
  %v3043 = vld [vmem:[%s5 + $0x570] sm:$0xff]
  %v3044 = vld [vmem:[%s5 + $0x578] sm:$0xff]
  %v3045 = vld [vmem:[%s5 + $0x580] sm:$0xff]
  %v3046 = vld [vmem:[%s5 + $0x588] sm:$0xff]
  %v3047 = vld [vmem:[%s5 + $0x590] sm:$0xff]
  %v3048 = vld [vmem:[%s5 + $0x598] sm:$0xff]
  %v3049 = vld [vmem:[%s5 + $0x5a0] sm:$0xff]
  %v3050 = vld [vmem:[%s5 + $0x5a8] sm:$0xff]
  %v3051 = vld [vmem:[%s5 + $0x5b0] sm:$0xff]
  %v3052 = vld [vmem:[%s5 + $0x5b8] sm:$0xff]
  %v3053 = vld [vmem:[%s5 + $0x5c0] sm:$0xff]
  %v3054 = vld [vmem:[%s5 + $0x5c8] sm:$0xff]
  %v3055 = vld [vmem:[%s5 + $0x5d0] sm:$0xff]
  %v3056 = vld [vmem:[%s5 + $0x5d8] sm:$0xff]
  %v3057 = vld [vmem:[%s5 + $0x5e0] sm:$0xff]
  %v3058 = vld [vmem:[%s5 + $0x5e8] sm:$0xff]
  %v3059 = vld [vmem:[%s5 + $0x5f0] sm:$0xff]
  %v3060 = vld [vmem:[%s5 + $0x5f8] sm:$0xff]
  %v3061 = vld [vmem:[%s5 + $0x600] sm:$0xff]
  %v3062 = vld [vmem:[%s5 + $0x608] sm:$0xff]
  %v3063 = vld [vmem:[%s5 + $0x610] sm:$0xff]
  %v3064 = vld [vmem:[%s5 + $0x618] sm:$0xff]
  %v3065 = vld [vmem:[%s5 + $0x620] sm:$0xff]
  %v3066 = vld [vmem:[%s5 + $0x628] sm:$0xff]
  %v3067 = vld [vmem:[%s5 + $0x630] sm:$0xff]
  %v3068 = vld [vmem:[%s5 + $0x638] sm:$0xff]
  %v3069 = vld [vmem:[%s5 + $0x640] sm:$0xff]
  %v3070 = vld [vmem:[%s5 + $0x648] sm:$0xff]
  %v3071 = vld [vmem:[%s5 + $0x650] sm:$0xff]
  %v3072 = vld [vmem:[%s5 + $0x658] sm:$0xff]
  %v3073 = vld [vmem:[%s5 + $0x660] sm:$0xff]
  %v3074 = vld [vmem:[%s5 + $0x668] sm:$0xff]
  %v3075 = vld [vmem:[%s5 + $0x670] sm:$0xff]
  %v3076 = vld [vmem:[%s5 + $0x678] sm:$0xff]
  %v3077 = vld [vmem:[%s5 + $0x680] sm:$0xff]
  %v3078 = vld [vmem:[%s5 + $0x688] sm:$0xff]
  %v3079 = vld [vmem:[%s5 + $0x690] sm:$0xff]
  %v3080 = vld [vmem:[%s5 + $0x698] sm:$0xff]
  %v3081 = vld [vmem:[%s5 + $0x6a0] sm:$0xff]
  %v3082 = vld [vmem:[%s5 + $0x6a8] sm:$0xff]
  %v3083 = vld [vmem:[%s5 + $0x6b0] sm:$0xff]
  %v3084 = vld [vmem:[%s5 + $0x6b8] sm:$0xff]
  %v3085 = vld [vmem:[%s5 + $0x6c0] sm:$0xff]
  %v3086 = vld [vmem:[%s5 + $0x6c8] sm:$0xff]
  %v3087 = vld [vmem:[%s5 + $0x6d0] sm:$0xff]
  %v3088 = vld [vmem:[%s5 + $0x6d8] sm:$0xff]
  %v3089 = vld [vmem:[%s5 + $0x6e0] sm:$0xff]
  %v3090 = vld [vmem:[%s5 + $0x6e8] sm:$0xff]
  %v3091 = vld [vmem:[%s5 + $0x6f0] sm:$0xff]
  %v3092 = vld [vmem:[%s5 + $0x6f8] sm:$0xff]
  %v3093 = vld [vmem:[%s5 + $0x700] sm:$0xff]
  %v3094 = vld [vmem:[%s5 + $0x708] sm:$0xff]
  %v3095 = vld [vmem:[%s5 + $0x710] sm:$0xff]
  %v3096 = vld [vmem:[%s5 + $0x718] sm:$0xff]
  %v3097 = vld [vmem:[%s5 + $0x720] sm:$0xff]
  %v3098 = vld [vmem:[%s5 + $0x728] sm:$0xff]
  %v3099 = vld [vmem:[%s5 + $0x730] sm:$0xff]
  %v3100 = vld [vmem:[%s5 + $0x738] sm:$0xff]
  %v3101 = vld [vmem:[%s5 + $0x740] sm:$0xff]
  %v3102 = vld [vmem:[%s5 + $0x748] sm:$0xff]
  %v3103 = vld [vmem:[%s5 + $0x750] sm:$0xff]
  %v3104 = vld [vmem:[%s5 + $0x758] sm:$0xff]
  %v3105 = vld [vmem:[%s5 + $0x760] sm:$0xff]
  %v3106 = vld [vmem:[%s5 + $0x768] sm:$0xff]
  %v3107 = vld [vmem:[%s5 + $0x770] sm:$0xff]
  %v3108 = vld [vmem:[%s5 + $0x778] sm:$0xff]
  %v3109 = vld [vmem:[%s5 + $0x780] sm:$0xff]
  %v3110 = vld [vmem:[%s5 + $0x788] sm:$0xff]
  %v3111 = vld [vmem:[%s5 + $0x790] sm:$0xff]
  %v3112 = vld [vmem:[%s5 + $0x798] sm:$0xff]
  %v3113 = vld [vmem:[%s5 + $0x7a0] sm:$0xff]
  %v3114 = vld [vmem:[%s5 + $0x7a8] sm:$0xff]
  %v3115 = vld [vmem:[%s5 + $0x7b0] sm:$0xff]
  %v3116 = vld [vmem:[%s5 + $0x7b8] sm:$0xff]
  %v3117 = vld [vmem:[%s5 + $0x7c0] sm:$0xff]
  %v3118 = vld [vmem:[%s5 + $0x7c8] sm:$0xff]
  %v3119 = vld [vmem:[%s5 + $0x7d0] sm:$0xff]
  %v3120 = vld [vmem:[%s5 + $0x7d8] sm:$0xff]
  %v3121 = vld [vmem:[%s5 + $0x7e0] sm:$0xff]
  %v3122 = vld [vmem:[%s5 + $0x7e8] sm:$0xff]
  %v3123 = vld [vmem:[%s5 + $0x7f0] sm:$0xff]
  %v3124 = vld [vmem:[%s5 + $0x7f8] sm:$0xff]
  %v3125 = vld [vmem:[%s5 + $0x800] sm:$0xff]
  %v3126 = vld [vmem:[%s5 + $0x808] sm:$0xff]
  %v3127 = vld [vmem:[%s5 + $0x810] sm:$0xff]
  %v3128 = vld [vmem:[%s5 + $0x818] sm:$0xff]
  %v3129 = vld [vmem:[%s5 + $0x820] sm:$0xff]
  %v3130 = vld [vmem:[%s5 + $0x828] sm:$0xff]
  %v3131 = vld [vmem:[%s5 + $0x830] sm:$0xff]
  %v3132 = vld [vmem:[%s5 + $0x838] sm:$0xff]
  %v3133 = vld [vmem:[%s5 + $0x840] sm:$0xff]
  %v3134 = vld [vmem:[%s5 + $0x848] sm:$0xff]
  %v3135 = vld [vmem:[%s5 + $0x850] sm:$0xff]
  %v3136 = vld [vmem:[%s5 + $0x858] sm:$0xff]
  %v3137 = vld [vmem:[%s5 + $0x860] sm:$0xff]
  %v3138 = vld [vmem:[%s5 + $0x868] sm:$0xff]
  %v3139 = vld [vmem:[%s5 + $0x870] sm:$0xff]
  %v3140 = vld [vmem:[%s5 + $0x878] sm:$0xff]
  %v3141 = vld [vmem:[%s5 + $0x880] sm:$0xff]
  %v3142 = vld [vmem:[%s5 + $0x888] sm:$0xff]
  %v3143 = vld [vmem:[%s5 + $0x890] sm:$0xff]
  %v3144 = vld [vmem:[%s5 + $0x898] sm:$0xff]
  %v3145 = vld [vmem:[%s5 + $0x8a0] sm:$0xff]
  %v3146 = vld [vmem:[%s5 + $0x8a8] sm:$0xff]
  %v3147 = vld [vmem:[%s5 + $0x8b0] sm:$0xff]
  %v3148 = vld [vmem:[%s5 + $0x8b8] sm:$0xff]
  %v3149 = vld [vmem:[%s5 + $0x8c0] sm:$0xff]
  %v3150 = vld [vmem:[%s5 + $0x8c8] sm:$0xff]
  %v3151 = vld [vmem:[%s5 + $0x8d0] sm:$0xff]
  %v3152 = vld [vmem:[%s5 + $0x8d8] sm:$0xff]
  %v3153 = vld [vmem:[%s5 + $0x8e0] sm:$0xff]
  %v3154 = vld [vmem:[%s5 + $0x8e8] sm:$0xff]
  %v3155 = vld [vmem:[%s5 + $0x8f0] sm:$0xff]
  %v3156 = vld [vmem:[%s5 + $0x8f8] sm:$0xff]
  %v3157 = vld [vmem:[%s5 + $0x900] sm:$0xff]
  %v3158 = vld [vmem:[%s5 + $0x908] sm:$0xff]
  %v3159 = vld [vmem:[%s5 + $0x910] sm:$0xff]
  %v3160 = vld [vmem:[%s5 + $0x918] sm:$0xff]
  %v3161 = vld [vmem:[%s5 + $0x920] sm:$0xff]
  %v3162 = vld [vmem:[%s5 + $0x928] sm:$0xff]
  %v3163 = vld [vmem:[%s5 + $0x930] sm:$0xff]
  %v3164 = vld [vmem:[%s5 + $0x938] sm:$0xff]
  %v3165 = vld [vmem:[%s5 + $0x940] sm:$0xff]
  %v3166 = vld [vmem:[%s5 + $0x948] sm:$0xff]
  %v3167 = vld [vmem:[%s5 + $0x950] sm:$0xff]
  %v3168 = vld [vmem:[%s5 + $0x958] sm:$0xff]
  %v3169 = vld [vmem:[%s5 + $0x960] sm:$0xff]
  %v3170 = vld [vmem:[%s5 + $0x968] sm:$0xff]
  %v3171 = vld [vmem:[%s5 + $0x970] sm:$0xff]
  %v3172 = vld [vmem:[%s5 + $0x978] sm:$0xff]
  %v3173 = vld [vmem:[%s5 + $0x980] sm:$0xff]
  %v3174 = vld [vmem:[%s5 + $0x988] sm:$0xff]
  %v3175 = vld [vmem:[%s5 + $0x990] sm:$0xff]
  %v3176 = vld [vmem:[%s5 + $0x998] sm:$0xff]
  %v3177 = vld [vmem:[%s5 + $0x9a0] sm:$0xff]
  %v3178 = vld [vmem:[%s5 + $0x9a8] sm:$0xff]
  %v3179 = vld [vmem:[%s5 + $0x9b0] sm:$0xff]
  %v3180 = vld [vmem:[%s5 + $0x9b8] sm:$0xff]
  %v3181 = vld [vmem:[%s5 + $0x9c0] sm:$0xff]
  %v3182 = vld [vmem:[%s5 + $0x9c8] sm:$0xff]
  %v3183 = vld [vmem:[%s5 + $0x9d0] sm:$0xff]
  %v3184 = vld [vmem:[%s5 + $0x9d8] sm:$0xff]
  %v3185 = vld [vmem:[%s5 + $0x9e0] sm:$0xff]
  %v3186 = vld [vmem:[%s5 + $0x9e8] sm:$0xff]
  %v3187 = vld [vmem:[%s5 + $0x9f0] sm:$0xff]
  %v3188 = vld [vmem:[%s5 + $0x9f8] sm:$0xff]
  %v3189 = vld [vmem:[%s5 + $0xa00] sm:$0xff]
  %v3190 = vld [vmem:[%s5 + $0xa08] sm:$0xff]
  %v3191 = vld [vmem:[%s5 + $0xa10] sm:$0xff]
  %v3192 = vld [vmem:[%s5 + $0xa18] sm:$0xff]
  %v3193 = vld [vmem:[%s5 + $0xa20] sm:$0xff]
  %v3194 = vld [vmem:[%s5 + $0xa28] sm:$0xff]
  %v3195 = vld [vmem:[%s5 + $0xa30] sm:$0xff]
  %v3196 = vld [vmem:[%s5 + $0xa38] sm:$0xff]
  %v3197 = vld [vmem:[%s5 + $0xa40] sm:$0xff]
  %v3198 = vld [vmem:[%s5 + $0xa48] sm:$0xff]
  %v3199 = vld [vmem:[%s5 + $0xa50] sm:$0xff]
  %v3200 = vld [vmem:[%s5 + $0xa58] sm:$0xff]
  %v3201 = vld [vmem:[%s5 + $0xa60] sm:$0xff]
  %v3202 = vld [vmem:[%s5 + $0xa68] sm:$0xff]
  %v3203 = vld [vmem:[%s5 + $0xa70] sm:$0xff]
  %v3204 = vld [vmem:[%s5 + $0xa78] sm:$0xff]
  %v3205 = vld [vmem:[%s5 + $0xa80] sm:$0xff]
  %v3206 = vld [vmem:[%s5 + $0xa88] sm:$0xff]
  %v3207 = vld [vmem:[%s5 + $0xa90] sm:$0xff]
  %v3208 = vld [vmem:[%s5 + $0xa98] sm:$0xff]
  %v3209 = vld [vmem:[%s5 + $0xaa0] sm:$0xff]
  %v3210 = vld [vmem:[%s5 + $0xaa8] sm:$0xff]
  %v3211 = vld [vmem:[%s5 + $0xab0] sm:$0xff]
  %v3212 = vld [vmem:[%s5 + $0xab8] sm:$0xff]
  %v3213 = vld [vmem:[%s5 + $0xac0] sm:$0xff]
  %v3214 = vld [vmem:[%s5 + $0xac8] sm:$0xff]
  %v3215 = vld [vmem:[%s5 + $0xad0] sm:$0xff]
  %v3216 = vld [vmem:[%s5 + $0xad8] sm:$0xff]
  %v3217 = vld [vmem:[%s5 + $0xae0] sm:$0xff]
  %v3218 = vld [vmem:[%s5 + $0xae8] sm:$0xff]
  %v3219 = vld [vmem:[%s5 + $0xaf0] sm:$0xff]
  %v3220 = vld [vmem:[%s5 + $0xaf8] sm:$0xff]
  %v3221 = vld [vmem:[%s5 + $0xb00] sm:$0xff]
  %v3222 = vld [vmem:[%s5 + $0xb08] sm:$0xff]
  %v3223 = vld [vmem:[%s5 + $0xb10] sm:$0xff]
  %v3224 = vld [vmem:[%s5 + $0xb18] sm:$0xff]
  %v3225 = vld [vmem:[%s5 + $0xb20] sm:$0xff]
  %v3226 = vld [vmem:[%s5 + $0xb28] sm:$0xff]
  %v3227 = vld [vmem:[%s5 + $0xb30] sm:$0xff]
  %v3228 = vld [vmem:[%s5 + $0xb38] sm:$0xff]
  %v3229 = vld [vmem:[%s5 + $0xb40] sm:$0xff]
  %v3230 = vld [vmem:[%s5 + $0xb48] sm:$0xff]
  %v3231 = vld [vmem:[%s5 + $0xb50] sm:$0xff]
  %v3232 = vld [vmem:[%s5 + $0xb58] sm:$0xff]
  %v3233 = vld [vmem:[%s5 + $0xb60] sm:$0xff]
  %v3234 = vld [vmem:[%s5 + $0xb68] sm:$0xff]
  %v3235 = vld [vmem:[%s5 + $0xb70] sm:$0xff]
  %v3236 = vld [vmem:[%s5 + $0xb78] sm:$0xff]
  %v3237 = vld [vmem:[%s5 + $0xb80] sm:$0xff]
  %v3238 = vld [vmem:[%s5 + $0xb88] sm:$0xff]
  %v3239 = vld [vmem:[%s5 + $0xb90] sm:$0xff]
  %v3240 = vld [vmem:[%s5 + $0xb98] sm:$0xff]
  %v3241 = vld [vmem:[%s5 + $0xba0] sm:$0xff]
  %v3242 = vld [vmem:[%s5 + $0xba8] sm:$0xff]
  %v3243 = vld [vmem:[%s5 + $0xbb0] sm:$0xff]
  %v3244 = vld [vmem:[%s5 + $0xbb8] sm:$0xff]
  %v3245 = vld [vmem:[%s5 + $0xbc0] sm:$0xff]
  %v3246 = vld [vmem:[%s5 + $0xbc8] sm:$0xff]
  %v3247 = vld [vmem:[%s5 + $0xbd0] sm:$0xff]
  %v3248 = vld [vmem:[%s5 + $0xbd8] sm:$0xff]
  %v3249 = vld [vmem:[%s5 + $0xbe0] sm:$0xff]
  %v3250 = vld [vmem:[%s5 + $0xbe8] sm:$0xff]
  %v3251 = vld [vmem:[%s5 + $0xbf0] sm:$0xff]
  %v3252 = vld [vmem:[%s5 + $0xbf8] sm:$0xff]
  %v3253 = vld [vmem:[%s5 + $0xc00] sm:$0xff]
  %v3254 = vld [vmem:[%s5 + $0xc08] sm:$0xff]
  %v3255 = vld [vmem:[%s5 + $0xc10] sm:$0xff]
  %v3256 = vld [vmem:[%s5 + $0xc18] sm:$0xff]
  %v3257 = vld [vmem:[%s5 + $0xc20] sm:$0xff]
  %v3258 = vld [vmem:[%s5 + $0xc28] sm:$0xff]
  %v3259 = vld [vmem:[%s5 + $0xc30] sm:$0xff]
  %v3260 = vld [vmem:[%s5 + $0xc38] sm:$0xff]
  %v3261 = vld [vmem:[%s5 + $0xc40] sm:$0xff]
  %v3262 = vld [vmem:[%s5 + $0xc48] sm:$0xff]
  %v3263 = vld [vmem:[%s5 + $0xc50] sm:$0xff]
  %v3264 = vld [vmem:[%s5 + $0xc58] sm:$0xff]
  %v3265 = vld [vmem:[%s5 + $0xc60] sm:$0xff]
  %v3266 = vld [vmem:[%s5 + $0xc68] sm:$0xff]
  %v3267 = vld [vmem:[%s5 + $0xc70] sm:$0xff]
  %v3268 = vld [vmem:[%s5 + $0xc78] sm:$0xff]
  %v3269 = vld [vmem:[%s5 + $0xc80] sm:$0xff]
  %v3270 = vld [vmem:[%s5 + $0xc88] sm:$0xff]
  %v3271 = vld [vmem:[%s5 + $0xc90] sm:$0xff]
  %v3272 = vld [vmem:[%s5 + $0xc98] sm:$0xff]
  %v3273 = vld [vmem:[%s5 + $0xca0] sm:$0xff]
  %v3274 = vld [vmem:[%s5 + $0xca8] sm:$0xff]
  %v3275 = vld [vmem:[%s5 + $0xcb0] sm:$0xff]
  %v3276 = vld [vmem:[%s5 + $0xcb8] sm:$0xff]
  %v3277 = vld [vmem:[%s5 + $0xcc0] sm:$0xff]
  %v3278 = vld [vmem:[%s5 + $0xcc8] sm:$0xff]
  %v3279 = vld [vmem:[%s5 + $0xcd0] sm:$0xff]
  %v3280 = vld [vmem:[%s5 + $0xcd8] sm:$0xff]
  %v3281 = vld [vmem:[%s5 + $0xce0] sm:$0xff]
  %v3282 = vld [vmem:[%s5 + $0xce8] sm:$0xff]
  %v3283 = vld [vmem:[%s5 + $0xcf0] sm:$0xff]
  %v3284 = vld [vmem:[%s5 + $0xcf8] sm:$0xff]
  %v3285 = vld [vmem:[%s5 + $0xd00] sm:$0xff]
  %v3286 = vld [vmem:[%s5 + $0xd08] sm:$0xff]
  %v3287 = vld [vmem:[%s5 + $0xd10] sm:$0xff]
  %v3288 = vld [vmem:[%s5 + $0xd18] sm:$0xff]
  %v3289 = vld [vmem:[%s5 + $0xd20] sm:$0xff]
  %v3290 = vld [vmem:[%s5 + $0xd28] sm:$0xff]
  %v3291 = vld [vmem:[%s5 + $0xd30] sm:$0xff]
  %v3292 = vld [vmem:[%s5 + $0xd38] sm:$0xff]
  %v3293 = vld [vmem:[%s5 + $0xd40] sm:$0xff]
  %v3294 = vld [vmem:[%s5 + $0xd48] sm:$0xff]
  %v3295 = vld [vmem:[%s5 + $0xd50] sm:$0xff]
  %v3296 = vld [vmem:[%s5 + $0xd58] sm:$0xff]
  %v3297 = vld [vmem:[%s5 + $0xd60] sm:$0xff]
  %v3298 = vld [vmem:[%s5 + $0xd68] sm:$0xff]
  %v3299 = vld [vmem:[%s5 + $0xd70] sm:$0xff]
  %v3300 = vld [vmem:[%s5 + $0xd78] sm:$0xff]
  %v3301 = vld [vmem:[%s5 + $0xd80] sm:$0xff]
  %v3302 = vld [vmem:[%s5 + $0xd88] sm:$0xff]
  %v3303 = vld [vmem:[%s5 + $0xd90] sm:$0xff]
  %v3304 = vld [vmem:[%s5 + $0xd98] sm:$0xff]
  %v3305 = vld [vmem:[%s5 + $0xda0] sm:$0xff]
  %v3306 = vld [vmem:[%s5 + $0xda8] sm:$0xff]
  %v3307 = vld [vmem:[%s5 + $0xdb0] sm:$0xff]
  %v3308 = vld [vmem:[%s5 + $0xdb8] sm:$0xff]
  %v3309 = vld [vmem:[%s5 + $0xdc0] sm:$0xff]
  %v3310 = vld [vmem:[%s5 + $0xdc8] sm:$0xff]
  %v3311 = vld [vmem:[%s5 + $0xdd0] sm:$0xff]
  %v3312 = vld [vmem:[%s5 + $0xdd8] sm:$0xff]
  %v3313 = vld [vmem:[%s5 + $0xde0] sm:$0xff]
  %v3314 = vld [vmem:[%s5 + $0xde8] sm:$0xff]
  %v3315 = vld [vmem:[%s5 + $0xdf0] sm:$0xff]
  %v3316 = vld [vmem:[%s5 + $0xdf8] sm:$0xff]
  %v3317 = vld [vmem:[%s5 + $0xe00] sm:$0xff]
  %v3318 = vld [vmem:[%s5 + $0xe08] sm:$0xff]
  %v3319 = vld [vmem:[%s5 + $0xe10] sm:$0xff]
  %v3320 = vld [vmem:[%s5 + $0xe18] sm:$0xff]
  %v3321 = vld [vmem:[%s5 + $0xe20] sm:$0xff]
  %v3322 = vld [vmem:[%s5 + $0xe28] sm:$0xff]
  %v3323 = vld [vmem:[%s5 + $0xe30] sm:$0xff]
  %v3324 = vld [vmem:[%s5 + $0xe38] sm:$0xff]
  %v3325 = vld [vmem:[%s5 + $0xe40] sm:$0xff]
  %v3326 = vld [vmem:[%s5 + $0xe48] sm:$0xff]
  %v3327 = vld [vmem:[%s5 + $0xe50] sm:$0xff]
  %v3328 = vld [vmem:[%s5 + $0xe58] sm:$0xff]
  %v3329 = vld [vmem:[%s5 + $0xe60] sm:$0xff]
  %v3330 = vld [vmem:[%s5 + $0xe68] sm:$0xff]
  %v3331 = vld [vmem:[%s5 + $0xe70] sm:$0xff]
  %v3332 = vld [vmem:[%s5 + $0xe78] sm:$0xff]
  %v3333 = vld [vmem:[%s5 + $0xe80] sm:$0xff]
  %v3334 = vld [vmem:[%s5 + $0xe88] sm:$0xff]
  %v3335 = vld [vmem:[%s5 + $0xe90] sm:$0xff]
  %v3336 = vld [vmem:[%s5 + $0xe98] sm:$0xff]
  %v3337 = vld [vmem:[%s5 + $0xea0] sm:$0xff]
  %v3338 = vld [vmem:[%s5 + $0xea8] sm:$0xff]
  %v3339 = vld [vmem:[%s5 + $0xeb0] sm:$0xff]
  %v3340 = vld [vmem:[%s5 + $0xeb8] sm:$0xff]
  %v3341 = vld [vmem:[%s5 + $0xec0] sm:$0xff]
  %v3342 = vld [vmem:[%s5 + $0xec8] sm:$0xff]
  %v3343 = vld [vmem:[%s5 + $0xed0] sm:$0xff]
  %v3344 = vld [vmem:[%s5 + $0xed8] sm:$0xff]
  %v3345 = vld [vmem:[%s5 + $0xee0] sm:$0xff]
  %v3346 = vld [vmem:[%s5 + $0xee8] sm:$0xff]
  %v3347 = vld [vmem:[%s5 + $0xef0] sm:$0xff]
  %v3348 = vld [vmem:[%s5 + $0xef8] sm:$0xff]
  %v3349 = vld [vmem:[%s5 + $0xf00] sm:$0xff]
  %v3350 = vld [vmem:[%s5 + $0xf08] sm:$0xff]
  %v3351 = vld [vmem:[%s5 + $0xf10] sm:$0xff]
  %v3352 = vld [vmem:[%s5 + $0xf18] sm:$0xff]
  %v3353 = vld [vmem:[%s5 + $0xf20] sm:$0xff]
  %v3354 = vld [vmem:[%s5 + $0xf28] sm:$0xff]
  %v3355 = vld [vmem:[%s5 + $0xf30] sm:$0xff]
  %v3356 = vld [vmem:[%s5 + $0xf38] sm:$0xff]
  %v3357 = vld [vmem:[%s5 + $0xf40] sm:$0xff]
  %v3358 = vld [vmem:[%s5 + $0xf48] sm:$0xff]
  %v3359 = vld [vmem:[%s5 + $0xf50] sm:$0xff]
  %v3360 = vld [vmem:[%s5 + $0xf58] sm:$0xff]
  %v3361 = vld [vmem:[%s5 + $0xf60] sm:$0xff]
  %v3362 = vld [vmem:[%s5 + $0xf68] sm:$0xff]
  %v3363 = vld [vmem:[%s5 + $0xf70] sm:$0xff]
  %v3364 = vld [vmem:[%s5 + $0xf78] sm:$0xff]
  %v3365 = vld [vmem:[%s5 + $0xf80] sm:$0xff]
  %v3366 = vld [vmem:[%s5 + $0xf88] sm:$0xff]
  %v3367 = vld [vmem:[%s5 + $0xf90] sm:$0xff]
  %v3368 = vld [vmem:[%s5 + $0xf98] sm:$0xff]
  %v3369 = vld [vmem:[%s5 + $0xfa0] sm:$0xff]
  %v3370 = vld [vmem:[%s5 + $0xfa8] sm:$0xff]
  %v3371 = vld [vmem:[%s5 + $0xfb0] sm:$0xff]
  %v3372 = vld [vmem:[%s5 + $0xfb8] sm:$0xff]
  %v3373 = vld [vmem:[%s5 + $0xfc0] sm:$0xff]
  %v3374 = vld [vmem:[%s5 + $0xfc8] sm:$0xff]
  %v3375 = vld [vmem:[%s5 + $0xfd0] sm:$0xff]
  %v3376 = vld [vmem:[%s5 + $0xfd8] sm:$0xff]
  %v3377 = vld [vmem:[%s5 + $0xfe0] sm:$0xff]
  %v3378 = vld [vmem:[%s5 + $0xfe8] sm:$0xff]
  %v3379 = vld [vmem:[%s5 + $0xff0] sm:$0xff]
  %v3380 = vld [vmem:[%s5 + $0xff8] sm:$0xff]
  %v3381 = vld [vmem:[%s6] sm:$0xff]
  %v3383 = vlaneseq
  %v3384 = vshrl.u32 %v3383, 7
  %v3385 = vsub.s32 0, %v3384
  %v3386 = vrot.slane %v3381, %v3385
  %v3387 = vlaneseq
  %v3388 = vshrl.u32 %v3387, 7
  %v3389 = vsub.s32 1, %v3388
  %v3390 = vrot.slane %v3381, %v3389
  %v3391 = vlaneseq
  %v3392 = vshrl.u32 %v3391, 7
  %v3393 = vsub.s32 2, %v3392
  %v3394 = vrot.slane %v3381, %v3393
  %v3395 = vlaneseq
  %v3396 = vshrl.u32 %v3395, 7
  %v3397 = vsub.s32 3, %v3396
  %v3398 = vrot.slane %v3381, %v3397
  %v3399 = vlaneseq
  %v3400 = vshrl.u32 %v3399, 7
  %v3401 = vsub.s32 4, %v3400
  %v3402 = vrot.slane %v3381, %v3401
  %v3403 = vlaneseq
  %v3404 = vshrl.u32 %v3403, 7
  %v3405 = vsub.s32 5, %v3404
  %v3406 = vrot.slane %v3381, %v3405
  %v3407 = vlaneseq
  %v3408 = vshrl.u32 %v3407, 7
  %v3409 = vsub.s32 6, %v3408
  %v3410 = vrot.slane %v3381, %v3409
  %v3411 = vlaneseq
  %v3412 = vshrl.u32 %v3411, 7
  %v3413 = vsub.s32 7, %v3412
  %v3414 = vrot.slane %v3381, %v3413
  %v3935 = vunpack.c.l.b16 %v2869
  %v3936 = vunpack.c.h.b16 %v2869
  %v3937 = vunpack.c.l.b16 %v2870
  %v3938 = vunpack.c.h.b16 %v2870
  %v3939 = vunpack.c.l.b16 %v2871
  %v3940 = vunpack.c.h.b16 %v2871
  %v3941 = vunpack.c.l.b16 %v2872
  %v3942 = vunpack.c.h.b16 %v2872
  %v3943 = vunpack.c.l.b16 %v2873
  %v3944 = vunpack.c.h.b16 %v2873
  %v3945 = vunpack.c.l.b16 %v2874
  %v3946 = vunpack.c.h.b16 %v2874
  %v3947 = vunpack.c.l.b16 %v2875
  %v3948 = vunpack.c.h.b16 %v2875
  %v3949 = vunpack.c.l.b16 %v2876
  %v3950 = vunpack.c.h.b16 %v2876
  %v3951 = vunpack.c.l.b16 %v2877
  %v3952 = vunpack.c.h.b16 %v2877
  %v3953 = vunpack.c.l.b16 %v2878
  %v3954 = vunpack.c.h.b16 %v2878
  %v3955 = vunpack.c.l.b16 %v2879
  %v3956 = vunpack.c.h.b16 %v2879
  %v3957 = vunpack.c.l.b16 %v2880
  %v3958 = vunpack.c.h.b16 %v2880
  %v3959 = vunpack.c.l.b16 %v2881
  %v3960 = vunpack.c.h.b16 %v2881
  %v3961 = vunpack.c.l.b16 %v2882
  %v3962 = vunpack.c.h.b16 %v2882
  %v3963 = vunpack.c.l.b16 %v2883
  %v3964 = vunpack.c.h.b16 %v2883
  %v3965 = vunpack.c.l.b16 %v2884
  %v3966 = vunpack.c.h.b16 %v2884
  %v3967 = vunpack.c.l.b16 %v2885
  %v3968 = vunpack.c.h.b16 %v2885
  %v3969 = vunpack.c.l.b16 %v2886
  %v3970 = vunpack.c.h.b16 %v2886
  %v3971 = vunpack.c.l.b16 %v2887
  %v3972 = vunpack.c.h.b16 %v2887
  %v3973 = vunpack.c.l.b16 %v2888
  %v3974 = vunpack.c.h.b16 %v2888
  %v3975 = vunpack.c.l.b16 %v2889
  %v3976 = vunpack.c.h.b16 %v2889
  %v3977 = vunpack.c.l.b16 %v2890
  %v3978 = vunpack.c.h.b16 %v2890
  %v3979 = vunpack.c.l.b16 %v2891
  %v3980 = vunpack.c.h.b16 %v2891
  %v3981 = vunpack.c.l.b16 %v2892
  %v3982 = vunpack.c.h.b16 %v2892
  %v3983 = vunpack.c.l.b16 %v2893
  %v3984 = vunpack.c.h.b16 %v2893
  %v3985 = vunpack.c.l.b16 %v2894
  %v3986 = vunpack.c.h.b16 %v2894
  %v3987 = vunpack.c.l.b16 %v2895
  %v3988 = vunpack.c.h.b16 %v2895
  %v3989 = vunpack.c.l.b16 %v2896
  %v3990 = vunpack.c.h.b16 %v2896
  %v3991 = vunpack.c.l.b16 %v2897
  %v3992 = vunpack.c.h.b16 %v2897
  %v3993 = vunpack.c.l.b16 %v2898
  %v3994 = vunpack.c.h.b16 %v2898
  %v3995 = vunpack.c.l.b16 %v2899
  %v3996 = vunpack.c.h.b16 %v2899
  %v3997 = vunpack.c.l.b16 %v2900
  %v3998 = vunpack.c.h.b16 %v2900
  %v3999 = vunpack.c.l.b16 %v2901
  %v4000 = vunpack.c.h.b16 %v2901
  %v4001 = vunpack.c.l.b16 %v2902
  %v4002 = vunpack.c.h.b16 %v2902
  %v4003 = vunpack.c.l.b16 %v2903
  %v4004 = vunpack.c.h.b16 %v2903
  %v4005 = vunpack.c.l.b16 %v2904
  %v4006 = vunpack.c.h.b16 %v2904
  %v4007 = vunpack.c.l.b16 %v2905
  %v4008 = vunpack.c.h.b16 %v2905
  %v4009 = vunpack.c.l.b16 %v2906
  %v4010 = vunpack.c.h.b16 %v2906
  %v4011 = vunpack.c.l.b16 %v2907
  %v4012 = vunpack.c.h.b16 %v2907
  %v4013 = vunpack.c.l.b16 %v2908
  %v4014 = vunpack.c.h.b16 %v2908
  %v4015 = vunpack.c.l.b16 %v2909
  %v4016 = vunpack.c.h.b16 %v2909
  %v4017 = vunpack.c.l.b16 %v2910
  %v4018 = vunpack.c.h.b16 %v2910
  %v4019 = vunpack.c.l.b16 %v2911
  %v4020 = vunpack.c.h.b16 %v2911
  %v4021 = vunpack.c.l.b16 %v2912
  %v4022 = vunpack.c.h.b16 %v2912
  %v4023 = vunpack.c.l.b16 %v2913
  %v4024 = vunpack.c.h.b16 %v2913
  %v4025 = vunpack.c.l.b16 %v2914
  %v4026 = vunpack.c.h.b16 %v2914
  %v4027 = vunpack.c.l.b16 %v2915
  %v4028 = vunpack.c.h.b16 %v2915
  %v4029 = vunpack.c.l.b16 %v2916
  %v4030 = vunpack.c.h.b16 %v2916
  %v4031 = vunpack.c.l.b16 %v2917
  %v4032 = vunpack.c.h.b16 %v2917
  %v4033 = vunpack.c.l.b16 %v2918
  %v4034 = vunpack.c.h.b16 %v2918
  %v4035 = vunpack.c.l.b16 %v2919
  %v4036 = vunpack.c.h.b16 %v2919
  %v4037 = vunpack.c.l.b16 %v2920
  %v4038 = vunpack.c.h.b16 %v2920
  %v4039 = vunpack.c.l.b16 %v2921
  %v4040 = vunpack.c.h.b16 %v2921
  %v4041 = vunpack.c.l.b16 %v2922
  %v4042 = vunpack.c.h.b16 %v2922
  %v4043 = vunpack.c.l.b16 %v2923
  %v4044 = vunpack.c.h.b16 %v2923
  %v4045 = vunpack.c.l.b16 %v2924
  %v4046 = vunpack.c.h.b16 %v2924
  %v4047 = vunpack.c.l.b16 %v2925
  %v4048 = vunpack.c.h.b16 %v2925
  %v4049 = vunpack.c.l.b16 %v2926
  %v4050 = vunpack.c.h.b16 %v2926
  %v4051 = vunpack.c.l.b16 %v2927
  %v4052 = vunpack.c.h.b16 %v2927
  %v4053 = vunpack.c.l.b16 %v2928
  %v4054 = vunpack.c.h.b16 %v2928
  %v4055 = vunpack.c.l.b16 %v2929
  %v4056 = vunpack.c.h.b16 %v2929
  %v4057 = vunpack.c.l.b16 %v2930
  %v4058 = vunpack.c.h.b16 %v2930
  %v4059 = vunpack.c.l.b16 %v2931
  %v4060 = vunpack.c.h.b16 %v2931
  %v4061 = vunpack.c.l.b16 %v2932
  %v4062 = vunpack.c.h.b16 %v2932
  %v4063 = vunpack.c.l.b16 %v2933
  %v4064 = vunpack.c.h.b16 %v2933
  %v4065 = vunpack.c.l.b16 %v2934
  %v4066 = vunpack.c.h.b16 %v2934
  %v4067 = vunpack.c.l.b16 %v2935
  %v4068 = vunpack.c.h.b16 %v2935
  %v4069 = vunpack.c.l.b16 %v2936
  %v4070 = vunpack.c.h.b16 %v2936
  %v4071 = vunpack.c.l.b16 %v2937
  %v4072 = vunpack.c.h.b16 %v2937
  %v4073 = vunpack.c.l.b16 %v2938
  %v4074 = vunpack.c.h.b16 %v2938
  %v4075 = vunpack.c.l.b16 %v2939
  %v4076 = vunpack.c.h.b16 %v2939
  %v4077 = vunpack.c.l.b16 %v2940
  %v4078 = vunpack.c.h.b16 %v2940
  %v4079 = vunpack.c.l.b16 %v2941
  %v4080 = vunpack.c.h.b16 %v2941
  %v4081 = vunpack.c.l.b16 %v2942
  %v4082 = vunpack.c.h.b16 %v2942
  %v4083 = vunpack.c.l.b16 %v2943
  %v4084 = vunpack.c.h.b16 %v2943
  %v4085 = vunpack.c.l.b16 %v2944
  %v4086 = vunpack.c.h.b16 %v2944
  %v4087 = vunpack.c.l.b16 %v2945
  %v4088 = vunpack.c.h.b16 %v2945
  %v4089 = vunpack.c.l.b16 %v2946
  %v4090 = vunpack.c.h.b16 %v2946
  %v4091 = vunpack.c.l.b16 %v2947
  %v4092 = vunpack.c.h.b16 %v2947
  %v4093 = vunpack.c.l.b16 %v2948
  %v4094 = vunpack.c.h.b16 %v2948
  %v4095 = vunpack.c.l.b16 %v2949
  %v4096 = vunpack.c.h.b16 %v2949
  %v4097 = vunpack.c.l.b16 %v2950
  %v4098 = vunpack.c.h.b16 %v2950
  %v4099 = vunpack.c.l.b16 %v2951
  %v4100 = vunpack.c.h.b16 %v2951
  %v4101 = vunpack.c.l.b16 %v2952
  %v4102 = vunpack.c.h.b16 %v2952
  %v4103 = vunpack.c.l.b16 %v2953
  %v4104 = vunpack.c.h.b16 %v2953
  %v4105 = vunpack.c.l.b16 %v2954
  %v4106 = vunpack.c.h.b16 %v2954
  %v4107 = vunpack.c.l.b16 %v2955
  %v4108 = vunpack.c.h.b16 %v2955
  %v4109 = vunpack.c.l.b16 %v2956
  %v4110 = vunpack.c.h.b16 %v2956
  %v4111 = vunpack.c.l.b16 %v2957
  %v4112 = vunpack.c.h.b16 %v2957
  %v4113 = vunpack.c.l.b16 %v2958
  %v4114 = vunpack.c.h.b16 %v2958
  %v4115 = vunpack.c.l.b16 %v2959
  %v4116 = vunpack.c.h.b16 %v2959
  %v4117 = vunpack.c.l.b16 %v2960
  %v4118 = vunpack.c.h.b16 %v2960
  %v4119 = vunpack.c.l.b16 %v2961
  %v4120 = vunpack.c.h.b16 %v2961
  %v4121 = vunpack.c.l.b16 %v2962
  %v4122 = vunpack.c.h.b16 %v2962
  %v4123 = vunpack.c.l.b16 %v2963
  %v4124 = vunpack.c.h.b16 %v2963
  %v4125 = vunpack.c.l.b16 %v2964
  %v4126 = vunpack.c.h.b16 %v2964
  %v4127 = vunpack.c.l.b16 %v2965
  %v4128 = vunpack.c.h.b16 %v2965
  %v4129 = vunpack.c.l.b16 %v2966
  %v4130 = vunpack.c.h.b16 %v2966
  %v4131 = vunpack.c.l.b16 %v2967
  %v4132 = vunpack.c.h.b16 %v2967
  %v4133 = vunpack.c.l.b16 %v2968
  %v4134 = vunpack.c.h.b16 %v2968
  %v4135 = vunpack.c.l.b16 %v2969
  %v4136 = vunpack.c.h.b16 %v2969
  %v4137 = vunpack.c.l.b16 %v2970
  %v4138 = vunpack.c.h.b16 %v2970
  %v4139 = vunpack.c.l.b16 %v2971
  %v4140 = vunpack.c.h.b16 %v2971
  %v4141 = vunpack.c.l.b16 %v2972
  %v4142 = vunpack.c.h.b16 %v2972
  %v4143 = vunpack.c.l.b16 %v2973
  %v4144 = vunpack.c.h.b16 %v2973
  %v4145 = vunpack.c.l.b16 %v2974
  %v4146 = vunpack.c.h.b16 %v2974
  %v4147 = vunpack.c.l.b16 %v2975
  %v4148 = vunpack.c.h.b16 %v2975
  %v4149 = vunpack.c.l.b16 %v2976
  %v4150 = vunpack.c.h.b16 %v2976
  %v4151 = vunpack.c.l.b16 %v2977
  %v4152 = vunpack.c.h.b16 %v2977
  %v4153 = vunpack.c.l.b16 %v2978
  %v4154 = vunpack.c.h.b16 %v2978
  %v4155 = vunpack.c.l.b16 %v2979
  %v4156 = vunpack.c.h.b16 %v2979
  %v4157 = vunpack.c.l.b16 %v2980
  %v4158 = vunpack.c.h.b16 %v2980
  %v4159 = vunpack.c.l.b16 %v2981
  %v4160 = vunpack.c.h.b16 %v2981
  %v4161 = vunpack.c.l.b16 %v2982
  %v4162 = vunpack.c.h.b16 %v2982
  %v4163 = vunpack.c.l.b16 %v2983
  %v4164 = vunpack.c.h.b16 %v2983
  %v4165 = vunpack.c.l.b16 %v2984
  %v4166 = vunpack.c.h.b16 %v2984
  %v4167 = vunpack.c.l.b16 %v2985
  %v4168 = vunpack.c.h.b16 %v2985
  %v4169 = vunpack.c.l.b16 %v2986
  %v4170 = vunpack.c.h.b16 %v2986
  %v4171 = vunpack.c.l.b16 %v2987
  %v4172 = vunpack.c.h.b16 %v2987
  %v4173 = vunpack.c.l.b16 %v2988
  %v4174 = vunpack.c.h.b16 %v2988
  %v4175 = vunpack.c.l.b16 %v2989
  %v4176 = vunpack.c.h.b16 %v2989
  %v4177 = vunpack.c.l.b16 %v2990
  %v4178 = vunpack.c.h.b16 %v2990
  %v4179 = vunpack.c.l.b16 %v2991
  %v4180 = vunpack.c.h.b16 %v2991
  %v4181 = vunpack.c.l.b16 %v2992
  %v4182 = vunpack.c.h.b16 %v2992
  %v4183 = vunpack.c.l.b16 %v2993
  %v4184 = vunpack.c.h.b16 %v2993
  %v4185 = vunpack.c.l.b16 %v2994
  %v4186 = vunpack.c.h.b16 %v2994
  %v4187 = vunpack.c.l.b16 %v2995
  %v4188 = vunpack.c.h.b16 %v2995
  %v4189 = vunpack.c.l.b16 %v2996
  %v4190 = vunpack.c.h.b16 %v2996
  %v4191 = vunpack.c.l.b16 %v2997
  %v4192 = vunpack.c.h.b16 %v2997
  %v4193 = vunpack.c.l.b16 %v2998
  %v4194 = vunpack.c.h.b16 %v2998
  %v4195 = vunpack.c.l.b16 %v2999
  %v4196 = vunpack.c.h.b16 %v2999
  %v4197 = vunpack.c.l.b16 %v3000
  %v4198 = vunpack.c.h.b16 %v3000
  %v4199 = vunpack.c.l.b16 %v3001
  %v4200 = vunpack.c.h.b16 %v3001
  %v4201 = vunpack.c.l.b16 %v3002
  %v4202 = vunpack.c.h.b16 %v3002
  %v4203 = vunpack.c.l.b16 %v3003
  %v4204 = vunpack.c.h.b16 %v3003
  %v4205 = vunpack.c.l.b16 %v3004
  %v4206 = vunpack.c.h.b16 %v3004
  %v4207 = vunpack.c.l.b16 %v3005
  %v4208 = vunpack.c.h.b16 %v3005
  %v4209 = vunpack.c.l.b16 %v3006
  %v4210 = vunpack.c.h.b16 %v3006
  %v4211 = vunpack.c.l.b16 %v3007
  %v4212 = vunpack.c.h.b16 %v3007
  %v4213 = vunpack.c.l.b16 %v3008
  %v4214 = vunpack.c.h.b16 %v3008
  %v4215 = vunpack.c.l.b16 %v3009
  %v4216 = vunpack.c.h.b16 %v3009
  %v4217 = vunpack.c.l.b16 %v3010
  %v4218 = vunpack.c.h.b16 %v3010
  %v4219 = vunpack.c.l.b16 %v3011
  %v4220 = vunpack.c.h.b16 %v3011
  %v4221 = vunpack.c.l.b16 %v3012
  %v4222 = vunpack.c.h.b16 %v3012
  %v4223 = vunpack.c.l.b16 %v3013
  %v4224 = vunpack.c.h.b16 %v3013
  %v4225 = vunpack.c.l.b16 %v3014
  %v4226 = vunpack.c.h.b16 %v3014
  %v4227 = vunpack.c.l.b16 %v3015
  %v4228 = vunpack.c.h.b16 %v3015
  %v4229 = vunpack.c.l.b16 %v3016
  %v4230 = vunpack.c.h.b16 %v3016
  %v4231 = vunpack.c.l.b16 %v3017
  %v4232 = vunpack.c.h.b16 %v3017
  %v4233 = vunpack.c.l.b16 %v3018
  %v4234 = vunpack.c.h.b16 %v3018
  %v4235 = vunpack.c.l.b16 %v3019
  %v4236 = vunpack.c.h.b16 %v3019
  %v4237 = vunpack.c.l.b16 %v3020
  %v4238 = vunpack.c.h.b16 %v3020
  %v4239 = vunpack.c.l.b16 %v3021
  %v4240 = vunpack.c.h.b16 %v3021
  %v4241 = vunpack.c.l.b16 %v3022
  %v4242 = vunpack.c.h.b16 %v3022
  %v4243 = vunpack.c.l.b16 %v3023
  %v4244 = vunpack.c.h.b16 %v3023
  %v4245 = vunpack.c.l.b16 %v3024
  %v4246 = vunpack.c.h.b16 %v3024
  %v4247 = vunpack.c.l.b16 %v3025
  %v4248 = vunpack.c.h.b16 %v3025
  %v4249 = vunpack.c.l.b16 %v3026
  %v4250 = vunpack.c.h.b16 %v3026
  %v4251 = vunpack.c.l.b16 %v3027
  %v4252 = vunpack.c.h.b16 %v3027
  %v4253 = vunpack.c.l.b16 %v3028
  %v4254 = vunpack.c.h.b16 %v3028
  %v4255 = vunpack.c.l.b16 %v3029
  %v4256 = vunpack.c.h.b16 %v3029
  %v4257 = vunpack.c.l.b16 %v3030
  %v4258 = vunpack.c.h.b16 %v3030
  %v4259 = vunpack.c.l.b16 %v3031
  %v4260 = vunpack.c.h.b16 %v3031
  %v4261 = vunpack.c.l.b16 %v3032
  %v4262 = vunpack.c.h.b16 %v3032
  %v4263 = vunpack.c.l.b16 %v3033
  %v4264 = vunpack.c.h.b16 %v3033
  %v4265 = vunpack.c.l.b16 %v3034
  %v4266 = vunpack.c.h.b16 %v3034
  %v4267 = vunpack.c.l.b16 %v3035
  %v4268 = vunpack.c.h.b16 %v3035
  %v4269 = vunpack.c.l.b16 %v3036
  %v4270 = vunpack.c.h.b16 %v3036
  %v4271 = vunpack.c.l.b16 %v3037
  %v4272 = vunpack.c.h.b16 %v3037
  %v4273 = vunpack.c.l.b16 %v3038
  %v4274 = vunpack.c.h.b16 %v3038
  %v4275 = vunpack.c.l.b16 %v3039
  %v4276 = vunpack.c.h.b16 %v3039
  %v4277 = vunpack.c.l.b16 %v3040
  %v4278 = vunpack.c.h.b16 %v3040
  %v4279 = vunpack.c.l.b16 %v3041
  %v4280 = vunpack.c.h.b16 %v3041
  %v4281 = vunpack.c.l.b16 %v3042
  %v4282 = vunpack.c.h.b16 %v3042
  %v4283 = vunpack.c.l.b16 %v3043
  %v4284 = vunpack.c.h.b16 %v3043
  %v4285 = vunpack.c.l.b16 %v3044
  %v4286 = vunpack.c.h.b16 %v3044
  %v4287 = vunpack.c.l.b16 %v3045
  %v4288 = vunpack.c.h.b16 %v3045
  %v4289 = vunpack.c.l.b16 %v3046
  %v4290 = vunpack.c.h.b16 %v3046
  %v4291 = vunpack.c.l.b16 %v3047
  %v4292 = vunpack.c.h.b16 %v3047
  %v4293 = vunpack.c.l.b16 %v3048
  %v4294 = vunpack.c.h.b16 %v3048
  %v4295 = vunpack.c.l.b16 %v3049
  %v4296 = vunpack.c.h.b16 %v3049
  %v4297 = vunpack.c.l.b16 %v3050
  %v4298 = vunpack.c.h.b16 %v3050
  %v4299 = vunpack.c.l.b16 %v3051
  %v4300 = vunpack.c.h.b16 %v3051
  %v4301 = vunpack.c.l.b16 %v3052
  %v4302 = vunpack.c.h.b16 %v3052
  %v4303 = vunpack.c.l.b16 %v3053
  %v4304 = vunpack.c.h.b16 %v3053
  %v4305 = vunpack.c.l.b16 %v3054
  %v4306 = vunpack.c.h.b16 %v3054
  %v4307 = vunpack.c.l.b16 %v3055
  %v4308 = vunpack.c.h.b16 %v3055
  %v4309 = vunpack.c.l.b16 %v3056
  %v4310 = vunpack.c.h.b16 %v3056
  %v4311 = vunpack.c.l.b16 %v3057
  %v4312 = vunpack.c.h.b16 %v3057
  %v4313 = vunpack.c.l.b16 %v3058
  %v4314 = vunpack.c.h.b16 %v3058
  %v4315 = vunpack.c.l.b16 %v3059
  %v4316 = vunpack.c.h.b16 %v3059
  %v4317 = vunpack.c.l.b16 %v3060
  %v4318 = vunpack.c.h.b16 %v3060
  %v4319 = vunpack.c.l.b16 %v3061
  %v4320 = vunpack.c.h.b16 %v3061
  %v4321 = vunpack.c.l.b16 %v3062
  %v4322 = vunpack.c.h.b16 %v3062
  %v4323 = vunpack.c.l.b16 %v3063
  %v4324 = vunpack.c.h.b16 %v3063
  %v4325 = vunpack.c.l.b16 %v3064
  %v4326 = vunpack.c.h.b16 %v3064
  %v4327 = vunpack.c.l.b16 %v3065
  %v4328 = vunpack.c.h.b16 %v3065
  %v4329 = vunpack.c.l.b16 %v3066
  %v4330 = vunpack.c.h.b16 %v3066
  %v4331 = vunpack.c.l.b16 %v3067
  %v4332 = vunpack.c.h.b16 %v3067
  %v4333 = vunpack.c.l.b16 %v3068
  %v4334 = vunpack.c.h.b16 %v3068
  %v4335 = vunpack.c.l.b16 %v3069
  %v4336 = vunpack.c.h.b16 %v3069
  %v4337 = vunpack.c.l.b16 %v3070
  %v4338 = vunpack.c.h.b16 %v3070
  %v4339 = vunpack.c.l.b16 %v3071
  %v4340 = vunpack.c.h.b16 %v3071
  %v4341 = vunpack.c.l.b16 %v3072
  %v4342 = vunpack.c.h.b16 %v3072
  %v4343 = vunpack.c.l.b16 %v3073
  %v4344 = vunpack.c.h.b16 %v3073
  %v4345 = vunpack.c.l.b16 %v3074
  %v4346 = vunpack.c.h.b16 %v3074
  %v4347 = vunpack.c.l.b16 %v3075
  %v4348 = vunpack.c.h.b16 %v3075
  %v4349 = vunpack.c.l.b16 %v3076
  %v4350 = vunpack.c.h.b16 %v3076
  %v4351 = vunpack.c.l.b16 %v3077
  %v4352 = vunpack.c.h.b16 %v3077
  %v4353 = vunpack.c.l.b16 %v3078
  %v4354 = vunpack.c.h.b16 %v3078
  %v4355 = vunpack.c.l.b16 %v3079
  %v4356 = vunpack.c.h.b16 %v3079
  %v4357 = vunpack.c.l.b16 %v3080
  %v4358 = vunpack.c.h.b16 %v3080
  %v4359 = vunpack.c.l.b16 %v3081
  %v4360 = vunpack.c.h.b16 %v3081
  %v4361 = vunpack.c.l.b16 %v3082
  %v4362 = vunpack.c.h.b16 %v3082
  %v4363 = vunpack.c.l.b16 %v3083
  %v4364 = vunpack.c.h.b16 %v3083
  %v4365 = vunpack.c.l.b16 %v3084
  %v4366 = vunpack.c.h.b16 %v3084
  %v4367 = vunpack.c.l.b16 %v3085
  %v4368 = vunpack.c.h.b16 %v3085
  %v4369 = vunpack.c.l.b16 %v3086
  %v4370 = vunpack.c.h.b16 %v3086
  %v4371 = vunpack.c.l.b16 %v3087
  %v4372 = vunpack.c.h.b16 %v3087
  %v4373 = vunpack.c.l.b16 %v3088
  %v4374 = vunpack.c.h.b16 %v3088
  %v4375 = vunpack.c.l.b16 %v3089
  %v4376 = vunpack.c.h.b16 %v3089
  %v4377 = vunpack.c.l.b16 %v3090
  %v4378 = vunpack.c.h.b16 %v3090
  %v4379 = vunpack.c.l.b16 %v3091
  %v4380 = vunpack.c.h.b16 %v3091
  %v4381 = vunpack.c.l.b16 %v3092
  %v4382 = vunpack.c.h.b16 %v3092
  %v4383 = vunpack.c.l.b16 %v3093
  %v4384 = vunpack.c.h.b16 %v3093
  %v4385 = vunpack.c.l.b16 %v3094
  %v4386 = vunpack.c.h.b16 %v3094
  %v4387 = vunpack.c.l.b16 %v3095
  %v4388 = vunpack.c.h.b16 %v3095
  %v4389 = vunpack.c.l.b16 %v3096
  %v4390 = vunpack.c.h.b16 %v3096
  %v4391 = vunpack.c.l.b16 %v3097
  %v4392 = vunpack.c.h.b16 %v3097
  %v4393 = vunpack.c.l.b16 %v3098
  %v4394 = vunpack.c.h.b16 %v3098
  %v4395 = vunpack.c.l.b16 %v3099
  %v4396 = vunpack.c.h.b16 %v3099
  %v4397 = vunpack.c.l.b16 %v3100
  %v4398 = vunpack.c.h.b16 %v3100
  %v4399 = vunpack.c.l.b16 %v3101
  %v4400 = vunpack.c.h.b16 %v3101
  %v4401 = vunpack.c.l.b16 %v3102
  %v4402 = vunpack.c.h.b16 %v3102
  %v4403 = vunpack.c.l.b16 %v3103
  %v4404 = vunpack.c.h.b16 %v3103
  %v4405 = vunpack.c.l.b16 %v3104
  %v4406 = vunpack.c.h.b16 %v3104
  %v4407 = vunpack.c.l.b16 %v3105
  %v4408 = vunpack.c.h.b16 %v3105
  %v4409 = vunpack.c.l.b16 %v3106
  %v4410 = vunpack.c.h.b16 %v3106
  %v4411 = vunpack.c.l.b16 %v3107
  %v4412 = vunpack.c.h.b16 %v3107
  %v4413 = vunpack.c.l.b16 %v3108
  %v4414 = vunpack.c.h.b16 %v3108
  %v4415 = vunpack.c.l.b16 %v3109
  %v4416 = vunpack.c.h.b16 %v3109
  %v4417 = vunpack.c.l.b16 %v3110
  %v4418 = vunpack.c.h.b16 %v3110
  %v4419 = vunpack.c.l.b16 %v3111
  %v4420 = vunpack.c.h.b16 %v3111
  %v4421 = vunpack.c.l.b16 %v3112
  %v4422 = vunpack.c.h.b16 %v3112
  %v4423 = vunpack.c.l.b16 %v3113
  %v4424 = vunpack.c.h.b16 %v3113
  %v4425 = vunpack.c.l.b16 %v3114
  %v4426 = vunpack.c.h.b16 %v3114
  %v4427 = vunpack.c.l.b16 %v3115
  %v4428 = vunpack.c.h.b16 %v3115
  %v4429 = vunpack.c.l.b16 %v3116
  %v4430 = vunpack.c.h.b16 %v3116
  %v4431 = vunpack.c.l.b16 %v3117
  %v4432 = vunpack.c.h.b16 %v3117
  %v4433 = vunpack.c.l.b16 %v3118
  %v4434 = vunpack.c.h.b16 %v3118
  %v4435 = vunpack.c.l.b16 %v3119
  %v4436 = vunpack.c.h.b16 %v3119
  %v4437 = vunpack.c.l.b16 %v3120
  %v4438 = vunpack.c.h.b16 %v3120
  %v4439 = vunpack.c.l.b16 %v3121
  %v4440 = vunpack.c.h.b16 %v3121
  %v4441 = vunpack.c.l.b16 %v3122
  %v4442 = vunpack.c.h.b16 %v3122
  %v4443 = vunpack.c.l.b16 %v3123
  %v4444 = vunpack.c.h.b16 %v3123
  %v4445 = vunpack.c.l.b16 %v3124
  %v4446 = vunpack.c.h.b16 %v3124
  %v4447 = vunpack.c.l.b16 %v3125
  %v4448 = vunpack.c.h.b16 %v3125
  %v4449 = vunpack.c.l.b16 %v3126
  %v4450 = vunpack.c.h.b16 %v3126
  %v4451 = vunpack.c.l.b16 %v3127
  %v4452 = vunpack.c.h.b16 %v3127
  %v4453 = vunpack.c.l.b16 %v3128
  %v4454 = vunpack.c.h.b16 %v3128
  %v4455 = vunpack.c.l.b16 %v3129
  %v4456 = vunpack.c.h.b16 %v3129
  %v4457 = vunpack.c.l.b16 %v3130
  %v4458 = vunpack.c.h.b16 %v3130
  %v4459 = vunpack.c.l.b16 %v3131
  %v4460 = vunpack.c.h.b16 %v3131
  %v4461 = vunpack.c.l.b16 %v3132
  %v4462 = vunpack.c.h.b16 %v3132
  %v4463 = vunpack.c.l.b16 %v3133
  %v4464 = vunpack.c.h.b16 %v3133
  %v4465 = vunpack.c.l.b16 %v3134
  %v4466 = vunpack.c.h.b16 %v3134
  %v4467 = vunpack.c.l.b16 %v3135
  %v4468 = vunpack.c.h.b16 %v3135
  %v4469 = vunpack.c.l.b16 %v3136
  %v4470 = vunpack.c.h.b16 %v3136
  %v4471 = vunpack.c.l.b16 %v3137
  %v4472 = vunpack.c.h.b16 %v3137
  %v4473 = vunpack.c.l.b16 %v3138
  %v4474 = vunpack.c.h.b16 %v3138
  %v4475 = vunpack.c.l.b16 %v3139
  %v4476 = vunpack.c.h.b16 %v3139
  %v4477 = vunpack.c.l.b16 %v3140
  %v4478 = vunpack.c.h.b16 %v3140
  %v4479 = vunpack.c.l.b16 %v3141
  %v4480 = vunpack.c.h.b16 %v3141
  %v4481 = vunpack.c.l.b16 %v3142
  %v4482 = vunpack.c.h.b16 %v3142
  %v4483 = vunpack.c.l.b16 %v3143
  %v4484 = vunpack.c.h.b16 %v3143
  %v4485 = vunpack.c.l.b16 %v3144
  %v4486 = vunpack.c.h.b16 %v3144
  %v4487 = vunpack.c.l.b16 %v3145
  %v4488 = vunpack.c.h.b16 %v3145
  %v4489 = vunpack.c.l.b16 %v3146
  %v4490 = vunpack.c.h.b16 %v3146
  %v4491 = vunpack.c.l.b16 %v3147
  %v4492 = vunpack.c.h.b16 %v3147
  %v4493 = vunpack.c.l.b16 %v3148
  %v4494 = vunpack.c.h.b16 %v3148
  %v4495 = vunpack.c.l.b16 %v3149
  %v4496 = vunpack.c.h.b16 %v3149
  %v4497 = vunpack.c.l.b16 %v3150
  %v4498 = vunpack.c.h.b16 %v3150
  %v4499 = vunpack.c.l.b16 %v3151
  %v4500 = vunpack.c.h.b16 %v3151
  %v4501 = vunpack.c.l.b16 %v3152
  %v4502 = vunpack.c.h.b16 %v3152
  %v4503 = vunpack.c.l.b16 %v3153
  %v4504 = vunpack.c.h.b16 %v3153
  %v4505 = vunpack.c.l.b16 %v3154
  %v4506 = vunpack.c.h.b16 %v3154
  %v4507 = vunpack.c.l.b16 %v3155
  %v4508 = vunpack.c.h.b16 %v3155
  %v4509 = vunpack.c.l.b16 %v3156
  %v4510 = vunpack.c.h.b16 %v3156
  %v4511 = vunpack.c.l.b16 %v3157
  %v4512 = vunpack.c.h.b16 %v3157
  %v4513 = vunpack.c.l.b16 %v3158
  %v4514 = vunpack.c.h.b16 %v3158
  %v4515 = vunpack.c.l.b16 %v3159
  %v4516 = vunpack.c.h.b16 %v3159
  %v4517 = vunpack.c.l.b16 %v3160
  %v4518 = vunpack.c.h.b16 %v3160
  %v4519 = vunpack.c.l.b16 %v3161
  %v4520 = vunpack.c.h.b16 %v3161
  %v4521 = vunpack.c.l.b16 %v3162
  %v4522 = vunpack.c.h.b16 %v3162
  %v4523 = vunpack.c.l.b16 %v3163
  %v4524 = vunpack.c.h.b16 %v3163
  %v4525 = vunpack.c.l.b16 %v3164
  %v4526 = vunpack.c.h.b16 %v3164
  %v4527 = vunpack.c.l.b16 %v3165
  %v4528 = vunpack.c.h.b16 %v3165
  %v4529 = vunpack.c.l.b16 %v3166
  %v4530 = vunpack.c.h.b16 %v3166
  %v4531 = vunpack.c.l.b16 %v3167
  %v4532 = vunpack.c.h.b16 %v3167
  %v4533 = vunpack.c.l.b16 %v3168
  %v4534 = vunpack.c.h.b16 %v3168
  %v4535 = vunpack.c.l.b16 %v3169
  %v4536 = vunpack.c.h.b16 %v3169
  %v4537 = vunpack.c.l.b16 %v3170
  %v4538 = vunpack.c.h.b16 %v3170
  %v4539 = vunpack.c.l.b16 %v3171
  %v4540 = vunpack.c.h.b16 %v3171
  %v4541 = vunpack.c.l.b16 %v3172
  %v4542 = vunpack.c.h.b16 %v3172
  %v4543 = vunpack.c.l.b16 %v3173
  %v4544 = vunpack.c.h.b16 %v3173
  %v4545 = vunpack.c.l.b16 %v3174
  %v4546 = vunpack.c.h.b16 %v3174
  %v4547 = vunpack.c.l.b16 %v3175
  %v4548 = vunpack.c.h.b16 %v3175
  %v4549 = vunpack.c.l.b16 %v3176
  %v4550 = vunpack.c.h.b16 %v3176
  %v4551 = vunpack.c.l.b16 %v3177
  %v4552 = vunpack.c.h.b16 %v3177
  %v4553 = vunpack.c.l.b16 %v3178
  %v4554 = vunpack.c.h.b16 %v3178
  %v4555 = vunpack.c.l.b16 %v3179
  %v4556 = vunpack.c.h.b16 %v3179
  %v4557 = vunpack.c.l.b16 %v3180
  %v4558 = vunpack.c.h.b16 %v3180
  %v4559 = vunpack.c.l.b16 %v3181
  %v4560 = vunpack.c.h.b16 %v3181
  %v4561 = vunpack.c.l.b16 %v3182
  %v4562 = vunpack.c.h.b16 %v3182
  %v4563 = vunpack.c.l.b16 %v3183
  %v4564 = vunpack.c.h.b16 %v3183
  %v4565 = vunpack.c.l.b16 %v3184
  %v4566 = vunpack.c.h.b16 %v3184
  %v4567 = vunpack.c.l.b16 %v3185
  %v4568 = vunpack.c.h.b16 %v3185
  %v4569 = vunpack.c.l.b16 %v3186
  %v4570 = vunpack.c.h.b16 %v3186
  %v4571 = vunpack.c.l.b16 %v3187
  %v4572 = vunpack.c.h.b16 %v3187
  %v4573 = vunpack.c.l.b16 %v3188
  %v4574 = vunpack.c.h.b16 %v3188
  %v4575 = vunpack.c.l.b16 %v3189
  %v4576 = vunpack.c.h.b16 %v3189
  %v4577 = vunpack.c.l.b16 %v3190
  %v4578 = vunpack.c.h.b16 %v3190
  %v4579 = vunpack.c.l.b16 %v3191
  %v4580 = vunpack.c.h.b16 %v3191
  %v4581 = vunpack.c.l.b16 %v3192
  %v4582 = vunpack.c.h.b16 %v3192
  %v4583 = vunpack.c.l.b16 %v3193
  %v4584 = vunpack.c.h.b16 %v3193
  %v4585 = vunpack.c.l.b16 %v3194
  %v4586 = vunpack.c.h.b16 %v3194
  %v4587 = vunpack.c.l.b16 %v3195
  %v4588 = vunpack.c.h.b16 %v3195
  %v4589 = vunpack.c.l.b16 %v3196
  %v4590 = vunpack.c.h.b16 %v3196
  %v4591 = vunpack.c.l.b16 %v3197
  %v4592 = vunpack.c.h.b16 %v3197
  %v4593 = vunpack.c.l.b16 %v3198
  %v4594 = vunpack.c.h.b16 %v3198
  %v4595 = vunpack.c.l.b16 %v3199
  %v4596 = vunpack.c.h.b16 %v3199
  %v4597 = vunpack.c.l.b16 %v3200
  %v4598 = vunpack.c.h.b16 %v3200
  %v4599 = vunpack.c.l.b16 %v3201
  %v4600 = vunpack.c.h.b16 %v3201
  %v4601 = vunpack.c.l.b16 %v3202
  %v4602 = vunpack.c.h.b16 %v3202
  %v4603 = vunpack.c.l.b16 %v3203
  %v4604 = vunpack.c.h.b16 %v3203
  %v4605 = vunpack.c.l.b16 %v3204
  %v4606 = vunpack.c.h.b16 %v3204
  %v4607 = vunpack.c.l.b16 %v3205
  %v4608 = vunpack.c.h.b16 %v3205
  %v4609 = vunpack.c.l.b16 %v3206
  %v4610 = vunpack.c.h.b16 %v3206
  %v4611 = vunpack.c.l.b16 %v3207
  %v4612 = vunpack.c.h.b16 %v3207
  %v4613 = vunpack.c.l.b16 %v3208
  %v4614 = vunpack.c.h.b16 %v3208
  %v4615 = vunpack.c.l.b16 %v3209
  %v4616 = vunpack.c.h.b16 %v3209
  %v4617 = vunpack.c.l.b16 %v3210
  %v4618 = vunpack.c.h.b16 %v3210
  %v4619 = vunpack.c.l.b16 %v3211
  %v4620 = vunpack.c.h.b16 %v3211
  %v4621 = vunpack.c.l.b16 %v3212
  %v4622 = vunpack.c.h.b16 %v3212
  %v4623 = vunpack.c.l.b16 %v3213
  %v4624 = vunpack.c.h.b16 %v3213
  %v4625 = vunpack.c.l.b16 %v3214
  %v4626 = vunpack.c.h.b16 %v3214
  %v4627 = vunpack.c.l.b16 %v3215
  %v4628 = vunpack.c.h.b16 %v3215
  %v4629 = vunpack.c.l.b16 %v3216
  %v4630 = vunpack.c.h.b16 %v3216
  %v4631 = vunpack.c.l.b16 %v3217
  %v4632 = vunpack.c.h.b16 %v3217
  %v4633 = vunpack.c.l.b16 %v3218
  %v4634 = vunpack.c.h.b16 %v3218
  %v4635 = vunpack.c.l.b16 %v3219
  %v4636 = vunpack.c.h.b16 %v3219
  %v4637 = vunpack.c.l.b16 %v3220
  %v4638 = vunpack.c.h.b16 %v3220
  %v4639 = vunpack.c.l.b16 %v3221
  %v4640 = vunpack.c.h.b16 %v3221
  %v4641 = vunpack.c.l.b16 %v3222
  %v4642 = vunpack.c.h.b16 %v3222
  %v4643 = vunpack.c.l.b16 %v3223
  %v4644 = vunpack.c.h.b16 %v3223
  %v4645 = vunpack.c.l.b16 %v3224
  %v4646 = vunpack.c.h.b16 %v3224
  %v4647 = vunpack.c.l.b16 %v3225
  %v4648 = vunpack.c.h.b16 %v3225
  %v4649 = vunpack.c.l.b16 %v3226
  %v4650 = vunpack.c.h.b16 %v3226
  %v4651 = vunpack.c.l.b16 %v3227
  %v4652 = vunpack.c.h.b16 %v3227
  %v4653 = vunpack.c.l.b16 %v3228
  %v4654 = vunpack.c.h.b16 %v3228
  %v4655 = vunpack.c.l.b16 %v3229
  %v4656 = vunpack.c.h.b16 %v3229
  %v4657 = vunpack.c.l.b16 %v3230
  %v4658 = vunpack.c.h.b16 %v3230
  %v4659 = vunpack.c.l.b16 %v3231
  %v4660 = vunpack.c.h.b16 %v3231
  %v4661 = vunpack.c.l.b16 %v3232
  %v4662 = vunpack.c.h.b16 %v3232
  %v4663 = vunpack.c.l.b16 %v3233
  %v4664 = vunpack.c.h.b16 %v3233
  %v4665 = vunpack.c.l.b16 %v3234
  %v4666 = vunpack.c.h.b16 %v3234
  %v4667 = vunpack.c.l.b16 %v3235
  %v4668 = vunpack.c.h.b16 %v3235
  %v4669 = vunpack.c.l.b16 %v3236
  %v4670 = vunpack.c.h.b16 %v3236
  %v4671 = vunpack.c.l.b16 %v3237
  %v4672 = vunpack.c.h.b16 %v3237
  %v4673 = vunpack.c.l.b16 %v3238
  %v4674 = vunpack.c.h.b16 %v3238
  %v4675 = vunpack.c.l.b16 %v3239
  %v4676 = vunpack.c.h.b16 %v3239
  %v4677 = vunpack.c.l.b16 %v3240
  %v4678 = vunpack.c.h.b16 %v3240
  %v4679 = vunpack.c.l.b16 %v3241
  %v4680 = vunpack.c.h.b16 %v3241
  %v4681 = vunpack.c.l.b16 %v3242
  %v4682 = vunpack.c.h.b16 %v3242
  %v4683 = vunpack.c.l.b16 %v3243
  %v4684 = vunpack.c.h.b16 %v3243
  %v4685 = vunpack.c.l.b16 %v3244
  %v4686 = vunpack.c.h.b16 %v3244
  %v4687 = vunpack.c.l.b16 %v3245
  %v4688 = vunpack.c.h.b16 %v3245
  %v4689 = vunpack.c.l.b16 %v3246
  %v4690 = vunpack.c.h.b16 %v3246
  %v4691 = vunpack.c.l.b16 %v3247
  %v4692 = vunpack.c.h.b16 %v3247
  %v4693 = vunpack.c.l.b16 %v3248
  %v4694 = vunpack.c.h.b16 %v3248
  %v4695 = vunpack.c.l.b16 %v3249
  %v4696 = vunpack.c.h.b16 %v3249
  %v4697 = vunpack.c.l.b16 %v3250
  %v4698 = vunpack.c.h.b16 %v3250
  %v4699 = vunpack.c.l.b16 %v3251
  %v4700 = vunpack.c.h.b16 %v3251
  %v4701 = vunpack.c.l.b16 %v3252
  %v4702 = vunpack.c.h.b16 %v3252
  %v4703 = vunpack.c.l.b16 %v3253
  %v4704 = vunpack.c.h.b16 %v3253
  %v4705 = vunpack.c.l.b16 %v3254
  %v4706 = vunpack.c.h.b16 %v3254
  %v4707 = vunpack.c.l.b16 %v3255
  %v4708 = vunpack.c.h.b16 %v3255
  %v4709 = vunpack.c.l.b16 %v3256
  %v4710 = vunpack.c.h.b16 %v3256
  %v4711 = vunpack.c.l.b16 %v3257
  %v4712 = vunpack.c.h.b16 %v3257
  %v4713 = vunpack.c.l.b16 %v3258
  %v4714 = vunpack.c.h.b16 %v3258
  %v4715 = vunpack.c.l.b16 %v3259
  %v4716 = vunpack.c.h.b16 %v3259
  %v4717 = vunpack.c.l.b16 %v3260
  %v4718 = vunpack.c.h.b16 %v3260
  %v4719 = vunpack.c.l.b16 %v3261
  %v4720 = vunpack.c.h.b16 %v3261
  %v4721 = vunpack.c.l.b16 %v3262
  %v4722 = vunpack.c.h.b16 %v3262
  %v4723 = vunpack.c.l.b16 %v3263
  %v4724 = vunpack.c.h.b16 %v3263
  %v4725 = vunpack.c.l.b16 %v3264
  %v4726 = vunpack.c.h.b16 %v3264
  %v4727 = vunpack.c.l.b16 %v3265
  %v4728 = vunpack.c.h.b16 %v3265
  %v4729 = vunpack.c.l.b16 %v3266
  %v4730 = vunpack.c.h.b16 %v3266
  %v4731 = vunpack.c.l.b16 %v3267
  %v4732 = vunpack.c.h.b16 %v3267
  %v4733 = vunpack.c.l.b16 %v3268
  %v4734 = vunpack.c.h.b16 %v3268
  %v4735 = vunpack.c.l.b16 %v3269
  %v4736 = vunpack.c.h.b16 %v3269
  %v4737 = vunpack.c.l.b16 %v3270
  %v4738 = vunpack.c.h.b16 %v3270
  %v4739 = vunpack.c.l.b16 %v3271
  %v4740 = vunpack.c.h.b16 %v3271
  %v4741 = vunpack.c.l.b16 %v3272
  %v4742 = vunpack.c.h.b16 %v3272
  %v4743 = vunpack.c.l.b16 %v3273
  %v4744 = vunpack.c.h.b16 %v3273
  %v4745 = vunpack.c.l.b16 %v3274
  %v4746 = vunpack.c.h.b16 %v3274
  %v4747 = vunpack.c.l.b16 %v3275
  %v4748 = vunpack.c.h.b16 %v3275
  %v4749 = vunpack.c.l.b16 %v3276
  %v4750 = vunpack.c.h.b16 %v3276
  %v4751 = vunpack.c.l.b16 %v3277
  %v4752 = vunpack.c.h.b16 %v3277
  %v4753 = vunpack.c.l.b16 %v3278
  %v4754 = vunpack.c.h.b16 %v3278
  %v4755 = vunpack.c.l.b16 %v3279
  %v4756 = vunpack.c.h.b16 %v3279
  %v4757 = vunpack.c.l.b16 %v3280
  %v4758 = vunpack.c.h.b16 %v3280
  %v4759 = vunpack.c.l.b16 %v3281
  %v4760 = vunpack.c.h.b16 %v3281
  %v4761 = vunpack.c.l.b16 %v3282
  %v4762 = vunpack.c.h.b16 %v3282
  %v4763 = vunpack.c.l.b16 %v3283
  %v4764 = vunpack.c.h.b16 %v3283
  %v4765 = vunpack.c.l.b16 %v3284
  %v4766 = vunpack.c.h.b16 %v3284
  %v4767 = vunpack.c.l.b16 %v3285
  %v4768 = vunpack.c.h.b16 %v3285
  %v4769 = vunpack.c.l.b16 %v3286
  %v4770 = vunpack.c.h.b16 %v3286
  %v4771 = vunpack.c.l.b16 %v3287
  %v4772 = vunpack.c.h.b16 %v3287
  %v4773 = vunpack.c.l.b16 %v3288
  %v4774 = vunpack.c.h.b16 %v3288
  %v4775 = vunpack.c.l.b16 %v3289
  %v4776 = vunpack.c.h.b16 %v3289
  %v4777 = vunpack.c.l.b16 %v3290
  %v4778 = vunpack.c.h.b16 %v3290
  %v4779 = vunpack.c.l.b16 %v3291
  %v4780 = vunpack.c.h.b16 %v3291
  %v4781 = vunpack.c.l.b16 %v3292
  %v4782 = vunpack.c.h.b16 %v3292
  %v4783 = vunpack.c.l.b16 %v3293
  %v4784 = vunpack.c.h.b16 %v3293
  %v4785 = vunpack.c.l.b16 %v3294
  %v4786 = vunpack.c.h.b16 %v3294
  %v4787 = vunpack.c.l.b16 %v3295
  %v4788 = vunpack.c.h.b16 %v3295
  %v4789 = vunpack.c.l.b16 %v3296
  %v4790 = vunpack.c.h.b16 %v3296
  %v4791 = vunpack.c.l.b16 %v3297
  %v4792 = vunpack.c.h.b16 %v3297
  %v4793 = vunpack.c.l.b16 %v3298
  %v4794 = vunpack.c.h.b16 %v3298
  %v4795 = vunpack.c.l.b16 %v3299
  %v4796 = vunpack.c.h.b16 %v3299
  %v4797 = vunpack.c.l.b16 %v3300
  %v4798 = vunpack.c.h.b16 %v3300
  %v4799 = vunpack.c.l.b16 %v3301
  %v4800 = vunpack.c.h.b16 %v3301
  %v4801 = vunpack.c.l.b16 %v3302
  %v4802 = vunpack.c.h.b16 %v3302
  %v4803 = vunpack.c.l.b16 %v3303
  %v4804 = vunpack.c.h.b16 %v3303
  %v4805 = vunpack.c.l.b16 %v3304
  %v4806 = vunpack.c.h.b16 %v3304
  %v4807 = vunpack.c.l.b16 %v3305
  %v4808 = vunpack.c.h.b16 %v3305
  %v4809 = vunpack.c.l.b16 %v3306
  %v4810 = vunpack.c.h.b16 %v3306
  %v4811 = vunpack.c.l.b16 %v3307
  %v4812 = vunpack.c.h.b16 %v3307
  %v4813 = vunpack.c.l.b16 %v3308
  %v4814 = vunpack.c.h.b16 %v3308
  %v4815 = vunpack.c.l.b16 %v3309
  %v4816 = vunpack.c.h.b16 %v3309
  %v4817 = vunpack.c.l.b16 %v3310
  %v4818 = vunpack.c.h.b16 %v3310
  %v4819 = vunpack.c.l.b16 %v3311
  %v4820 = vunpack.c.h.b16 %v3311
  %v4821 = vunpack.c.l.b16 %v3312
  %v4822 = vunpack.c.h.b16 %v3312
  %v4823 = vunpack.c.l.b16 %v3313
  %v4824 = vunpack.c.h.b16 %v3313
  %v4825 = vunpack.c.l.b16 %v3314
  %v4826 = vunpack.c.h.b16 %v3314
  %v4827 = vunpack.c.l.b16 %v3315
  %v4828 = vunpack.c.h.b16 %v3315
  %v4829 = vunpack.c.l.b16 %v3316
  %v4830 = vunpack.c.h.b16 %v3316
  %v4831 = vunpack.c.l.b16 %v3317
  %v4832 = vunpack.c.h.b16 %v3317
  %v4833 = vunpack.c.l.b16 %v3318
  %v4834 = vunpack.c.h.b16 %v3318
  %v4835 = vunpack.c.l.b16 %v3319
  %v4836 = vunpack.c.h.b16 %v3319
  %v4837 = vunpack.c.l.b16 %v3320
  %v4838 = vunpack.c.h.b16 %v3320
  %v4839 = vunpack.c.l.b16 %v3321
  %v4840 = vunpack.c.h.b16 %v3321
  %v4841 = vunpack.c.l.b16 %v3322
  %v4842 = vunpack.c.h.b16 %v3322
  %v4843 = vunpack.c.l.b16 %v3323
  %v4844 = vunpack.c.h.b16 %v3323
  %v4845 = vunpack.c.l.b16 %v3324
  %v4846 = vunpack.c.h.b16 %v3324
  %v4847 = vunpack.c.l.b16 %v3325
  %v4848 = vunpack.c.h.b16 %v3325
  %v4849 = vunpack.c.l.b16 %v3326
  %v4850 = vunpack.c.h.b16 %v3326
  %v4851 = vunpack.c.l.b16 %v3327
  %v4852 = vunpack.c.h.b16 %v3327
  %v4853 = vunpack.c.l.b16 %v3328
  %v4854 = vunpack.c.h.b16 %v3328
  %v4855 = vunpack.c.l.b16 %v3329
  %v4856 = vunpack.c.h.b16 %v3329
  %v4857 = vunpack.c.l.b16 %v3330
  %v4858 = vunpack.c.h.b16 %v3330
  %v4859 = vunpack.c.l.b16 %v3331
  %v4860 = vunpack.c.h.b16 %v3331
  %v4861 = vunpack.c.l.b16 %v3332
  %v4862 = vunpack.c.h.b16 %v3332
  %v4863 = vunpack.c.l.b16 %v3333
  %v4864 = vunpack.c.h.b16 %v3333
  %v4865 = vunpack.c.l.b16 %v3334
  %v4866 = vunpack.c.h.b16 %v3334
  %v4867 = vunpack.c.l.b16 %v3335
  %v4868 = vunpack.c.h.b16 %v3335
  %v4869 = vunpack.c.l.b16 %v3336
  %v4870 = vunpack.c.h.b16 %v3336
  %v4871 = vunpack.c.l.b16 %v3337
  %v4872 = vunpack.c.h.b16 %v3337
  %v4873 = vunpack.c.l.b16 %v3338
  %v4874 = vunpack.c.h.b16 %v3338
  %v4875 = vunpack.c.l.b16 %v3339
  %v4876 = vunpack.c.h.b16 %v3339
  %v4877 = vunpack.c.l.b16 %v3340
  %v4878 = vunpack.c.h.b16 %v3340
  %v4879 = vunpack.c.l.b16 %v3341
  %v4880 = vunpack.c.h.b16 %v3341
  %v4881 = vunpack.c.l.b16 %v3342
  %v4882 = vunpack.c.h.b16 %v3342
  %v4883 = vunpack.c.l.b16 %v3343
  %v4884 = vunpack.c.h.b16 %v3343
  %v4885 = vunpack.c.l.b16 %v3344
  %v4886 = vunpack.c.h.b16 %v3344
  %v4887 = vunpack.c.l.b16 %v3345
  %v4888 = vunpack.c.h.b16 %v3345
  %v4889 = vunpack.c.l.b16 %v3346
  %v4890 = vunpack.c.h.b16 %v3346
  %v4891 = vunpack.c.l.b16 %v3347
  %v4892 = vunpack.c.h.b16 %v3347
  %v4893 = vunpack.c.l.b16 %v3348
  %v4894 = vunpack.c.h.b16 %v3348
  %v4895 = vunpack.c.l.b16 %v3349
  %v4896 = vunpack.c.h.b16 %v3349
  %v4897 = vunpack.c.l.b16 %v3350
  %v4898 = vunpack.c.h.b16 %v3350
  %v4899 = vunpack.c.l.b16 %v3351
  %v4900 = vunpack.c.h.b16 %v3351
  %v4901 = vunpack.c.l.b16 %v3352
  %v4902 = vunpack.c.h.b16 %v3352
  %v4903 = vunpack.c.l.b16 %v3353
  %v4904 = vunpack.c.h.b16 %v3353
  %v4905 = vunpack.c.l.b16 %v3354
  %v4906 = vunpack.c.h.b16 %v3354
  %v4907 = vunpack.c.l.b16 %v3355
  %v4908 = vunpack.c.h.b16 %v3355
  %v4909 = vunpack.c.l.b16 %v3356
  %v4910 = vunpack.c.h.b16 %v3356
  %v4911 = vunpack.c.l.b16 %v3357
  %v4912 = vunpack.c.h.b16 %v3357
  %v4913 = vunpack.c.l.b16 %v3358
  %v4914 = vunpack.c.h.b16 %v3358
  %v4915 = vunpack.c.l.b16 %v3359
  %v4916 = vunpack.c.h.b16 %v3359
  %v4917 = vunpack.c.l.b16 %v3360
  %v4918 = vunpack.c.h.b16 %v3360
  %v4919 = vunpack.c.l.b16 %v3361
  %v4920 = vunpack.c.h.b16 %v3361
  %v4921 = vunpack.c.l.b16 %v3362
  %v4922 = vunpack.c.h.b16 %v3362
  %v4923 = vunpack.c.l.b16 %v3363
  %v4924 = vunpack.c.h.b16 %v3363
  %v4925 = vunpack.c.l.b16 %v3364
  %v4926 = vunpack.c.h.b16 %v3364
  %v4927 = vunpack.c.l.b16 %v3365
  %v4928 = vunpack.c.h.b16 %v3365
  %v4929 = vunpack.c.l.b16 %v3366
  %v4930 = vunpack.c.h.b16 %v3366
  %v4931 = vunpack.c.l.b16 %v3367
  %v4932 = vunpack.c.h.b16 %v3367
  %v4933 = vunpack.c.l.b16 %v3368
  %v4934 = vunpack.c.h.b16 %v3368
  %v4935 = vunpack.c.l.b16 %v3369
  %v4936 = vunpack.c.h.b16 %v3369
  %v4937 = vunpack.c.l.b16 %v3370
  %v4938 = vunpack.c.h.b16 %v3370
  %v4939 = vunpack.c.l.b16 %v3371
  %v4940 = vunpack.c.h.b16 %v3371
  %v4941 = vunpack.c.l.b16 %v3372
  %v4942 = vunpack.c.h.b16 %v3372
  %v4943 = vunpack.c.l.b16 %v3373
  %v4944 = vunpack.c.h.b16 %v3373
  %v4945 = vunpack.c.l.b16 %v3374
  %v4946 = vunpack.c.h.b16 %v3374
  %v4947 = vunpack.c.l.b16 %v3375
  %v4948 = vunpack.c.h.b16 %v3375
  %v4949 = vunpack.c.l.b16 %v3376
  %v4950 = vunpack.c.h.b16 %v3376
  %v4951 = vunpack.c.l.b16 %v3377
  %v4952 = vunpack.c.h.b16 %v3377
  %v4953 = vunpack.c.l.b16 %v3378
  %v4954 = vunpack.c.h.b16 %v3378
  %v4955 = vunpack.c.l.b16 %v3379
  %v4956 = vunpack.c.h.b16 %v3379
  %v4957 = vunpack.c.l.b16 %v3380
  %v4958 = vunpack.c.h.b16 %v3380
  %v4959 = vpack.c.b16 %v3943, %v3935
  %v4960 = vpack.c.b16 %v3944, %v3936
  %v4961 = vpack.c.b16 %v3945, %v3937
  %v4962 = vpack.c.b16 %v3946, %v3938
  %v4963 = vpack.c.b16 %v3947, %v3939
  %v4964 = vpack.c.b16 %v3948, %v3940
  %v4965 = vpack.c.b16 %v3949, %v3941
  %v4966 = vpack.c.b16 %v3950, %v3942
  %v4967 = vpack.c.b16 %v3959, %v3951
  %v4968 = vpack.c.b16 %v3960, %v3952
  %v4969 = vpack.c.b16 %v3961, %v3953
  %v4970 = vpack.c.b16 %v3962, %v3954
  %v4971 = vpack.c.b16 %v3963, %v3955
  %v4972 = vpack.c.b16 %v3964, %v3956
  %v4973 = vpack.c.b16 %v3965, %v3957
  %v4974 = vpack.c.b16 %v3966, %v3958
  %v4975 = vpack.c.b16 %v3975, %v3967
  %v4976 = vpack.c.b16 %v3976, %v3968
  %v4977 = vpack.c.b16 %v3977, %v3969
  %v4978 = vpack.c.b16 %v3978, %v3970
  %v4979 = vpack.c.b16 %v3979, %v3971
  %v4980 = vpack.c.b16 %v3980, %v3972
  %v4981 = vpack.c.b16 %v3981, %v3973
  %v4982 = vpack.c.b16 %v3982, %v3974
  %v4983 = vpack.c.b16 %v3991, %v3983
  %v4984 = vpack.c.b16 %v3992, %v3984
  %v4985 = vpack.c.b16 %v3993, %v3985
  %v4986 = vpack.c.b16 %v3994, %v3986
  %v4987 = vpack.c.b16 %v3995, %v3987
  %v4988 = vpack.c.b16 %v3996, %v3988
  %v4989 = vpack.c.b16 %v3997, %v3989
  %v4990 = vpack.c.b16 %v3998, %v3990
  %v4991 = vpack.c.b16 %v4007, %v3999
  %v4992 = vpack.c.b16 %v4008, %v4000
  %v4993 = vpack.c.b16 %v4009, %v4001
  %v4994 = vpack.c.b16 %v4010, %v4002
  %v4995 = vpack.c.b16 %v4011, %v4003
  %v4996 = vpack.c.b16 %v4012, %v4004
  %v4997 = vpack.c.b16 %v4013, %v4005
  %v4998 = vpack.c.b16 %v4014, %v4006
  %v4999 = vpack.c.b16 %v4023, %v4015
  %v5000 = vpack.c.b16 %v4024, %v4016
  %v5001 = vpack.c.b16 %v4025, %v4017
  %v5002 = vpack.c.b16 %v4026, %v4018
  %v5003 = vpack.c.b16 %v4027, %v4019
  %v5004 = vpack.c.b16 %v4028, %v4020
  %v5005 = vpack.c.b16 %v4029, %v4021
  %v5006 = vpack.c.b16 %v4030, %v4022
  %v5007 = vpack.c.b16 %v4039, %v4031
  %v5008 = vpack.c.b16 %v4040, %v4032
  %v5009 = vpack.c.b16 %v4041, %v4033
  %v5010 = vpack.c.b16 %v4042, %v4034
  %v5011 = vpack.c.b16 %v4043, %v4035
  %v5012 = vpack.c.b16 %v4044, %v4036
  %v5013 = vpack.c.b16 %v4045, %v4037
  %v5014 = vpack.c.b16 %v4046, %v4038
  %v5015 = vpack.c.b16 %v4055, %v4047
  %v5016 = vpack.c.b16 %v4056, %v4048
  %v5017 = vpack.c.b16 %v4057, %v4049
  %v5018 = vpack.c.b16 %v4058, %v4050
  %v5019 = vpack.c.b16 %v4059, %v4051
  %v5020 = vpack.c.b16 %v4060, %v4052
  %v5021 = vpack.c.b16 %v4061, %v4053
  %v5022 = vpack.c.b16 %v4062, %v4054
  %v5023 = vpack.c.b16 %v4071, %v4063
  %v5024 = vpack.c.b16 %v4072, %v4064
  %v5025 = vpack.c.b16 %v4073, %v4065
  %v5026 = vpack.c.b16 %v4074, %v4066
  %v5027 = vpack.c.b16 %v4075, %v4067
  %v5028 = vpack.c.b16 %v4076, %v4068
  %v5029 = vpack.c.b16 %v4077, %v4069
  %v5030 = vpack.c.b16 %v4078, %v4070
  %v5031 = vpack.c.b16 %v4087, %v4079
  %v5032 = vpack.c.b16 %v4088, %v4080
  %v5033 = vpack.c.b16 %v4089, %v4081
  %v5034 = vpack.c.b16 %v4090, %v4082
  %v5035 = vpack.c.b16 %v4091, %v4083
  %v5036 = vpack.c.b16 %v4092, %v4084
  %v5037 = vpack.c.b16 %v4093, %v4085
  %v5038 = vpack.c.b16 %v4094, %v4086
  %v5039 = vpack.c.b16 %v4103, %v4095
  %v5040 = vpack.c.b16 %v4104, %v4096
  %v5041 = vpack.c.b16 %v4105, %v4097
  %v5042 = vpack.c.b16 %v4106, %v4098
  %v5043 = vpack.c.b16 %v4107, %v4099
  %v5044 = vpack.c.b16 %v4108, %v4100
  %v5045 = vpack.c.b16 %v4109, %v4101
  %v5046 = vpack.c.b16 %v4110, %v4102
  %v5047 = vpack.c.b16 %v4119, %v4111
  %v5048 = vpack.c.b16 %v4120, %v4112
  %v5049 = vpack.c.b16 %v4121, %v4113
  %v5050 = vpack.c.b16 %v4122, %v4114
  %v5051 = vpack.c.b16 %v4123, %v4115
  %v5052 = vpack.c.b16 %v4124, %v4116
  %v5053 = vpack.c.b16 %v4125, %v4117
  %v5054 = vpack.c.b16 %v4126, %v4118
  %v5055 = vpack.c.b16 %v4135, %v4127
  %v5056 = vpack.c.b16 %v4136, %v4128
  %v5057 = vpack.c.b16 %v4137, %v4129
  %v5058 = vpack.c.b16 %v4138, %v4130
  %v5059 = vpack.c.b16 %v4139, %v4131
  %v5060 = vpack.c.b16 %v4140, %v4132
  %v5061 = vpack.c.b16 %v4141, %v4133
  %v5062 = vpack.c.b16 %v4142, %v4134
  %v5063 = vpack.c.b16 %v4151, %v4143
  %v5064 = vpack.c.b16 %v4152, %v4144
  %v5065 = vpack.c.b16 %v4153, %v4145
  %v5066 = vpack.c.b16 %v4154, %v4146
  %v5067 = vpack.c.b16 %v4155, %v4147
  %v5068 = vpack.c.b16 %v4156, %v4148
  %v5069 = vpack.c.b16 %v4157, %v4149
  %v5070 = vpack.c.b16 %v4158, %v4150
  %v5071 = vpack.c.b16 %v4167, %v4159
  %v5072 = vpack.c.b16 %v4168, %v4160
  %v5073 = vpack.c.b16 %v4169, %v4161
  %v5074 = vpack.c.b16 %v4170, %v4162
  %v5075 = vpack.c.b16 %v4171, %v4163
  %v5076 = vpack.c.b16 %v4172, %v4164
  %v5077 = vpack.c.b16 %v4173, %v4165
  %v5078 = vpack.c.b16 %v4174, %v4166
  %v5079 = vpack.c.b16 %v4183, %v4175
  %v5080 = vpack.c.b16 %v4184, %v4176
  %v5081 = vpack.c.b16 %v4185, %v4177
  %v5082 = vpack.c.b16 %v4186, %v4178
  %v5083 = vpack.c.b16 %v4187, %v4179
  %v5084 = vpack.c.b16 %v4188, %v4180
  %v5085 = vpack.c.b16 %v4189, %v4181
  %v5086 = vpack.c.b16 %v4190, %v4182
  %v5087 = vpack.c.b16 %v4199, %v4191
  %v5088 = vpack.c.b16 %v4200, %v4192
  %v5089 = vpack.c.b16 %v4201, %v4193
  %v5090 = vpack.c.b16 %v4202, %v4194
  %v5091 = vpack.c.b16 %v4203, %v4195
  %v5092 = vpack.c.b16 %v4204, %v4196
  %v5093 = vpack.c.b16 %v4205, %v4197
  %v5094 = vpack.c.b16 %v4206, %v4198
  %v5095 = vpack.c.b16 %v4215, %v4207
  %v5096 = vpack.c.b16 %v4216, %v4208
  %v5097 = vpack.c.b16 %v4217, %v4209
  %v5098 = vpack.c.b16 %v4218, %v4210
  %v5099 = vpack.c.b16 %v4219, %v4211
  %v5100 = vpack.c.b16 %v4220, %v4212
  %v5101 = vpack.c.b16 %v4221, %v4213
  %v5102 = vpack.c.b16 %v4222, %v4214
  %v5103 = vpack.c.b16 %v4231, %v4223
  %v5104 = vpack.c.b16 %v4232, %v4224
  %v5105 = vpack.c.b16 %v4233, %v4225
  %v5106 = vpack.c.b16 %v4234, %v4226
  %v5107 = vpack.c.b16 %v4235, %v4227
  %v5108 = vpack.c.b16 %v4236, %v4228
  %v5109 = vpack.c.b16 %v4237, %v4229
  %v5110 = vpack.c.b16 %v4238, %v4230
  %v5111 = vpack.c.b16 %v4247, %v4239
  %v5112 = vpack.c.b16 %v4248, %v4240
  %v5113 = vpack.c.b16 %v4249, %v4241
  %v5114 = vpack.c.b16 %v4250, %v4242
  %v5115 = vpack.c.b16 %v4251, %v4243
  %v5116 = vpack.c.b16 %v4252, %v4244
  %v5117 = vpack.c.b16 %v4253, %v4245
  %v5118 = vpack.c.b16 %v4254, %v4246
  %v5119 = vpack.c.b16 %v4263, %v4255
  %v5120 = vpack.c.b16 %v4264, %v4256
  %v5121 = vpack.c.b16 %v4265, %v4257
  %v5122 = vpack.c.b16 %v4266, %v4258
  %v5123 = vpack.c.b16 %v4267, %v4259
  %v5124 = vpack.c.b16 %v4268, %v4260
  %v5125 = vpack.c.b16 %v4269, %v4261
  %v5126 = vpack.c.b16 %v4270, %v4262
  %v5127 = vpack.c.b16 %v4279, %v4271
  %v5128 = vpack.c.b16 %v4280, %v4272
  %v5129 = vpack.c.b16 %v4281, %v4273
  %v5130 = vpack.c.b16 %v4282, %v4274
  %v5131 = vpack.c.b16 %v4283, %v4275
  %v5132 = vpack.c.b16 %v4284, %v4276
  %v5133 = vpack.c.b16 %v4285, %v4277
  %v5134 = vpack.c.b16 %v4286, %v4278
  %v5135 = vpack.c.b16 %v4295, %v4287
  %v5136 = vpack.c.b16 %v4296, %v4288
  %v5137 = vpack.c.b16 %v4297, %v4289
  %v5138 = vpack.c.b16 %v4298, %v4290
  %v5139 = vpack.c.b16 %v4299, %v4291
  %v5140 = vpack.c.b16 %v4300, %v4292
  %v5141 = vpack.c.b16 %v4301, %v4293
  %v5142 = vpack.c.b16 %v4302, %v4294
  %v5143 = vpack.c.b16 %v4311, %v4303
  %v5144 = vpack.c.b16 %v4312, %v4304
  %v5145 = vpack.c.b16 %v4313, %v4305
  %v5146 = vpack.c.b16 %v4314, %v4306
  %v5147 = vpack.c.b16 %v4315, %v4307
  %v5148 = vpack.c.b16 %v4316, %v4308
  %v5149 = vpack.c.b16 %v4317, %v4309
  %v5150 = vpack.c.b16 %v4318, %v4310
  %v5151 = vpack.c.b16 %v4327, %v4319
  %v5152 = vpack.c.b16 %v4328, %v4320
  %v5153 = vpack.c.b16 %v4329, %v4321
  %v5154 = vpack.c.b16 %v4330, %v4322
  %v5155 = vpack.c.b16 %v4331, %v4323
  %v5156 = vpack.c.b16 %v4332, %v4324
  %v5157 = vpack.c.b16 %v4333, %v4325
  %v5158 = vpack.c.b16 %v4334, %v4326
  %v5159 = vpack.c.b16 %v4343, %v4335
  %v5160 = vpack.c.b16 %v4344, %v4336
  %v5161 = vpack.c.b16 %v4345, %v4337
  %v5162 = vpack.c.b16 %v4346, %v4338
  %v5163 = vpack.c.b16 %v4347, %v4339
  %v5164 = vpack.c.b16 %v4348, %v4340
  %v5165 = vpack.c.b16 %v4349, %v4341
  %v5166 = vpack.c.b16 %v4350, %v4342
  %v5167 = vpack.c.b16 %v4359, %v4351
  %v5168 = vpack.c.b16 %v4360, %v4352
  %v5169 = vpack.c.b16 %v4361, %v4353
  %v5170 = vpack.c.b16 %v4362, %v4354
  %v5171 = vpack.c.b16 %v4363, %v4355
  %v5172 = vpack.c.b16 %v4364, %v4356
  %v5173 = vpack.c.b16 %v4365, %v4357
  %v5174 = vpack.c.b16 %v4366, %v4358
  %v5175 = vpack.c.b16 %v4375, %v4367
  %v5176 = vpack.c.b16 %v4376, %v4368
  %v5177 = vpack.c.b16 %v4377, %v4369
  %v5178 = vpack.c.b16 %v4378, %v4370
  %v5179 = vpack.c.b16 %v4379, %v4371
  %v5180 = vpack.c.b16 %v4380, %v4372
  %v5181 = vpack.c.b16 %v4381, %v4373
  %v5182 = vpack.c.b16 %v4382, %v4374
  %v5183 = vpack.c.b16 %v4391, %v4383
  %v5184 = vpack.c.b16 %v4392, %v4384
  %v5185 = vpack.c.b16 %v4393, %v4385
  %v5186 = vpack.c.b16 %v4394, %v4386
  %v5187 = vpack.c.b16 %v4395, %v4387
  %v5188 = vpack.c.b16 %v4396, %v4388
  %v5189 = vpack.c.b16 %v4397, %v4389
  %v5190 = vpack.c.b16 %v4398, %v4390
  %v5191 = vpack.c.b16 %v4407, %v4399
  %v5192 = vpack.c.b16 %v4408, %v4400
  %v5193 = vpack.c.b16 %v4409, %v4401
  %v5194 = vpack.c.b16 %v4410, %v4402
  %v5195 = vpack.c.b16 %v4411, %v4403
  %v5196 = vpack.c.b16 %v4412, %v4404
  %v5197 = vpack.c.b16 %v4413, %v4405
  %v5198 = vpack.c.b16 %v4414, %v4406
  %v5199 = vpack.c.b16 %v4423, %v4415
  %v5200 = vpack.c.b16 %v4424, %v4416
  %v5201 = vpack.c.b16 %v4425, %v4417
  %v5202 = vpack.c.b16 %v4426, %v4418
  %v5203 = vpack.c.b16 %v4427, %v4419
  %v5204 = vpack.c.b16 %v4428, %v4420
  %v5205 = vpack.c.b16 %v4429, %v4421
  %v5206 = vpack.c.b16 %v4430, %v4422
  %v5207 = vpack.c.b16 %v4439, %v4431
  %v5208 = vpack.c.b16 %v4440, %v4432
  %v5209 = vpack.c.b16 %v4441, %v4433
  %v5210 = vpack.c.b16 %v4442, %v4434
  %v5211 = vpack.c.b16 %v4443, %v4435
  %v5212 = vpack.c.b16 %v4444, %v4436
  %v5213 = vpack.c.b16 %v4445, %v4437
  %v5214 = vpack.c.b16 %v4446, %v4438
  %v5215 = vpack.c.b16 %v4455, %v4447
  %v5216 = vpack.c.b16 %v4456, %v4448
  %v5217 = vpack.c.b16 %v4457, %v4449
  %v5218 = vpack.c.b16 %v4458, %v4450
  %v5219 = vpack.c.b16 %v4459, %v4451
  %v5220 = vpack.c.b16 %v4460, %v4452
  %v5221 = vpack.c.b16 %v4461, %v4453
  %v5222 = vpack.c.b16 %v4462, %v4454
  %v5223 = vpack.c.b16 %v4471, %v4463
  %v5224 = vpack.c.b16 %v4472, %v4464
  %v5225 = vpack.c.b16 %v4473, %v4465
  %v5226 = vpack.c.b16 %v4474, %v4466
  %v5227 = vpack.c.b16 %v4475, %v4467
  %v5228 = vpack.c.b16 %v4476, %v4468
  %v5229 = vpack.c.b16 %v4477, %v4469
  %v5230 = vpack.c.b16 %v4478, %v4470
  %v5231 = vpack.c.b16 %v4487, %v4479
  %v5232 = vpack.c.b16 %v4488, %v4480
  %v5233 = vpack.c.b16 %v4489, %v4481
  %v5234 = vpack.c.b16 %v4490, %v4482
  %v5235 = vpack.c.b16 %v4491, %v4483
  %v5236 = vpack.c.b16 %v4492, %v4484
  %v5237 = vpack.c.b16 %v4493, %v4485
  %v5238 = vpack.c.b16 %v4494, %v4486
  %v5239 = vpack.c.b16 %v4503, %v4495
  %v5240 = vpack.c.b16 %v4504, %v4496
  %v5241 = vpack.c.b16 %v4505, %v4497
  %v5242 = vpack.c.b16 %v4506, %v4498
  %v5243 = vpack.c.b16 %v4507, %v4499
  %v5244 = vpack.c.b16 %v4508, %v4500
  %v5245 = vpack.c.b16 %v4509, %v4501
  %v5246 = vpack.c.b16 %v4510, %v4502
  %v5247 = vpack.c.b16 %v4519, %v4511
  %v5248 = vpack.c.b16 %v4520, %v4512
  %v5249 = vpack.c.b16 %v4521, %v4513
  %v5250 = vpack.c.b16 %v4522, %v4514
  %v5251 = vpack.c.b16 %v4523, %v4515
  %v5252 = vpack.c.b16 %v4524, %v4516
  %v5253 = vpack.c.b16 %v4525, %v4517
  %v5254 = vpack.c.b16 %v4526, %v4518
  %v5255 = vpack.c.b16 %v4535, %v4527
  %v5256 = vpack.c.b16 %v4536, %v4528
  %v5257 = vpack.c.b16 %v4537, %v4529
  %v5258 = vpack.c.b16 %v4538, %v4530
  %v5259 = vpack.c.b16 %v4539, %v4531
  %v5260 = vpack.c.b16 %v4540, %v4532
  %v5261 = vpack.c.b16 %v4541, %v4533
  %v5262 = vpack.c.b16 %v4542, %v4534
  %v5263 = vpack.c.b16 %v4551, %v4543
  %v5264 = vpack.c.b16 %v4552, %v4544
  %v5265 = vpack.c.b16 %v4553, %v4545
  %v5266 = vpack.c.b16 %v4554, %v4546
  %v5267 = vpack.c.b16 %v4555, %v4547
  %v5268 = vpack.c.b16 %v4556, %v4548
  %v5269 = vpack.c.b16 %v4557, %v4549
  %v5270 = vpack.c.b16 %v4558, %v4550
  %v5271 = vpack.c.b16 %v4567, %v4559
  %v5272 = vpack.c.b16 %v4568, %v4560
  %v5273 = vpack.c.b16 %v4569, %v4561
  %v5274 = vpack.c.b16 %v4570, %v4562
  %v5275 = vpack.c.b16 %v4571, %v4563
  %v5276 = vpack.c.b16 %v4572, %v4564
  %v5277 = vpack.c.b16 %v4573, %v4565
  %v5278 = vpack.c.b16 %v4574, %v4566
  %v5279 = vpack.c.b16 %v4583, %v4575
  %v5280 = vpack.c.b16 %v4584, %v4576
  %v5281 = vpack.c.b16 %v4585, %v4577
  %v5282 = vpack.c.b16 %v4586, %v4578
  %v5283 = vpack.c.b16 %v4587, %v4579
  %v5284 = vpack.c.b16 %v4588, %v4580
  %v5285 = vpack.c.b16 %v4589, %v4581
  %v5286 = vpack.c.b16 %v4590, %v4582
  %v5287 = vpack.c.b16 %v4599, %v4591
  %v5288 = vpack.c.b16 %v4600, %v4592
  %v5289 = vpack.c.b16 %v4601, %v4593
  %v5290 = vpack.c.b16 %v4602, %v4594
  %v5291 = vpack.c.b16 %v4603, %v4595
  %v5292 = vpack.c.b16 %v4604, %v4596
  %v5293 = vpack.c.b16 %v4605, %v4597
  %v5294 = vpack.c.b16 %v4606, %v4598
  %v5295 = vpack.c.b16 %v4615, %v4607
  %v5296 = vpack.c.b16 %v4616, %v4608
  %v5297 = vpack.c.b16 %v4617, %v4609
  %v5298 = vpack.c.b16 %v4618, %v4610
  %v5299 = vpack.c.b16 %v4619, %v4611
  %v5300 = vpack.c.b16 %v4620, %v4612
  %v5301 = vpack.c.b16 %v4621, %v4613
  %v5302 = vpack.c.b16 %v4622, %v4614
  %v5303 = vpack.c.b16 %v4631, %v4623
  %v5304 = vpack.c.b16 %v4632, %v4624
  %v5305 = vpack.c.b16 %v4633, %v4625
  %v5306 = vpack.c.b16 %v4634, %v4626
  %v5307 = vpack.c.b16 %v4635, %v4627
  %v5308 = vpack.c.b16 %v4636, %v4628
  %v5309 = vpack.c.b16 %v4637, %v4629
  %v5310 = vpack.c.b16 %v4638, %v4630
  %v5311 = vpack.c.b16 %v4647, %v4639
  %v5312 = vpack.c.b16 %v4648, %v4640
  %v5313 = vpack.c.b16 %v4649, %v4641
  %v5314 = vpack.c.b16 %v4650, %v4642
  %v5315 = vpack.c.b16 %v4651, %v4643
  %v5316 = vpack.c.b16 %v4652, %v4644
  %v5317 = vpack.c.b16 %v4653, %v4645
  %v5318 = vpack.c.b16 %v4654, %v4646
  %v5319 = vpack.c.b16 %v4663, %v4655
  %v5320 = vpack.c.b16 %v4664, %v4656
  %v5321 = vpack.c.b16 %v4665, %v4657
  %v5322 = vpack.c.b16 %v4666, %v4658
  %v5323 = vpack.c.b16 %v4667, %v4659
  %v5324 = vpack.c.b16 %v4668, %v4660
  %v5325 = vpack.c.b16 %v4669, %v4661
  %v5326 = vpack.c.b16 %v4670, %v4662
  %v5327 = vpack.c.b16 %v4679, %v4671
  %v5328 = vpack.c.b16 %v4680, %v4672
  %v5329 = vpack.c.b16 %v4681, %v4673
  %v5330 = vpack.c.b16 %v4682, %v4674
  %v5331 = vpack.c.b16 %v4683, %v4675
  %v5332 = vpack.c.b16 %v4684, %v4676
  %v5333 = vpack.c.b16 %v4685, %v4677
  %v5334 = vpack.c.b16 %v4686, %v4678
  %v5335 = vpack.c.b16 %v4695, %v4687
  %v5336 = vpack.c.b16 %v4696, %v4688
  %v5337 = vpack.c.b16 %v4697, %v4689
  %v5338 = vpack.c.b16 %v4698, %v4690
  %v5339 = vpack.c.b16 %v4699, %v4691
  %v5340 = vpack.c.b16 %v4700, %v4692
  %v5341 = vpack.c.b16 %v4701, %v4693
  %v5342 = vpack.c.b16 %v4702, %v4694
  %v5343 = vpack.c.b16 %v4711, %v4703
  %v5344 = vpack.c.b16 %v4712, %v4704
  %v5345 = vpack.c.b16 %v4713, %v4705
  %v5346 = vpack.c.b16 %v4714, %v4706
  %v5347 = vpack.c.b16 %v4715, %v4707
  %v5348 = vpack.c.b16 %v4716, %v4708
  %v5349 = vpack.c.b16 %v4717, %v4709
  %v5350 = vpack.c.b16 %v4718, %v4710
  %v5351 = vpack.c.b16 %v4727, %v4719
  %v5352 = vpack.c.b16 %v4728, %v4720
  %v5353 = vpack.c.b16 %v4729, %v4721
  %v5354 = vpack.c.b16 %v4730, %v4722
  %v5355 = vpack.c.b16 %v4731, %v4723
  %v5356 = vpack.c.b16 %v4732, %v4724
  %v5357 = vpack.c.b16 %v4733, %v4725
  %v5358 = vpack.c.b16 %v4734, %v4726
  %v5359 = vpack.c.b16 %v4743, %v4735
  %v5360 = vpack.c.b16 %v4744, %v4736
  %v5361 = vpack.c.b16 %v4745, %v4737
  %v5362 = vpack.c.b16 %v4746, %v4738
  %v5363 = vpack.c.b16 %v4747, %v4739
  %v5364 = vpack.c.b16 %v4748, %v4740
  %v5365 = vpack.c.b16 %v4749, %v4741
  %v5366 = vpack.c.b16 %v4750, %v4742
  %v5367 = vpack.c.b16 %v4759, %v4751
  %v5368 = vpack.c.b16 %v4760, %v4752
  %v5369 = vpack.c.b16 %v4761, %v4753
  %v5370 = vpack.c.b16 %v4762, %v4754
  %v5371 = vpack.c.b16 %v4763, %v4755
  %v5372 = vpack.c.b16 %v4764, %v4756
  %v5373 = vpack.c.b16 %v4765, %v4757
  %v5374 = vpack.c.b16 %v4766, %v4758
  %v5375 = vpack.c.b16 %v4775, %v4767
  %v5376 = vpack.c.b16 %v4776, %v4768
  %v5377 = vpack.c.b16 %v4777, %v4769
  %v5378 = vpack.c.b16 %v4778, %v4770
  %v5379 = vpack.c.b16 %v4779, %v4771
  %v5380 = vpack.c.b16 %v4780, %v4772
  %v5381 = vpack.c.b16 %v4781, %v4773
  %v5382 = vpack.c.b16 %v4782, %v4774
  %v5383 = vpack.c.b16 %v4791, %v4783
  %v5384 = vpack.c.b16 %v4792, %v4784
  %v5385 = vpack.c.b16 %v4793, %v4785
  %v5386 = vpack.c.b16 %v4794, %v4786
  %v5387 = vpack.c.b16 %v4795, %v4787
  %v5388 = vpack.c.b16 %v4796, %v4788
  %v5389 = vpack.c.b16 %v4797, %v4789
  %v5390 = vpack.c.b16 %v4798, %v4790
  %v5391 = vpack.c.b16 %v4807, %v4799
  %v5392 = vpack.c.b16 %v4808, %v4800
  %v5393 = vpack.c.b16 %v4809, %v4801
  %v5394 = vpack.c.b16 %v4810, %v4802
  %v5395 = vpack.c.b16 %v4811, %v4803
  %v5396 = vpack.c.b16 %v4812, %v4804
  %v5397 = vpack.c.b16 %v4813, %v4805
  %v5398 = vpack.c.b16 %v4814, %v4806
  %v5399 = vpack.c.b16 %v4823, %v4815
  %v5400 = vpack.c.b16 %v4824, %v4816
  %v5401 = vpack.c.b16 %v4825, %v4817
  %v5402 = vpack.c.b16 %v4826, %v4818
  %v5403 = vpack.c.b16 %v4827, %v4819
  %v5404 = vpack.c.b16 %v4828, %v4820
  %v5405 = vpack.c.b16 %v4829, %v4821
  %v5406 = vpack.c.b16 %v4830, %v4822
  %v5407 = vpack.c.b16 %v4839, %v4831
  %v5408 = vpack.c.b16 %v4840, %v4832
  %v5409 = vpack.c.b16 %v4841, %v4833
  %v5410 = vpack.c.b16 %v4842, %v4834
  %v5411 = vpack.c.b16 %v4843, %v4835
  %v5412 = vpack.c.b16 %v4844, %v4836
  %v5413 = vpack.c.b16 %v4845, %v4837
  %v5414 = vpack.c.b16 %v4846, %v4838
  %v5415 = vpack.c.b16 %v4855, %v4847
  %v5416 = vpack.c.b16 %v4856, %v4848
  %v5417 = vpack.c.b16 %v4857, %v4849
  %v5418 = vpack.c.b16 %v4858, %v4850
  %v5419 = vpack.c.b16 %v4859, %v4851
  %v5420 = vpack.c.b16 %v4860, %v4852
  %v5421 = vpack.c.b16 %v4861, %v4853
  %v5422 = vpack.c.b16 %v4862, %v4854
  %v5423 = vpack.c.b16 %v4871, %v4863
  %v5424 = vpack.c.b16 %v4872, %v4864
  %v5425 = vpack.c.b16 %v4873, %v4865
  %v5426 = vpack.c.b16 %v4874, %v4866
  %v5427 = vpack.c.b16 %v4875, %v4867
  %v5428 = vpack.c.b16 %v4876, %v4868
  %v5429 = vpack.c.b16 %v4877, %v4869
  %v5430 = vpack.c.b16 %v4878, %v4870
  %v5431 = vpack.c.b16 %v4887, %v4879
  %v5432 = vpack.c.b16 %v4888, %v4880
  %v5433 = vpack.c.b16 %v4889, %v4881
  %v5434 = vpack.c.b16 %v4890, %v4882
  %v5435 = vpack.c.b16 %v4891, %v4883
  %v5436 = vpack.c.b16 %v4892, %v4884
  %v5437 = vpack.c.b16 %v4893, %v4885
  %v5438 = vpack.c.b16 %v4894, %v4886
  %v5439 = vpack.c.b16 %v4903, %v4895
  %v5440 = vpack.c.b16 %v4904, %v4896
  %v5441 = vpack.c.b16 %v4905, %v4897
  %v5442 = vpack.c.b16 %v4906, %v4898
  %v5443 = vpack.c.b16 %v4907, %v4899
  %v5444 = vpack.c.b16 %v4908, %v4900
  %v5445 = vpack.c.b16 %v4909, %v4901
  %v5446 = vpack.c.b16 %v4910, %v4902
  %v5447 = vpack.c.b16 %v4919, %v4911
  %v5448 = vpack.c.b16 %v4920, %v4912
  %v5449 = vpack.c.b16 %v4921, %v4913
  %v5450 = vpack.c.b16 %v4922, %v4914
  %v5451 = vpack.c.b16 %v4923, %v4915
  %v5452 = vpack.c.b16 %v4924, %v4916
  %v5453 = vpack.c.b16 %v4925, %v4917
  %v5454 = vpack.c.b16 %v4926, %v4918
  %v5455 = vpack.c.b16 %v4935, %v4927
  %v5456 = vpack.c.b16 %v4936, %v4928
  %v5457 = vpack.c.b16 %v4937, %v4929
  %v5458 = vpack.c.b16 %v4938, %v4930
  %v5459 = vpack.c.b16 %v4939, %v4931
  %v5460 = vpack.c.b16 %v4940, %v4932
  %v5461 = vpack.c.b16 %v4941, %v4933
  %v5462 = vpack.c.b16 %v4942, %v4934
  %v5463 = vpack.c.b16 %v4951, %v4943
  %v5464 = vpack.c.b16 %v4952, %v4944
  %v5465 = vpack.c.b16 %v4953, %v4945
  %v5466 = vpack.c.b16 %v4954, %v4946
  %v5467 = vpack.c.b16 %v4955, %v4947
  %v5468 = vpack.c.b16 %v4956, %v4948
  %v5469 = vpack.c.b16 %v4957, %v4949
  %v5470 = vpack.c.b16 %v4958, %v4950
  %5983 = vmatprep.subr.bf16.mxu0 %v4960
  %5984 = vmatpush1.bf16.msra.mxu0 %v4959
  %5985 = vmatprep.subr.bf16.mxu0 %v4968
  %5986 = vmatpush1.bf16.msra.mxu0 %v4967
  %5987 = vmatprep.subr.bf16.mxu0 %v4976
  %5988 = vmatpush1.bf16.msra.mxu0 %v4975
  %5989 = vmatprep.subr.bf16.mxu0 %v4984
  %5990 = vmatpush1.bf16.msra.mxu0 %v4983
  %5991 = vmatprep.subr.bf16.mxu0 %v4992
  %5992 = vmatpush1.bf16.msra.mxu0 %v4991
  %5993 = vmatprep.subr.bf16.mxu0 %v5000
  %5994 = vmatpush1.bf16.msra.mxu0 %v4999
  %5995 = vmatprep.subr.bf16.mxu0 %v5008
  %5996 = vmatpush1.bf16.msra.mxu0 %v5007
  %5997 = vmatprep.subr.bf16.mxu0 %v5016
  %5998 = vmatpush1.bf16.msra.mxu0 %v5015
  %5999 = vmatprep.subr.bf16.mxu0 %v5024
  %6000 = vmatpush1.bf16.msra.mxu0 %v5023
  %6001 = vmatprep.subr.bf16.mxu0 %v5032
  %6002 = vmatpush1.bf16.msra.mxu0 %v5031
  %6003 = vmatprep.subr.bf16.mxu0 %v5040
  %6004 = vmatpush1.bf16.msra.mxu0 %v5039
  %6005 = vmatprep.subr.bf16.mxu0 %v5048
  %6006 = vmatpush1.bf16.msra.mxu0 %v5047
  %6007 = vmatprep.subr.bf16.mxu0 %v5056
  %6008 = vmatpush1.bf16.msra.mxu0 %v5055
  %6009 = vmatprep.subr.bf16.mxu0 %v5064
  %6010 = vmatpush1.bf16.msra.mxu0 %v5063
  %6011 = vmatprep.subr.bf16.mxu0 %v5072
  %6012 = vmatpush1.bf16.msra.mxu0 %v5071
  %6013 = vmatprep.subr.bf16.mxu0 %v5080
  %6014 = vmatpush1.bf16.msra.mxu0 %v5079
  %6015 = vmatprep.mubr.bf16.mxu0 %v2862
  %6016 = vmatmul.mubr.bf16.gmra.mrb[0].mxu0 %v2861
  %v6017 = vpop.f32.mrb[0].mxu0
  %v6018 = vadd.f32 %v3386, %v6017
  %v6019 = vpop.f32.mrb[0].mxu0
  %v6020 = vadd.f32 %v3390, %v6019
  %v6021 = vpop.f32.mrb[0].mxu0
  %v6022 = vpop.f32.mrb[0].mxu0
  %6023 = vdwg.mxu0
  %6024 = vmatprep.subr.bf16.mxu0 %v5088
  %6025 = vmatpush1.bf16.msra.mxu0 %v5087
  %6026 = vmatprep.subr.bf16.mxu0 %v5096
  %6027 = vmatpush1.bf16.msra.mxu0 %v5095
  %6028 = vmatprep.subr.bf16.mxu0 %v5104
  %6029 = vmatpush1.bf16.msra.mxu0 %v5103
  %6030 = vmatprep.subr.bf16.mxu0 %v5112
  %6031 = vmatpush1.bf16.msra.mxu0 %v5111
  %6032 = vmatprep.subr.bf16.mxu0 %v5120
  %6033 = vmatpush1.bf16.msra.mxu0 %v5119
  %6034 = vmatprep.subr.bf16.mxu0 %v5128
  %6035 = vmatpush1.bf16.msra.mxu0 %v5127
  %6036 = vmatprep.subr.bf16.mxu0 %v5136
  %6037 = vmatpush1.bf16.msra.mxu0 %v5135
  %6038 = vmatprep.subr.bf16.mxu0 %v5144
  %6039 = vmatpush1.bf16.msra.mxu0 %v5143
  %6040 = vmatprep.subr.bf16.mxu0 %v5152
  %6041 = vmatpush1.bf16.msra.mxu0 %v5151
  %6042 = vmatprep.subr.bf16.mxu0 %v5160
  %6043 = vmatpush1.bf16.msra.mxu0 %v5159
  %6044 = vmatprep.subr.bf16.mxu0 %v5168
  %6045 = vmatpush1.bf16.msra.mxu0 %v5167
  %6046 = vmatprep.subr.bf16.mxu0 %v5176
  %6047 = vmatpush1.bf16.msra.mxu0 %v5175
  %6048 = vmatprep.subr.bf16.mxu0 %v5184
  %6049 = vmatpush1.bf16.msra.mxu0 %v5183
  %6050 = vmatprep.subr.bf16.mxu0 %v5192
  %6051 = vmatpush1.bf16.msra.mxu0 %v5191
  %6052 = vmatprep.subr.bf16.mxu0 %v5200
  %6053 = vmatpush1.bf16.msra.mxu0 %v5199
  %6054 = vmatprep.subr.bf16.mxu0 %v5208
  %6055 = vmatpush1.bf16.msra.mxu0 %v5207
  %6056 = vmatprep.mubr.bf16.mxu0 %v2864
  %6057 = vmatmul.mubr.bf16.gmra.mrb[0].mxu0 %v2863
  %v6058 = vpop.f32.mrb[0].mxu0
  %v6059 = vadd.f32 %v6018, %v6058
  %v6060 = vpop.f32.mrb[0].mxu0
  %v6061 = vadd.f32 %v6020, %v6060
  %v6062 = vpop.f32.mrb[0].mxu0
  %v6063 = vpop.f32.mrb[0].mxu0
  %6064 = vdwg.mxu0
  %6065 = vmatprep.subr.bf16.mxu0 %v5216
  %6066 = vmatpush1.bf16.msra.mxu0 %v5215
  %6067 = vmatprep.subr.bf16.mxu0 %v5224
  %6068 = vmatpush1.bf16.msra.mxu0 %v5223
  %6069 = vmatprep.subr.bf16.mxu0 %v5232
  %6070 = vmatpush1.bf16.msra.mxu0 %v5231
  %6071 = vmatprep.subr.bf16.mxu0 %v5240
  %6072 = vmatpush1.bf16.msra.mxu0 %v5239
  %6073 = vmatprep.subr.bf16.mxu0 %v5248
  %6074 = vmatpush1.bf16.msra.mxu0 %v5247
  %6075 = vmatprep.subr.bf16.mxu0 %v5256
  %6076 = vmatpush1.bf16.msra.mxu0 %v5255
  %6077 = vmatprep.subr.bf16.mxu0 %v5264
  %6078 = vmatpush1.bf16.msra.mxu0 %v5263
  %6079 = vmatprep.subr.bf16.mxu0 %v5272
  %6080 = vmatpush1.bf16.msra.mxu0 %v5271
  %6081 = vmatprep.subr.bf16.mxu0 %v5280
  %6082 = vmatpush1.bf16.msra.mxu0 %v5279
  %6083 = vmatprep.subr.bf16.mxu0 %v5288
  %6084 = vmatpush1.bf16.msra.mxu0 %v5287
  %6085 = vmatprep.subr.bf16.mxu0 %v5296
  %6086 = vmatpush1.bf16.msra.mxu0 %v5295
  %6087 = vmatprep.subr.bf16.mxu0 %v5304
  %6088 = vmatpush1.bf16.msra.mxu0 %v5303
  %6089 = vmatprep.subr.bf16.mxu0 %v5312
  %6090 = vmatpush1.bf16.msra.mxu0 %v5311
  %6091 = vmatprep.subr.bf16.mxu0 %v5320
  %6092 = vmatpush1.bf16.msra.mxu0 %v5319
  %6093 = vmatprep.subr.bf16.mxu0 %v5328
  %6094 = vmatpush1.bf16.msra.mxu0 %v5327
  %6095 = vmatprep.subr.bf16.mxu0 %v5336
  %6096 = vmatpush1.bf16.msra.mxu0 %v5335
  %6097 = vmatprep.mubr.bf16.mxu0 %v2866
  %6098 = vmatmul.mubr.bf16.gmra.mrb[0].mxu0 %v2865
  %v6099 = vpop.f32.mrb[0].mxu0
  %v6100 = vadd.f32 %v6059, %v6099
  %v6101 = vpop.f32.mrb[0].mxu0
  %v6102 = vadd.f32 %v6061, %v6101
  %v6103 = vpop.f32.mrb[0].mxu0
  %v6104 = vpop.f32.mrb[0].mxu0
  %6105 = vdwg.mxu0
  %6106 = vmatprep.subr.bf16.mxu0 %v5344
  %6107 = vmatpush1.bf16.msra.mxu0 %v5343
  %6108 = vmatprep.subr.bf16.mxu0 %v5352
  %6109 = vmatpush1.bf16.msra.mxu0 %v5351
  %6110 = vmatprep.subr.bf16.mxu0 %v5360
  %6111 = vmatpush1.bf16.msra.mxu0 %v5359
  %6112 = vmatprep.subr.bf16.mxu0 %v5368
  %6113 = vmatpush1.bf16.msra.mxu0 %v5367
  %6114 = vmatprep.subr.bf16.mxu0 %v5376
  %6115 = vmatpush1.bf16.msra.mxu0 %v5375
  %6116 = vmatprep.subr.bf16.mxu0 %v5384
  %6117 = vmatpush1.bf16.msra.mxu0 %v5383
  %6118 = vmatprep.subr.bf16.mxu0 %v5392
  %6119 = vmatpush1.bf16.msra.mxu0 %v5391
  %6120 = vmatprep.subr.bf16.mxu0 %v5400
  %6121 = vmatpush1.bf16.msra.mxu0 %v5399
  %6122 = vmatprep.subr.bf16.mxu0 %v5408
  %6123 = vmatpush1.bf16.msra.mxu0 %v5407
  %6124 = vmatprep.subr.bf16.mxu0 %v5416
  %6125 = vmatpush1.bf16.msra.mxu0 %v5415
  %6126 = vmatprep.subr.bf16.mxu0 %v5424
  %6127 = vmatpush1.bf16.msra.mxu0 %v5423
  %6128 = vmatprep.subr.bf16.mxu0 %v5432
  %6129 = vmatpush1.bf16.msra.mxu0 %v5431
  %6130 = vmatprep.subr.bf16.mxu0 %v5440
  %6131 = vmatpush1.bf16.msra.mxu0 %v5439
  %6132 = vmatprep.subr.bf16.mxu0 %v5448
  %6133 = vmatpush1.bf16.msra.mxu0 %v5447
  %6134 = vmatprep.subr.bf16.mxu0 %v5456
  %6135 = vmatpush1.bf16.msra.mxu0 %v5455
  %6136 = vmatprep.subr.bf16.mxu0 %v5464
  %6137 = vmatpush1.bf16.msra.mxu0 %v5463
  %6138 = vmatprep.mubr.bf16.mxu0 %v2868
  %6139 = vmatmul.mubr.bf16.gmra.mrb[0].mxu0 %v2867
  %v6140 = vpop.f32.mrb[0].mxu0
  %v6141 = vadd.f32 %v6100, %v6140
  %v6142 = vpop.f32.mrb[0].mxu0
  %v6143 = vadd.f32 %v6102, %v6142
  %v6144 = vpop.f32.mrb[0].mxu0
  %v6145 = vpop.f32.mrb[0].mxu0
  %6146 = vdwg.mxu0
  %6147 = vmatprep.subr.bf16.mxu0 %v4962
  %6148 = vmatpush1.bf16.msra.mxu0 %v4961
  %6149 = vmatprep.subr.bf16.mxu0 %v4970
  %6150 = vmatpush1.bf16.msra.mxu0 %v4969
  %6151 = vmatprep.subr.bf16.mxu0 %v4978
  %6152 = vmatpush1.bf16.msra.mxu0 %v4977
  %6153 = vmatprep.subr.bf16.mxu0 %v4986
  %6154 = vmatpush1.bf16.msra.mxu0 %v4985
  %6155 = vmatprep.subr.bf16.mxu0 %v4994
  %6156 = vmatpush1.bf16.msra.mxu0 %v4993
  %6157 = vmatprep.subr.bf16.mxu0 %v5002
  %6158 = vmatpush1.bf16.msra.mxu0 %v5001
  %6159 = vmatprep.subr.bf16.mxu0 %v5010
  %6160 = vmatpush1.bf16.msra.mxu0 %v5009
  %6161 = vmatprep.subr.bf16.mxu0 %v5018
  %6162 = vmatpush1.bf16.msra.mxu0 %v5017
  %6163 = vmatprep.subr.bf16.mxu0 %v5026
  %6164 = vmatpush1.bf16.msra.mxu0 %v5025
  %6165 = vmatprep.subr.bf16.mxu0 %v5034
  %6166 = vmatpush1.bf16.msra.mxu0 %v5033
  %6167 = vmatprep.subr.bf16.mxu0 %v5042
  %6168 = vmatpush1.bf16.msra.mxu0 %v5041
  %6169 = vmatprep.subr.bf16.mxu0 %v5050
  %6170 = vmatpush1.bf16.msra.mxu0 %v5049
  %6171 = vmatprep.subr.bf16.mxu0 %v5058
  %6172 = vmatpush1.bf16.msra.mxu0 %v5057
  %6173 = vmatprep.subr.bf16.mxu0 %v5066
  %6174 = vmatpush1.bf16.msra.mxu0 %v5065
  %6175 = vmatprep.subr.bf16.mxu0 %v5074
  %6176 = vmatpush1.bf16.msra.mxu0 %v5073
  %6177 = vmatprep.subr.bf16.mxu0 %v5082
  %6178 = vmatpush1.bf16.msra.mxu0 %v5081
  %6179 = vmatprep.mubr.bf16.mxu0 %v2862
  %6180 = vmatmul.mubr.bf16.gmra.mrb[0].mxu0 %v2861
  %v6181 = vpop.f32.mrb[0].mxu0
  %v6182 = vadd.f32 %v3394, %v6181
  %v6183 = vpop.f32.mrb[0].mxu0
  %v6184 = vadd.f32 %v3398, %v6183
  %v6185 = vpop.f32.mrb[0].mxu0
  %v6186 = vpop.f32.mrb[0].mxu0
  %6187 = vdwg.mxu0
  %6188 = vmatprep.subr.bf16.mxu0 %v5090
  %6189 = vmatpush1.bf16.msra.mxu0 %v5089
  %6190 = vmatprep.subr.bf16.mxu0 %v5098
  %6191 = vmatpush1.bf16.msra.mxu0 %v5097
  %6192 = vmatprep.subr.bf16.mxu0 %v5106
  %6193 = vmatpush1.bf16.msra.mxu0 %v5105
  %6194 = vmatprep.subr.bf16.mxu0 %v5114
  %6195 = vmatpush1.bf16.msra.mxu0 %v5113
  %6196 = vmatprep.subr.bf16.mxu0 %v5122
  %6197 = vmatpush1.bf16.msra.mxu0 %v5121
  %6198 = vmatprep.subr.bf16.mxu0 %v5130
  %6199 = vmatpush1.bf16.msra.mxu0 %v5129
  %6200 = vmatprep.subr.bf16.mxu0 %v5138
  %6201 = vmatpush1.bf16.msra.mxu0 %v5137
  %6202 = vmatprep.subr.bf16.mxu0 %v5146
  %6203 = vmatpush1.bf16.msra.mxu0 %v5145
  %6204 = vmatprep.subr.bf16.mxu0 %v5154
  %6205 = vmatpush1.bf16.msra.mxu0 %v5153
  %6206 = vmatprep.subr.bf16.mxu0 %v5162
  %6207 = vmatpush1.bf16.msra.mxu0 %v5161
  %6208 = vmatprep.subr.bf16.mxu0 %v5170
  %6209 = vmatpush1.bf16.msra.mxu0 %v5169
  %6210 = vmatprep.subr.bf16.mxu0 %v5178
  %6211 = vmatpush1.bf16.msra.mxu0 %v5177
  %6212 = vmatprep.subr.bf16.mxu0 %v5186
  %6213 = vmatpush1.bf16.msra.mxu0 %v5185
  %6214 = vmatprep.subr.bf16.mxu0 %v5194
  %6215 = vmatpush1.bf16.msra.mxu0 %v5193
  %6216 = vmatprep.subr.bf16.mxu0 %v5202
  %6217 = vmatpush1.bf16.msra.mxu0 %v5201
  %6218 = vmatprep.subr.bf16.mxu0 %v5210
  %6219 = vmatpush1.bf16.msra.mxu0 %v5209
  %6220 = vmatprep.mubr.bf16.mxu0 %v2864
  %6221 = vmatmul.mubr.bf16.gmra.mrb[0].mxu0 %v2863
  %v6222 = vpop.f32.mrb[0].mxu0
  %v6223 = vadd.f32 %v6182, %v6222
  %v6224 = vpop.f32.mrb[0].mxu0
  %v6225 = vadd.f32 %v6184, %v6224
  %v6226 = vpop.f32.mrb[0].mxu0
  %v6227 = vpop.f32.mrb[0].mxu0
  %6228 = vdwg.mxu0
  %6229 = vmatprep.subr.bf16.mxu0 %v5218
  %6230 = vmatpush1.bf16.msra.mxu0 %v5217
  %6231 = vmatprep.subr.bf16.mxu0 %v5226
  %6232 = vmatpush1.bf16.msra.mxu0 %v5225
  %6233 = vmatprep.subr.bf16.mxu0 %v5234
  %6234 = vmatpush1.bf16.msra.mxu0 %v5233
  %6235 = vmatprep.subr.bf16.mxu0 %v5242
  %6236 = vmatpush1.bf16.msra.mxu0 %v5241
  %6237 = vmatprep.subr.bf16.mxu0 %v5250
  %6238 = vmatpush1.bf16.msra.mxu0 %v5249
  %6239 = vmatprep.subr.bf16.mxu0 %v5258
  %6240 = vmatpush1.bf16.msra.mxu0 %v5257
  %6241 = vmatprep.subr.bf16.mxu0 %v5266
  %6242 = vmatpush1.bf16.msra.mxu0 %v5265
  %6243 = vmatprep.subr.bf16.mxu0 %v5274
  %6244 = vmatpush1.bf16.msra.mxu0 %v5273
  %6245 = vmatprep.subr.bf16.mxu0 %v5282
  %6246 = vmatpush1.bf16.msra.mxu0 %v5281
  %6247 = vmatprep.subr.bf16.mxu0 %v5290
  %6248 = vmatpush1.bf16.msra.mxu0 %v5289
  %6249 = vmatprep.subr.bf16.mxu0 %v5298
  %6250 = vmatpush1.bf16.msra.mxu0 %v5297
  %6251 = vmatprep.subr.bf16.mxu0 %v5306
  %6252 = vmatpush1.bf16.msra.mxu0 %v5305
  %6253 = vmatprep.subr.bf16.mxu0 %v5314
  %6254 = vmatpush1.bf16.msra.mxu0 %v5313
  %6255 = vmatprep.subr.bf16.mxu0 %v5322
  %6256 = vmatpush1.bf16.msra.mxu0 %v5321
  %6257 = vmatprep.subr.bf16.mxu0 %v5330
  %6258 = vmatpush1.bf16.msra.mxu0 %v5329
  %6259 = vmatprep.subr.bf16.mxu0 %v5338
  %6260 = vmatpush1.bf16.msra.mxu0 %v5337
  %6261 = vmatprep.mubr.bf16.mxu0 %v2866
  %6262 = vmatmul.mubr.bf16.gmra.mrb[0].mxu0 %v2865
  %v6263 = vpop.f32.mrb[0].mxu0
  %v6264 = vadd.f32 %v6223, %v6263
  %v6265 = vpop.f32.mrb[0].mxu0
  %v6266 = vadd.f32 %v6225, %v6265
  %v6267 = vpop.f32.mrb[0].mxu0
  %v6268 = vpop.f32.mrb[0].mxu0
  %6269 = vdwg.mxu0
  %6270 = vmatprep.subr.bf16.mxu0 %v5346
  %6271 = vmatpush1.bf16.msra.mxu0 %v5345
  %6272 = vmatprep.subr.bf16.mxu0 %v5354
  %6273 = vmatpush1.bf16.msra.mxu0 %v5353
  %6274 = vmatprep.subr.bf16.mxu0 %v5362
  %6275 = vmatpush1.bf16.msra.mxu0 %v5361
  %6276 = vmatprep.subr.bf16.mxu0 %v5370
  %6277 = vmatpush1.bf16.msra.mxu0 %v5369
  %6278 = vmatprep.subr.bf16.mxu0 %v5378
  %6279 = vmatpush1.bf16.msra.mxu0 %v5377
  %6280 = vmatprep.subr.bf16.mxu0 %v5386
  %6281 = vmatpush1.bf16.msra.mxu0 %v5385
  %6282 = vmatprep.subr.bf16.mxu0 %v5394
  %6283 = vmatpush1.bf16.msra.mxu0 %v5393
  %6284 = vmatprep.subr.bf16.mxu0 %v5402
  %6285 = vmatpush1.bf16.msra.mxu0 %v5401
  %6286 = vmatprep.subr.bf16.mxu0 %v5410
  %6287 = vmatpush1.bf16.msra.mxu0 %v5409
  %6288 = vmatprep.subr.bf16.mxu0 %v5418
  %6289 = vmatpush1.bf16.msra.mxu0 %v5417
  %6290 = vmatprep.subr.bf16.mxu0 %v5426
  %6291 = vmatpush1.bf16.msra.mxu0 %v5425
  %6292 = vmatprep.subr.bf16.mxu0 %v5434
  %6293 = vmatpush1.bf16.msra.mxu0 %v5433
  %6294 = vmatprep.subr.bf16.mxu0 %v5442
  %6295 = vmatpush1.bf16.msra.mxu0 %v5441
  %6296 = vmatprep.subr.bf16.mxu0 %v5450
  %6297 = vmatpush1.bf16.msra.mxu0 %v5449
  %6298 = vmatprep.subr.bf16.mxu0 %v5458
  %6299 = vmatpush1.bf16.msra.mxu0 %v5457
  %6300 = vmatprep.subr.bf16.mxu0 %v5466
  %6301 = vmatpush1.bf16.msra.mxu0 %v5465
  %6302 = vmatprep.mubr.bf16.mxu0 %v2868
  %6303 = vmatmul.mubr.bf16.gmra.mrb[0].mxu0 %v2867
  %v6304 = vpop.f32.mrb[0].mxu0
  %v6305 = vadd.f32 %v6264, %v6304
  %v6306 = vpop.f32.mrb[0].mxu0
  %v6307 = vadd.f32 %v6266, %v6306
  %v6308 = vpop.f32.mrb[0].mxu0
  %v6309 = vpop.f32.mrb[0].mxu0
  %6310 = vdwg.mxu0
  %6311 = vmatprep.subr.bf16.mxu0 %v4964
  %6312 = vmatpush1.bf16.msra.mxu0 %v4963
  %6313 = vmatprep.subr.bf16.mxu0 %v4972
  %6314 = vmatpush1.bf16.msra.mxu0 %v4971
  %6315 = vmatprep.subr.bf16.mxu0 %v4980
  %6316 = vmatpush1.bf16.msra.mxu0 %v4979
  %6317 = vmatprep.subr.bf16.mxu0 %v4988
  %6318 = vmatpush1.bf16.msra.mxu0 %v4987
  %6319 = vmatprep.subr.bf16.mxu0 %v4996
  %6320 = vmatpush1.bf16.msra.mxu0 %v4995
  %6321 = vmatprep.subr.bf16.mxu0 %v5004
  %6322 = vmatpush1.bf16.msra.mxu0 %v5003
  %6323 = vmatprep.subr.bf16.mxu0 %v5012
  %6324 = vmatpush1.bf16.msra.mxu0 %v5011
  %6325 = vmatprep.subr.bf16.mxu0 %v5020
  %6326 = vmatpush1.bf16.msra.mxu0 %v5019
  %6327 = vmatprep.subr.bf16.mxu0 %v5028
  %6328 = vmatpush1.bf16.msra.mxu0 %v5027
  %6329 = vmatprep.subr.bf16.mxu0 %v5036
  %6330 = vmatpush1.bf16.msra.mxu0 %v5035
  %6331 = vmatprep.subr.bf16.mxu0 %v5044
  %6332 = vmatpush1.bf16.msra.mxu0 %v5043
  %6333 = vmatprep.subr.bf16.mxu0 %v5052
  %6334 = vmatpush1.bf16.msra.mxu0 %v5051
  %6335 = vmatprep.subr.bf16.mxu0 %v5060
  %6336 = vmatpush1.bf16.msra.mxu0 %v5059
  %6337 = vmatprep.subr.bf16.mxu0 %v5068
  %6338 = vmatpush1.bf16.msra.mxu0 %v5067
  %6339 = vmatprep.subr.bf16.mxu0 %v5076
  %6340 = vmatpush1.bf16.msra.mxu0 %v5075
  %6341 = vmatprep.subr.bf16.mxu0 %v5084
  %6342 = vmatpush1.bf16.msra.mxu0 %v5083
  %6343 = vmatprep.mubr.bf16.mxu0 %v2862
  %6344 = vmatmul.mubr.bf16.gmra.mrb[0].mxu0 %v2861
  %v6345 = vpop.f32.mrb[0].mxu0
  %v6346 = vadd.f32 %v3402, %v6345
  %v6347 = vpop.f32.mrb[0].mxu0
  %v6348 = vadd.f32 %v3406, %v6347
  %v6349 = vpop.f32.mrb[0].mxu0
  %v6350 = vpop.f32.mrb[0].mxu0
  %6351 = vdwg.mxu0
  %6352 = vmatprep.subr.bf16.mxu0 %v5092
  %6353 = vmatpush1.bf16.msra.mxu0 %v5091
  %6354 = vmatprep.subr.bf16.mxu0 %v5100
  %6355 = vmatpush1.bf16.msra.mxu0 %v5099
  %6356 = vmatprep.subr.bf16.mxu0 %v5108
  %6357 = vmatpush1.bf16.msra.mxu0 %v5107
  %6358 = vmatprep.subr.bf16.mxu0 %v5116
  %6359 = vmatpush1.bf16.msra.mxu0 %v5115
  %6360 = vmatprep.subr.bf16.mxu0 %v5124
  %6361 = vmatpush1.bf16.msra.mxu0 %v5123
  %6362 = vmatprep.subr.bf16.mxu0 %v5132
  %6363 = vmatpush1.bf16.msra.mxu0 %v5131
  %6364 = vmatprep.subr.bf16.mxu0 %v5140
  %6365 = vmatpush1.bf16.msra.mxu0 %v5139
  %6366 = vmatprep.subr.bf16.mxu0 %v5148
  %6367 = vmatpush1.bf16.msra.mxu0 %v5147
  %6368 = vmatprep.subr.bf16.mxu0 %v5156
  %6369 = vmatpush1.bf16.msra.mxu0 %v5155
  %6370 = vmatprep.subr.bf16.mxu0 %v5164
  %6371 = vmatpush1.bf16.msra.mxu0 %v5163
  %6372 = vmatprep.subr.bf16.mxu0 %v5172
  %6373 = vmatpush1.bf16.msra.mxu0 %v5171
  %6374 = vmatprep.subr.bf16.mxu0 %v5180
  %6375 = vmatpush1.bf16.msra.mxu0 %v5179
  %6376 = vmatprep.subr.bf16.mxu0 %v5188
  %6377 = vmatpush1.bf16.msra.mxu0 %v5187
  %6378 = vmatprep.subr.bf16.mxu0 %v5196
  %6379 = vmatpush1.bf16.msra.mxu0 %v5195
  %6380 = vmatprep.subr.bf16.mxu0 %v5204
  %6381 = vmatpush1.bf16.msra.mxu0 %v5203
  %6382 = vmatprep.subr.bf16.mxu0 %v5212
  %6383 = vmatpush1.bf16.msra.mxu0 %v5211
  %6384 = vmatprep.mubr.bf16.mxu0 %v2864
  %6385 = vmatmul.mubr.bf16.gmra.mrb[0].mxu0 %v2863
  %v6386 = vpop.f32.mrb[0].mxu0
  %v6387 = vadd.f32 %v6346, %v6386
  %v6388 = vpop.f32.mrb[0].mxu0
  %v6389 = vadd.f32 %v6348, %v6388
  %v6390 = vpop.f32.mrb[0].mxu0
  %v6391 = vpop.f32.mrb[0].mxu0
  %6392 = vdwg.mxu0
  %6393 = vmatprep.subr.bf16.mxu0 %v5220
  %6394 = vmatpush1.bf16.msra.mxu0 %v5219
  %6395 = vmatprep.subr.bf16.mxu0 %v5228
  %6396 = vmatpush1.bf16.msra.mxu0 %v5227
  %6397 = vmatprep.subr.bf16.mxu0 %v5236
  %6398 = vmatpush1.bf16.msra.mxu0 %v5235
  %6399 = vmatprep.subr.bf16.mxu0 %v5244
  %6400 = vmatpush1.bf16.msra.mxu0 %v5243
  %6401 = vmatprep.subr.bf16.mxu0 %v5252
  %6402 = vmatpush1.bf16.msra.mxu0 %v5251
  %6403 = vmatprep.subr.bf16.mxu0 %v5260
  %6404 = vmatpush1.bf16.msra.mxu0 %v5259
  %6405 = vmatprep.subr.bf16.mxu0 %v5268
  %6406 = vmatpush1.bf16.msra.mxu0 %v5267
  %6407 = vmatprep.subr.bf16.mxu0 %v5276
  %6408 = vmatpush1.bf16.msra.mxu0 %v5275
  %6409 = vmatprep.subr.bf16.mxu0 %v5284
  %6410 = vmatpush1.bf16.msra.mxu0 %v5283
  %6411 = vmatprep.subr.bf16.mxu0 %v5292
  %6412 = vmatpush1.bf16.msra.mxu0 %v5291
  %6413 = vmatprep.subr.bf16.mxu0 %v5300
  %6414 = vmatpush1.bf16.msra.mxu0 %v5299
  %6415 = vmatprep.subr.bf16.mxu0 %v5308
  %6416 = vmatpush1.bf16.msra.mxu0 %v5307
  %6417 = vmatprep.subr.bf16.mxu0 %v5316
  %6418 = vmatpush1.bf16.msra.mxu0 %v5315
  %6419 = vmatprep.subr.bf16.mxu0 %v5324
  %6420 = vmatpush1.bf16.msra.mxu0 %v5323
  %6421 = vmatprep.subr.bf16.mxu0 %v5332
  %6422 = vmatpush1.bf16.msra.mxu0 %v5331
  %6423 = vmatprep.subr.bf16.mxu0 %v5340
  %6424 = vmatpush1.bf16.msra.mxu0 %v5339
  %6425 = vmatprep.mubr.bf16.mxu0 %v2866
  %6426 = vmatmul.mubr.bf16.gmra.mrb[0].mxu0 %v2865
  %v6427 = vpop.f32.mrb[0].mxu0
  %v6428 = vadd.f32 %v6387, %v6427
  %v6429 = vpop.f32.mrb[0].mxu0
  %v6430 = vadd.f32 %v6389, %v6429
  %v6431 = vpop.f32.mrb[0].mxu0
  %v6432 = vpop.f32.mrb[0].mxu0
  %6433 = vdwg.mxu0
  %6434 = vmatprep.subr.bf16.mxu0 %v5348
  %6435 = vmatpush1.bf16.msra.mxu0 %v5347
  %6436 = vmatprep.subr.bf16.mxu0 %v5356
  %6437 = vmatpush1.bf16.msra.mxu0 %v5355
  %6438 = vmatprep.subr.bf16.mxu0 %v5364
  %6439 = vmatpush1.bf16.msra.mxu0 %v5363
  %6440 = vmatprep.subr.bf16.mxu0 %v5372
  %6441 = vmatpush1.bf16.msra.mxu0 %v5371
  %6442 = vmatprep.subr.bf16.mxu0 %v5380
  %6443 = vmatpush1.bf16.msra.mxu0 %v5379
  %6444 = vmatprep.subr.bf16.mxu0 %v5388
  %6445 = vmatpush1.bf16.msra.mxu0 %v5387
  %6446 = vmatprep.subr.bf16.mxu0 %v5396
  %6447 = vmatpush1.bf16.msra.mxu0 %v5395
  %6448 = vmatprep.subr.bf16.mxu0 %v5404
  %6449 = vmatpush1.bf16.msra.mxu0 %v5403
  %6450 = vmatprep.subr.bf16.mxu0 %v5412
  %6451 = vmatpush1.bf16.msra.mxu0 %v5411
  %6452 = vmatprep.subr.bf16.mxu0 %v5420
  %6453 = vmatpush1.bf16.msra.mxu0 %v5419
  %6454 = vmatprep.subr.bf16.mxu0 %v5428
  %6455 = vmatpush1.bf16.msra.mxu0 %v5427
  %6456 = vmatprep.subr.bf16.mxu0 %v5436
  %6457 = vmatpush1.bf16.msra.mxu0 %v5435
  %6458 = vmatprep.subr.bf16.mxu0 %v5444
  %6459 = vmatpush1.bf16.msra.mxu0 %v5443
  %6460 = vmatprep.subr.bf16.mxu0 %v5452
  %6461 = vmatpush1.bf16.msra.mxu0 %v5451
  %6462 = vmatprep.subr.bf16.mxu0 %v5460
  %6463 = vmatpush1.bf16.msra.mxu0 %v5459
  %6464 = vmatprep.subr.bf16.mxu0 %v5468
  %6465 = vmatpush1.bf16.msra.mxu0 %v5467
  %6466 = vmatprep.mubr.bf16.mxu0 %v2868
  %6467 = vmatmul.mubr.bf16.gmra.mrb[0].mxu0 %v2867
  %v6468 = vpop.f32.mrb[0].mxu0
  %v6469 = vadd.f32 %v6428, %v6468
  %v6470 = vpop.f32.mrb[0].mxu0
  %v6471 = vadd.f32 %v6430, %v6470
  %v6472 = vpop.f32.mrb[0].mxu0
  %v6473 = vpop.f32.mrb[0].mxu0
  %6474 = vdwg.mxu0
  %6475 = vmatprep.subr.bf16.mxu0 %v4966
  %6476 = vmatpush1.bf16.msra.mxu0 %v4965
  %6477 = vmatprep.subr.bf16.mxu0 %v4974
  %6478 = vmatpush1.bf16.msra.mxu0 %v4973
  %6479 = vmatprep.subr.bf16.mxu0 %v4982
  %6480 = vmatpush1.bf16.msra.mxu0 %v4981
  %6481 = vmatprep.subr.bf16.mxu0 %v4990
  %6482 = vmatpush1.bf16.msra.mxu0 %v4989
  %6483 = vmatprep.subr.bf16.mxu0 %v4998
  %6484 = vmatpush1.bf16.msra.mxu0 %v4997
  %6485 = vmatprep.subr.bf16.mxu0 %v5006
  %6486 = vmatpush1.bf16.msra.mxu0 %v5005
  %6487 = vmatprep.subr.bf16.mxu0 %v5014
  %6488 = vmatpush1.bf16.msra.mxu0 %v5013
  %6489 = vmatprep.subr.bf16.mxu0 %v5022
  %6490 = vmatpush1.bf16.msra.mxu0 %v5021
  %6491 = vmatprep.subr.bf16.mxu0 %v5030
  %6492 = vmatpush1.bf16.msra.mxu0 %v5029
  %6493 = vmatprep.subr.bf16.mxu0 %v5038
  %6494 = vmatpush1.bf16.msra.mxu0 %v5037
  %6495 = vmatprep.subr.bf16.mxu0 %v5046
  %6496 = vmatpush1.bf16.msra.mxu0 %v5045
  %6497 = vmatprep.subr.bf16.mxu0 %v5054
  %6498 = vmatpush1.bf16.msra.mxu0 %v5053
  %6499 = vmatprep.subr.bf16.mxu0 %v5062
  %6500 = vmatpush1.bf16.msra.mxu0 %v5061
  %6501 = vmatprep.subr.bf16.mxu0 %v5070
  %6502 = vmatpush1.bf16.msra.mxu0 %v5069
  %6503 = vmatprep.subr.bf16.mxu0 %v5078
  %6504 = vmatpush1.bf16.msra.mxu0 %v5077
  %6505 = vmatprep.subr.bf16.mxu0 %v5086
  %6506 = vmatpush1.bf16.msra.mxu0 %v5085
  %6507 = vmatprep.mubr.bf16.mxu0 %v2862
  %6508 = vmatmul.mubr.bf16.gmra.mrb[0].mxu0 %v2861
  %v6509 = vpop.f32.mrb[0].mxu0
  %v6510 = vadd.f32 %v3410, %v6509
  %v6511 = vpop.f32.mrb[0].mxu0
  %v6512 = vadd.f32 %v3414, %v6511
  %v6513 = vpop.f32.mrb[0].mxu0
  %v6514 = vpop.f32.mrb[0].mxu0
  %6515 = vdwg.mxu0
  %6516 = vmatprep.subr.bf16.mxu0 %v5094
  %6517 = vmatpush1.bf16.msra.mxu0 %v5093
  %6518 = vmatprep.subr.bf16.mxu0 %v5102
  %6519 = vmatpush1.bf16.msra.mxu0 %v5101
  %6520 = vmatprep.subr.bf16.mxu0 %v5110
  %6521 = vmatpush1.bf16.msra.mxu0 %v5109
  %6522 = vmatprep.subr.bf16.mxu0 %v5118
  %6523 = vmatpush1.bf16.msra.mxu0 %v5117
  %6524 = vmatprep.subr.bf16.mxu0 %v5126
  %6525 = vmatpush1.bf16.msra.mxu0 %v5125
  %6526 = vmatprep.subr.bf16.mxu0 %v5134
  %6527 = vmatpush1.bf16.msra.mxu0 %v5133
  %6528 = vmatprep.subr.bf16.mxu0 %v5142
  %6529 = vmatpush1.bf16.msra.mxu0 %v5141
  %6530 = vmatprep.subr.bf16.mxu0 %v5150
  %6531 = vmatpush1.bf16.msra.mxu0 %v5149
  %6532 = vmatprep.subr.bf16.mxu0 %v5158
  %6533 = vmatpush1.bf16.msra.mxu0 %v5157
  %6534 = vmatprep.subr.bf16.mxu0 %v5166
  %6535 = vmatpush1.bf16.msra.mxu0 %v5165
  %6536 = vmatprep.subr.bf16.mxu0 %v5174
  %6537 = vmatpush1.bf16.msra.mxu0 %v5173
  %6538 = vmatprep.subr.bf16.mxu0 %v5182
  %6539 = vmatpush1.bf16.msra.mxu0 %v5181
  %6540 = vmatprep.subr.bf16.mxu0 %v5190
  %6541 = vmatpush1.bf16.msra.mxu0 %v5189
  %6542 = vmatprep.subr.bf16.mxu0 %v5198
  %6543 = vmatpush1.bf16.msra.mxu0 %v5197
  %6544 = vmatprep.subr.bf16.mxu0 %v5206
  %6545 = vmatpush1.bf16.msra.mxu0 %v5205
  %6546 = vmatprep.subr.bf16.mxu0 %v5214
  %6547 = vmatpush1.bf16.msra.mxu0 %v5213
  %6548 = vmatprep.mubr.bf16.mxu0 %v2864
  %6549 = vmatmul.mubr.bf16.gmra.mrb[0].mxu0 %v2863
  %v6550 = vpop.f32.mrb[0].mxu0
  %v6551 = vadd.f32 %v6510, %v6550
  %v6552 = vpop.f32.mrb[0].mxu0
  %v6553 = vadd.f32 %v6512, %v6552
  %v6554 = vpop.f32.mrb[0].mxu0
  %v6555 = vpop.f32.mrb[0].mxu0
  %6556 = vdwg.mxu0
  %6557 = vmatprep.subr.bf16.mxu0 %v5222
  %6558 = vmatpush1.bf16.msra.mxu0 %v5221
  %6559 = vmatprep.subr.bf16.mxu0 %v5230
  %6560 = vmatpush1.bf16.msra.mxu0 %v5229
  %6561 = vmatprep.subr.bf16.mxu0 %v5238
  %6562 = vmatpush1.bf16.msra.mxu0 %v5237
  %6563 = vmatprep.subr.bf16.mxu0 %v5246
  %6564 = vmatpush1.bf16.msra.mxu0 %v5245
  %6565 = vmatprep.subr.bf16.mxu0 %v5254
  %6566 = vmatpush1.bf16.msra.mxu0 %v5253
  %6567 = vmatprep.subr.bf16.mxu0 %v5262
  %6568 = vmatpush1.bf16.msra.mxu0 %v5261
  %6569 = vmatprep.subr.bf16.mxu0 %v5270
  %6570 = vmatpush1.bf16.msra.mxu0 %v5269
  %6571 = vmatprep.subr.bf16.mxu0 %v5278
  %6572 = vmatpush1.bf16.msra.mxu0 %v5277
  %6573 = vmatprep.subr.bf16.mxu0 %v5286
  %6574 = vmatpush1.bf16.msra.mxu0 %v5285
  %6575 = vmatprep.subr.bf16.mxu0 %v5294
  %6576 = vmatpush1.bf16.msra.mxu0 %v5293
  %6577 = vmatprep.subr.bf16.mxu0 %v5302
  %6578 = vmatpush1.bf16.msra.mxu0 %v5301
  %6579 = vmatprep.subr.bf16.mxu0 %v5310
  %6580 = vmatpush1.bf16.msra.mxu0 %v5309
  %6581 = vmatprep.subr.bf16.mxu0 %v5318
  %6582 = vmatpush1.bf16.msra.mxu0 %v5317
  %6583 = vmatprep.subr.bf16.mxu0 %v5326
  %6584 = vmatpush1.bf16.msra.mxu0 %v5325
  %6585 = vmatprep.subr.bf16.mxu0 %v5334
  %6586 = vmatpush1.bf16.msra.mxu0 %v5333
  %6587 = vmatprep.subr.bf16.mxu0 %v5342
  %6588 = vmatpush1.bf16.msra.mxu0 %v5341
  %6589 = vmatprep.mubr.bf16.mxu0 %v2866
  %6590 = vmatmul.mubr.bf16.gmra.mrb[0].mxu0 %v2865
  %v6591 = vpop.f32.mrb[0].mxu0
  %v6592 = vadd.f32 %v6551, %v6591
  %v6593 = vpop.f32.mrb[0].mxu0
  %v6594 = vadd.f32 %v6553, %v6593
  %v6595 = vpop.f32.mrb[0].mxu0
  %v6596 = vpop.f32.mrb[0].mxu0
  %6597 = vdwg.mxu0
  %6598 = vmatprep.subr.bf16.mxu0 %v5350
  %6599 = vmatpush1.bf16.msra.mxu0 %v5349
  %6600 = vmatprep.subr.bf16.mxu0 %v5358
  %6601 = vmatpush1.bf16.msra.mxu0 %v5357
  %6602 = vmatprep.subr.bf16.mxu0 %v5366
  %6603 = vmatpush1.bf16.msra.mxu0 %v5365
  %6604 = vmatprep.subr.bf16.mxu0 %v5374
  %6605 = vmatpush1.bf16.msra.mxu0 %v5373
  %6606 = vmatprep.subr.bf16.mxu0 %v5382
  %6607 = vmatpush1.bf16.msra.mxu0 %v5381
  %6608 = vmatprep.subr.bf16.mxu0 %v5390
  %6609 = vmatpush1.bf16.msra.mxu0 %v5389
  %6610 = vmatprep.subr.bf16.mxu0 %v5398
  %6611 = vmatpush1.bf16.msra.mxu0 %v5397
  %6612 = vmatprep.subr.bf16.mxu0 %v5406
  %6613 = vmatpush1.bf16.msra.mxu0 %v5405
  %6614 = vmatprep.subr.bf16.mxu0 %v5414
  %6615 = vmatpush1.bf16.msra.mxu0 %v5413
  %6616 = vmatprep.subr.bf16.mxu0 %v5422
  %6617 = vmatpush1.bf16.msra.mxu0 %v5421
  %6618 = vmatprep.subr.bf16.mxu0 %v5430
  %6619 = vmatpush1.bf16.msra.mxu0 %v5429
  %6620 = vmatprep.subr.bf16.mxu0 %v5438
  %6621 = vmatpush1.bf16.msra.mxu0 %v5437
  %6622 = vmatprep.subr.bf16.mxu0 %v5446
  %6623 = vmatpush1.bf16.msra.mxu0 %v5445
  %6624 = vmatprep.subr.bf16.mxu0 %v5454
  %6625 = vmatpush1.bf16.msra.mxu0 %v5453
  %6626 = vmatprep.subr.bf16.mxu0 %v5462
  %6627 = vmatpush1.bf16.msra.mxu0 %v5461
  %6628 = vmatprep.subr.bf16.mxu0 %v5470
  %6629 = vmatpush1.bf16.msra.mxu0 %v5469
  %6630 = vmatprep.mubr.bf16.mxu0 %v2868
  %6631 = vmatmul.mubr.bf16.gmra.mrb[0].mxu0 %v2867
  %v6632 = vpop.f32.mrb[0].mxu0
  %v6633 = vadd.f32 %v6592, %v6632
  %v6634 = vpop.f32.mrb[0].mxu0
  %v6635 = vadd.f32 %v6594, %v6634
  %v6636 = vpop.f32.mrb[0].mxu0
  %v6637 = vpop.f32.mrb[0].mxu0
  %6638 = vdwg.mxu0
  %v6639 = vmax.f32 %v6141, 0.0
  %v6640 = vmax.f32 %v6143, 0.0
  %v6641 = vmax.f32 %v6305, 0.0
  %v6642 = vmax.f32 %v6307, 0.0
  %v6643 = vmax.f32 %v6469, 0.0
  %v6644 = vmax.f32 %v6471, 0.0
  %v6645 = vmax.f32 %v6633, 0.0
  %v6646 = vmax.f32 %v6635, 0.0
  %v6647 = vld [vmem:[%s7] sm:$0xff]
  %v6648 = vld [vmem:[%s7 + $0x8] sm:$0xff]
  %v6649 = vld [vmem:[%s7 + $0x10] sm:$0xff]
  %v6650 = vld [vmem:[%s7 + $0x18] sm:$0xff]
  %v6651 = vld [vmem:[%s7 + $0x20] sm:$0xff]
  %v6652 = vld [vmem:[%s7 + $0x28] sm:$0xff]
  %v6653 = vld [vmem:[%s7 + $0x30] sm:$0xff]
  %v6654 = vld [vmem:[%s7 + $0x38] sm:$0xff]
  %v6655 = vld [vmem:[%s7 + $0x40] sm:$0xff]
  %v6656 = vld [vmem:[%s7 + $0x48] sm:$0xff]
  %v6657 = vld [vmem:[%s7 + $0x50] sm:$0xff]
  %v6658 = vld [vmem:[%s7 + $0x58] sm:$0xff]
  %v6659 = vld [vmem:[%s7 + $0x60] sm:$0xff]
  %v6660 = vld [vmem:[%s7 + $0x68] sm:$0xff]
  %v6661 = vld [vmem:[%s7 + $0x70] sm:$0xff]
  %v6662 = vld [vmem:[%s7 + $0x78] sm:$0xff]
  %v6663 = vld [vmem:[%s7 + $0x80] sm:$0xff]
  %v6664 = vld [vmem:[%s7 + $0x88] sm:$0xff]
  %v6665 = vld [vmem:[%s7 + $0x90] sm:$0xff]
  %v6666 = vld [vmem:[%s7 + $0x98] sm:$0xff]
  %v6667 = vld [vmem:[%s7 + $0xa0] sm:$0xff]
  %v6668 = vld [vmem:[%s7 + $0xa8] sm:$0xff]
  %v6669 = vld [vmem:[%s7 + $0xb0] sm:$0xff]
  %v6670 = vld [vmem:[%s7 + $0xb8] sm:$0xff]
  %v6671 = vld [vmem:[%s7 + $0xc0] sm:$0xff]
  %v6672 = vld [vmem:[%s7 + $0xc8] sm:$0xff]
  %v6673 = vld [vmem:[%s7 + $0xd0] sm:$0xff]
  %v6674 = vld [vmem:[%s7 + $0xd8] sm:$0xff]
  %v6675 = vld [vmem:[%s7 + $0xe0] sm:$0xff]
  %v6676 = vld [vmem:[%s7 + $0xe8] sm:$0xff]
  %v6677 = vld [vmem:[%s7 + $0xf0] sm:$0xff]
  %v6678 = vld [vmem:[%s7 + $0xf8] sm:$0xff]
  %v6679 = vld [vmem:[%s7 + $0x100] sm:$0xff]
  %v6680 = vld [vmem:[%s7 + $0x108] sm:$0xff]
  %v6681 = vld [vmem:[%s7 + $0x110] sm:$0xff]
  %v6682 = vld [vmem:[%s7 + $0x118] sm:$0xff]
  %v6683 = vld [vmem:[%s7 + $0x120] sm:$0xff]
  %v6684 = vld [vmem:[%s7 + $0x128] sm:$0xff]
  %v6685 = vld [vmem:[%s7 + $0x130] sm:$0xff]
  %v6686 = vld [vmem:[%s7 + $0x138] sm:$0xff]
  %v6687 = vld [vmem:[%s7 + $0x140] sm:$0xff]
  %v6688 = vld [vmem:[%s7 + $0x148] sm:$0xff]
  %v6689 = vld [vmem:[%s7 + $0x150] sm:$0xff]
  %v6690 = vld [vmem:[%s7 + $0x158] sm:$0xff]
  %v6691 = vld [vmem:[%s7 + $0x160] sm:$0xff]
  %v6692 = vld [vmem:[%s7 + $0x168] sm:$0xff]
  %v6693 = vld [vmem:[%s7 + $0x170] sm:$0xff]
  %v6694 = vld [vmem:[%s7 + $0x178] sm:$0xff]
  %v6695 = vld [vmem:[%s7 + $0x180] sm:$0xff]
  %v6696 = vld [vmem:[%s7 + $0x188] sm:$0xff]
  %v6697 = vld [vmem:[%s7 + $0x190] sm:$0xff]
  %v6698 = vld [vmem:[%s7 + $0x198] sm:$0xff]
  %v6699 = vld [vmem:[%s7 + $0x1a0] sm:$0xff]
  %v6700 = vld [vmem:[%s7 + $0x1a8] sm:$0xff]
  %v6701 = vld [vmem:[%s7 + $0x1b0] sm:$0xff]
  %v6702 = vld [vmem:[%s7 + $0x1b8] sm:$0xff]
  %v6703 = vld [vmem:[%s7 + $0x1c0] sm:$0xff]
  %v6704 = vld [vmem:[%s7 + $0x1c8] sm:$0xff]
  %v6705 = vld [vmem:[%s7 + $0x1d0] sm:$0xff]
  %v6706 = vld [vmem:[%s7 + $0x1d8] sm:$0xff]
  %v6707 = vld [vmem:[%s7 + $0x1e0] sm:$0xff]
  %v6708 = vld [vmem:[%s7 + $0x1e8] sm:$0xff]
  %v6709 = vld [vmem:[%s7 + $0x1f0] sm:$0xff]
  %v6710 = vld [vmem:[%s7 + $0x1f8] sm:$0xff]
  %v6711 = vld [vmem:[%s7 + $0x200] sm:$0xff]
  %v6712 = vld [vmem:[%s7 + $0x208] sm:$0xff]
  %v6713 = vld [vmem:[%s7 + $0x210] sm:$0xff]
  %v6714 = vld [vmem:[%s7 + $0x218] sm:$0xff]
  %v6715 = vld [vmem:[%s7 + $0x220] sm:$0xff]
  %v6716 = vld [vmem:[%s7 + $0x228] sm:$0xff]
  %v6717 = vld [vmem:[%s7 + $0x230] sm:$0xff]
  %v6718 = vld [vmem:[%s7 + $0x238] sm:$0xff]
  %v6719 = vld [vmem:[%s7 + $0x240] sm:$0xff]
  %v6720 = vld [vmem:[%s7 + $0x248] sm:$0xff]
  %v6721 = vld [vmem:[%s7 + $0x250] sm:$0xff]
  %v6722 = vld [vmem:[%s7 + $0x258] sm:$0xff]
  %v6723 = vld [vmem:[%s7 + $0x260] sm:$0xff]
  %v6724 = vld [vmem:[%s7 + $0x268] sm:$0xff]
  %v6725 = vld [vmem:[%s7 + $0x270] sm:$0xff]
  %v6726 = vld [vmem:[%s7 + $0x278] sm:$0xff]
  %v6727 = vld [vmem:[%s7 + $0x280] sm:$0xff]
  %v6728 = vld [vmem:[%s7 + $0x288] sm:$0xff]
  %v6729 = vld [vmem:[%s7 + $0x290] sm:$0xff]
  %v6730 = vld [vmem:[%s7 + $0x298] sm:$0xff]
  %v6731 = vld [vmem:[%s7 + $0x2a0] sm:$0xff]
  %v6732 = vld [vmem:[%s7 + $0x2a8] sm:$0xff]
  %v6733 = vld [vmem:[%s7 + $0x2b0] sm:$0xff]
  %v6734 = vld [vmem:[%s7 + $0x2b8] sm:$0xff]
  %v6735 = vld [vmem:[%s7 + $0x2c0] sm:$0xff]
  %v6736 = vld [vmem:[%s7 + $0x2c8] sm:$0xff]
  %v6737 = vld [vmem:[%s7 + $0x2d0] sm:$0xff]
  %v6738 = vld [vmem:[%s7 + $0x2d8] sm:$0xff]
  %v6739 = vld [vmem:[%s7 + $0x2e0] sm:$0xff]
  %v6740 = vld [vmem:[%s7 + $0x2e8] sm:$0xff]
  %v6741 = vld [vmem:[%s7 + $0x2f0] sm:$0xff]
  %v6742 = vld [vmem:[%s7 + $0x2f8] sm:$0xff]
  %v6743 = vld [vmem:[%s7 + $0x300] sm:$0xff]
  %v6744 = vld [vmem:[%s7 + $0x308] sm:$0xff]
  %v6745 = vld [vmem:[%s7 + $0x310] sm:$0xff]
  %v6746 = vld [vmem:[%s7 + $0x318] sm:$0xff]
  %v6747 = vld [vmem:[%s7 + $0x320] sm:$0xff]
  %v6748 = vld [vmem:[%s7 + $0x328] sm:$0xff]
  %v6749 = vld [vmem:[%s7 + $0x330] sm:$0xff]
  %v6750 = vld [vmem:[%s7 + $0x338] sm:$0xff]
  %v6751 = vld [vmem:[%s7 + $0x340] sm:$0xff]
  %v6752 = vld [vmem:[%s7 + $0x348] sm:$0xff]
  %v6753 = vld [vmem:[%s7 + $0x350] sm:$0xff]
  %v6754 = vld [vmem:[%s7 + $0x358] sm:$0xff]
  %v6755 = vld [vmem:[%s7 + $0x360] sm:$0xff]
  %v6756 = vld [vmem:[%s7 + $0x368] sm:$0xff]
  %v6757 = vld [vmem:[%s7 + $0x370] sm:$0xff]
  %v6758 = vld [vmem:[%s7 + $0x378] sm:$0xff]
  %v6759 = vld [vmem:[%s7 + $0x380] sm:$0xff]
  %v6760 = vld [vmem:[%s7 + $0x388] sm:$0xff]
  %v6761 = vld [vmem:[%s7 + $0x390] sm:$0xff]
  %v6762 = vld [vmem:[%s7 + $0x398] sm:$0xff]
  %v6763 = vld [vmem:[%s7 + $0x3a0] sm:$0xff]
  %v6764 = vld [vmem:[%s7 + $0x3a8] sm:$0xff]
  %v6765 = vld [vmem:[%s7 + $0x3b0] sm:$0xff]
  %v6766 = vld [vmem:[%s7 + $0x3b8] sm:$0xff]
  %v6767 = vld [vmem:[%s7 + $0x3c0] sm:$0xff]
  %v6768 = vld [vmem:[%s7 + $0x3c8] sm:$0xff]
  %v6769 = vld [vmem:[%s7 + $0x3d0] sm:$0xff]
  %v6770 = vld [vmem:[%s7 + $0x3d8] sm:$0xff]
  %v6771 = vld [vmem:[%s7 + $0x3e0] sm:$0xff]
  %v6772 = vld [vmem:[%s7 + $0x3e8] sm:$0xff]
  %v6773 = vld [vmem:[%s7 + $0x3f0] sm:$0xff]
  %v6774 = vld [vmem:[%s7 + $0x3f8] sm:$0xff]
  %v6775 = vld [vmem:[%s9] sm:$0x1]
  %v6777 = vlaneseq
  %v6778 = vshrl.u32 %v6777, 7
  %v6779 = vsub.s32 0, %v6778
  %v6780 = vrot.slane %v6775, %v6779
  %6782 = vmatprep.subr.mxu0 0.0
  %6783 = vmatpush1.msra.mxu0 %v6647
  %6784 = vmatprep.subr.mxu0 0.0
  %6785 = vmatpush1.msra.mxu0 %v6648
  %6786 = vmatprep.subr.mxu0 0.0
  %6787 = vmatpush1.msra.mxu0 %v6649
  %6788 = vmatprep.subr.mxu0 0.0
  %6789 = vmatpush1.msra.mxu0 %v6650
  %6790 = vmatprep.subr.mxu0 0.0
  %6791 = vmatpush1.msra.mxu0 %v6651
  %6792 = vmatprep.subr.mxu0 0.0
  %6793 = vmatpush1.msra.mxu0 %v6652
  %6794 = vmatprep.subr.mxu0 0.0
  %6795 = vmatpush1.msra.mxu0 %v6653
  %6796 = vmatprep.subr.mxu0 0.0
  %6797 = vmatpush1.msra.mxu0 %v6654
  %6798 = vmatprep.subr.mxu0 0.0
  %6799 = vmatpush1.msra.mxu0 %v6655
  %6800 = vmatprep.subr.mxu0 0.0
  %6801 = vmatpush1.msra.mxu0 %v6656
  %6802 = vmatprep.subr.mxu0 0.0
  %6803 = vmatpush1.msra.mxu0 %v6657
  %6804 = vmatprep.subr.mxu0 0.0
  %6805 = vmatpush1.msra.mxu0 %v6658
  %6806 = vmatprep.subr.mxu0 0.0
  %6807 = vmatpush1.msra.mxu0 %v6659
  %6808 = vmatprep.subr.mxu0 0.0
  %6809 = vmatpush1.msra.mxu0 %v6660
  %6810 = vmatprep.subr.mxu0 0.0
  %6811 = vmatpush1.msra.mxu0 %v6661
  %6812 = vmatprep.subr.mxu0 0.0
  %6813 = vmatpush1.msra.mxu0 %v6662
  %6814 = vmatprep.subr.mxu0 0.0
  %6815 = vmatpush1.msra.mxu0 %v6663
  %6816 = vmatprep.subr.mxu0 0.0
  %6817 = vmatpush1.msra.mxu0 %v6664
  %6818 = vmatprep.subr.mxu0 0.0
  %6819 = vmatpush1.msra.mxu0 %v6665
  %6820 = vmatprep.subr.mxu0 0.0
  %6821 = vmatpush1.msra.mxu0 %v6666
  %6822 = vmatprep.subr.mxu0 0.0
  %6823 = vmatpush1.msra.mxu0 %v6667
  %6824 = vmatprep.subr.mxu0 0.0
  %6825 = vmatpush1.msra.mxu0 %v6668
  %6826 = vmatprep.subr.mxu0 0.0
  %6827 = vmatpush1.msra.mxu0 %v6669
  %6828 = vmatprep.subr.mxu0 0.0
  %6829 = vmatpush1.msra.mxu0 %v6670
  %6830 = vmatprep.subr.mxu0 0.0
  %6831 = vmatpush1.msra.mxu0 %v6671
  %6832 = vmatprep.subr.mxu0 0.0
  %6833 = vmatpush1.msra.mxu0 %v6672
  %6834 = vmatprep.subr.mxu0 0.0
  %6835 = vmatpush1.msra.mxu0 %v6673
  %6836 = vmatprep.subr.mxu0 0.0
  %6837 = vmatpush1.msra.mxu0 %v6674
  %6838 = vmatprep.subr.mxu0 0.0
  %6839 = vmatpush1.msra.mxu0 %v6675
  %6840 = vmatprep.subr.mxu0 0.0
  %6841 = vmatpush1.msra.mxu0 %v6676
  %6842 = vmatprep.subr.mxu0 0.0
  %6843 = vmatpush1.msra.mxu0 %v6677
  %6844 = vmatprep.subr.mxu0 0.0
  %6845 = vmatpush1.msra.mxu0 %v6678
  %6846 = vmatprep.mubr.f32.mxu0 %v6640
  %6847 = vmatmul.mubr.f32.gmra.mrb[0].mxu0 %v6639
  %v6848 = vpop.f32.mrb[0].mxu0
  %v6849 = vadd.f32 %v6780, %v6848
  %v6850 = vpop.f32.mrb[0].mxu0
  %6851 = vdwg.mxu0
  %6852 = vmatprep.subr.mxu0 0.0
  %6853 = vmatpush1.msra.mxu0 %v6679
  %6854 = vmatprep.subr.mxu0 0.0
  %6855 = vmatpush1.msra.mxu0 %v6680
  %6856 = vmatprep.subr.mxu0 0.0
  %6857 = vmatpush1.msra.mxu0 %v6681
  %6858 = vmatprep.subr.mxu0 0.0
  %6859 = vmatpush1.msra.mxu0 %v6682
  %6860 = vmatprep.subr.mxu0 0.0
  %6861 = vmatpush1.msra.mxu0 %v6683
  %6862 = vmatprep.subr.mxu0 0.0
  %6863 = vmatpush1.msra.mxu0 %v6684
  %6864 = vmatprep.subr.mxu0 0.0
  %6865 = vmatpush1.msra.mxu0 %v6685
  %6866 = vmatprep.subr.mxu0 0.0
  %6867 = vmatpush1.msra.mxu0 %v6686
  %6868 = vmatprep.subr.mxu0 0.0
  %6869 = vmatpush1.msra.mxu0 %v6687
  %6870 = vmatprep.subr.mxu0 0.0
  %6871 = vmatpush1.msra.mxu0 %v6688
  %6872 = vmatprep.subr.mxu0 0.0
  %6873 = vmatpush1.msra.mxu0 %v6689
  %6874 = vmatprep.subr.mxu0 0.0
  %6875 = vmatpush1.msra.mxu0 %v6690
  %6876 = vmatprep.subr.mxu0 0.0
  %6877 = vmatpush1.msra.mxu0 %v6691
  %6878 = vmatprep.subr.mxu0 0.0
  %6879 = vmatpush1.msra.mxu0 %v6692
  %6880 = vmatprep.subr.mxu0 0.0
  %6881 = vmatpush1.msra.mxu0 %v6693
  %6882 = vmatprep.subr.mxu0 0.0
  %6883 = vmatpush1.msra.mxu0 %v6694
  %6884 = vmatprep.subr.mxu0 0.0
  %6885 = vmatpush1.msra.mxu0 %v6695
  %6886 = vmatprep.subr.mxu0 0.0
  %6887 = vmatpush1.msra.mxu0 %v6696
  %6888 = vmatprep.subr.mxu0 0.0
  %6889 = vmatpush1.msra.mxu0 %v6697
  %6890 = vmatprep.subr.mxu0 0.0
  %6891 = vmatpush1.msra.mxu0 %v6698
  %6892 = vmatprep.subr.mxu0 0.0
  %6893 = vmatpush1.msra.mxu0 %v6699
  %6894 = vmatprep.subr.mxu0 0.0
  %6895 = vmatpush1.msra.mxu0 %v6700
  %6896 = vmatprep.subr.mxu0 0.0
  %6897 = vmatpush1.msra.mxu0 %v6701
  %6898 = vmatprep.subr.mxu0 0.0
  %6899 = vmatpush1.msra.mxu0 %v6702
  %6900 = vmatprep.subr.mxu0 0.0
  %6901 = vmatpush1.msra.mxu0 %v6703
  %6902 = vmatprep.subr.mxu0 0.0
  %6903 = vmatpush1.msra.mxu0 %v6704
  %6904 = vmatprep.subr.mxu0 0.0
  %6905 = vmatpush1.msra.mxu0 %v6705
  %6906 = vmatprep.subr.mxu0 0.0
  %6907 = vmatpush1.msra.mxu0 %v6706
  %6908 = vmatprep.subr.mxu0 0.0
  %6909 = vmatpush1.msra.mxu0 %v6707
  %6910 = vmatprep.subr.mxu0 0.0
  %6911 = vmatpush1.msra.mxu0 %v6708
  %6912 = vmatprep.subr.mxu0 0.0
  %6913 = vmatpush1.msra.mxu0 %v6709
  %6914 = vmatprep.subr.mxu0 0.0
  %6915 = vmatpush1.msra.mxu0 %v6710
  %6916 = vmatprep.mubr.f32.mxu0 %v6642
  %6917 = vmatmul.mubr.f32.gmra.mrb[0].mxu0 %v6641
  %v6918 = vpop.f32.mrb[0].mxu0
  %v6919 = vadd.f32 %v6849, %v6918
  %v6920 = vpop.f32.mrb[0].mxu0
  %6921 = vdwg.mxu0
  %6922 = vmatprep.subr.mxu0 0.0
  %6923 = vmatpush1.msra.mxu0 %v6711
  %6924 = vmatprep.subr.mxu0 0.0
  %6925 = vmatpush1.msra.mxu0 %v6712
  %6926 = vmatprep.subr.mxu0 0.0
  %6927 = vmatpush1.msra.mxu0 %v6713
  %6928 = vmatprep.subr.mxu0 0.0
  %6929 = vmatpush1.msra.mxu0 %v6714
  %6930 = vmatprep.subr.mxu0 0.0
  %6931 = vmatpush1.msra.mxu0 %v6715
  %6932 = vmatprep.subr.mxu0 0.0
  %6933 = vmatpush1.msra.mxu0 %v6716
  %6934 = vmatprep.subr.mxu0 0.0
  %6935 = vmatpush1.msra.mxu0 %v6717
  %6936 = vmatprep.subr.mxu0 0.0
  %6937 = vmatpush1.msra.mxu0 %v6718
  %6938 = vmatprep.subr.mxu0 0.0
  %6939 = vmatpush1.msra.mxu0 %v6719
  %6940 = vmatprep.subr.mxu0 0.0
  %6941 = vmatpush1.msra.mxu0 %v6720
  %6942 = vmatprep.subr.mxu0 0.0
  %6943 = vmatpush1.msra.mxu0 %v6721
  %6944 = vmatprep.subr.mxu0 0.0
  %6945 = vmatpush1.msra.mxu0 %v6722
  %6946 = vmatprep.subr.mxu0 0.0
  %6947 = vmatpush1.msra.mxu0 %v6723
  %6948 = vmatprep.subr.mxu0 0.0
  %6949 = vmatpush1.msra.mxu0 %v6724
  %6950 = vmatprep.subr.mxu0 0.0
  %6951 = vmatpush1.msra.mxu0 %v6725
  %6952 = vmatprep.subr.mxu0 0.0
  %6953 = vmatpush1.msra.mxu0 %v6726
  %6954 = vmatprep.subr.mxu0 0.0
  %6955 = vmatpush1.msra.mxu0 %v6727
  %6956 = vmatprep.subr.mxu0 0.0
  %6957 = vmatpush1.msra.mxu0 %v6728
  %6958 = vmatprep.subr.mxu0 0.0
  %6959 = vmatpush1.msra.mxu0 %v6729
  %6960 = vmatprep.subr.mxu0 0.0
  %6961 = vmatpush1.msra.mxu0 %v6730
  %6962 = vmatprep.subr.mxu0 0.0
  %6963 = vmatpush1.msra.mxu0 %v6731
  %6964 = vmatprep.subr.mxu0 0.0
  %6965 = vmatpush1.msra.mxu0 %v6732
  %6966 = vmatprep.subr.mxu0 0.0
  %6967 = vmatpush1.msra.mxu0 %v6733
  %6968 = vmatprep.subr.mxu0 0.0
  %6969 = vmatpush1.msra.mxu0 %v6734
  %6970 = vmatprep.subr.mxu0 0.0
  %6971 = vmatpush1.msra.mxu0 %v6735
  %6972 = vmatprep.subr.mxu0 0.0
  %6973 = vmatpush1.msra.mxu0 %v6736
  %6974 = vmatprep.subr.mxu0 0.0
  %6975 = vmatpush1.msra.mxu0 %v6737
  %6976 = vmatprep.subr.mxu0 0.0
  %6977 = vmatpush1.msra.mxu0 %v6738
  %6978 = vmatprep.subr.mxu0 0.0
  %6979 = vmatpush1.msra.mxu0 %v6739
  %6980 = vmatprep.subr.mxu0 0.0
  %6981 = vmatpush1.msra.mxu0 %v6740
  %6982 = vmatprep.subr.mxu0 0.0
  %6983 = vmatpush1.msra.mxu0 %v6741
  %6984 = vmatprep.subr.mxu0 0.0
  %6985 = vmatpush1.msra.mxu0 %v6742
  %6986 = vmatprep.mubr.f32.mxu0 %v6644
  %6987 = vmatmul.mubr.f32.gmra.mrb[0].mxu0 %v6643
  %v6988 = vpop.f32.mrb[0].mxu0
  %v6989 = vadd.f32 %v6919, %v6988
  %v6990 = vpop.f32.mrb[0].mxu0
  %6991 = vdwg.mxu0
  %6992 = vmatprep.subr.mxu0 0.0
  %6993 = vmatpush1.msra.mxu0 %v6743
  %6994 = vmatprep.subr.mxu0 0.0
  %6995 = vmatpush1.msra.mxu0 %v6744
  %6996 = vmatprep.subr.mxu0 0.0
  %6997 = vmatpush1.msra.mxu0 %v6745
  %6998 = vmatprep.subr.mxu0 0.0
  %6999 = vmatpush1.msra.mxu0 %v6746
  %7000 = vmatprep.subr.mxu0 0.0
  %7001 = vmatpush1.msra.mxu0 %v6747
  %7002 = vmatprep.subr.mxu0 0.0
  %7003 = vmatpush1.msra.mxu0 %v6748
  %7004 = vmatprep.subr.mxu0 0.0
  %7005 = vmatpush1.msra.mxu0 %v6749
  %7006 = vmatprep.subr.mxu0 0.0
  %7007 = vmatpush1.msra.mxu0 %v6750
  %7008 = vmatprep.subr.mxu0 0.0
  %7009 = vmatpush1.msra.mxu0 %v6751
  %7010 = vmatprep.subr.mxu0 0.0
  %7011 = vmatpush1.msra.mxu0 %v6752
  %7012 = vmatprep.subr.mxu0 0.0
  %7013 = vmatpush1.msra.mxu0 %v6753
  %7014 = vmatprep.subr.mxu0 0.0
  %7015 = vmatpush1.msra.mxu0 %v6754
  %7016 = vmatprep.subr.mxu0 0.0
  %7017 = vmatpush1.msra.mxu0 %v6755
  %7018 = vmatprep.subr.mxu0 0.0
  %7019 = vmatpush1.msra.mxu0 %v6756
  %7020 = vmatprep.subr.mxu0 0.0
  %7021 = vmatpush1.msra.mxu0 %v6757
  %7022 = vmatprep.subr.mxu0 0.0
  %7023 = vmatpush1.msra.mxu0 %v6758
  %7024 = vmatprep.subr.mxu0 0.0
  %7025 = vmatpush1.msra.mxu0 %v6759
  %7026 = vmatprep.subr.mxu0 0.0
  %7027 = vmatpush1.msra.mxu0 %v6760
  %7028 = vmatprep.subr.mxu0 0.0
  %7029 = vmatpush1.msra.mxu0 %v6761
  %7030 = vmatprep.subr.mxu0 0.0
  %7031 = vmatpush1.msra.mxu0 %v6762
  %7032 = vmatprep.subr.mxu0 0.0
  %7033 = vmatpush1.msra.mxu0 %v6763
  %7034 = vmatprep.subr.mxu0 0.0
  %7035 = vmatpush1.msra.mxu0 %v6764
  %7036 = vmatprep.subr.mxu0 0.0
  %7037 = vmatpush1.msra.mxu0 %v6765
  %7038 = vmatprep.subr.mxu0 0.0
  %7039 = vmatpush1.msra.mxu0 %v6766
  %7040 = vmatprep.subr.mxu0 0.0
  %7041 = vmatpush1.msra.mxu0 %v6767
  %7042 = vmatprep.subr.mxu0 0.0
  %7043 = vmatpush1.msra.mxu0 %v6768
  %7044 = vmatprep.subr.mxu0 0.0
  %7045 = vmatpush1.msra.mxu0 %v6769
  %7046 = vmatprep.subr.mxu0 0.0
  %7047 = vmatpush1.msra.mxu0 %v6770
  %7048 = vmatprep.subr.mxu0 0.0
  %7049 = vmatpush1.msra.mxu0 %v6771
  %7050 = vmatprep.subr.mxu0 0.0
  %7051 = vmatpush1.msra.mxu0 %v6772
  %7052 = vmatprep.subr.mxu0 0.0
  %7053 = vmatpush1.msra.mxu0 %v6773
  %7054 = vmatprep.subr.mxu0 0.0
  %7055 = vmatpush1.msra.mxu0 %v6774
  %7056 = vmatprep.mubr.f32.mxu0 %v6646
  %7057 = vmatmul.mubr.f32.gmra.mrb[0].mxu0 %v6645
  %v7058 = vpop.f32.mrb[0].mxu0
  %v7059 = vadd.f32 %v6989, %v7058
  %v7060 = vpop.f32.mrb[0].mxu0
  %7061 = vdwg.mxu0
  %v7062 = vld [vmem:[%s10] sm:$0xff]
  %v7063 = vld [vmem:[%s8] sm:$0xff]
  %v7064 = vld [vmem:[%s8 + $0x8] sm:$0xff]
  %v7065 = vld [vmem:[%s8 + $0x10] sm:$0xff]
  %v7066 = vld [vmem:[%s8 + $0x18] sm:$0xff]
  %v7067 = vld [vmem:[%s8 + $0x20] sm:$0xff]
  %v7068 = vld [vmem:[%s8 + $0x28] sm:$0xff]
  %v7069 = vld [vmem:[%s8 + $0x30] sm:$0xff]
  %v7070 = vld [vmem:[%s8 + $0x38] sm:$0xff]
  %v7071 = vld [vmem:[%s8 + $0x40] sm:$0xff]
  %v7072 = vld [vmem:[%s8 + $0x48] sm:$0xff]
  %v7073 = vld [vmem:[%s8 + $0x50] sm:$0xff]
  %v7074 = vld [vmem:[%s8 + $0x58] sm:$0xff]
  %v7075 = vld [vmem:[%s8 + $0x60] sm:$0xff]
  %v7076 = vld [vmem:[%s8 + $0x68] sm:$0xff]
  %v7077 = vld [vmem:[%s8 + $0x70] sm:$0xff]
  %v7078 = vld [vmem:[%s8 + $0x78] sm:$0xff]
  %7079 = vmatprep.subr.mxu0 0.0
  %7080 = vmatpush1.msra.mxu0 %v7063
  %7081 = vmatprep.subr.mxu0 0.0
  %7082 = vmatpush1.msra.mxu0 %v7064
  %7083 = vmatprep.subr.mxu0 0.0
  %7084 = vmatpush1.msra.mxu0 %v7065
  %7085 = vmatprep.subr.mxu0 0.0
  %7086 = vmatpush1.msra.mxu0 %v7066
  %7087 = vmatprep.subr.mxu0 0.0
  %7088 = vmatpush1.msra.mxu0 %v7067
  %7089 = vmatprep.subr.mxu0 0.0
  %7090 = vmatpush1.msra.mxu0 %v7068
  %7091 = vmatprep.subr.mxu0 0.0
  %7092 = vmatpush1.msra.mxu0 %v7069
  %7093 = vmatprep.subr.mxu0 0.0
  %7094 = vmatpush1.msra.mxu0 %v7070
  %7095 = vmatprep.subr.mxu0 0.0
  %7096 = vmatpush1.msra.mxu0 %v7071
  %7097 = vmatprep.subr.mxu0 0.0
  %7098 = vmatpush1.msra.mxu0 %v7072
  %7099 = vmatprep.subr.mxu0 0.0
  %7100 = vmatpush1.msra.mxu0 %v7073
  %7101 = vmatprep.subr.mxu0 0.0
  %7102 = vmatpush1.msra.mxu0 %v7074
  %7103 = vmatprep.subr.mxu0 0.0
  %7104 = vmatpush1.msra.mxu0 %v7075
  %7105 = vmatprep.subr.mxu0 0.0
  %7106 = vmatpush1.msra.mxu0 %v7076
  %7107 = vmatprep.subr.mxu0 0.0
  %7108 = vmatpush1.msra.mxu0 %v7077
  %7109 = vmatprep.subr.mxu0 0.0
  %7110 = vmatpush1.msra.mxu0 %v7078
  %7111 = vmatprep.subr.mxu0 0.0
  %7112 = vmatpush1.msra.mxu0 0.0
  %7113 = vmatprep.subr.mxu0 0.0
  %7114 = vmatpush1.msra.mxu0 0.0
  %7115 = vmatprep.subr.mxu0 0.0
  %7116 = vmatpush1.msra.mxu0 0.0
  %7117 = vmatprep.subr.mxu0 0.0
  %7118 = vmatpush1.msra.mxu0 0.0
  %7119 = vmatprep.subr.mxu0 0.0
  %7120 = vmatpush1.msra.mxu0 0.0
  %7121 = vmatprep.subr.mxu0 0.0
  %7122 = vmatpush1.msra.mxu0 0.0
  %7123 = vmatprep.subr.mxu0 0.0
  %7124 = vmatpush1.msra.mxu0 0.0
  %7125 = vmatprep.subr.mxu0 0.0
  %7126 = vmatpush1.msra.mxu0 0.0
  %7127 = vmatprep.subr.mxu0 0.0
  %7128 = vmatpush1.msra.mxu0 0.0
  %7129 = vmatprep.subr.mxu0 0.0
  %7130 = vmatpush1.msra.mxu0 0.0
  %7131 = vmatprep.subr.mxu0 0.0
  %7132 = vmatpush1.msra.mxu0 0.0
  %7133 = vmatprep.subr.mxu0 0.0
  %7134 = vmatpush1.msra.mxu0 0.0
  %7135 = vmatprep.subr.mxu0 0.0
  %7136 = vmatpush1.msra.mxu0 0.0
  %7137 = vmatprep.subr.mxu0 0.0
  %7138 = vmatpush1.msra.mxu0 0.0
  %7139 = vmatprep.subr.mxu0 0.0
  %7140 = vmatpush1.msra.mxu0 0.0
  %7141 = vmatprep.subr.mxu0 0.0
  %7142 = vmatpush1.msra.mxu0 0.0
  %7143 = vmatprep.mubr.f32.mxu0 0.0
  %7144 = vmatmul.mubr.f32.gmra.mrb[0].mxu0 %v7062
  %v7145 = vpop.f32.mrb[0].mxu0
  %v7146 = vadd.f32 0.0, %v7145
  %v7147 = vpop.f32.mrb[0].mxu0
  %7148 = vdwg.mxu0
  %v7149 = vadd.f32 %v7059, %v7146
  %v7150 = vadd.f32 %v7062, %v7149
  %7151 = vmatprep.subr.mxu0 0.0
  %7152 = vmatpush1.msra.mxu0 %v7063
  %7153 = vmatprep.subr.mxu0 0.0
  %7154 = vmatpush1.msra.mxu0 %v7064
  %7155 = vmatprep.subr.mxu0 0.0
  %7156 = vmatpush1.msra.mxu0 %v7065
  %7157 = vmatprep.subr.mxu0 0.0
  %7158 = vmatpush1.msra.mxu0 %v7066
  %7159 = vmatprep.subr.mxu0 0.0
  %7160 = vmatpush1.msra.mxu0 %v7067
  %7161 = vmatprep.subr.mxu0 0.0
  %7162 = vmatpush1.msra.mxu0 %v7068
  %7163 = vmatprep.subr.mxu0 0.0
  %7164 = vmatpush1.msra.mxu0 %v7069
  %7165 = vmatprep.subr.mxu0 0.0
  %7166 = vmatpush1.msra.mxu0 %v7070
  %7167 = vmatprep.subr.mxu0 0.0
  %7168 = vmatpush1.msra.mxu0 %v7071
  %7169 = vmatprep.subr.mxu0 0.0
  %7170 = vmatpush1.msra.mxu0 %v7072
  %7171 = vmatprep.subr.mxu0 0.0
  %7172 = vmatpush1.msra.mxu0 %v7073
  %7173 = vmatprep.subr.mxu0 0.0
  %7174 = vmatpush1.msra.mxu0 %v7074
  %7175 = vmatprep.subr.mxu0 0.0
  %7176 = vmatpush1.msra.mxu0 %v7075
  %7177 = vmatprep.subr.mxu0 0.0
  %7178 = vmatpush1.msra.mxu0 %v7076
  %7179 = vmatprep.subr.mxu0 0.0
  %7180 = vmatpush1.msra.mxu0 %v7077
  %7181 = vmatprep.subr.mxu0 0.0
  %7182 = vmatpush1.msra.mxu0 %v7078
  %7183 = vmatprep.subr.mxu0 0.0
  %7184 = vmatpush1.msra.mxu0 0.0
  %7185 = vmatprep.subr.mxu0 0.0
  %7186 = vmatpush1.msra.mxu0 0.0
  %7187 = vmatprep.subr.mxu0 0.0
  %7188 = vmatpush1.msra.mxu0 0.0
  %7189 = vmatprep.subr.mxu0 0.0
  %7190 = vmatpush1.msra.mxu0 0.0
  %7191 = vmatprep.subr.mxu0 0.0
  %7192 = vmatpush1.msra.mxu0 0.0
  %7193 = vmatprep.subr.mxu0 0.0
  %7194 = vmatpush1.msra.mxu0 0.0
  %7195 = vmatprep.subr.mxu0 0.0
  %7196 = vmatpush1.msra.mxu0 0.0
  %7197 = vmatprep.subr.mxu0 0.0
  %7198 = vmatpush1.msra.mxu0 0.0
  %7199 = vmatprep.subr.mxu0 0.0
  %7200 = vmatpush1.msra.mxu0 0.0
  %7201 = vmatprep.subr.mxu0 0.0
  %7202 = vmatpush1.msra.mxu0 0.0
  %7203 = vmatprep.subr.mxu0 0.0
  %7204 = vmatpush1.msra.mxu0 0.0
  %7205 = vmatprep.subr.mxu0 0.0
  %7206 = vmatpush1.msra.mxu0 0.0
  %7207 = vmatprep.subr.mxu0 0.0
  %7208 = vmatpush1.msra.mxu0 0.0
  %7209 = vmatprep.subr.mxu0 0.0
  %7210 = vmatpush1.msra.mxu0 0.0
  %7211 = vmatprep.subr.mxu0 0.0
  %7212 = vmatpush1.msra.mxu0 0.0
  %7213 = vmatprep.subr.mxu0 0.0
  %7214 = vmatpush1.msra.mxu0 0.0
  %7215 = vmatprep.mubr.f32.mxu0 0.0
  %7216 = vmatmul.mubr.f32.gmra.mrb[0].mxu0 %v7150
  %v7217 = vpop.f32.mrb[0].mxu0
  %v7218 = vadd.f32 0.0, %v7217
  %v7219 = vpop.f32.mrb[0].mxu0
  %7220 = vdwg.mxu0
  %v7221 = vadd.f32 %v7059, %v7218
  %v7222 = vadd.f32 %v7150, %v7221
  %7223 = vmatprep.subr.mxu0 0.0
  %7224 = vmatpush1.msra.mxu0 %v7063
  %7225 = vmatprep.subr.mxu0 0.0
  %7226 = vmatpush1.msra.mxu0 %v7064
  %7227 = vmatprep.subr.mxu0 0.0
  %7228 = vmatpush1.msra.mxu0 %v7065
  %7229 = vmatprep.subr.mxu0 0.0
  %7230 = vmatpush1.msra.mxu0 %v7066
  %7231 = vmatprep.subr.mxu0 0.0
  %7232 = vmatpush1.msra.mxu0 %v7067
  %7233 = vmatprep.subr.mxu0 0.0
  %7234 = vmatpush1.msra.mxu0 %v7068
  %7235 = vmatprep.subr.mxu0 0.0
  %7236 = vmatpush1.msra.mxu0 %v7069
  %7237 = vmatprep.subr.mxu0 0.0
  %7238 = vmatpush1.msra.mxu0 %v7070
  %7239 = vmatprep.subr.mxu0 0.0
  %7240 = vmatpush1.msra.mxu0 %v7071
  %7241 = vmatprep.subr.mxu0 0.0
  %7242 = vmatpush1.msra.mxu0 %v7072
  %7243 = vmatprep.subr.mxu0 0.0
  %7244 = vmatpush1.msra.mxu0 %v7073
  %7245 = vmatprep.subr.mxu0 0.0
  %7246 = vmatpush1.msra.mxu0 %v7074
  %7247 = vmatprep.subr.mxu0 0.0
  %7248 = vmatpush1.msra.mxu0 %v7075
  %7249 = vmatprep.subr.mxu0 0.0
  %7250 = vmatpush1.msra.mxu0 %v7076
  %7251 = vmatprep.subr.mxu0 0.0
  %7252 = vmatpush1.msra.mxu0 %v7077
  %7253 = vmatprep.subr.mxu0 0.0
  %7254 = vmatpush1.msra.mxu0 %v7078
  %7255 = vmatprep.subr.mxu0 0.0
  %7256 = vmatpush1.msra.mxu0 0.0
  %7257 = vmatprep.subr.mxu0 0.0
  %7258 = vmatpush1.msra.mxu0 0.0
  %7259 = vmatprep.subr.mxu0 0.0
  %7260 = vmatpush1.msra.mxu0 0.0
  %7261 = vmatprep.subr.mxu0 0.0
  %7262 = vmatpush1.msra.mxu0 0.0
  %7263 = vmatprep.subr.mxu0 0.0
  %7264 = vmatpush1.msra.mxu0 0.0
  %7265 = vmatprep.subr.mxu0 0.0
  %7266 = vmatpush1.msra.mxu0 0.0
  %7267 = vmatprep.subr.mxu0 0.0
  %7268 = vmatpush1.msra.mxu0 0.0
  %7269 = vmatprep.subr.mxu0 0.0
  %7270 = vmatpush1.msra.mxu0 0.0
  %7271 = vmatprep.subr.mxu0 0.0
  %7272 = vmatpush1.msra.mxu0 0.0
  %7273 = vmatprep.subr.mxu0 0.0
  %7274 = vmatpush1.msra.mxu0 0.0
  %7275 = vmatprep.subr.mxu0 0.0
  %7276 = vmatpush1.msra.mxu0 0.0
  %7277 = vmatprep.subr.mxu0 0.0
  %7278 = vmatpush1.msra.mxu0 0.0
  %7279 = vmatprep.subr.mxu0 0.0
  %7280 = vmatpush1.msra.mxu0 0.0
  %7281 = vmatprep.subr.mxu0 0.0
  %7282 = vmatpush1.msra.mxu0 0.0
  %7283 = vmatprep.subr.mxu0 0.0
  %7284 = vmatpush1.msra.mxu0 0.0
  %7285 = vmatprep.subr.mxu0 0.0
  %7286 = vmatpush1.msra.mxu0 0.0
  %7287 = vmatprep.mubr.f32.mxu0 0.0
  %7288 = vmatmul.mubr.f32.gmra.mrb[0].mxu0 %v7222
  %v7289 = vpop.f32.mrb[0].mxu0
  %v7290 = vadd.f32 0.0, %v7289
  %v7291 = vpop.f32.mrb[0].mxu0
  %7292 = vdwg.mxu0
  %v7293 = vadd.f32 %v7059, %v7290
  %v7294 = vadd.f32 %v7222, %v7293
  %7295 = vst [vmem:[%s11] sm:$0xff] %v7294
  // Predicated region
  $region46: #{h3dw_forward.1} parent=0 // pred_check
    _
  $region47: #{h3dw_forward.1} parent=0 // pred_check_branch
    %7297 = sbr.rel (0) target = $region49
  $region48: #{h3dw_forward.1} parent=0 // pred_region
    _
  $region49: #{h3dw_forward.1} parent=0 // pred_fallthru
    _
  // Predicated region
  $region50: #{h3dw_forward.1} parent=0 // pred_check
    _
  $region51: #{h3dw_forward.1} parent=0 // pred_check_branch
    %7299 = sbr.rel (0) target = $region53
  $region52: #{h3dw_forward.1} parent=0 // pred_region
    _
  $region53: #{h3dw_forward.1} parent=0 // pred_fallthru
    _

</llo_original>
